<compile_context>
chip_gen: v5e
topology: v5e:2x2
jax: 0.10.0
libtpu: 0.0.40
codegen_flags: <defaults>
</compile_context>

<pallas_src>
import functools

import jax
import jax.numpy as jnp
from jax import lax
from jax.experimental import pallas as pl
from jax.experimental.pallas import tpu as pltpu


_PAD_MODE = {"reflect": "reflect", "replicate": "edge", "zero": "constant"}


# ---------------------------------------------------------------------------
# Fused kernel: 3x3 conv (implicit im2col) + InstanceNorm + AdaIN (+ReLU/+residual)
# One grid step = one batch sample.  Row space = flattened padded spatial rows
# (h * Wp + w); the last 2 columns of each Wp-group are throwaway lanes of the
# implicit im2col (masked out of the stats, sliced away in the wrapper).
# ---------------------------------------------------------------------------
def _make_fused_kernel(H, W, eps, relu, has_residual):
    Wp = W + 2
    Rows = H * Wp
    inv_count = 1.0 / float(H * W)

    def kernel(*refs):
        if has_residual:
            xp_ref, w_ref, s_ref, t_ref, m_ref, r_ref, o_ref, acc_ref = refs
        else:
            xp_ref, w_ref, s_ref, t_ref, m_ref, o_ref, acc_ref = refs

        mxu_dtype = w_ref.dtype  # bf16 (default) or f32

        # ---- 3x3 conv as 9 shifted row-slab MXU matmuls (implicit im2col) ----
        # Conv bias is omitted on purpose: the following mean subtraction cancels
        # a per-channel bias exactly.
        acc_ref[...] = jnp.zeros_like(acc_ref)
        for dy in range(3):
            for dx in range(3):
                off = dy * Wp + dx
                a = xp_ref[off:off + Rows, :].astype(mxu_dtype)
                acc_ref[...] += jnp.dot(a, w_ref[dy * 3 + dx],
                                        preferred_element_type=jnp.float32)
        y = acc_ref[...]                                      # (Rows, Co) f32

        # ---- InstanceNorm stats over the H*W valid rows (single pass, masked) ----
        # The masked row-reductions are expressed as skinny MXU matmuls so the mask
        # can be stored lane-dense as (1, Rows).
        mrow = m_ref[...]                                     # (1, Rows): 1.0 on valid rows
        mean = jnp.dot(mrow, y, preferred_element_type=jnp.float32) * inv_count
        ex2 = jnp.dot(mrow, y * y, preferred_element_type=jnp.float32) * inv_count
        inv_std = lax.rsqrt(ex2 - mean * mean + eps)          # (1, Co)

        # ---- fold InstanceNorm scale + AdaIN scale/shift into one per-channel FMA ----
        m = inv_std * s_ref[...].astype(jnp.float32)          # (1, Co)
        c = t_ref[...].astype(jnp.float32) - mean * m         # (1, Co)
        z = y * m + c
        if relu:
            z = jnp.maximum(z, 0.0)
        if has_residual:
            # residual = original x, read from the already-padded conv1 input slab
            # at offset (+1 row, +1 col) = +Wp+1 flattened rows.
            z = z + r_ref[Wp + 1:Wp + 1 + Rows, :].astype(jnp.float32)
        o_ref[...] = z.astype(o_ref.dtype)

    return kernel


def _fused_conv3x3_in_adain(xp_flat, w_taps, scale, shift, mask_row, residual_flat,
                            *, H, W, eps, relu, out_dtype):
    """xp_flat: (N, (H+2)*(W+2)+2, Cin) padded+flattened sample slabs (f32).
       w_taps: (9, Cin, Cout) conv weights (bf16/f32, VMEM-resident).
       scale/shift: (N, Cout) fused AdaIN params.  mask_row: (1, H*(W+2)).
       residual_flat: optional (N, (H+2)*(W+2)+2, Cout) slab (reuses conv1's input).
       Returns (N, H*(W+2), Cout); the 2 throwaway cols/row-group are sliced off
       by the caller (fuses into the adjacent XLA pad / transpose)."""
    N, R0, C = xp_flat.shape
    Co = w_taps.shape[-1]
    Wp = W + 2
    Rows = H * Wp
    assert w_taps.shape == (9, C, Co) and R0 == (H + 2) * Wp + 2
    assert mask_row.shape == (1, Rows)

    scale3 = scale.reshape(N, 1, Co)
    shift3 = shift.reshape(N, 1, Co)

    in_specs = [
        pl.BlockSpec((None, R0, C), lambda n: (n, 0, 0)),     # padded sample slab
        pl.BlockSpec((9, C, Co), lambda n: (0, 0, 0)),        # weights: fetched once, resident
        pl.BlockSpec((None, 1, Co), lambda n: (n, 0, 0)),     # AdaIN scale (per sample)
        pl.BlockSpec((None, 1, Co), lambda n: (n, 0, 0)),     # AdaIN shift (per sample)
        pl.BlockSpec((1, Rows), lambda n: (0, 0)),            # valid-row mask (lane-dense)
    ]
    args = [xp_flat, w_taps, scale3, shift3, mask_row]
    if residual_flat is not None:
        assert residual_flat.shape == (N, R0, Co)
        in_specs.append(pl.BlockSpec((None, R0, Co), lambda n: (n, 0, 0)))
        args.append(residual_flat)

    # Generous per-sample VMEM budget: double-buffered slabs/out + resident weights + acc.
    # Clamped to [32 MiB, 56 MiB] so it is safe on v5e/v6e (128 MiB) and v7x (64 MiB).
    est = (2 * R0 * C * xp_flat.dtype.itemsize
           * (2 if residual_flat is not None else 1)
           + 2 * 9 * C * Co * w_taps.dtype.itemsize
           + 2 * Rows * Co * jnp.dtype(out_dtype).itemsize
           + Rows * Co * 4 + (1 << 20))
    vmem_limit = int(min(max(2 * est, 32 << 20), 56 << 20))

    return pl.pallas_call(
        _make_fused_kernel(H, W, float(eps), relu, residual_flat is not None),
        out_shape=jax.ShapeDtypeStruct((N, Rows, Co), out_dtype),
        grid_spec=pltpu.PrefetchScalarGridSpec(
            num_scalar_prefetch=0,
            grid=(N,),
            in_specs=in_specs,
            out_specs=pl.BlockSpec((None, Rows, Co), lambda n: (n, 0, 0)),
            scratch_shapes=[pltpu.VMEM((Rows, Co), jnp.float32)],
        ),
        compiler_params=pltpu.CompilerParams(
            dimension_semantics=("parallel",),   # >=2 samples -> both v7x TCs busy
            vmem_limit_bytes=vmem_limit),
    )(*args)


# ---------------------------------------------------------------------------
# Block wrapper (NCHW in / NCHW out, matching the PyTorch module)
# ---------------------------------------------------------------------------
def _pad_flatten(x_nhwc, mode):
    """Pad spatial by 1 (reflect/replicate/zero), flatten to rows, add 2 slack rows
    so the largest-offset tap slab stays in bounds."""
    N, H, W, C = x_nhwc.shape
    xp = jnp.pad(x_nhwc, ((0, 0), (1, 1), (1, 1), (0, 0)), mode=mode)
    xf = xp.reshape(N, (H + 2) * (W + 2), C)
    return jnp.pad(xf, ((0, 0), (0, 2), (0, 0)))


def resnet_block_adain(x, latent, params, *, padding_type="reflect", eps=1e-8,
                       use_bf16_mxu=True):
    N, C, H, W = x.shape
    Wp = W + 2
    Rows = H * Wp
    mode = _PAD_MODE[padding_type]
    mxu_dtype = jnp.bfloat16 if use_bf16_mxu else jnp.float32

    # Tiny style linear in plain jnp (a Pallas launch is pure overhead at (N,L)@(L,2C));
    # fold ApplyStyle's "+1.0" into the linear bias.
    def style_params(lw, lb):
        lb = lb.at[:C].add(1.0)
        st = jnp.dot(latent, lw.T, precision=lax.Precision.HIGHEST) + lb
        return st[:, :C].astype(jnp.float32), st[:, C:].astype(jnp.float32)

    s1, t1 = style_params(params["style1_w"], params["style1_b"])
    s2, t2 = style_params(params["style2_w"], params["style2_b"])

    # Conv weights -> (tap, Cin, Cout) in the MXU dtype.
    # NOTE: conv biases are intentionally not applied in the kernel -- InstanceNorm's
    # mean subtraction cancels a per-channel bias exactly (validated vs the reference).
    def conv_w(w):
        return jnp.transpose(w, (2, 3, 1, 0)).reshape(9, C, C).astype(mxu_dtype)

    w1, w2 = conv_w(params["conv1_w"]), conv_w(params["conv2_w"])

    # Valid-row mask for the flattened padded row space (1.0 where w < W).
    mask_row = (jnp.arange(Rows) % Wp < W).astype(jnp.float32).reshape(1, Rows)

    # NCHW -> NHWC once per block (would be hoisted to the network boundary in a full port).
    x_nhwc = jnp.transpose(x, (0, 2, 3, 1))
    xp1 = _pad_flatten(x_nhwc, mode)                           # (N, (H+2)*Wp+2, C)

    # conv1 + InstanceNorm + style1 + ReLU   (one fused Pallas kernel)
    y1 = _fused_conv3x3_in_adain(xp1, w1, s1, t1, mask_row, None,
                                 H=H, W=W, eps=eps, relu=True, out_dtype=x.dtype)
    # Drop the 2 throwaway columns per row group; XLA fuses this slice into the next pad.
    y1_img = y1.reshape(N, H, Wp, C)[:, :, :W, :]
    # TODO(synk): the inter-conv reflect pad is plain XLA (jnp.pad), not a Pallas kernel.
    xp2 = _pad_flatten(y1_img, mode)

    # conv2 + InstanceNorm + style2 + residual (residual read straight from xp1's slab)
    out = _fused_conv3x3_in_adain(xp2, w2, s2, t2, mask_row, xp1,
                                  H=H, W=W, eps=eps, relu=False, out_dtype=x.dtype)
    out_nhwc = out.reshape(N, H, Wp, C)[:, :, :W, :]
    return jnp.transpose(out_nhwc, (0, 3, 1, 2))


# ---------------------------------------------------------------------------
# Pure-JAX reference (independent path: lax.conv, includes the conv biases)
# ---------------------------------------------------------------------------
def _reference(x, latent, params, *, padding_type="reflect", eps=1e-8):
    N, C, H, W = x.shape
    mode = _PAD_MODE[padding_type]

    def conv(v, w, b):
        vp = jnp.pad(v, ((0, 0), (0, 0), (1, 1), (1, 1)), mode=mode)
        y = lax.conv_general_dilated(
            vp, w, window_strides=(1, 1), padding="VALID",
            dimension_numbers=("NCHW", "OIHW", "NCHW"),
            precision=lax.Precision.HIGHEST)
        return y + b.reshape(1, -1, 1, 1)

    def inorm(v):
        m = jnp.mean(v, axis=(2, 3), keepdims=True)
        vc = v - m
        return vc * lax.rsqrt(jnp.mean(vc * vc, axis=(2, 3), keepdims=True) + eps)

    def style(v, lw, lb):
        st = jnp.dot(latent, lw.T, precision=lax.Precision.HIGHEST) + lb
        sc = st[:, :C].reshape(N, C, 1, 1)
        sh = st[:, C:].reshape(N, C, 1, 1)
        return v * (sc + 1.0) + sh

    y = inorm(conv(x, params["conv1_w"], params["conv1_b"]))
    y = style(y, params["style1_w"], params["style1_b"])
    y = jnp.maximum(y, 0.0)
    y = inorm(conv(y, params["conv2_w"], params["conv2_b"]))
    y = style(y, params["style2_w"], params["style2_b"])
    return x + y


if __name__ == "__main__":
    key = jax.random.PRNGKey(0)
    N, C, H, W, L = 2, 4, 16, 16, 8          # dim=4, latent_size=8
    ks = jax.random.split(key, 8)

    x = jax.random.normal(ks[0], (N, C, H, W), dtype=jnp.float32)
    latent = jax.random.normal(ks[1], (N, L), dtype=jnp.float32)
    params = {
        "conv1_w": 0.1 * jax.random.normal(ks[2], (C, C, 3, 3), jnp.float32),
        "conv1_b": 0.1 * jax.random.normal(ks[3], (C,), jnp.float32),
        "conv2_w": 0.1 * jax.random.normal(ks[4], (C, C, 3, 3), jnp.float32),
        "conv2_b": 0.1 * jax.random.normal(ks[5], (C,), jnp.float32),
        "style1_w": 0.1 * jax.random.normal(ks[6], (2 * C, L), jnp.float32),
        "style1_b": 0.1 * jax.random.normal(ks[7], (2 * C,), jnp.float32),
        "style2_w": 0.1 * jax.random.normal(ks[6], (2 * C, L), jnp.float32) + 0.05,
        "style2_b": jnp.zeros((2 * C,), jnp.float32),
    }

    ref = _reference(x, latent, params, padding_type="reflect")

    # f32-MXU path: validates the fused kernel math (incl. the bias-cancellation) tightly.
    fwd_f32 = jax.jit(functools.partial(resnet_block_adain, padding_type="reflect",
                                        use_bf16_mxu=False))
    out_f32 = jax.block_until_ready(fwd_f32(x, latent, params))
    assert out_f32.shape == x.shape and out_f32.dtype == x.dtype
    err_f32 = float(jnp.max(jnp.abs(out_f32 - ref)))
    assert err_f32 < 2e-3, f"f32 path mismatch, max_err={err_f32}"

    # bf16-MXU path (default / production): looser tolerance for bf16 operand rounding.
    fwd_bf16 = jax.jit(functools.partial(resnet_block_adain, padding_type="reflect",
                                         use_bf16_mxu=True))
    out_bf16 = jax.block_until_ready(fwd_bf16(x, latent, params))
    assert out_bf16.shape == x.shape and out_bf16.dtype == x.dtype
    err_bf16 = float(jnp.max(jnp.abs(out_bf16 - ref)))
    assert err_bf16 < 4e-2, f"bf16 path mismatch, max_err={err_bf16}"

    print("KERNEL_OK")
</pallas_src>

<mosaic_0001>
module attributes {stable_mosaic.version = 11 : i64} {
  func.func @kernel(%arg0: i32, %arg1: memref<1x326x4xf32, #tpu.memory_space<vmem>>, %arg2: memref<9x4x4xf32, #tpu.memory_space<vmem>>, %arg3: memref<1x1x4xf32, #tpu.memory_space<vmem>>, %arg4: memref<1x1x4xf32, #tpu.memory_space<vmem>>, %arg5: memref<1x288xf32, #tpu.memory_space<vmem>>, %arg6: memref<1x288x4xf32, #tpu.memory_space<vmem>>, %arg7: memref<288x4xf32, #tpu.memory_space<vmem>>) attributes {dimension_semantics = [#tpu.dimension_semantics<parallel>], iteration_bounds = array<i64: 2>, scalar_prefetch = 0 : i64, scratch_operands = 1 : i64, tpu.core_type = #tpu.core_type<tc>, window_params = [{transform_indices = @transform_0, window_bounds = array<i64: 1, 326, 4>}, {pipeline_mode = #tpu.pipeline_mode<synchronous>, transform_indices = @transform_1, window_bounds = array<i64: 9, 4, 4>}, {transform_indices = @transform_2, window_bounds = array<i64: 1, 1, 4>}, {transform_indices = @transform_3, window_bounds = array<i64: 1, 1, 4>}, {pipeline_mode = #tpu.pipeline_mode<synchronous>, transform_indices = @transform_4, window_bounds = array<i64: 1, 288>}, {transform_indices = @transform_5, window_bounds = array<i64: 1, 288, 4>}]} {
    %cst = arith.constant 0.000000e+00 : f32
    %0 = vector.broadcast %cst : f32 to vector<288x4xf32>
    %c0 = arith.constant 0 : index
    %c0_0 = arith.constant 0 : index
    %1 = vector.load %arg7[%c0, %c0_0] : memref<288x4xf32, #tpu.memory_space<vmem>>, vector<288x4xf32>
    tpu.vector_store %arg7[%c0, %c0_0], %0 {strides = array<i32>} : memref<288x4xf32, #tpu.memory_space<vmem>>, vector<288x4xf32>,
    %c0_1 = arith.constant 0 : index
    %c0_2 = arith.constant 0 : index
    %c0_3 = arith.constant 0 : index
    %2 = vector.load %arg1[%c0_1, %c0_2, %c0_3] : memref<1x326x4xf32, #tpu.memory_space<vmem>>, vector<1x288x4xf32>
    %3 = vector.shape_cast %2 : vector<1x288x4xf32> to vector<288x4xf32>
    %c0_4 = arith.constant 0 : index
    %c0_5 = arith.constant 0 : index
    %4 = vector.load %arg7[%c0_4, %c0_5] : memref<288x4xf32, #tpu.memory_space<vmem>>, vector<288x4xf32>
    %c0_6 = arith.constant 0 : index
    %c0_7 = arith.constant 0 : index
    %c0_8 = arith.constant 0 : index
    %5 = vector.load %arg2[%c0_6, %c0_7, %c0_8] : memref<9x4x4xf32, #tpu.memory_space<vmem>>, vector<1x4x4xf32>
    %6 = vector.shape_cast %5 : vector<1x4x4xf32> to vector<4x4xf32>
    %cst_9 = arith.constant dense<0.000000e+00> : vector<288x4xf32>
    %7 = tpu.matmul %3, %6, %cst_9 {dimension_numbers = #tpu.dot_dimension_numbers<[1], [0], [0], [1], [0, 0, 1, 1], [], []>} : vector<288x4xf32>, vector<4x4xf32>, vector<288x4xf32> -> vector<288x4xf32>
    %8 = arith.addf %4, %7 : vector<288x4xf32>
    %c0_10 = arith.constant 0 : index
    %c0_11 = arith.constant 0 : index
    %9 = vector.load %arg7[%c0_10, %c0_11] : memref<288x4xf32, #tpu.memory_space<vmem>>, vector<288x4xf32>
    tpu.vector_store %arg7[%c0_10, %c0_11], %8 {strides = array<i32>} : memref<288x4xf32, #tpu.memory_space<vmem>>, vector<288x4xf32>,
    %c0_12 = arith.constant 0 : index
    %c1 = arith.constant 1 : index
    %c0_13 = arith.constant 0 : index
    %10 = vector.load %arg1[%c0_12, %c1, %c0_13] : memref<1x326x4xf32, #tpu.memory_space<vmem>>, vector<1x288x4xf32>
    %11 = vector.shape_cast %10 : vector<1x288x4xf32> to vector<288x4xf32>
    %c0_14 = arith.constant 0 : index
    %c0_15 = arith.constant 0 : index
    %12 = vector.load %arg7[%c0_14, %c0_15] : memref<288x4xf32, #tpu.memory_space<vmem>>, vector<288x4xf32>
    %c1_16 = arith.constant 1 : index
    %c0_17 = arith.constant 0 : index
    %c0_18 = arith.constant 0 : index
    %13 = vector.load %arg2[%c1_16, %c0_17, %c0_18] : memref<9x4x4xf32, #tpu.memory_space<vmem>>, vector<1x4x4xf32>
    %14 = vector.shape_cast %13 : vector<1x4x4xf32> to vector<4x4xf32>
    %cst_19 = arith.constant dense<0.000000e+00> : vector<288x4xf32>
    %15 = tpu.matmul %11, %14, %cst_19 {dimension_numbers = #tpu.dot_dimension_numbers<[1], [0], [0], [1], [0, 0, 1, 1], [], []>} : vector<288x4xf32>, vector<4x4xf32>, vector<288x4xf32> -> vector<288x4xf32>
    %16 = arith.addf %12, %15 : vector<288x4xf32>
    %c0_20 = arith.constant 0 : index
    %c0_21 = arith.constant 0 : index
    %17 = vector.load %arg7[%c0_20, %c0_21] : memref<288x4xf32, #tpu.memory_space<vmem>>, vector<288x4xf32>
    tpu.vector_store %arg7[%c0_20, %c0_21], %16 {strides = array<i32>} : memref<288x4xf32, #tpu.memory_space<vmem>>, vector<288x4xf32>,
    %c0_22 = arith.constant 0 : index
    %c2 = arith.constant 2 : index
    %c0_23 = arith.constant 0 : index
    %18 = vector.load %arg1[%c0_22, %c2, %c0_23] : memref<1x326x4xf32, #tpu.memory_space<vmem>>, vector<1x288x4xf32>
    %19 = vector.shape_cast %18 : vector<1x288x4xf32> to vector<288x4xf32>
    %c0_24 = arith.constant 0 : index
    %c0_25 = arith.constant 0 : index
    %20 = vector.load %arg7[%c0_24, %c0_25] : memref<288x4xf32, #tpu.memory_space<vmem>>, vector<288x4xf32>
    %c2_26 = arith.constant 2 : index
    %c0_27 = arith.constant 0 : index
    %c0_28 = arith.constant 0 : index
    %21 = vector.load %arg2[%c2_26, %c0_27, %c0_28] : memref<9x4x4xf32, #tpu.memory_space<vmem>>, vector<1x4x4xf32>
    %22 = vector.shape_cast %21 : vector<1x4x4xf32> to vector<4x4xf32>
    %cst_29 = arith.constant dense<0.000000e+00> : vector<288x4xf32>
    %23 = tpu.matmul %19, %22, %cst_29 {dimension_numbers = #tpu.dot_dimension_numbers<[1], [0], [0], [1], [0, 0, 1, 1], [], []>} : vector<288x4xf32>, vector<4x4xf32>, vector<288x4xf32> -> vector<288x4xf32>
    %24 = arith.addf %20, %23 : vector<288x4xf32>
    %c0_30 = arith.constant 0 : index
    %c0_31 = arith.constant 0 : index
    %25 = vector.load %arg7[%c0_30, %c0_31] : memref<288x4xf32, #tpu.memory_space<vmem>>, vector<288x4xf32>
    tpu.vector_store %arg7[%c0_30, %c0_31], %24 {strides = array<i32>} : memref<288x4xf32, #tpu.memory_space<vmem>>, vector<288x4xf32>,
    %c0_32 = arith.constant 0 : index
    %c18 = arith.constant 18 : index
    %c0_33 = arith.constant 0 : index
    %26 = vector.load %arg1[%c0_32, %c18, %c0_33] : memref<1x326x4xf32, #tpu.memory_space<vmem>>, vector<1x288x4xf32>
    %27 = vector.shape_cast %26 : vector<1x288x4xf32> to vector<288x4xf32>
    %c0_34 = arith.constant 0 : index
    %c0_35 = arith.constant 0 : index
    %28 = vector.load %arg7[%c0_34, %c0_35] : memref<288x4xf32, #tpu.memory_space<vmem>>, vector<288x4xf32>
    %c3 = arith.constant 3 : index
    %c0_36 = arith.constant 0 : index
    %c0_37 = arith.constant 0 : index
    %29 = vector.load %arg2[%c3, %c0_36, %c0_37] : memref<9x4x4xf32, #tpu.memory_space<vmem>>, vector<1x4x4xf32>
    %30 = vector.shape_cast %29 : vector<1x4x4xf32> to vector<4x4xf32>
    %cst_38 = arith.constant dense<0.000000e+00> : vector<288x4xf32>
    %31 = tpu.matmul %27, %30, %cst_38 {dimension_numbers = #tpu.dot_dimension_numbers<[1], [0], [0], [1], [0, 0, 1, 1], [], []>} : vector<288x4xf32>, vector<4x4xf32>, vector<288x4xf32> -> vector<288x4xf32>
    %32 = arith.addf %28, %31 : vector<288x4xf32>
    %c0_39 = arith.constant 0 : index
    %c0_40 = arith.constant 0 : index
    %33 = vector.load %arg7[%c0_39, %c0_40] : memref<288x4xf32, #tpu.memory_space<vmem>>, vector<288x4xf32>
    tpu.vector_store %arg7[%c0_39, %c0_40], %32 {strides = array<i32>} : memref<288x4xf32, #tpu.memory_space<vmem>>, vector<288x4xf32>,
    %c0_41 = arith.constant 0 : index
    %c19 = arith.constant 19 : index
    %c0_42 = arith.constant 0 : index
    %34 = vector.load %arg1[%c0_41, %c19, %c0_42] : memref<1x326x4xf32, #tpu.memory_space<vmem>>, vector<1x288x4xf32>
    %35 = vector.shape_cast %34 : vector<1x288x4xf32> to vector<288x4xf32>
    %c0_43 = arith.constant 0 : index
    %c0_44 = arith.constant 0 : index
    %36 = vector.load %arg7[%c0_43, %c0_44] : memref<288x4xf32, #tpu.memory_space<vmem>>, vector<288x4xf32>
    %c4 = arith.constant 4 : index
    %c0_45 = arith.constant 0 : index
    %c0_46 = arith.constant 0 : index
    %37 = vector.load %arg2[%c4, %c0_45, %c0_46] : memref<9x4x4xf32, #tpu.memory_space<vmem>>, vector<1x4x4xf32>
    %38 = vector.shape_cast %37 : vector<1x4x4xf32> to vector<4x4xf32>
    %cst_47 = arith.constant dense<0.000000e+00> : vector<288x4xf32>
    %39 = tpu.matmul %35, %38, %cst_47 {dimension_numbers = #tpu.dot_dimension_numbers<[1], [0], [0], [1], [0, 0, 1, 1], [], []>} : vector<288x4xf32>, vector<4x4xf32>, vector<288x4xf32> -> vector<288x4xf32>
    %40 = arith.addf %36, %39 : vector<288x4xf32>
    %c0_48 = arith.constant 0 : index
    %c0_49 = arith.constant 0 : index
    %41 = vector.load %arg7[%c0_48, %c0_49] : memref<288x4xf32, #tpu.memory_space<vmem>>, vector<288x4xf32>
    tpu.vector_store %arg7[%c0_48, %c0_49], %40 {strides = array<i32>} : memref<288x4xf32, #tpu.memory_space<vmem>>, vector<288x4xf32>,
    %c0_50 = arith.constant 0 : index
    %c20 = arith.constant 20 : index
    %c0_51 = arith.constant 0 : index
    %42 = vector.load %arg1[%c0_50, %c20, %c0_51] : memref<1x326x4xf32, #tpu.memory_space<vmem>>, vector<1x288x4xf32>
    %43 = vector.shape_cast %42 : vector<1x288x4xf32> to vector<288x4xf32>
    %c0_52 = arith.constant 0 : index
    %c0_53 = arith.constant 0 : index
    %44 = vector.load %arg7[%c0_52, %c0_53] : memref<288x4xf32, #tpu.memory_space<vmem>>, vector<288x4xf32>
    %c5 = arith.constant 5 : index
    %c0_54 = arith.constant 0 : index
    %c0_55 = arith.constant 0 : index
    %45 = vector.load %arg2[%c5, %c0_54, %c0_55] : memref<9x4x4xf32, #tpu.memory_space<vmem>>, vector<1x4x4xf32>
    %46 = vector.shape_cast %45 : vector<1x4x4xf32> to vector<4x4xf32>
    %cst_56 = arith.constant dense<0.000000e+00> : vector<288x4xf32>
    %47 = tpu.matmul %43, %46, %cst_56 {dimension_numbers = #tpu.dot_dimension_numbers<[1], [0], [0], [1], [0, 0, 1, 1], [], []>} : vector<288x4xf32>, vector<4x4xf32>, vector<288x4xf32> -> vector<288x4xf32>
    %48 = arith.addf %44, %47 : vector<288x4xf32>
    %c0_57 = arith.constant 0 : index
    %c0_58 = arith.constant 0 : index
    %49 = vector.load %arg7[%c0_57, %c0_58] : memref<288x4xf32, #tpu.memory_space<vmem>>, vector<288x4xf32>
    tpu.vector_store %arg7[%c0_57, %c0_58], %48 {strides = array<i32>} : memref<288x4xf32, #tpu.memory_space<vmem>>, vector<288x4xf32>,
    %c0_59 = arith.constant 0 : index
    %c36 = arith.constant 36 : index
    %c0_60 = arith.constant 0 : index
    %50 = vector.load %arg1[%c0_59, %c36, %c0_60] : memref<1x326x4xf32, #tpu.memory_space<vmem>>, vector<1x288x4xf32>
    %51 = vector.shape_cast %50 : vector<1x288x4xf32> to vector<288x4xf32>
    %c0_61 = arith.constant 0 : index
    %c0_62 = arith.constant 0 : index
    %52 = vector.load %arg7[%c0_61, %c0_62] : memref<288x4xf32, #tpu.memory_space<vmem>>, vector<288x4xf32>
    %c6 = arith.constant 6 : index
    %c0_63 = arith.constant 0 : index
    %c0_64 = arith.constant 0 : index
    %53 = vector.load %arg2[%c6, %c0_63, %c0_64] : memref<9x4x4xf32, #tpu.memory_space<vmem>>, vector<1x4x4xf32>
    %54 = vector.shape_cast %53 : vector<1x4x4xf32> to vector<4x4xf32>
    %cst_65 = arith.constant dense<0.000000e+00> : vector<288x4xf32>
    %55 = tpu.matmul %51, %54, %cst_65 {dimension_numbers = #tpu.dot_dimension_numbers<[1], [0], [0], [1], [0, 0, 1, 1], [], []>} : vector<288x4xf32>, vector<4x4xf32>, vector<288x4xf32> -> vector<288x4xf32>
    %56 = arith.addf %52, %55 : vector<288x4xf32>
    %c0_66 = arith.constant 0 : index
    %c0_67 = arith.constant 0 : index
    %57 = vector.load %arg7[%c0_66, %c0_67] : memref<288x4xf32, #tpu.memory_space<vmem>>, vector<288x4xf32>
    tpu.vector_store %arg7[%c0_66, %c0_67], %56 {strides = array<i32>} : memref<288x4xf32, #tpu.memory_space<vmem>>, vector<288x4xf32>,
    %c0_68 = arith.constant 0 : index
    %c37 = arith.constant 37 : index
    %c0_69 = arith.constant 0 : index
    %58 = vector.load %arg1[%c0_68, %c37, %c0_69] : memref<1x326x4xf32, #tpu.memory_space<vmem>>, vector<1x288x4xf32>
    %59 = vector.shape_cast %58 : vector<1x288x4xf32> to vector<288x4xf32>
    %c0_70 = arith.constant 0 : index
    %c0_71 = arith.constant 0 : index
    %60 = vector.load %arg7[%c0_70, %c0_71] : memref<288x4xf32, #tpu.memory_space<vmem>>, vector<288x4xf32>
    %c7 = arith.constant 7 : index
    %c0_72 = arith.constant 0 : index
    %c0_73 = arith.constant 0 : index
    %61 = vector.load %arg2[%c7, %c0_72, %c0_73] : memref<9x4x4xf32, #tpu.memory_space<vmem>>, vector<1x4x4xf32>
    %62 = vector.shape_cast %61 : vector<1x4x4xf32> to vector<4x4xf32>
    %cst_74 = arith.constant dense<0.000000e+00> : vector<288x4xf32>
    %63 = tpu.matmul %59, %62, %cst_74 {dimension_numbers = #tpu.dot_dimension_numbers<[1], [0], [0], [1], [0, 0, 1, 1], [], []>} : vector<288x4xf32>, vector<4x4xf32>, vector<288x4xf32> -> vector<288x4xf32>
    %64 = arith.addf %60, %63 : vector<288x4xf32>
    %c0_75 = arith.constant 0 : index
    %c0_76 = arith.constant 0 : index
    %65 = vector.load %arg7[%c0_75, %c0_76] : memref<288x4xf32, #tpu.memory_space<vmem>>, vector<288x4xf32>
    tpu.vector_store %arg7[%c0_75, %c0_76], %64 {strides = array<i32>} : memref<288x4xf32, #tpu.memory_space<vmem>>, vector<288x4xf32>,
    %c0_77 = arith.constant 0 : index
    %c38 = arith.constant 38 : index
    %c0_78 = arith.constant 0 : index
    %66 = vector.load %arg1[%c0_77, %c38, %c0_78] : memref<1x326x4xf32, #tpu.memory_space<vmem>>, vector<1x288x4xf32>
    %67 = vector.shape_cast %66 : vector<1x288x4xf32> to vector<288x4xf32>
    %c0_79 = arith.constant 0 : index
    %c0_80 = arith.constant 0 : index
    %68 = vector.load %arg7[%c0_79, %c0_80] : memref<288x4xf32, #tpu.memory_space<vmem>>, vector<288x4xf32>
    %c8 = arith.constant 8 : index
    %c0_81 = arith.constant 0 : index
    %c0_82 = arith.constant 0 : index
    %69 = vector.load %arg2[%c8, %c0_81, %c0_82] : memref<9x4x4xf32, #tpu.memory_space<vmem>>, vector<1x4x4xf32>
    %70 = vector.shape_cast %69 : vector<1x4x4xf32> to vector<4x4xf32>
    %cst_83 = arith.constant dense<0.000000e+00> : vector<288x4xf32>
    %71 = tpu.matmul %67, %70, %cst_83 {dimension_numbers = #tpu.dot_dimension_numbers<[1], [0], [0], [1], [0, 0, 1, 1], [], []>} : vector<288x4xf32>, vector<4x4xf32>, vector<288x4xf32> -> vector<288x4xf32>
    %72 = arith.addf %68, %71 : vector<288x4xf32>
    %c0_84 = arith.constant 0 : index
    %c0_85 = arith.constant 0 : index
    %73 = vector.load %arg7[%c0_84, %c0_85] : memref<288x4xf32, #tpu.memory_space<vmem>>, vector<288x4xf32>
    tpu.vector_store %arg7[%c0_84, %c0_85], %72 {strides = array<i32>} : memref<288x4xf32, #tpu.memory_space<vmem>>, vector<288x4xf32>,
    %c0_86 = arith.constant 0 : index
    %c0_87 = arith.constant 0 : index
    %74 = vector.load %arg7[%c0_86, %c0_87] : memref<288x4xf32, #tpu.memory_space<vmem>>, vector<288x4xf32>
    %c0_88 = arith.constant 0 : index
    %c0_89 = arith.constant 0 : index
    %75 = vector.load %arg5[%c0_88, %c0_89] : memref<1x288xf32, #tpu.memory_space<vmem>>, vector<1x288xf32>
    %cst_90 = arith.constant dense<0.000000e+00> : vector<1x4xf32>
    %76 = tpu.matmul %75, %74, %cst_90 {dimension_numbers = #tpu.dot_dimension_numbers<[1], [0], [0], [1], [0, 0, 1, 1], [], []>} : vector<1x288xf32>, vector<288x4xf32>, vector<1x4xf32> -> vector<1x4xf32>
    %cst_91 = arith.constant 3.906250e-03 : f32
    %77 = vector.broadcast %cst_91 : f32 to vector<1x4xf32>
    %78 = arith.mulf %76, %77 : vector<1x4xf32>
    %79 = arith.mulf %74, %74 : vector<288x4xf32>
    %cst_92 = arith.constant dense<0.000000e+00> : vector<1x4xf32>
    %80 = tpu.matmul %75, %79, %cst_92 {dimension_numbers = #tpu.dot_dimension_numbers<[1], [0], [0], [1], [0, 0, 1, 1], [], []>} : vector<1x288xf32>, vector<288x4xf32>, vector<1x4xf32> -> vector<1x4xf32>
    %cst_93 = arith.constant 3.906250e-03 : f32
    %81 = vector.broadcast %cst_93 : f32 to vector<1x4xf32>
    %82 = arith.mulf %80, %81 : vector<1x4xf32>
    %83 = arith.mulf %78, %78 : vector<1x4xf32>
    %84 = arith.subf %82, %83 : vector<1x4xf32>
    %cst_94 = arith.constant 9.99999993E-9 : f32
    %85 = vector.broadcast %cst_94 : f32 to vector<1x4xf32>
    %86 = arith.addf %84, %85 : vector<1x4xf32>
    %87 = math.rsqrt %86 : vector<1x4xf32>
    %c0_95 = arith.constant 0 : index
    %c0_96 = arith.constant 0 : index
    %c0_97 = arith.constant 0 : index
    %88 = vector.load %arg3[%c0_95, %c0_96, %c0_97] : memref<1x1x4xf32, #tpu.memory_space<vmem>>, vector<1x1x4xf32>
    %89 = vector.shape_cast %88 : vector<1x1x4xf32> to vector<1x4xf32>
    %90 = arith.mulf %87, %89 : vector<1x4xf32>
    %c0_98 = arith.constant 0 : index
    %c0_99 = arith.constant 0 : index
    %c0_100 = arith.constant 0 : index
    %91 = vector.load %arg4[%c0_98, %c0_99, %c0_100] : memref<1x1x4xf32, #tpu.memory_space<vmem>>, vector<1x1x4xf32>
    %92 = vector.shape_cast %91 : vector<1x1x4xf32> to vector<1x4xf32>
    %93 = arith.mulf %78, %90 : vector<1x4xf32>
    %94 = arith.subf %92, %93 : vector<1x4xf32>
    %95 = vector.broadcast %90 : vector<1x4xf32> to vector<288x4xf32>
    %96 = arith.mulf %74, %95 : vector<288x4xf32>
    %97 = vector.broadcast %94 : vector<1x4xf32> to vector<288x4xf32>
    %98 = arith.addf %96, %97 : vector<288x4xf32>
    %cst_101 = arith.constant 0.000000e+00 : f32
    %99 = vector.broadcast %cst_101 : f32 to vector<288x4xf32>
    %100 = arith.maximumf %98, %99 : vector<288x4xf32>
    %c0_102 = arith.constant 0 : index
    %c0_103 = arith.constant 0 : index
    %c0_104 = arith.constant 0 : index
    %101 = vector.load %arg6[%c0_102, %c0_103, %c0_104] : memref<1x288x4xf32, #tpu.memory_space<vmem>>, vector<1x288x4xf32>
    %102 = vector.shape_cast %101 : vector<1x288x4xf32> to vector<288x4xf32>
    %103 = vector.shape_cast %100 : vector<288x4xf32> to vector<1x288x4xf32>
    tpu.vector_store %arg6[%c0_102, %c0_103, %c0_104], %103 {strides = array<i32>} : memref<1x288x4xf32, #tpu.memory_space<vmem>>, vector<1x288x4xf32>,
    return
  }
  func.func @transform_0(%arg0: i32) -> (i32, i32, i32) {
    %c0_i32 = arith.constant 0 : i32
    %c0_i32_0 = arith.constant 0 : i32
    %c0_i32_1 = arith.constant 0 : i32
    return %arg0, %c0_i32, %c0_i32_0 : i32, i32, i32
  }
  func.func @transform_1(%arg0: i32) -> (i32, i32, i32) {
    %c0_i32 = arith.constant 0 : i32
    %c0_i32_0 = arith.constant 0 : i32
    %c0_i32_1 = arith.constant 0 : i32
    %c0_i32_2 = arith.constant 0 : i32
    return %c0_i32, %c0_i32_0, %c0_i32_1 : i32, i32, i32
  }
  func.func @transform_2(%arg0: i32) -> (i32, i32, i32) {
    %c0_i32 = arith.constant 0 : i32
    %c0_i32_0 = arith.constant 0 : i32
    %c0_i32_1 = arith.constant 0 : i32
    return %arg0, %c0_i32, %c0_i32_0 : i32, i32, i32
  }
  func.func @transform_3(%arg0: i32) -> (i32, i32, i32) {
    %c0_i32 = arith.constant 0 : i32
    %c0_i32_0 = arith.constant 0 : i32
    %c0_i32_1 = arith.constant 0 : i32
    return %arg0, %c0_i32, %c0_i32_0 : i32, i32, i32
  }
  func.func @transform_4(%arg0: i32) -> (i32, i32) {
    %c0_i32 = arith.constant 0 : i32
    %c0_i32_0 = arith.constant 0 : i32
    %c0_i32_1 = arith.constant 0 : i32
    return %c0_i32, %c0_i32_0 : i32, i32
  }
  func.func @transform_5(%arg0: i32) -> (i32, i32, i32) {
    %c0_i32 = arith.constant 0 : i32
    %c0_i32_0 = arith.constant 0 : i32
    %c0_i32_1 = arith.constant 0 : i32
    return %arg0, %c0_i32, %c0_i32_0 : i32, i32, i32
  }
}

module attributes {stable_mosaic.version = 11 : i64} {
  func.func @kernel(%arg0: i32, %arg1: memref<1x326x4xf32, #tpu.memory_space<vmem>>, %arg2: memref<9x4x4xf32, #tpu.memory_space<vmem>>, %arg3: memref<1x1x4xf32, #tpu.memory_space<vmem>>, %arg4: memref<1x1x4xf32, #tpu.memory_space<vmem>>, %arg5: memref<1x288xf32, #tpu.memory_space<vmem>>, %arg6: memref<1x326x4xf32, #tpu.memory_space<vmem>>, %arg7: memref<1x288x4xf32, #tpu.memory_space<vmem>>, %arg8: memref<288x4xf32, #tpu.memory_space<vmem>>) attributes {dimension_semantics = [#tpu.dimension_semantics<parallel>], iteration_bounds = array<i64: 2>, scalar_prefetch = 0 : i64, scratch_operands = 1 : i64, tpu.core_type = #tpu.core_type<tc>, window_params = [{transform_indices = @transform_0, window_bounds = array<i64: 1, 326, 4>}, {pipeline_mode = #tpu.pipeline_mode<synchronous>, transform_indices = @transform_1, window_bounds = array<i64: 9, 4, 4>}, {transform_indices = @transform_2, window_bounds = array<i64: 1, 1, 4>}, {transform_indices = @transform_3, window_bounds = array<i64: 1, 1, 4>}, {pipeline_mode = #tpu.pipeline_mode<synchronous>, transform_indices = @transform_4, window_bounds = array<i64: 1, 288>}, {transform_indices = @transform_5, window_bounds = array<i64: 1, 326, 4>}, {transform_indices = @transform_6, window_bounds = array<i64: 1, 288, 4>}]} {
    %cst = arith.constant 0.000000e+00 : f32
    %0 = vector.broadcast %cst : f32 to vector<288x4xf32>
    %c0 = arith.constant 0 : index
    %c0_0 = arith.constant 0 : index
    %1 = vector.load %arg8[%c0, %c0_0] : memref<288x4xf32, #tpu.memory_space<vmem>>, vector<288x4xf32>
    tpu.vector_store %arg8[%c0, %c0_0], %0 {strides = array<i32>} : memref<288x4xf32, #tpu.memory_space<vmem>>, vector<288x4xf32>,
    %c0_1 = arith.constant 0 : index
    %c0_2 = arith.constant 0 : index
    %c0_3 = arith.constant 0 : index
    %2 = vector.load %arg1[%c0_1, %c0_2, %c0_3] : memref<1x326x4xf32, #tpu.memory_space<vmem>>, vector<1x288x4xf32>
    %3 = vector.shape_cast %2 : vector<1x288x4xf32> to vector<288x4xf32>
    %c0_4 = arith.constant 0 : index
    %c0_5 = arith.constant 0 : index
    %4 = vector.load %arg8[%c0_4, %c0_5] : memref<288x4xf32, #tpu.memory_space<vmem>>, vector<288x4xf32>
    %c0_6 = arith.constant 0 : index
    %c0_7 = arith.constant 0 : index
    %c0_8 = arith.constant 0 : index
    %5 = vector.load %arg2[%c0_6, %c0_7, %c0_8] : memref<9x4x4xf32, #tpu.memory_space<vmem>>, vector<1x4x4xf32>
    %6 = vector.shape_cast %5 : vector<1x4x4xf32> to vector<4x4xf32>
    %cst_9 = arith.constant dense<0.000000e+00> : vector<288x4xf32>
    %7 = tpu.matmul %3, %6, %cst_9 {dimension_numbers = #tpu.dot_dimension_numbers<[1], [0], [0], [1], [0, 0, 1, 1], [], []>} : vector<288x4xf32>, vector<4x4xf32>, vector<288x4xf32> -> vector<288x4xf32>
    %8 = arith.addf %4, %7 : vector<288x4xf32>
    %c0_10 = arith.constant 0 : index
    %c0_11 = arith.constant 0 : index
    %9 = vector.load %arg8[%c0_10, %c0_11] : memref<288x4xf32, #tpu.memory_space<vmem>>, vector<288x4xf32>
    tpu.vector_store %arg8[%c0_10, %c0_11], %8 {strides = array<i32>} : memref<288x4xf32, #tpu.memory_space<vmem>>, vector<288x4xf32>,
    %c0_12 = arith.constant 0 : index
    %c1 = arith.constant 1 : index
    %c0_13 = arith.constant 0 : index
    %10 = vector.load %arg1[%c0_12, %c1, %c0_13] : memref<1x326x4xf32, #tpu.memory_space<vmem>>, vector<1x288x4xf32>
    %11 = vector.shape_cast %10 : vector<1x288x4xf32> to vector<288x4xf32>
    %c0_14 = arith.constant 0 : index
    %c0_15 = arith.constant 0 : index
    %12 = vector.load %arg8[%c0_14, %c0_15] : memref<288x4xf32, #tpu.memory_space<vmem>>, vector<288x4xf32>
    %c1_16 = arith.constant 1 : index
    %c0_17 = arith.constant 0 : index
    %c0_18 = arith.constant 0 : index
    %13 = vector.load %arg2[%c1_16, %c0_17, %c0_18] : memref<9x4x4xf32, #tpu.memory_space<vmem>>, vector<1x4x4xf32>
    %14 = vector.shape_cast %13 : vector<1x4x4xf32> to vector<4x4xf32>
    %cst_19 = arith.constant dense<0.000000e+00> : vector<288x4xf32>
    %15 = tpu.matmul %11, %14, %cst_19 {dimension_numbers = #tpu.dot_dimension_numbers<[1], [0], [0], [1], [0, 0, 1, 1], [], []>} : vector<288x4xf32>, vector<4x4xf32>, vector<288x4xf32> -> vector<288x4xf32>
    %16 = arith.addf %12, %15 : vector<288x4xf32>
    %c0_20 = arith.constant 0 : index
    %c0_21 = arith.constant 0 : index
    %17 = vector.load %arg8[%c0_20, %c0_21] : memref<288x4xf32, #tpu.memory_space<vmem>>, vector<288x4xf32>
    tpu.vector_store %arg8[%c0_20, %c0_21], %16 {strides = array<i32>} : memref<288x4xf32, #tpu.memory_space<vmem>>, vector<288x4xf32>,
    %c0_22 = arith.constant 0 : index
    %c2 = arith.constant 2 : index
    %c0_23 = arith.constant 0 : index
    %18 = vector.load %arg1[%c0_22, %c2, %c0_23] : memref<1x326x4xf32, #tpu.memory_space<vmem>>, vector<1x288x4xf32>
    %19 = vector.shape_cast %18 : vector<1x288x4xf32> to vector<288x4xf32>
    %c0_24 = arith.constant 0 : index
    %c0_25 = arith.constant 0 : index
    %20 = vector.load %arg8[%c0_24, %c0_25] : memref<288x4xf32, #tpu.memory_space<vmem>>, vector<288x4xf32>
    %c2_26 = arith.constant 2 : index
    %c0_27 = arith.constant 0 : index
    %c0_28 = arith.constant 0 : index
    %21 = vector.load %arg2[%c2_26, %c0_27, %c0_28] : memref<9x4x4xf32, #tpu.memory_space<vmem>>, vector<1x4x4xf32>
    %22 = vector.shape_cast %21 : vector<1x4x4xf32> to vector<4x4xf32>
    %cst_29 = arith.constant dense<0.000000e+00> : vector<288x4xf32>
    %23 = tpu.matmul %19, %22, %cst_29 {dimension_numbers = #tpu.dot_dimension_numbers<[1], [0], [0], [1], [0, 0, 1, 1], [], []>} : vector<288x4xf32>, vector<4x4xf32>, vector<288x4xf32> -> vector<288x4xf32>
    %24 = arith.addf %20, %23 : vector<288x4xf32>
    %c0_30 = arith.constant 0 : index
    %c0_31 = arith.constant 0 : index
    %25 = vector.load %arg8[%c0_30, %c0_31] : memref<288x4xf32, #tpu.memory_space<vmem>>, vector<288x4xf32>
    tpu.vector_store %arg8[%c0_30, %c0_31], %24 {strides = array<i32>} : memref<288x4xf32, #tpu.memory_space<vmem>>, vector<288x4xf32>,
    %c0_32 = arith.constant 0 : index
    %c18 = arith.constant 18 : index
    %c0_33 = arith.constant 0 : index
    %26 = vector.load %arg1[%c0_32, %c18, %c0_33] : memref<1x326x4xf32, #tpu.memory_space<vmem>>, vector<1x288x4xf32>
    %27 = vector.shape_cast %26 : vector<1x288x4xf32> to vector<288x4xf32>
    %c0_34 = arith.constant 0 : index
    %c0_35 = arith.constant 0 : index
    %28 = vector.load %arg8[%c0_34, %c0_35] : memref<288x4xf32, #tpu.memory_space<vmem>>, vector<288x4xf32>
    %c3 = arith.constant 3 : index
    %c0_36 = arith.constant 0 : index
    %c0_37 = arith.constant 0 : index
    %29 = vector.load %arg2[%c3, %c0_36, %c0_37] : memref<9x4x4xf32, #tpu.memory_space<vmem>>, vector<1x4x4xf32>
    %30 = vector.shape_cast %29 : vector<1x4x4xf32> to vector<4x4xf32>
    %cst_38 = arith.constant dense<0.000000e+00> : vector<288x4xf32>
    %31 = tpu.matmul %27, %30, %cst_38 {dimension_numbers = #tpu.dot_dimension_numbers<[1], [0], [0], [1], [0, 0, 1, 1], [], []>} : vector<288x4xf32>, vector<4x4xf32>, vector<288x4xf32> -> vector<288x4xf32>
    %32 = arith.addf %28, %31 : vector<288x4xf32>
    %c0_39 = arith.constant 0 : index
    %c0_40 = arith.constant 0 : index
    %33 = vector.load %arg8[%c0_39, %c0_40] : memref<288x4xf32, #tpu.memory_space<vmem>>, vector<288x4xf32>
    tpu.vector_store %arg8[%c0_39, %c0_40], %32 {strides = array<i32>} : memref<288x4xf32, #tpu.memory_space<vmem>>, vector<288x4xf32>,
    %c0_41 = arith.constant 0 : index
    %c19 = arith.constant 19 : index
    %c0_42 = arith.constant 0 : index
    %34 = vector.load %arg1[%c0_41, %c19, %c0_42] : memref<1x326x4xf32, #tpu.memory_space<vmem>>, vector<1x288x4xf32>
    %35 = vector.shape_cast %34 : vector<1x288x4xf32> to vector<288x4xf32>
    %c0_43 = arith.constant 0 : index
    %c0_44 = arith.constant 0 : index
    %36 = vector.load %arg8[%c0_43, %c0_44] : memref<288x4xf32, #tpu.memory_space<vmem>>, vector<288x4xf32>
    %c4 = arith.constant 4 : index
    %c0_45 = arith.constant 0 : index
    %c0_46 = arith.constant 0 : index
    %37 = vector.load %arg2[%c4, %c0_45, %c0_46] : memref<9x4x4xf32, #tpu.memory_space<vmem>>, vector<1x4x4xf32>
    %38 = vector.shape_cast %37 : vector<1x4x4xf32> to vector<4x4xf32>
    %cst_47 = arith.constant dense<0.000000e+00> : vector<288x4xf32>
    %39 = tpu.matmul %35, %38, %cst_47 {dimension_numbers = #tpu.dot_dimension_numbers<[1], [0], [0], [1], [0, 0, 1, 1], [], []>} : vector<288x4xf32>, vector<4x4xf32>, vector<288x4xf32> -> vector<288x4xf32>
    %40 = arith.addf %36, %39 : vector<288x4xf32>
    %c0_48 = arith.constant 0 : index
    %c0_49 = arith.constant 0 : index
    %41 = vector.load %arg8[%c0_48, %c0_49] : memref<288x4xf32, #tpu.memory_space<vmem>>, vector<288x4xf32>
    tpu.vector_store %arg8[%c0_48, %c0_49], %40 {strides = array<i32>} : memref<288x4xf32, #tpu.memory_space<vmem>>, vector<288x4xf32>,
    %c0_50 = arith.constant 0 : index
    %c20 = arith.constant 20 : index
    %c0_51 = arith.constant 0 : index
    %42 = vector.load %arg1[%c0_50, %c20, %c0_51] : memref<1x326x4xf32, #tpu.memory_space<vmem>>, vector<1x288x4xf32>
    %43 = vector.shape_cast %42 : vector<1x288x4xf32> to vector<288x4xf32>
    %c0_52 = arith.constant 0 : index
    %c0_53 = arith.constant 0 : index
    %44 = vector.load %arg8[%c0_52, %c0_53] : memref<288x4xf32, #tpu.memory_space<vmem>>, vector<288x4xf32>
    %c5 = arith.constant 5 : index
    %c0_54 = arith.constant 0 : index
    %c0_55 = arith.constant 0 : index
    %45 = vector.load %arg2[%c5, %c0_54, %c0_55] : memref<9x4x4xf32, #tpu.memory_space<vmem>>, vector<1x4x4xf32>
    %46 = vector.shape_cast %45 : vector<1x4x4xf32> to vector<4x4xf32>
    %cst_56 = arith.constant dense<0.000000e+00> : vector<288x4xf32>
    %47 = tpu.matmul %43, %46, %cst_56 {dimension_numbers = #tpu.dot_dimension_numbers<[1], [0], [0], [1], [0, 0, 1, 1], [], []>} : vector<288x4xf32>, vector<4x4xf32>, vector<288x4xf32> -> vector<288x4xf32>
    %48 = arith.addf %44, %47 : vector<288x4xf32>
    %c0_57 = arith.constant 0 : index
    %c0_58 = arith.constant 0 : index
    %49 = vector.load %arg8[%c0_57, %c0_58] : memref<288x4xf32, #tpu.memory_space<vmem>>, vector<288x4xf32>
    tpu.vector_store %arg8[%c0_57, %c0_58], %48 {strides = array<i32>} : memref<288x4xf32, #tpu.memory_space<vmem>>, vector<288x4xf32>,
    %c0_59 = arith.constant 0 : index
    %c36 = arith.constant 36 : index
    %c0_60 = arith.constant 0 : index
    %50 = vector.load %arg1[%c0_59, %c36, %c0_60] : memref<1x326x4xf32, #tpu.memory_space<vmem>>, vector<1x288x4xf32>
    %51 = vector.shape_cast %50 : vector<1x288x4xf32> to vector<288x4xf32>
    %c0_61 = arith.constant 0 : index
    %c0_62 = arith.constant 0 : index
    %52 = vector.load %arg8[%c0_61, %c0_62] : memref<288x4xf32, #tpu.memory_space<vmem>>, vector<288x4xf32>
    %c6 = arith.constant 6 : index
    %c0_63 = arith.constant 0 : index
    %c0_64 = arith.constant 0 : index
    %53 = vector.load %arg2[%c6, %c0_63, %c0_64] : memref<9x4x4xf32, #tpu.memory_space<vmem>>, vector<1x4x4xf32>
    %54 = vector.shape_cast %53 : vector<1x4x4xf32> to vector<4x4xf32>
    %cst_65 = arith.constant dense<0.000000e+00> : vector<288x4xf32>
    %55 = tpu.matmul %51, %54, %cst_65 {dimension_numbers = #tpu.dot_dimension_numbers<[1], [0], [0], [1], [0, 0, 1, 1], [], []>} : vector<288x4xf32>, vector<4x4xf32>, vector<288x4xf32> -> vector<288x4xf32>
    %56 = arith.addf %52, %55 : vector<288x4xf32>
    %c0_66 = arith.constant 0 : index
    %c0_67 = arith.constant 0 : index
    %57 = vector.load %arg8[%c0_66, %c0_67] : memref<288x4xf32, #tpu.memory_space<vmem>>, vector<288x4xf32>
    tpu.vector_store %arg8[%c0_66, %c0_67], %56 {strides = array<i32>} : memref<288x4xf32, #tpu.memory_space<vmem>>, vector<288x4xf32>,
    %c0_68 = arith.constant 0 : index
    %c37 = arith.constant 37 : index
    %c0_69 = arith.constant 0 : index
    %58 = vector.load %arg1[%c0_68, %c37, %c0_69] : memref<1x326x4xf32, #tpu.memory_space<vmem>>, vector<1x288x4xf32>
    %59 = vector.shape_cast %58 : vector<1x288x4xf32> to vector<288x4xf32>
    %c0_70 = arith.constant 0 : index
    %c0_71 = arith.constant 0 : index
    %60 = vector.load %arg8[%c0_70, %c0_71] : memref<288x4xf32, #tpu.memory_space<vmem>>, vector<288x4xf32>
    %c7 = arith.constant 7 : index
    %c0_72 = arith.constant 0 : index
    %c0_73 = arith.constant 0 : index
    %61 = vector.load %arg2[%c7, %c0_72, %c0_73] : memref<9x4x4xf32, #tpu.memory_space<vmem>>, vector<1x4x4xf32>
    %62 = vector.shape_cast %61 : vector<1x4x4xf32> to vector<4x4xf32>
    %cst_74 = arith.constant dense<0.000000e+00> : vector<288x4xf32>
    %63 = tpu.matmul %59, %62, %cst_74 {dimension_numbers = #tpu.dot_dimension_numbers<[1], [0], [0], [1], [0, 0, 1, 1], [], []>} : vector<288x4xf32>, vector<4x4xf32>, vector<288x4xf32> -> vector<288x4xf32>
    %64 = arith.addf %60, %63 : vector<288x4xf32>
    %c0_75 = arith.constant 0 : index
    %c0_76 = arith.constant 0 : index
    %65 = vector.load %arg8[%c0_75, %c0_76] : memref<288x4xf32, #tpu.memory_space<vmem>>, vector<288x4xf32>
    tpu.vector_store %arg8[%c0_75, %c0_76], %64 {strides = array<i32>} : memref<288x4xf32, #tpu.memory_space<vmem>>, vector<288x4xf32>,
    %c0_77 = arith.constant 0 : index
    %c38 = arith.constant 38 : index
    %c0_78 = arith.constant 0 : index
    %66 = vector.load %arg1[%c0_77, %c38, %c0_78] : memref<1x326x4xf32, #tpu.memory_space<vmem>>, vector<1x288x4xf32>
    %67 = vector.shape_cast %66 : vector<1x288x4xf32> to vector<288x4xf32>
    %c0_79 = arith.constant 0 : index
    %c0_80 = arith.constant 0 : index
    %68 = vector.load %arg8[%c0_79, %c0_80] : memref<288x4xf32, #tpu.memory_space<vmem>>, vector<288x4xf32>
    %c8 = arith.constant 8 : index
    %c0_81 = arith.constant 0 : index
    %c0_82 = arith.constant 0 : index
    %69 = vector.load %arg2[%c8, %c0_81, %c0_82] : memref<9x4x4xf32, #tpu.memory_space<vmem>>, vector<1x4x4xf32>
    %70 = vector.shape_cast %69 : vector<1x4x4xf32> to vector<4x4xf32>
    %cst_83 = arith.constant dense<0.000000e+00> : vector<288x4xf32>
    %71 = tpu.matmul %67, %70, %cst_83 {dimension_numbers = #tpu.dot_dimension_numbers<[1], [0], [0], [1], [0, 0, 1, 1], [], []>} : vector<288x4xf32>, vector<4x4xf32>, vector<288x4xf32> -> vector<288x4xf32>
    %72 = arith.addf %68, %71 : vector<288x4xf32>
    %c0_84 = arith.constant 0 : index
    %c0_85 = arith.constant 0 : index
    %73 = vector.load %arg8[%c0_84, %c0_85] : memref<288x4xf32, #tpu.memory_space<vmem>>, vector<288x4xf32>
    tpu.vector_store %arg8[%c0_84, %c0_85], %72 {strides = array<i32>} : memref<288x4xf32, #tpu.memory_space<vmem>>, vector<288x4xf32>,
    %c0_86 = arith.constant 0 : index
    %c0_87 = arith.constant 0 : index
    %74 = vector.load %arg8[%c0_86, %c0_87] : memref<288x4xf32, #tpu.memory_space<vmem>>, vector<288x4xf32>
    %c0_88 = arith.constant 0 : index
    %c0_89 = arith.constant 0 : index
    %75 = vector.load %arg5[%c0_88, %c0_89] : memref<1x288xf32, #tpu.memory_space<vmem>>, vector<1x288xf32>
    %cst_90 = arith.constant dense<0.000000e+00> : vector<1x4xf32>
    %76 = tpu.matmul %75, %74, %cst_90 {dimension_numbers = #tpu.dot_dimension_numbers<[1], [0], [0], [1], [0, 0, 1, 1], [], []>} : vector<1x288xf32>, vector<288x4xf32>, vector<1x4xf32> -> vector<1x4xf32>
    %cst_91 = arith.constant 3.906250e-03 : f32
    %77 = vector.broadcast %cst_91 : f32 to vector<1x4xf32>
    %78 = arith.mulf %76, %77 : vector<1x4xf32>
    %79 = arith.mulf %74, %74 : vector<288x4xf32>
    %cst_92 = arith.constant dense<0.000000e+00> : vector<1x4xf32>
    %80 = tpu.matmul %75, %79, %cst_92 {dimension_numbers = #tpu.dot_dimension_numbers<[1], [0], [0], [1], [0, 0, 1, 1], [], []>} : vector<1x288xf32>, vector<288x4xf32>, vector<1x4xf32> -> vector<1x4xf32>
    %cst_93 = arith.constant 3.906250e-03 : f32
    %81 = vector.broadcast %cst_93 : f32 to vector<1x4xf32>
    %82 = arith.mulf %80, %81 : vector<1x4xf32>
    %83 = arith.mulf %78, %78 : vector<1x4xf32>
    %84 = arith.subf %82, %83 : vector<1x4xf32>
    %cst_94 = arith.constant 9.99999993E-9 : f32
    %85 = vector.broadcast %cst_94 : f32 to vector<1x4xf32>
    %86 = arith.addf %84, %85 : vector<1x4xf32>
    %87 = math.rsqrt %86 : vector<1x4xf32>
    %c0_95 = arith.constant 0 : index
    %c0_96 = arith.constant 0 : index
    %c0_97 = arith.constant 0 : index
    %88 = vector.load %arg3[%c0_95, %c0_96, %c0_97] : memref<1x1x4xf32, #tpu.memory_space<vmem>>, vector<1x1x4xf32>
    %89 = vector.shape_cast %88 : vector<1x1x4xf32> to vector<1x4xf32>
    %90 = arith.mulf %87, %89 : vector<1x4xf32>
    %c0_98 = arith.constant 0 : index
    %c0_99 = arith.constant 0 : index
    %c0_100 = arith.constant 0 : index
    %91 = vector.load %arg4[%c0_98, %c0_99, %c0_100] : memref<1x1x4xf32, #tpu.memory_space<vmem>>, vector<1x1x4xf32>
    %92 = vector.shape_cast %91 : vector<1x1x4xf32> to vector<1x4xf32>
    %93 = arith.mulf %78, %90 : vector<1x4xf32>
    %94 = arith.subf %92, %93 : vector<1x4xf32>
    %95 = vector.broadcast %90 : vector<1x4xf32> to vector<288x4xf32>
    %96 = arith.mulf %74, %95 : vector<288x4xf32>
    %97 = vector.broadcast %94 : vector<1x4xf32> to vector<288x4xf32>
    %98 = arith.addf %96, %97 : vector<288x4xf32>
    %c0_101 = arith.constant 0 : index
    %c19_102 = arith.constant 19 : index
    %c0_103 = arith.constant 0 : index
    %99 = vector.load %arg6[%c0_101, %c19_102, %c0_103] : memref<1x326x4xf32, #tpu.memory_space<vmem>>, vector<1x288x4xf32>
    %100 = vector.shape_cast %99 : vector<1x288x4xf32> to vector<288x4xf32>
    %101 = arith.addf %98, %100 : vector<288x4xf32>
    %c0_104 = arith.constant 0 : index
    %c0_105 = arith.constant 0 : index
    %c0_106 = arith.constant 0 : index
    %102 = vector.load %arg7[%c0_104, %c0_105, %c0_106] : memref<1x288x4xf32, #tpu.memory_space<vmem>>, vector<1x288x4xf32>
    %103 = vector.shape_cast %102 : vector<1x288x4xf32> to vector<288x4xf32>
    %104 = vector.shape_cast %101 : vector<288x4xf32> to vector<1x288x4xf32>
    tpu.vector_store %arg7[%c0_104, %c0_105, %c0_106], %104 {strides = array<i32>} : memref<1x288x4xf32, #tpu.memory_space<vmem>>, vector<1x288x4xf32>,
    return
  }
  func.func @transform_0(%arg0: i32) -> (i32, i32, i32) {
    %c0_i32 = arith.constant 0 : i32
    %c0_i32_0 = arith.constant 0 : i32
    %c0_i32_1 = arith.constant 0 : i32
    return %arg0, %c0_i32, %c0_i32_0 : i32, i32, i32
  }
  func.func @transform_1(%arg0: i32) -> (i32, i32, i32) {
    %c0_i32 = arith.constant 0 : i32
    %c0_i32_0 = arith.constant 0 : i32
    %c0_i32_1 = arith.constant 0 : i32
    %c0_i32_2 = arith.constant 0 : i32
    return %c0_i32, %c0_i32_0, %c0_i32_1 : i32, i32, i32
  }
  func.func @transform_2(%arg0: i32) -> (i32, i32, i32) {
    %c0_i32 = arith.constant 0 : i32
    %c0_i32_0 = arith.constant 0 : i32
    %c0_i32_1 = arith.constant 0 : i32
    return %arg0, %c0_i32, %c0_i32_0 : i32, i32, i32
  }
  func.func @transform_3(%arg0: i32) -> (i32, i32, i32) {
    %c0_i32 = arith.constant 0 : i32
    %c0_i32_0 = arith.constant 0 : i32
    %c0_i32_1 = arith.constant 0 : i32
    return %arg0, %c0_i32, %c0_i32_0 : i32, i32, i32
  }
  func.func @transform_4(%arg0: i32) -> (i32, i32) {
    %c0_i32 = arith.constant 0 : i32
    %c0_i32_0 = arith.constant 0 : i32
    %c0_i32_1 = arith.constant 0 : i32
    return %c0_i32, %c0_i32_0 : i32, i32
  }
  func.func @transform_5(%arg0: i32) -> (i32, i32, i32) {
    %c0_i32 = arith.constant 0 : i32
    %c0_i32_0 = arith.constant 0 : i32
    %c0_i32_1 = arith.constant 0 : i32
    return %arg0, %c0_i32, %c0_i32_0 : i32, i32, i32
  }
  func.func @transform_6(%arg0: i32) -> (i32, i32, i32) {
    %c0_i32 = arith.constant 0 : i32
    %c0_i32_0 = arith.constant 0 : i32
    %c0_i32_1 = arith.constant 0 : i32
    return %arg0, %c0_i32, %c0_i32_0 : i32, i32, i32
  }
}

</mosaic_0001>

<llo_original>
// kernel: resnet_block_adain.2
$region0: #{resnet_block_adain.2}
  #allocation0 [shape = 'u32[]', space=smem, size = 0x4, offset = 0x4, fixed_abs, tag = 'smem constant byte address 0x4 - core index']
  #allocation1 [shape = 'u32[72,128]{1,0:T(1,128)}', space=vmem, size = 0x9000, scoped, tag = 'internal scratch']
  #allocation2 [shape = 'f32[288,4]{1,0:T(8,128)}', space=vmem, size = 0x24000, scoped, tag = 'scratch operand']
  %s0 = inlined_call_operand.vmem [shape: f32[2,326,4], index: 0, kind: input, shape index: {}]
  %s1 = inlined_call_operand.vmem [shape: f32[9,4,4], index: 1, kind: input, shape index: {}]
  %s2 = inlined_call_operand.vmem [shape: f32[2,1,4], index: 2, kind: input, shape index: {}]
  %s3 = inlined_call_operand.vmem [shape: f32[2,1,4], index: 3, kind: input, shape index: {}]
  %s4 = inlined_call_operand.vmem [shape: f32[1,288], index: 4, kind: input, shape index: {}]
  %s5 = inlined_call_operand.vmem [shape: f32[2,288,4], index: 5, kind: output, shape index: {}]
  %s6 = sld [smem:[#allocation0]]
  $region53: #{resnet_block_adain.2} parent=0
    _
  %s8 = ssub.s32 1, %s6
  %s9 = scalar_select 0, %s8, %s6
  loop: start=0, step=1, limit=4
  $region2: #{resnet_block_adain.2} parent=0 // loop_pre_header
    _
  $region3: #{resnet_block_adain.2} parent=0 // loop_header
    %s11 = sphi 0, %s15
    %p12 = scmp.ge.s32.totalorder %s11, 4
    %s21 = sphi 0, %s23
    %s24 = sphi 0, %s21
    %s25 = sphi 0, %s24
    %s41 = sphi 0, %s25
    %s45 = sphi 0, %s45
    %s47 = sphi 0, %s45
    %s48 = sphi 0, %s47
    %s62 = sphi 0, %s48
    %s68 = sphi 0, %s70
    %s71 = sphi 0, %s68
    %s72 = sphi 0, %s71
    %s88 = sphi 0, %s72
    %s94 = sphi 0, %s96
    %s97 = sphi 0, %s94
    %s98 = sphi 0, %s97
    %s114 = sphi 0, %s98
    %s118 = sphi 0, %s118
    %s120 = sphi 0, %s118
    %s121 = sphi 0, %s120
    %s135 = sphi 0, %s121
    %s141 = sphi 0, %s143
    %s144 = sphi 0, %s141
    %s145 = sphi 0, %s144
    %s161 = sphi 0, %s145
  $region4: #{resnet_block_adain.2} parent=0 // loop_header_branch
    %14 = sbr.rel (%p12) target = $region8
  $region5: #{resnet_block_adain.2} parent=0 // loop_body
    %s16 = ssub.s32 %s11, 1
    %s17 = ssub.s32 %s11, 2
    %s18 = sadd.s32 %s11, 1
    %s19 = ssub.s32 %s11, %s18
    %p20 = scmp.eq.s32.totalorder %s19, 0
    %s22 = sadd.s32 %s21, 1
    %s23 = scalar_select %p20, %s21, %s22
    %p26 = pneg %p20
    %p27 = scmp.eq.s32.totalorder %s11, 1
    %p28 = por %p26, %p27
    %p29 = scmp.ne.s32.totalorder %s21, %s24
    %p30 = scmp.eq.s32.totalorder %s11, 0
    %p31 = por %p29, %p30
    %p32 = scmp.ne.s32.totalorder %s21, %s24
    %p33 = scmp.eq.s32.totalorder %s16, 1
    %p34 = por %p32, %p33
    %p35 = scmp.ne.s32.totalorder %s24, %s25
    %p36 = scmp.eq.s32.totalorder %s16, 0
    %p37 = por %p35, %p36
    %p38 = scmp.ne.s32.totalorder %s24, %s25
    %p39 = scmp.eq.s32.totalorder %s17, 1
    %p40 = por %p38, %p39
    %p42 = scmp.ne.s32.totalorder %s25, %s41
    %p43 = scmp.eq.s32.totalorder %s17, 0
    %p44 = por %p42, %p43
    %s46 = sadd.s32 %s45, 1
    %p49 = scmp.eq.s32.totalorder %s11, 1
    %p50 = scmp.ne.s32.totalorder %s45, %s47
    %p51 = scmp.eq.s32.totalorder %s11, 0
    %p52 = por %p50, %p51
    %p53 = scmp.ne.s32.totalorder %s45, %s47
    %p54 = scmp.eq.s32.totalorder %s16, 1
    %p55 = por %p53, %p54
    %p56 = scmp.ne.s32.totalorder %s47, %s48
    %p57 = scmp.eq.s32.totalorder %s16, 0
    %p58 = por %p56, %p57
    %p59 = scmp.ne.s32.totalorder %s47, %s48
    %p60 = scmp.eq.s32.totalorder %s17, 1
    %p61 = por %p59, %p60
    %p63 = scmp.ne.s32.totalorder %s48, %s62
    %p64 = scmp.eq.s32.totalorder %s17, 0
    %p65 = por %p63, %p64
    %s66 = ssub.s32 %s11, %s18
    %p67 = scmp.eq.s32.totalorder %s66, 0
    %s69 = sadd.s32 %s68, 1
    %s70 = scalar_select %p67, %s68, %s69
    %p73 = pneg %p67
    %p74 = scmp.eq.s32.totalorder %s11, 1
    %p75 = por %p73, %p74
    %p76 = scmp.ne.s32.totalorder %s68, %s71
    %p77 = scmp.eq.s32.totalorder %s11, 0
    %p78 = por %p76, %p77
    %p79 = scmp.ne.s32.totalorder %s68, %s71
    %p80 = scmp.eq.s32.totalorder %s16, 1
    %p81 = por %p79, %p80
    %p82 = scmp.ne.s32.totalorder %s71, %s72
    %p83 = scmp.eq.s32.totalorder %s16, 0
    %p84 = por %p82, %p83
    %p85 = scmp.ne.s32.totalorder %s71, %s72
    %p86 = scmp.eq.s32.totalorder %s17, 1
    %p87 = por %p85, %p86
    %p89 = scmp.ne.s32.totalorder %s72, %s88
    %p90 = scmp.eq.s32.totalorder %s17, 0
    %p91 = por %p89, %p90
    %s92 = ssub.s32 %s11, %s18
    %p93 = scmp.eq.s32.totalorder %s92, 0
    %s95 = sadd.s32 %s94, 1
    %s96 = scalar_select %p93, %s94, %s95
    %p99 = pneg %p93
    %p100 = scmp.eq.s32.totalorder %s11, 1
    %p101 = por %p99, %p100
    %p102 = scmp.ne.s32.totalorder %s94, %s97
    %p103 = scmp.eq.s32.totalorder %s11, 0
    %p104 = por %p102, %p103
    %p105 = scmp.ne.s32.totalorder %s94, %s97
    %p106 = scmp.eq.s32.totalorder %s16, 1
    %p107 = por %p105, %p106
    %p108 = scmp.ne.s32.totalorder %s97, %s98
    %p109 = scmp.eq.s32.totalorder %s16, 0
    %p110 = por %p108, %p109
    %p111 = scmp.ne.s32.totalorder %s97, %s98
    %p112 = scmp.eq.s32.totalorder %s17, 1
    %p113 = por %p111, %p112
    %p115 = scmp.ne.s32.totalorder %s98, %s114
    %p116 = scmp.eq.s32.totalorder %s17, 0
    %p117 = por %p115, %p116
    %s119 = sadd.s32 %s118, 1
    %p122 = scmp.eq.s32.totalorder %s11, 1
    %p123 = scmp.ne.s32.totalorder %s118, %s120
    %p124 = scmp.eq.s32.totalorder %s11, 0
    %p125 = por %p123, %p124
    %p126 = scmp.ne.s32.totalorder %s118, %s120
    %p127 = scmp.eq.s32.totalorder %s16, 1
    %p128 = por %p126, %p127
    %p129 = scmp.ne.s32.totalorder %s120, %s121
    %p130 = scmp.eq.s32.totalorder %s16, 0
    %p131 = por %p129, %p130
    %p132 = scmp.ne.s32.totalorder %s120, %s121
    %p133 = scmp.eq.s32.totalorder %s17, 1
    %p134 = por %p132, %p133
    %p136 = scmp.ne.s32.totalorder %s121, %s135
    %p137 = scmp.eq.s32.totalorder %s17, 0
    %p138 = por %p136, %p137
    %s139 = ssub.s32 %s11, %s18
    %p140 = scmp.eq.s32.totalorder %s139, 0
    %s142 = sadd.s32 %s141, 1
    %s143 = scalar_select %p140, %s141, %s142
    %p146 = pneg %p140
    %p147 = scmp.eq.s32.totalorder %s11, 1
    %p148 = por %p146, %p147
    %p149 = scmp.ne.s32.totalorder %s141, %s144
    %p150 = scmp.eq.s32.totalorder %s11, 0
    %p151 = por %p149, %p150
    %p152 = scmp.ne.s32.totalorder %s141, %s144
    %p153 = scmp.eq.s32.totalorder %s16, 1
    %p154 = por %p152, %p153
    %p155 = scmp.ne.s32.totalorder %s144, %s145
    %p156 = scmp.eq.s32.totalorder %s16, 0
    %p157 = por %p155, %p156
    %p158 = scmp.ne.s32.totalorder %s144, %s145
    %p159 = scmp.eq.s32.totalorder %s17, 1
    %p160 = por %p158, %p159
    %p162 = scmp.ne.s32.totalorder %s145, %s161
    %p163 = scmp.eq.s32.totalorder %s17, 0
    %p164 = por %p162, %p163
    %p165 = scmp.le.s32.totalorder 1, %s11
    %p166 = scmp.lt.s32.totalorder %s11, 3
    %p167 = pnand %p165, %p166
    %p168 = pneg %p167
    // Predicated region
    $region9: #{resnet_block_adain.2} parent=5 // pred_check
      _
    $region10: #{resnet_block_adain.2} parent=5 // pred_check_branch
      %170 = sbr.rel (%p167) target = $region12
    $region11: #{resnet_block_adain.2} parent=5 // pred_region
      %s171 = ssub.s32 %s11, 1
      // Predicated region
      $region13: #{resnet_block_adain.2} parent=11 // pred_check
        %p172 = pneg %p58
      $region14: #{resnet_block_adain.2} parent=11 // pred_check_branch
        %174 = sbr.rel (%p172) target = $region16
      $region15: #{resnet_block_adain.2} parent=11 // pred_region
        _
      $region16: #{resnet_block_adain.2} parent=11 // pred_fallthru
        _
      // Predicated region
      $region17: #{resnet_block_adain.2} parent=11 // pred_check
        %p175 = pneg %p131
      $region18: #{resnet_block_adain.2} parent=11 // pred_check_branch
        %177 = sbr.rel (%p175) target = $region20
      $region19: #{resnet_block_adain.2} parent=11 // pred_region
        _
      $region20: #{resnet_block_adain.2} parent=11 // pred_fallthru
        _
    $region12: #{resnet_block_adain.2} parent=5 // pred_fallthru
      _
    %p178 = scmp.lt.s32.totalorder %s11, 2
    // Predicated region
    $region21: #{resnet_block_adain.2} parent=5 // pred_check
      %p179 = pneg %p178
    $region22: #{resnet_block_adain.2} parent=5 // pred_check_branch
      %181 = sbr.rel (%p179) target = $region24
    $region23: #{resnet_block_adain.2} parent=5 // pred_region
      // Predicated region
      $region25: #{resnet_block_adain.2} parent=23 // pred_check
        %p182 = pneg %p31
      $region26: #{resnet_block_adain.2} parent=23 // pred_check_branch
        %184 = sbr.rel (%p182) target = $region28
      $region27: #{resnet_block_adain.2} parent=23 // pred_region
        %p185 = scmp.lt.s32.totalorder %s11, 1
        %s186 = scalar_select %p185, %s11, 1
        %s187 = smul.addr %s186, 41
        %s188 = smul.addr %s187, 8
        %s189 = scalar_lea.vmem %s0, %s188
      $region28: #{resnet_block_adain.2} parent=23 // pred_fallthru
        _
      // Predicated region
      $region29: #{resnet_block_adain.2} parent=23 // pred_check
        %p190 = pneg %p78
      $region30: #{resnet_block_adain.2} parent=23 // pred_check_branch
        %192 = sbr.rel (%p190) target = $region32
      $region31: #{resnet_block_adain.2} parent=23 // pred_region
        %p193 = scmp.lt.s32.totalorder %s11, 1
        %s194 = scalar_select %p193, %s11, 1
        %s195 = scalar_lea.vmem %s2, %s194
      $region32: #{resnet_block_adain.2} parent=23 // pred_fallthru
        _
      // Predicated region
      $region33: #{resnet_block_adain.2} parent=23 // pred_check
        %p196 = pneg %p104
      $region34: #{resnet_block_adain.2} parent=23 // pred_check_branch
        %198 = sbr.rel (%p196) target = $region36
      $region35: #{resnet_block_adain.2} parent=23 // pred_region
        %p199 = scmp.lt.s32.totalorder %s11, 1
        %s200 = scalar_select %p199, %s11, 1
        %s201 = scalar_lea.vmem %s3, %s200
      $region36: #{resnet_block_adain.2} parent=23 // pred_fallthru
        _
    $region24: #{resnet_block_adain.2} parent=5 // pred_fallthru
      _
    %p202 = scmp.le.s32.totalorder 1, %s11
    %p203 = scmp.lt.s32.totalorder %s11, 3
    %p204 = pnand %p202, %p203
    %p205 = pneg %p204
    // Predicated region
    $region37: #{resnet_block_adain.2} parent=5 // pred_check
      _
    $region38: #{resnet_block_adain.2} parent=5 // pred_check_branch
      %207 = sbr.rel (%p204) target = $region40
    $region39: #{resnet_block_adain.2} parent=5 // pred_region
      %s208 = ssub.s32 %s11, 1
      %p209 = scmp.lt.s32.totalorder %s16, 1
      %s210 = scalar_select %p209, %s16, 1
      %s211 = smul.addr %s210, 41
      %s212 = smul.addr %s211, 8
      %s213 = scalar_lea.vmem %s0, %s212
      %p214 = pneg %p37
      %p215 = pneg %p34
      %p216 = pneg %p58
      %p217 = pneg %p55
      %p218 = scmp.lt.s32.totalorder %s16, 1
      %s219 = scalar_select %p218, %s16, 1
      %s220 = scalar_lea.vmem %s2, %s219
      %p221 = pneg %p84
      %p222 = pneg %p81
      %p223 = scmp.lt.s32.totalorder %s16, 1
      %s224 = scalar_select %p223, %s16, 1
      %s225 = scalar_lea.vmem %s3, %s224
      %p226 = pneg %p110
      %p227 = pneg %p107
      %p228 = pneg %p131
      %p229 = pneg %p128
      %p230 = pneg %p157
      %p231 = pneg %p154
      %p232 = scmp.lt.s32.totalorder %s16, 1
      %s233 = scalar_select %p232, %s16, 1
      %s234 = smul.addr %s233, 36
      %s235 = smul.addr %s234, 8
      %s236 = scalar_lea.vmem %s5, %s235
      %p237 = scmp.lt.s32.totalorder %s16, 1
      %s238 = scalar_select %p237, %s16, 1
      %s239 = smul.addr %s238, 41
      %s240 = smul.addr %s239, 8
      %s241 = scalar_lea.vmem %s0, %s240
      %p242 = scmp.lt.s32.totalorder %s16, 1
      %s243 = scalar_select %p242, %s16, 1
      %s244 = scalar_lea.vmem %s2, %s243
      %p245 = scmp.lt.s32.totalorder %s16, 1
      %s246 = scalar_select %p245, %s16, 1
      %s247 = scalar_lea.vmem %s3, %s246
      %p248 = scmp.lt.s32.totalorder %s16, 1
      %s249 = scalar_select %p248, %s16, 1
      %s250 = smul.addr %s249, 36
      %s251 = smul.addr %s250, 8
      %s252 = scalar_lea.vmem %s5, %s251
      %vm253 = vcmask 31744
      %254 = vst.msk [vmem:[#allocation2] sm:$0xff] %vm253, 0.0
      %255 = vst.msk [vmem:[#allocation2 + $0x8] sm:$0xff] %vm253, 0.0
      %256 = vst.msk [vmem:[#allocation2 + $0x10] sm:$0xff] %vm253, 0.0
      %257 = vst.msk [vmem:[#allocation2 + $0x18] sm:$0xff] %vm253, 0.0
      %258 = vst.msk [vmem:[#allocation2 + $0x20] sm:$0xff] %vm253, 0.0
      %259 = vst.msk [vmem:[#allocation2 + $0x28] sm:$0xff] %vm253, 0.0
      %260 = vst.msk [vmem:[#allocation2 + $0x30] sm:$0xff] %vm253, 0.0
      %261 = vst.msk [vmem:[#allocation2 + $0x38] sm:$0xff] %vm253, 0.0
      %262 = vst.msk [vmem:[#allocation2 + $0x40] sm:$0xff] %vm253, 0.0
      %263 = vst.msk [vmem:[#allocation2 + $0x48] sm:$0xff] %vm253, 0.0
      %264 = vst.msk [vmem:[#allocation2 + $0x50] sm:$0xff] %vm253, 0.0
      %265 = vst.msk [vmem:[#allocation2 + $0x58] sm:$0xff] %vm253, 0.0
      %266 = vst.msk [vmem:[#allocation2 + $0x60] sm:$0xff] %vm253, 0.0
      %267 = vst.msk [vmem:[#allocation2 + $0x68] sm:$0xff] %vm253, 0.0
      %268 = vst.msk [vmem:[#allocation2 + $0x70] sm:$0xff] %vm253, 0.0
      %269 = vst.msk [vmem:[#allocation2 + $0x78] sm:$0xff] %vm253, 0.0
      %270 = vst.msk [vmem:[#allocation2 + $0x80] sm:$0xff] %vm253, 0.0
      %271 = vst.msk [vmem:[#allocation2 + $0x88] sm:$0xff] %vm253, 0.0
      %272 = vst.msk [vmem:[#allocation2 + $0x90] sm:$0xff] %vm253, 0.0
      %273 = vst.msk [vmem:[#allocation2 + $0x98] sm:$0xff] %vm253, 0.0
      %274 = vst.msk [vmem:[#allocation2 + $0xa0] sm:$0xff] %vm253, 0.0
      %275 = vst.msk [vmem:[#allocation2 + $0xa8] sm:$0xff] %vm253, 0.0
      %276 = vst.msk [vmem:[#allocation2 + $0xb0] sm:$0xff] %vm253, 0.0
      %277 = vst.msk [vmem:[#allocation2 + $0xb8] sm:$0xff] %vm253, 0.0
      %278 = vst.msk [vmem:[#allocation2 + $0xc0] sm:$0xff] %vm253, 0.0
      %279 = vst.msk [vmem:[#allocation2 + $0xc8] sm:$0xff] %vm253, 0.0
      %280 = vst.msk [vmem:[#allocation2 + $0xd0] sm:$0xff] %vm253, 0.0
      %281 = vst.msk [vmem:[#allocation2 + $0xd8] sm:$0xff] %vm253, 0.0
      %282 = vst.msk [vmem:[#allocation2 + $0xe0] sm:$0xff] %vm253, 0.0
      %283 = vst.msk [vmem:[#allocation2 + $0xe8] sm:$0xff] %vm253, 0.0
      %284 = vst.msk [vmem:[#allocation2 + $0xf0] sm:$0xff] %vm253, 0.0
      %285 = vst.msk [vmem:[#allocation2 + $0xf8] sm:$0xff] %vm253, 0.0
      %286 = vst.msk [vmem:[#allocation2 + $0x100] sm:$0xff] %vm253, 0.0
      %287 = vst.msk [vmem:[#allocation2 + $0x108] sm:$0xff] %vm253, 0.0
      %288 = vst.msk [vmem:[#allocation2 + $0x110] sm:$0xff] %vm253, 0.0
      %289 = vst.msk [vmem:[#allocation2 + $0x118] sm:$0xff] %vm253, 0.0
      %v290 = vld [vmem:[%s241] sm:$0xff]
      %v291 = vld [vmem:[%s241 + $0x8] sm:$0xff]
      %v292 = vld [vmem:[%s241 + $0x10] sm:$0xff]
      %v293 = vld [vmem:[%s241 + $0x18] sm:$0xff]
      %v294 = vld [vmem:[%s241 + $0x20] sm:$0xff]
      %v295 = vld [vmem:[%s241 + $0x28] sm:$0xff]
      %v296 = vld [vmem:[%s241 + $0x30] sm:$0xff]
      %v297 = vld [vmem:[%s241 + $0x38] sm:$0xff]
      %v298 = vld [vmem:[%s241 + $0x40] sm:$0xff]
      %v299 = vld [vmem:[%s241 + $0x48] sm:$0xff]
      %v300 = vld [vmem:[%s241 + $0x50] sm:$0xff]
      %v301 = vld [vmem:[%s241 + $0x58] sm:$0xff]
      %v302 = vld [vmem:[%s241 + $0x60] sm:$0xff]
      %v303 = vld [vmem:[%s241 + $0x68] sm:$0xff]
      %v304 = vld [vmem:[%s241 + $0x70] sm:$0xff]
      %v305 = vld [vmem:[%s241 + $0x78] sm:$0xff]
      %v306 = vld [vmem:[%s241 + $0x80] sm:$0xff]
      %v307 = vld [vmem:[%s241 + $0x88] sm:$0xff]
      %v308 = vld [vmem:[%s241 + $0x90] sm:$0xff]
      %v309 = vld [vmem:[%s241 + $0x98] sm:$0xff]
      %v310 = vld [vmem:[%s241 + $0xa0] sm:$0xff]
      %v311 = vld [vmem:[%s241 + $0xa8] sm:$0xff]
      %v312 = vld [vmem:[%s241 + $0xb0] sm:$0xff]
      %v313 = vld [vmem:[%s241 + $0xb8] sm:$0xff]
      %v314 = vld [vmem:[%s241 + $0xc0] sm:$0xff]
      %v315 = vld [vmem:[%s241 + $0xc8] sm:$0xff]
      %v316 = vld [vmem:[%s241 + $0xd0] sm:$0xff]
      %v317 = vld [vmem:[%s241 + $0xd8] sm:$0xff]
      %v318 = vld [vmem:[%s241 + $0xe0] sm:$0xff]
      %v319 = vld [vmem:[%s241 + $0xe8] sm:$0xff]
      %v320 = vld [vmem:[%s241 + $0xf0] sm:$0xff]
      %v321 = vld [vmem:[%s241 + $0xf8] sm:$0xff]
      %v322 = vld [vmem:[%s241 + $0x100] sm:$0xff]
      %v323 = vld [vmem:[%s241 + $0x108] sm:$0xff]
      %v324 = vld [vmem:[%s241 + $0x110] sm:$0xff]
      %v325 = vld [vmem:[%s241 + $0x118] sm:$0xff]
      %v326 = vld [vmem:[#allocation2] sm:$0xff]
      %v327 = vld [vmem:[#allocation2 + $0x8] sm:$0xff]
      %v328 = vld [vmem:[#allocation2 + $0x10] sm:$0xff]
      %v329 = vld [vmem:[#allocation2 + $0x18] sm:$0xff]
      %v330 = vld [vmem:[#allocation2 + $0x20] sm:$0xff]
      %v331 = vld [vmem:[#allocation2 + $0x28] sm:$0xff]
      %v332 = vld [vmem:[#allocation2 + $0x30] sm:$0xff]
      %v333 = vld [vmem:[#allocation2 + $0x38] sm:$0xff]
      %v334 = vld [vmem:[#allocation2 + $0x40] sm:$0xff]
      %v335 = vld [vmem:[#allocation2 + $0x48] sm:$0xff]
      %v336 = vld [vmem:[#allocation2 + $0x50] sm:$0xff]
      %v337 = vld [vmem:[#allocation2 + $0x58] sm:$0xff]
      %v338 = vld [vmem:[#allocation2 + $0x60] sm:$0xff]
      %v339 = vld [vmem:[#allocation2 + $0x68] sm:$0xff]
      %v340 = vld [vmem:[#allocation2 + $0x70] sm:$0xff]
      %v341 = vld [vmem:[#allocation2 + $0x78] sm:$0xff]
      %v342 = vld [vmem:[#allocation2 + $0x80] sm:$0xff]
      %v343 = vld [vmem:[#allocation2 + $0x88] sm:$0xff]
      %v344 = vld [vmem:[#allocation2 + $0x90] sm:$0xff]
      %v345 = vld [vmem:[#allocation2 + $0x98] sm:$0xff]
      %v346 = vld [vmem:[#allocation2 + $0xa0] sm:$0xff]
      %v347 = vld [vmem:[#allocation2 + $0xa8] sm:$0xff]
      %v348 = vld [vmem:[#allocation2 + $0xb0] sm:$0xff]
      %v349 = vld [vmem:[#allocation2 + $0xb8] sm:$0xff]
      %v350 = vld [vmem:[#allocation2 + $0xc0] sm:$0xff]
      %v351 = vld [vmem:[#allocation2 + $0xc8] sm:$0xff]
      %v352 = vld [vmem:[#allocation2 + $0xd0] sm:$0xff]
      %v353 = vld [vmem:[#allocation2 + $0xd8] sm:$0xff]
      %v354 = vld [vmem:[#allocation2 + $0xe0] sm:$0xff]
      %v355 = vld [vmem:[#allocation2 + $0xe8] sm:$0xff]
      %v356 = vld [vmem:[#allocation2 + $0xf0] sm:$0xff]
      %v357 = vld [vmem:[#allocation2 + $0xf8] sm:$0xff]
      %v358 = vld [vmem:[#allocation2 + $0x100] sm:$0xff]
      %v359 = vld [vmem:[#allocation2 + $0x108] sm:$0xff]
      %v360 = vld [vmem:[#allocation2 + $0x110] sm:$0xff]
      %v361 = vld [vmem:[#allocation2 + $0x118] sm:$0xff]
      %v362 = vld [vmem:[%s1] sm:$0xf]
      %v364 = vsel %vm253, %v290, 0
      %v367 = vsel %vm253, %v291, 0
      %v370 = vsel %vm253, %v292, 0
      %v373 = vsel %vm253, %v293, 0
      %v376 = vsel %vm253, %v294, 0
      %v379 = vsel %vm253, %v295, 0
      %v382 = vsel %vm253, %v296, 0
      %v385 = vsel %vm253, %v297, 0
      %v388 = vsel %vm253, %v298, 0
      %v391 = vsel %vm253, %v299, 0
      %v394 = vsel %vm253, %v300, 0
      %v397 = vsel %vm253, %v301, 0
      %v400 = vsel %vm253, %v302, 0
      %v403 = vsel %vm253, %v303, 0
      %v406 = vsel %vm253, %v304, 0
      %v409 = vsel %vm253, %v305, 0
      %v412 = vsel %vm253, %v306, 0
      %v415 = vsel %vm253, %v307, 0
      %v418 = vsel %vm253, %v308, 0
      %v421 = vsel %vm253, %v309, 0
      %v424 = vsel %vm253, %v310, 0
      %v427 = vsel %vm253, %v311, 0
      %v430 = vsel %vm253, %v312, 0
      %v433 = vsel %vm253, %v313, 0
      %v436 = vsel %vm253, %v314, 0
      %v439 = vsel %vm253, %v315, 0
      %v442 = vsel %vm253, %v316, 0
      %v445 = vsel %vm253, %v317, 0
      %v448 = vsel %vm253, %v318, 0
      %v451 = vsel %vm253, %v319, 0
      %v454 = vsel %vm253, %v320, 0
      %v457 = vsel %vm253, %v321, 0
      %v460 = vsel %vm253, %v322, 0
      %v463 = vsel %vm253, %v323, 0
      %v466 = vsel %vm253, %v324, 0
      %v469 = vsel %vm253, %v325, 0
      %vm471 = vcmask 1043456
      %v473 = vsel %vm471, %v362, 0
      %475 = vmatpush.msra.mxu0 0.0
      %476 = vmatpush.msra.mxu0 0.0
      %477 = vmatpush.msra.mxu0 0.0
      %478 = vmatpush.msra.mxu0 0.0
      %479 = vmatpush.msra.mxu0 0.0
      %480 = vmatpush.msra.mxu0 0.0
      %481 = vmatpush.msra.mxu0 0.0
      %482 = vmatpush.msra.mxu0 0.0
      %483 = vmatpush.msra.mxu0 0.0
      %484 = vmatpush.msra.mxu0 0.0
      %485 = vmatpush.msra.mxu0 0.0
      %486 = vmatpush.msra.mxu0 0.0
      %487 = vmatpush.msra.mxu0 0.0
      %488 = vmatpush.msra.mxu0 0.0
      %489 = vmatpush.msra.mxu0 0.0
      %490 = vmatpush.msra.mxu0 %v473
      %491 = vmatmul.f32.gmra.mxu0 %v364
      %v492 = vpop.f32.mrf.mxu0
      %v493 = vadd.f32 0.0, %v492
      %494 = vmatmul.f32.gmra.mxu0 %v367
      %v495 = vpop.f32.mrf.mxu0
      %v496 = vadd.f32 0.0, %v495
      %497 = vmatmul.f32.gmra.mxu0 %v370
      %v498 = vpop.f32.mrf.mxu0
      %v499 = vadd.f32 0.0, %v498
      %500 = vmatmul.f32.gmra.mxu0 %v373
      %v501 = vpop.f32.mrf.mxu0
      %v502 = vadd.f32 0.0, %v501
      %503 = vmatmul.f32.gmra.mxu0 %v376
      %v504 = vpop.f32.mrf.mxu0
      %v505 = vadd.f32 0.0, %v504
      %506 = vmatmul.f32.gmra.mxu0 %v379
      %v507 = vpop.f32.mrf.mxu0
      %v508 = vadd.f32 0.0, %v507
      %509 = vmatmul.f32.gmra.mxu0 %v382
      %v510 = vpop.f32.mrf.mxu0
      %v511 = vadd.f32 0.0, %v510
      %512 = vmatmul.f32.gmra.mxu0 %v385
      %v513 = vpop.f32.mrf.mxu0
      %v514 = vadd.f32 0.0, %v513
      %515 = vmatmul.f32.gmra.mxu0 %v388
      %v516 = vpop.f32.mrf.mxu0
      %v517 = vadd.f32 0.0, %v516
      %518 = vmatmul.f32.gmra.mxu0 %v391
      %v519 = vpop.f32.mrf.mxu0
      %v520 = vadd.f32 0.0, %v519
      %521 = vmatmul.f32.gmra.mxu0 %v394
      %v522 = vpop.f32.mrf.mxu0
      %v523 = vadd.f32 0.0, %v522
      %524 = vmatmul.f32.gmra.mxu0 %v397
      %v525 = vpop.f32.mrf.mxu0
      %v526 = vadd.f32 0.0, %v525
      %527 = vmatmul.f32.gmra.mxu0 %v400
      %v528 = vpop.f32.mrf.mxu0
      %v529 = vadd.f32 0.0, %v528
      %530 = vmatmul.f32.gmra.mxu0 %v403
      %v531 = vpop.f32.mrf.mxu0
      %v532 = vadd.f32 0.0, %v531
      %533 = vmatmul.f32.gmra.mxu0 %v406
      %v534 = vpop.f32.mrf.mxu0
      %v535 = vadd.f32 0.0, %v534
      %536 = vmatmul.f32.gmra.mxu0 %v409
      %v537 = vpop.f32.mrf.mxu0
      %v538 = vadd.f32 0.0, %v537
      %539 = vmatmul.f32.gmra.mxu0 %v412
      %v540 = vpop.f32.mrf.mxu0
      %v541 = vadd.f32 0.0, %v540
      %542 = vmatmul.f32.gmra.mxu0 %v415
      %v543 = vpop.f32.mrf.mxu0
      %v544 = vadd.f32 0.0, %v543
      %545 = vmatmul.f32.gmra.mxu0 %v418
      %v546 = vpop.f32.mrf.mxu0
      %v547 = vadd.f32 0.0, %v546
      %548 = vmatmul.f32.gmra.mxu0 %v421
      %v549 = vpop.f32.mrf.mxu0
      %v550 = vadd.f32 0.0, %v549
      %551 = vmatmul.f32.gmra.mxu0 %v424
      %v552 = vpop.f32.mrf.mxu0
      %v553 = vadd.f32 0.0, %v552
      %554 = vmatmul.f32.gmra.mxu0 %v427
      %v555 = vpop.f32.mrf.mxu0
      %v556 = vadd.f32 0.0, %v555
      %557 = vmatmul.f32.gmra.mxu0 %v430
      %v558 = vpop.f32.mrf.mxu0
      %v559 = vadd.f32 0.0, %v558
      %560 = vmatmul.f32.gmra.mxu0 %v433
      %v561 = vpop.f32.mrf.mxu0
      %v562 = vadd.f32 0.0, %v561
      %563 = vmatmul.f32.gmra.mxu0 %v436
      %v564 = vpop.f32.mrf.mxu0
      %v565 = vadd.f32 0.0, %v564
      %566 = vmatmul.f32.gmra.mxu0 %v439
      %v567 = vpop.f32.mrf.mxu0
      %v568 = vadd.f32 0.0, %v567
      %569 = vmatmul.f32.gmra.mxu0 %v442
      %v570 = vpop.f32.mrf.mxu0
      %v571 = vadd.f32 0.0, %v570
      %572 = vmatmul.f32.gmra.mxu0 %v445
      %v573 = vpop.f32.mrf.mxu0
      %v574 = vadd.f32 0.0, %v573
      %575 = vmatmul.f32.gmra.mxu0 %v448
      %v576 = vpop.f32.mrf.mxu0
      %v577 = vadd.f32 0.0, %v576
      %578 = vmatmul.f32.gmra.mxu0 %v451
      %v579 = vpop.f32.mrf.mxu0
      %v580 = vadd.f32 0.0, %v579
      %581 = vmatmul.f32.gmra.mxu0 %v454
      %v582 = vpop.f32.mrf.mxu0
      %v583 = vadd.f32 0.0, %v582
      %584 = vmatmul.f32.gmra.mxu0 %v457
      %v585 = vpop.f32.mrf.mxu0
      %v586 = vadd.f32 0.0, %v585
      %587 = vmatmul.f32.gmra.mxu0 %v460
      %v588 = vpop.f32.mrf.mxu0
      %v589 = vadd.f32 0.0, %v588
      %590 = vmatmul.f32.gmra.mxu0 %v463
      %v591 = vpop.f32.mrf.mxu0
      %v592 = vadd.f32 0.0, %v591
      %593 = vmatmul.f32.gmra.mxu0 %v466
      %v594 = vpop.f32.mrf.mxu0
      %v595 = vadd.f32 0.0, %v594
      %596 = vmatmul.f32.gmra.mxu0 %v469
      %v597 = vpop.f32.mrf.mxu0
      %v598 = vadd.f32 0.0, %v597
      %599 = vdwg.mxu0
      %v600 = vadd.f32 %v326, %v493
      %v601 = vadd.f32 %v327, %v496
      %v602 = vadd.f32 %v328, %v499
      %v603 = vadd.f32 %v329, %v502
      %v604 = vadd.f32 %v330, %v505
      %v605 = vadd.f32 %v331, %v508
      %v606 = vadd.f32 %v332, %v511
      %v607 = vadd.f32 %v333, %v514
      %v608 = vadd.f32 %v334, %v517
      %v609 = vadd.f32 %v335, %v520
      %v610 = vadd.f32 %v336, %v523
      %v611 = vadd.f32 %v337, %v526
      %v612 = vadd.f32 %v338, %v529
      %v613 = vadd.f32 %v339, %v532
      %v614 = vadd.f32 %v340, %v535
      %v615 = vadd.f32 %v341, %v538
      %v616 = vadd.f32 %v342, %v541
      %v617 = vadd.f32 %v343, %v544
      %v618 = vadd.f32 %v344, %v547
      %v619 = vadd.f32 %v345, %v550
      %v620 = vadd.f32 %v346, %v553
      %v621 = vadd.f32 %v347, %v556
      %v622 = vadd.f32 %v348, %v559
      %v623 = vadd.f32 %v349, %v562
      %v624 = vadd.f32 %v350, %v565
      %v625 = vadd.f32 %v351, %v568
      %v626 = vadd.f32 %v352, %v571
      %v627 = vadd.f32 %v353, %v574
      %v628 = vadd.f32 %v354, %v577
      %v629 = vadd.f32 %v355, %v580
      %v630 = vadd.f32 %v356, %v583
      %v631 = vadd.f32 %v357, %v586
      %v632 = vadd.f32 %v358, %v589
      %v633 = vadd.f32 %v359, %v592
      %v634 = vadd.f32 %v360, %v595
      %v635 = vadd.f32 %v361, %v598
      %636 = vst.msk [vmem:[#allocation2] sm:$0xff] %vm253, %v600
      %637 = vst.msk [vmem:[#allocation2 + $0x8] sm:$0xff] %vm253, %v601
      %638 = vst.msk [vmem:[#allocation2 + $0x10] sm:$0xff] %vm253, %v602
      %639 = vst.msk [vmem:[#allocation2 + $0x18] sm:$0xff] %vm253, %v603
      %640 = vst.msk [vmem:[#allocation2 + $0x20] sm:$0xff] %vm253, %v604
      %641 = vst.msk [vmem:[#allocation2 + $0x28] sm:$0xff] %vm253, %v605
      %642 = vst.msk [vmem:[#allocation2 + $0x30] sm:$0xff] %vm253, %v606
      %643 = vst.msk [vmem:[#allocation2 + $0x38] sm:$0xff] %vm253, %v607
      %644 = vst.msk [vmem:[#allocation2 + $0x40] sm:$0xff] %vm253, %v608
      %645 = vst.msk [vmem:[#allocation2 + $0x48] sm:$0xff] %vm253, %v609
      %646 = vst.msk [vmem:[#allocation2 + $0x50] sm:$0xff] %vm253, %v610
      %647 = vst.msk [vmem:[#allocation2 + $0x58] sm:$0xff] %vm253, %v611
      %648 = vst.msk [vmem:[#allocation2 + $0x60] sm:$0xff] %vm253, %v612
      %649 = vst.msk [vmem:[#allocation2 + $0x68] sm:$0xff] %vm253, %v613
      %650 = vst.msk [vmem:[#allocation2 + $0x70] sm:$0xff] %vm253, %v614
      %651 = vst.msk [vmem:[#allocation2 + $0x78] sm:$0xff] %vm253, %v615
      %652 = vst.msk [vmem:[#allocation2 + $0x80] sm:$0xff] %vm253, %v616
      %653 = vst.msk [vmem:[#allocation2 + $0x88] sm:$0xff] %vm253, %v617
      %654 = vst.msk [vmem:[#allocation2 + $0x90] sm:$0xff] %vm253, %v618
      %655 = vst.msk [vmem:[#allocation2 + $0x98] sm:$0xff] %vm253, %v619
      %656 = vst.msk [vmem:[#allocation2 + $0xa0] sm:$0xff] %vm253, %v620
      %657 = vst.msk [vmem:[#allocation2 + $0xa8] sm:$0xff] %vm253, %v621
      %658 = vst.msk [vmem:[#allocation2 + $0xb0] sm:$0xff] %vm253, %v622
      %659 = vst.msk [vmem:[#allocation2 + $0xb8] sm:$0xff] %vm253, %v623
      %660 = vst.msk [vmem:[#allocation2 + $0xc0] sm:$0xff] %vm253, %v624
      %661 = vst.msk [vmem:[#allocation2 + $0xc8] sm:$0xff] %vm253, %v625
      %662 = vst.msk [vmem:[#allocation2 + $0xd0] sm:$0xff] %vm253, %v626
      %663 = vst.msk [vmem:[#allocation2 + $0xd8] sm:$0xff] %vm253, %v627
      %664 = vst.msk [vmem:[#allocation2 + $0xe0] sm:$0xff] %vm253, %v628
      %665 = vst.msk [vmem:[#allocation2 + $0xe8] sm:$0xff] %vm253, %v629
      %666 = vst.msk [vmem:[#allocation2 + $0xf0] sm:$0xff] %vm253, %v630
      %667 = vst.msk [vmem:[#allocation2 + $0xf8] sm:$0xff] %vm253, %v631
      %668 = vst.msk [vmem:[#allocation2 + $0x100] sm:$0xff] %vm253, %v632
      %669 = vst.msk [vmem:[#allocation2 + $0x108] sm:$0xff] %vm253, %v633
      %670 = vst.msk [vmem:[#allocation2 + $0x110] sm:$0xff] %vm253, %v634
      %671 = vst.msk [vmem:[#allocation2 + $0x118] sm:$0xff] %vm253, %v635
      %v672 = vld [vmem:[%s241 + $0x1] sm:$0xff]
      %v673 = vld [vmem:[%s241 + $0x9] sm:$0xff]
      %v674 = vld [vmem:[%s241 + $0x11] sm:$0xff]
      %v675 = vld [vmem:[%s241 + $0x19] sm:$0xff]
      %v676 = vld [vmem:[%s241 + $0x21] sm:$0xff]
      %v677 = vld [vmem:[%s241 + $0x29] sm:$0xff]
      %v678 = vld [vmem:[%s241 + $0x31] sm:$0xff]
      %v679 = vld [vmem:[%s241 + $0x39] sm:$0xff]
      %v680 = vld [vmem:[%s241 + $0x41] sm:$0xff]
      %v681 = vld [vmem:[%s241 + $0x49] sm:$0xff]
      %v682 = vld [vmem:[%s241 + $0x51] sm:$0xff]
      %v683 = vld [vmem:[%s241 + $0x59] sm:$0xff]
      %v684 = vld [vmem:[%s241 + $0x61] sm:$0xff]
      %v685 = vld [vmem:[%s241 + $0x69] sm:$0xff]
      %v686 = vld [vmem:[%s241 + $0x71] sm:$0xff]
      %v687 = vld [vmem:[%s241 + $0x79] sm:$0xff]
      %v688 = vld [vmem:[%s241 + $0x81] sm:$0xff]
      %v689 = vld [vmem:[%s241 + $0x89] sm:$0xff]
      %v690 = vld [vmem:[%s241 + $0x91] sm:$0xff]
      %v691 = vld [vmem:[%s241 + $0x99] sm:$0xff]
      %v692 = vld [vmem:[%s241 + $0xa1] sm:$0xff]
      %v693 = vld [vmem:[%s241 + $0xa9] sm:$0xff]
      %v694 = vld [vmem:[%s241 + $0xb1] sm:$0xff]
      %v695 = vld [vmem:[%s241 + $0xb9] sm:$0xff]
      %v696 = vld [vmem:[%s241 + $0xc1] sm:$0xff]
      %v697 = vld [vmem:[%s241 + $0xc9] sm:$0xff]
      %v698 = vld [vmem:[%s241 + $0xd1] sm:$0xff]
      %v699 = vld [vmem:[%s241 + $0xd9] sm:$0xff]
      %v700 = vld [vmem:[%s241 + $0xe1] sm:$0xff]
      %v701 = vld [vmem:[%s241 + $0xe9] sm:$0xff]
      %v702 = vld [vmem:[%s241 + $0xf1] sm:$0xff]
      %v703 = vld [vmem:[%s241 + $0xf9] sm:$0xff]
      %v704 = vld [vmem:[%s241 + $0x101] sm:$0xff]
      %v705 = vld [vmem:[%s241 + $0x109] sm:$0xff]
      %v706 = vld [vmem:[%s241 + $0x111] sm:$0xff]
      %v707 = vld [vmem:[%s241 + $0x119] sm:$0xff]
      %v708 = vld [vmem:[#allocation2] sm:$0xff]
      %v709 = vld [vmem:[#allocation2 + $0x8] sm:$0xff]
      %v710 = vld [vmem:[#allocation2 + $0x10] sm:$0xff]
      %v711 = vld [vmem:[#allocation2 + $0x18] sm:$0xff]
      %v712 = vld [vmem:[#allocation2 + $0x20] sm:$0xff]
      %v713 = vld [vmem:[#allocation2 + $0x28] sm:$0xff]
      %v714 = vld [vmem:[#allocation2 + $0x30] sm:$0xff]
      %v715 = vld [vmem:[#allocation2 + $0x38] sm:$0xff]
      %v716 = vld [vmem:[#allocation2 + $0x40] sm:$0xff]
      %v717 = vld [vmem:[#allocation2 + $0x48] sm:$0xff]
      %v718 = vld [vmem:[#allocation2 + $0x50] sm:$0xff]
      %v719 = vld [vmem:[#allocation2 + $0x58] sm:$0xff]
      %v720 = vld [vmem:[#allocation2 + $0x60] sm:$0xff]
      %v721 = vld [vmem:[#allocation2 + $0x68] sm:$0xff]
      %v722 = vld [vmem:[#allocation2 + $0x70] sm:$0xff]
      %v723 = vld [vmem:[#allocation2 + $0x78] sm:$0xff]
      %v724 = vld [vmem:[#allocation2 + $0x80] sm:$0xff]
      %v725 = vld [vmem:[#allocation2 + $0x88] sm:$0xff]
      %v726 = vld [vmem:[#allocation2 + $0x90] sm:$0xff]
      %v727 = vld [vmem:[#allocation2 + $0x98] sm:$0xff]
      %v728 = vld [vmem:[#allocation2 + $0xa0] sm:$0xff]
      %v729 = vld [vmem:[#allocation2 + $0xa8] sm:$0xff]
      %v730 = vld [vmem:[#allocation2 + $0xb0] sm:$0xff]
      %v731 = vld [vmem:[#allocation2 + $0xb8] sm:$0xff]
      %v732 = vld [vmem:[#allocation2 + $0xc0] sm:$0xff]
      %v733 = vld [vmem:[#allocation2 + $0xc8] sm:$0xff]
      %v734 = vld [vmem:[#allocation2 + $0xd0] sm:$0xff]
      %v735 = vld [vmem:[#allocation2 + $0xd8] sm:$0xff]
      %v736 = vld [vmem:[#allocation2 + $0xe0] sm:$0xff]
      %v737 = vld [vmem:[#allocation2 + $0xe8] sm:$0xff]
      %v738 = vld [vmem:[#allocation2 + $0xf0] sm:$0xff]
      %v739 = vld [vmem:[#allocation2 + $0xf8] sm:$0xff]
      %v740 = vld [vmem:[#allocation2 + $0x100] sm:$0xff]
      %v741 = vld [vmem:[#allocation2 + $0x108] sm:$0xff]
      %v742 = vld [vmem:[#allocation2 + $0x110] sm:$0xff]
      %v743 = vld [vmem:[#allocation2 + $0x118] sm:$0xff]
      %s744 = scalar_lea.vmem %s1, 4
      %v745 = vld [vmem:[%s744] sm:$0xf]
      %v747 = vsel %vm253, %v672, 0
      %v750 = vsel %vm253, %v673, 0
      %v753 = vsel %vm253, %v674, 0
      %v756 = vsel %vm253, %v675, 0
      %v759 = vsel %vm253, %v676, 0
      %v762 = vsel %vm253, %v677, 0
      %v765 = vsel %vm253, %v678, 0
      %v768 = vsel %vm253, %v679, 0
      %v771 = vsel %vm253, %v680, 0
      %v774 = vsel %vm253, %v681, 0
      %v777 = vsel %vm253, %v682, 0
      %v780 = vsel %vm253, %v683, 0
      %v783 = vsel %vm253, %v684, 0
      %v786 = vsel %vm253, %v685, 0
      %v789 = vsel %vm253, %v686, 0
      %v792 = vsel %vm253, %v687, 0
      %v795 = vsel %vm253, %v688, 0
      %v798 = vsel %vm253, %v689, 0
      %v801 = vsel %vm253, %v690, 0
      %v804 = vsel %vm253, %v691, 0
      %v807 = vsel %vm253, %v692, 0
      %v810 = vsel %vm253, %v693, 0
      %v813 = vsel %vm253, %v694, 0
      %v816 = vsel %vm253, %v695, 0
      %v819 = vsel %vm253, %v696, 0
      %v822 = vsel %vm253, %v697, 0
      %v825 = vsel %vm253, %v698, 0
      %v828 = vsel %vm253, %v699, 0
      %v831 = vsel %vm253, %v700, 0
      %v834 = vsel %vm253, %v701, 0
      %v837 = vsel %vm253, %v702, 0
      %v840 = vsel %vm253, %v703, 0
      %v843 = vsel %vm253, %v704, 0
      %v846 = vsel %vm253, %v705, 0
      %v849 = vsel %vm253, %v706, 0
      %v852 = vsel %vm253, %v707, 0
      %v855 = vsel %vm471, %v745, 0
      %857 = vmatpush.msra.mxu0 0.0
      %858 = vmatpush.msra.mxu0 0.0
      %859 = vmatpush.msra.mxu0 0.0
      %860 = vmatpush.msra.mxu0 0.0
      %861 = vmatpush.msra.mxu0 0.0
      %862 = vmatpush.msra.mxu0 0.0
      %863 = vmatpush.msra.mxu0 0.0
      %864 = vmatpush.msra.mxu0 0.0
      %865 = vmatpush.msra.mxu0 0.0
      %866 = vmatpush.msra.mxu0 0.0
      %867 = vmatpush.msra.mxu0 0.0
      %868 = vmatpush.msra.mxu0 0.0
      %869 = vmatpush.msra.mxu0 0.0
      %870 = vmatpush.msra.mxu0 0.0
      %871 = vmatpush.msra.mxu0 0.0
      %872 = vmatpush.msra.mxu0 %v855
      %873 = vmatmul.f32.gmra.mxu0 %v747
      %v874 = vpop.f32.mrf.mxu0
      %v875 = vadd.f32 0.0, %v874
      %876 = vmatmul.f32.gmra.mxu0 %v750
      %v877 = vpop.f32.mrf.mxu0
      %v878 = vadd.f32 0.0, %v877
      %879 = vmatmul.f32.gmra.mxu0 %v753
      %v880 = vpop.f32.mrf.mxu0
      %v881 = vadd.f32 0.0, %v880
      %882 = vmatmul.f32.gmra.mxu0 %v756
      %v883 = vpop.f32.mrf.mxu0
      %v884 = vadd.f32 0.0, %v883
      %885 = vmatmul.f32.gmra.mxu0 %v759
      %v886 = vpop.f32.mrf.mxu0
      %v887 = vadd.f32 0.0, %v886
      %888 = vmatmul.f32.gmra.mxu0 %v762
      %v889 = vpop.f32.mrf.mxu0
      %v890 = vadd.f32 0.0, %v889
      %891 = vmatmul.f32.gmra.mxu0 %v765
      %v892 = vpop.f32.mrf.mxu0
      %v893 = vadd.f32 0.0, %v892
      %894 = vmatmul.f32.gmra.mxu0 %v768
      %v895 = vpop.f32.mrf.mxu0
      %v896 = vadd.f32 0.0, %v895
      %897 = vmatmul.f32.gmra.mxu0 %v771
      %v898 = vpop.f32.mrf.mxu0
      %v899 = vadd.f32 0.0, %v898
      %900 = vmatmul.f32.gmra.mxu0 %v774
      %v901 = vpop.f32.mrf.mxu0
      %v902 = vadd.f32 0.0, %v901
      %903 = vmatmul.f32.gmra.mxu0 %v777
      %v904 = vpop.f32.mrf.mxu0
      %v905 = vadd.f32 0.0, %v904
      %906 = vmatmul.f32.gmra.mxu0 %v780
      %v907 = vpop.f32.mrf.mxu0
      %v908 = vadd.f32 0.0, %v907
      %909 = vmatmul.f32.gmra.mxu0 %v783
      %v910 = vpop.f32.mrf.mxu0
      %v911 = vadd.f32 0.0, %v910
      %912 = vmatmul.f32.gmra.mxu0 %v786
      %v913 = vpop.f32.mrf.mxu0
      %v914 = vadd.f32 0.0, %v913
      %915 = vmatmul.f32.gmra.mxu0 %v789
      %v916 = vpop.f32.mrf.mxu0
      %v917 = vadd.f32 0.0, %v916
      %918 = vmatmul.f32.gmra.mxu0 %v792
      %v919 = vpop.f32.mrf.mxu0
      %v920 = vadd.f32 0.0, %v919
      %921 = vmatmul.f32.gmra.mxu0 %v795
      %v922 = vpop.f32.mrf.mxu0
      %v923 = vadd.f32 0.0, %v922
      %924 = vmatmul.f32.gmra.mxu0 %v798
      %v925 = vpop.f32.mrf.mxu0
      %v926 = vadd.f32 0.0, %v925
      %927 = vmatmul.f32.gmra.mxu0 %v801
      %v928 = vpop.f32.mrf.mxu0
      %v929 = vadd.f32 0.0, %v928
      %930 = vmatmul.f32.gmra.mxu0 %v804
      %v931 = vpop.f32.mrf.mxu0
      %v932 = vadd.f32 0.0, %v931
      %933 = vmatmul.f32.gmra.mxu0 %v807
      %v934 = vpop.f32.mrf.mxu0
      %v935 = vadd.f32 0.0, %v934
      %936 = vmatmul.f32.gmra.mxu0 %v810
      %v937 = vpop.f32.mrf.mxu0
      %v938 = vadd.f32 0.0, %v937
      %939 = vmatmul.f32.gmra.mxu0 %v813
      %v940 = vpop.f32.mrf.mxu0
      %v941 = vadd.f32 0.0, %v940
      %942 = vmatmul.f32.gmra.mxu0 %v816
      %v943 = vpop.f32.mrf.mxu0
      %v944 = vadd.f32 0.0, %v943
      %945 = vmatmul.f32.gmra.mxu0 %v819
      %v946 = vpop.f32.mrf.mxu0
      %v947 = vadd.f32 0.0, %v946
      %948 = vmatmul.f32.gmra.mxu0 %v822
      %v949 = vpop.f32.mrf.mxu0
      %v950 = vadd.f32 0.0, %v949
      %951 = vmatmul.f32.gmra.mxu0 %v825
      %v952 = vpop.f32.mrf.mxu0
      %v953 = vadd.f32 0.0, %v952
      %954 = vmatmul.f32.gmra.mxu0 %v828
      %v955 = vpop.f32.mrf.mxu0
      %v956 = vadd.f32 0.0, %v955
      %957 = vmatmul.f32.gmra.mxu0 %v831
      %v958 = vpop.f32.mrf.mxu0
      %v959 = vadd.f32 0.0, %v958
      %960 = vmatmul.f32.gmra.mxu0 %v834
      %v961 = vpop.f32.mrf.mxu0
      %v962 = vadd.f32 0.0, %v961
      %963 = vmatmul.f32.gmra.mxu0 %v837
      %v964 = vpop.f32.mrf.mxu0
      %v965 = vadd.f32 0.0, %v964
      %966 = vmatmul.f32.gmra.mxu0 %v840
      %v967 = vpop.f32.mrf.mxu0
      %v968 = vadd.f32 0.0, %v967
      %969 = vmatmul.f32.gmra.mxu0 %v843
      %v970 = vpop.f32.mrf.mxu0
      %v971 = vadd.f32 0.0, %v970
      %972 = vmatmul.f32.gmra.mxu0 %v846
      %v973 = vpop.f32.mrf.mxu0
      %v974 = vadd.f32 0.0, %v973
      %975 = vmatmul.f32.gmra.mxu0 %v849
      %v976 = vpop.f32.mrf.mxu0
      %v977 = vadd.f32 0.0, %v976
      %978 = vmatmul.f32.gmra.mxu0 %v852
      %v979 = vpop.f32.mrf.mxu0
      %v980 = vadd.f32 0.0, %v979
      %981 = vdwg.mxu0
      %v982 = vadd.f32 %v708, %v875
      %v983 = vadd.f32 %v709, %v878
      %v984 = vadd.f32 %v710, %v881
      %v985 = vadd.f32 %v711, %v884
      %v986 = vadd.f32 %v712, %v887
      %v987 = vadd.f32 %v713, %v890
      %v988 = vadd.f32 %v714, %v893
      %v989 = vadd.f32 %v715, %v896
      %v990 = vadd.f32 %v716, %v899
      %v991 = vadd.f32 %v717, %v902
      %v992 = vadd.f32 %v718, %v905
      %v993 = vadd.f32 %v719, %v908
      %v994 = vadd.f32 %v720, %v911
      %v995 = vadd.f32 %v721, %v914
      %v996 = vadd.f32 %v722, %v917
      %v997 = vadd.f32 %v723, %v920
      %v998 = vadd.f32 %v724, %v923
      %v999 = vadd.f32 %v725, %v926
      %v1000 = vadd.f32 %v726, %v929
      %v1001 = vadd.f32 %v727, %v932
      %v1002 = vadd.f32 %v728, %v935
      %v1003 = vadd.f32 %v729, %v938
      %v1004 = vadd.f32 %v730, %v941
      %v1005 = vadd.f32 %v731, %v944
      %v1006 = vadd.f32 %v732, %v947
      %v1007 = vadd.f32 %v733, %v950
      %v1008 = vadd.f32 %v734, %v953
      %v1009 = vadd.f32 %v735, %v956
      %v1010 = vadd.f32 %v736, %v959
      %v1011 = vadd.f32 %v737, %v962
      %v1012 = vadd.f32 %v738, %v965
      %v1013 = vadd.f32 %v739, %v968
      %v1014 = vadd.f32 %v740, %v971
      %v1015 = vadd.f32 %v741, %v974
      %v1016 = vadd.f32 %v742, %v977
      %v1017 = vadd.f32 %v743, %v980
      %1018 = vst.msk [vmem:[#allocation2] sm:$0xff] %vm253, %v982
      %1019 = vst.msk [vmem:[#allocation2 + $0x8] sm:$0xff] %vm253, %v983
      %1020 = vst.msk [vmem:[#allocation2 + $0x10] sm:$0xff] %vm253, %v984
      %1021 = vst.msk [vmem:[#allocation2 + $0x18] sm:$0xff] %vm253, %v985
      %1022 = vst.msk [vmem:[#allocation2 + $0x20] sm:$0xff] %vm253, %v986
      %1023 = vst.msk [vmem:[#allocation2 + $0x28] sm:$0xff] %vm253, %v987
      %1024 = vst.msk [vmem:[#allocation2 + $0x30] sm:$0xff] %vm253, %v988
      %1025 = vst.msk [vmem:[#allocation2 + $0x38] sm:$0xff] %vm253, %v989
      %1026 = vst.msk [vmem:[#allocation2 + $0x40] sm:$0xff] %vm253, %v990
      %1027 = vst.msk [vmem:[#allocation2 + $0x48] sm:$0xff] %vm253, %v991
      %1028 = vst.msk [vmem:[#allocation2 + $0x50] sm:$0xff] %vm253, %v992
      %1029 = vst.msk [vmem:[#allocation2 + $0x58] sm:$0xff] %vm253, %v993
      %1030 = vst.msk [vmem:[#allocation2 + $0x60] sm:$0xff] %vm253, %v994
      %1031 = vst.msk [vmem:[#allocation2 + $0x68] sm:$0xff] %vm253, %v995
      %1032 = vst.msk [vmem:[#allocation2 + $0x70] sm:$0xff] %vm253, %v996
      %1033 = vst.msk [vmem:[#allocation2 + $0x78] sm:$0xff] %vm253, %v997
      %1034 = vst.msk [vmem:[#allocation2 + $0x80] sm:$0xff] %vm253, %v998
      %1035 = vst.msk [vmem:[#allocation2 + $0x88] sm:$0xff] %vm253, %v999
      %1036 = vst.msk [vmem:[#allocation2 + $0x90] sm:$0xff] %vm253, %v1000
      %1037 = vst.msk [vmem:[#allocation2 + $0x98] sm:$0xff] %vm253, %v1001
      %1038 = vst.msk [vmem:[#allocation2 + $0xa0] sm:$0xff] %vm253, %v1002
      %1039 = vst.msk [vmem:[#allocation2 + $0xa8] sm:$0xff] %vm253, %v1003
      %1040 = vst.msk [vmem:[#allocation2 + $0xb0] sm:$0xff] %vm253, %v1004
      %1041 = vst.msk [vmem:[#allocation2 + $0xb8] sm:$0xff] %vm253, %v1005
      %1042 = vst.msk [vmem:[#allocation2 + $0xc0] sm:$0xff] %vm253, %v1006
      %1043 = vst.msk [vmem:[#allocation2 + $0xc8] sm:$0xff] %vm253, %v1007
      %1044 = vst.msk [vmem:[#allocation2 + $0xd0] sm:$0xff] %vm253, %v1008
      %1045 = vst.msk [vmem:[#allocation2 + $0xd8] sm:$0xff] %vm253, %v1009
      %1046 = vst.msk [vmem:[#allocation2 + $0xe0] sm:$0xff] %vm253, %v1010
      %1047 = vst.msk [vmem:[#allocation2 + $0xe8] sm:$0xff] %vm253, %v1011
      %1048 = vst.msk [vmem:[#allocation2 + $0xf0] sm:$0xff] %vm253, %v1012
      %1049 = vst.msk [vmem:[#allocation2 + $0xf8] sm:$0xff] %vm253, %v1013
      %1050 = vst.msk [vmem:[#allocation2 + $0x100] sm:$0xff] %vm253, %v1014
      %1051 = vst.msk [vmem:[#allocation2 + $0x108] sm:$0xff] %vm253, %v1015
      %1052 = vst.msk [vmem:[#allocation2 + $0x110] sm:$0xff] %vm253, %v1016
      %1053 = vst.msk [vmem:[#allocation2 + $0x118] sm:$0xff] %vm253, %v1017
      %v1054 = vld [vmem:[%s241 + $0x2] sm:$0xff]
      %v1055 = vld [vmem:[%s241 + $0xa] sm:$0xff]
      %v1056 = vld [vmem:[%s241 + $0x12] sm:$0xff]
      %v1057 = vld [vmem:[%s241 + $0x1a] sm:$0xff]
      %v1058 = vld [vmem:[%s241 + $0x22] sm:$0xff]
      %v1059 = vld [vmem:[%s241 + $0x2a] sm:$0xff]
      %v1060 = vld [vmem:[%s241 + $0x32] sm:$0xff]
      %v1061 = vld [vmem:[%s241 + $0x3a] sm:$0xff]
      %v1062 = vld [vmem:[%s241 + $0x42] sm:$0xff]
      %v1063 = vld [vmem:[%s241 + $0x4a] sm:$0xff]
      %v1064 = vld [vmem:[%s241 + $0x52] sm:$0xff]
      %v1065 = vld [vmem:[%s241 + $0x5a] sm:$0xff]
      %v1066 = vld [vmem:[%s241 + $0x62] sm:$0xff]
      %v1067 = vld [vmem:[%s241 + $0x6a] sm:$0xff]
      %v1068 = vld [vmem:[%s241 + $0x72] sm:$0xff]
      %v1069 = vld [vmem:[%s241 + $0x7a] sm:$0xff]
      %v1070 = vld [vmem:[%s241 + $0x82] sm:$0xff]
      %v1071 = vld [vmem:[%s241 + $0x8a] sm:$0xff]
      %v1072 = vld [vmem:[%s241 + $0x92] sm:$0xff]
      %v1073 = vld [vmem:[%s241 + $0x9a] sm:$0xff]
      %v1074 = vld [vmem:[%s241 + $0xa2] sm:$0xff]
      %v1075 = vld [vmem:[%s241 + $0xaa] sm:$0xff]
      %v1076 = vld [vmem:[%s241 + $0xb2] sm:$0xff]
      %v1077 = vld [vmem:[%s241 + $0xba] sm:$0xff]
      %v1078 = vld [vmem:[%s241 + $0xc2] sm:$0xff]
      %v1079 = vld [vmem:[%s241 + $0xca] sm:$0xff]
      %v1080 = vld [vmem:[%s241 + $0xd2] sm:$0xff]
      %v1081 = vld [vmem:[%s241 + $0xda] sm:$0xff]
      %v1082 = vld [vmem:[%s241 + $0xe2] sm:$0xff]
      %v1083 = vld [vmem:[%s241 + $0xea] sm:$0xff]
      %v1084 = vld [vmem:[%s241 + $0xf2] sm:$0xff]
      %v1085 = vld [vmem:[%s241 + $0xfa] sm:$0xff]
      %v1086 = vld [vmem:[%s241 + $0x102] sm:$0xff]
      %v1087 = vld [vmem:[%s241 + $0x10a] sm:$0xff]
      %v1088 = vld [vmem:[%s241 + $0x112] sm:$0xff]
      %v1089 = vld [vmem:[%s241 + $0x11a] sm:$0xff]
      %v1090 = vld [vmem:[#allocation2] sm:$0xff]
      %v1091 = vld [vmem:[#allocation2 + $0x8] sm:$0xff]
      %v1092 = vld [vmem:[#allocation2 + $0x10] sm:$0xff]
      %v1093 = vld [vmem:[#allocation2 + $0x18] sm:$0xff]
      %v1094 = vld [vmem:[#allocation2 + $0x20] sm:$0xff]
      %v1095 = vld [vmem:[#allocation2 + $0x28] sm:$0xff]
      %v1096 = vld [vmem:[#allocation2 + $0x30] sm:$0xff]
      %v1097 = vld [vmem:[#allocation2 + $0x38] sm:$0xff]
      %v1098 = vld [vmem:[#allocation2 + $0x40] sm:$0xff]
      %v1099 = vld [vmem:[#allocation2 + $0x48] sm:$0xff]
      %v1100 = vld [vmem:[#allocation2 + $0x50] sm:$0xff]
      %v1101 = vld [vmem:[#allocation2 + $0x58] sm:$0xff]
      %v1102 = vld [vmem:[#allocation2 + $0x60] sm:$0xff]
      %v1103 = vld [vmem:[#allocation2 + $0x68] sm:$0xff]
      %v1104 = vld [vmem:[#allocation2 + $0x70] sm:$0xff]
      %v1105 = vld [vmem:[#allocation2 + $0x78] sm:$0xff]
      %v1106 = vld [vmem:[#allocation2 + $0x80] sm:$0xff]
      %v1107 = vld [vmem:[#allocation2 + $0x88] sm:$0xff]
      %v1108 = vld [vmem:[#allocation2 + $0x90] sm:$0xff]
      %v1109 = vld [vmem:[#allocation2 + $0x98] sm:$0xff]
      %v1110 = vld [vmem:[#allocation2 + $0xa0] sm:$0xff]
      %v1111 = vld [vmem:[#allocation2 + $0xa8] sm:$0xff]
      %v1112 = vld [vmem:[#allocation2 + $0xb0] sm:$0xff]
      %v1113 = vld [vmem:[#allocation2 + $0xb8] sm:$0xff]
      %v1114 = vld [vmem:[#allocation2 + $0xc0] sm:$0xff]
      %v1115 = vld [vmem:[#allocation2 + $0xc8] sm:$0xff]
      %v1116 = vld [vmem:[#allocation2 + $0xd0] sm:$0xff]
      %v1117 = vld [vmem:[#allocation2 + $0xd8] sm:$0xff]
      %v1118 = vld [vmem:[#allocation2 + $0xe0] sm:$0xff]
      %v1119 = vld [vmem:[#allocation2 + $0xe8] sm:$0xff]
      %v1120 = vld [vmem:[#allocation2 + $0xf0] sm:$0xff]
      %v1121 = vld [vmem:[#allocation2 + $0xf8] sm:$0xff]
      %v1122 = vld [vmem:[#allocation2 + $0x100] sm:$0xff]
      %v1123 = vld [vmem:[#allocation2 + $0x108] sm:$0xff]
      %v1124 = vld [vmem:[#allocation2 + $0x110] sm:$0xff]
      %v1125 = vld [vmem:[#allocation2 + $0x118] sm:$0xff]
      %s1126 = scalar_lea.vmem %s1, 8
      %v1127 = vld [vmem:[%s1126] sm:$0xf]
      %v1129 = vsel %vm253, %v1054, 0
      %v1132 = vsel %vm253, %v1055, 0
      %v1135 = vsel %vm253, %v1056, 0
      %v1138 = vsel %vm253, %v1057, 0
      %v1141 = vsel %vm253, %v1058, 0
      %v1144 = vsel %vm253, %v1059, 0
      %v1147 = vsel %vm253, %v1060, 0
      %v1150 = vsel %vm253, %v1061, 0
      %v1153 = vsel %vm253, %v1062, 0
      %v1156 = vsel %vm253, %v1063, 0
      %v1159 = vsel %vm253, %v1064, 0
      %v1162 = vsel %vm253, %v1065, 0
      %v1165 = vsel %vm253, %v1066, 0
      %v1168 = vsel %vm253, %v1067, 0
      %v1171 = vsel %vm253, %v1068, 0
      %v1174 = vsel %vm253, %v1069, 0
      %v1177 = vsel %vm253, %v1070, 0
      %v1180 = vsel %vm253, %v1071, 0
      %v1183 = vsel %vm253, %v1072, 0
      %v1186 = vsel %vm253, %v1073, 0
      %v1189 = vsel %vm253, %v1074, 0
      %v1192 = vsel %vm253, %v1075, 0
      %v1195 = vsel %vm253, %v1076, 0
      %v1198 = vsel %vm253, %v1077, 0
      %v1201 = vsel %vm253, %v1078, 0
      %v1204 = vsel %vm253, %v1079, 0
      %v1207 = vsel %vm253, %v1080, 0
      %v1210 = vsel %vm253, %v1081, 0
      %v1213 = vsel %vm253, %v1082, 0
      %v1216 = vsel %vm253, %v1083, 0
      %v1219 = vsel %vm253, %v1084, 0
      %v1222 = vsel %vm253, %v1085, 0
      %v1225 = vsel %vm253, %v1086, 0
      %v1228 = vsel %vm253, %v1087, 0
      %v1231 = vsel %vm253, %v1088, 0
      %v1234 = vsel %vm253, %v1089, 0
      %v1237 = vsel %vm471, %v1127, 0
      %1239 = vmatpush.msra.mxu0 0.0
      %1240 = vmatpush.msra.mxu0 0.0
      %1241 = vmatpush.msra.mxu0 0.0
      %1242 = vmatpush.msra.mxu0 0.0
      %1243 = vmatpush.msra.mxu0 0.0
      %1244 = vmatpush.msra.mxu0 0.0
      %1245 = vmatpush.msra.mxu0 0.0
      %1246 = vmatpush.msra.mxu0 0.0
      %1247 = vmatpush.msra.mxu0 0.0
      %1248 = vmatpush.msra.mxu0 0.0
      %1249 = vmatpush.msra.mxu0 0.0
      %1250 = vmatpush.msra.mxu0 0.0
      %1251 = vmatpush.msra.mxu0 0.0
      %1252 = vmatpush.msra.mxu0 0.0
      %1253 = vmatpush.msra.mxu0 0.0
      %1254 = vmatpush.msra.mxu0 %v1237
      %1255 = vmatmul.f32.gmra.mxu0 %v1129
      %v1256 = vpop.f32.mrf.mxu0
      %v1257 = vadd.f32 0.0, %v1256
      %1258 = vmatmul.f32.gmra.mxu0 %v1132
      %v1259 = vpop.f32.mrf.mxu0
      %v1260 = vadd.f32 0.0, %v1259
      %1261 = vmatmul.f32.gmra.mxu0 %v1135
      %v1262 = vpop.f32.mrf.mxu0
      %v1263 = vadd.f32 0.0, %v1262
      %1264 = vmatmul.f32.gmra.mxu0 %v1138
      %v1265 = vpop.f32.mrf.mxu0
      %v1266 = vadd.f32 0.0, %v1265
      %1267 = vmatmul.f32.gmra.mxu0 %v1141
      %v1268 = vpop.f32.mrf.mxu0
      %v1269 = vadd.f32 0.0, %v1268
      %1270 = vmatmul.f32.gmra.mxu0 %v1144
      %v1271 = vpop.f32.mrf.mxu0
      %v1272 = vadd.f32 0.0, %v1271
      %1273 = vmatmul.f32.gmra.mxu0 %v1147
      %v1274 = vpop.f32.mrf.mxu0
      %v1275 = vadd.f32 0.0, %v1274
      %1276 = vmatmul.f32.gmra.mxu0 %v1150
      %v1277 = vpop.f32.mrf.mxu0
      %v1278 = vadd.f32 0.0, %v1277
      %1279 = vmatmul.f32.gmra.mxu0 %v1153
      %v1280 = vpop.f32.mrf.mxu0
      %v1281 = vadd.f32 0.0, %v1280
      %1282 = vmatmul.f32.gmra.mxu0 %v1156
      %v1283 = vpop.f32.mrf.mxu0
      %v1284 = vadd.f32 0.0, %v1283
      %1285 = vmatmul.f32.gmra.mxu0 %v1159
      %v1286 = vpop.f32.mrf.mxu0
      %v1287 = vadd.f32 0.0, %v1286
      %1288 = vmatmul.f32.gmra.mxu0 %v1162
      %v1289 = vpop.f32.mrf.mxu0
      %v1290 = vadd.f32 0.0, %v1289
      %1291 = vmatmul.f32.gmra.mxu0 %v1165
      %v1292 = vpop.f32.mrf.mxu0
      %v1293 = vadd.f32 0.0, %v1292
      %1294 = vmatmul.f32.gmra.mxu0 %v1168
      %v1295 = vpop.f32.mrf.mxu0
      %v1296 = vadd.f32 0.0, %v1295
      %1297 = vmatmul.f32.gmra.mxu0 %v1171
      %v1298 = vpop.f32.mrf.mxu0
      %v1299 = vadd.f32 0.0, %v1298
      %1300 = vmatmul.f32.gmra.mxu0 %v1174
      %v1301 = vpop.f32.mrf.mxu0
      %v1302 = vadd.f32 0.0, %v1301
      %1303 = vmatmul.f32.gmra.mxu0 %v1177
      %v1304 = vpop.f32.mrf.mxu0
      %v1305 = vadd.f32 0.0, %v1304
      %1306 = vmatmul.f32.gmra.mxu0 %v1180
      %v1307 = vpop.f32.mrf.mxu0
      %v1308 = vadd.f32 0.0, %v1307
      %1309 = vmatmul.f32.gmra.mxu0 %v1183
      %v1310 = vpop.f32.mrf.mxu0
      %v1311 = vadd.f32 0.0, %v1310
      %1312 = vmatmul.f32.gmra.mxu0 %v1186
      %v1313 = vpop.f32.mrf.mxu0
      %v1314 = vadd.f32 0.0, %v1313
      %1315 = vmatmul.f32.gmra.mxu0 %v1189
      %v1316 = vpop.f32.mrf.mxu0
      %v1317 = vadd.f32 0.0, %v1316
      %1318 = vmatmul.f32.gmra.mxu0 %v1192
      %v1319 = vpop.f32.mrf.mxu0
      %v1320 = vadd.f32 0.0, %v1319
      %1321 = vmatmul.f32.gmra.mxu0 %v1195
      %v1322 = vpop.f32.mrf.mxu0
      %v1323 = vadd.f32 0.0, %v1322
      %1324 = vmatmul.f32.gmra.mxu0 %v1198
      %v1325 = vpop.f32.mrf.mxu0
      %v1326 = vadd.f32 0.0, %v1325
      %1327 = vmatmul.f32.gmra.mxu0 %v1201
      %v1328 = vpop.f32.mrf.mxu0
      %v1329 = vadd.f32 0.0, %v1328
      %1330 = vmatmul.f32.gmra.mxu0 %v1204
      %v1331 = vpop.f32.mrf.mxu0
      %v1332 = vadd.f32 0.0, %v1331
      %1333 = vmatmul.f32.gmra.mxu0 %v1207
      %v1334 = vpop.f32.mrf.mxu0
      %v1335 = vadd.f32 0.0, %v1334
      %1336 = vmatmul.f32.gmra.mxu0 %v1210
      %v1337 = vpop.f32.mrf.mxu0
      %v1338 = vadd.f32 0.0, %v1337
      %1339 = vmatmul.f32.gmra.mxu0 %v1213
      %v1340 = vpop.f32.mrf.mxu0
      %v1341 = vadd.f32 0.0, %v1340
      %1342 = vmatmul.f32.gmra.mxu0 %v1216
      %v1343 = vpop.f32.mrf.mxu0
      %v1344 = vadd.f32 0.0, %v1343
      %1345 = vmatmul.f32.gmra.mxu0 %v1219
      %v1346 = vpop.f32.mrf.mxu0
      %v1347 = vadd.f32 0.0, %v1346
      %1348 = vmatmul.f32.gmra.mxu0 %v1222
      %v1349 = vpop.f32.mrf.mxu0
      %v1350 = vadd.f32 0.0, %v1349
      %1351 = vmatmul.f32.gmra.mxu0 %v1225
      %v1352 = vpop.f32.mrf.mxu0
      %v1353 = vadd.f32 0.0, %v1352
      %1354 = vmatmul.f32.gmra.mxu0 %v1228
      %v1355 = vpop.f32.mrf.mxu0
      %v1356 = vadd.f32 0.0, %v1355
      %1357 = vmatmul.f32.gmra.mxu0 %v1231
      %v1358 = vpop.f32.mrf.mxu0
      %v1359 = vadd.f32 0.0, %v1358
      %1360 = vmatmul.f32.gmra.mxu0 %v1234
      %v1361 = vpop.f32.mrf.mxu0
      %v1362 = vadd.f32 0.0, %v1361
      %1363 = vdwg.mxu0
      %v1364 = vadd.f32 %v1090, %v1257
      %v1365 = vadd.f32 %v1091, %v1260
      %v1366 = vadd.f32 %v1092, %v1263
      %v1367 = vadd.f32 %v1093, %v1266
      %v1368 = vadd.f32 %v1094, %v1269
      %v1369 = vadd.f32 %v1095, %v1272
      %v1370 = vadd.f32 %v1096, %v1275
      %v1371 = vadd.f32 %v1097, %v1278
      %v1372 = vadd.f32 %v1098, %v1281
      %v1373 = vadd.f32 %v1099, %v1284
      %v1374 = vadd.f32 %v1100, %v1287
      %v1375 = vadd.f32 %v1101, %v1290
      %v1376 = vadd.f32 %v1102, %v1293
      %v1377 = vadd.f32 %v1103, %v1296
      %v1378 = vadd.f32 %v1104, %v1299
      %v1379 = vadd.f32 %v1105, %v1302
      %v1380 = vadd.f32 %v1106, %v1305
      %v1381 = vadd.f32 %v1107, %v1308
      %v1382 = vadd.f32 %v1108, %v1311
      %v1383 = vadd.f32 %v1109, %v1314
      %v1384 = vadd.f32 %v1110, %v1317
      %v1385 = vadd.f32 %v1111, %v1320
      %v1386 = vadd.f32 %v1112, %v1323
      %v1387 = vadd.f32 %v1113, %v1326
      %v1388 = vadd.f32 %v1114, %v1329
      %v1389 = vadd.f32 %v1115, %v1332
      %v1390 = vadd.f32 %v1116, %v1335
      %v1391 = vadd.f32 %v1117, %v1338
      %v1392 = vadd.f32 %v1118, %v1341
      %v1393 = vadd.f32 %v1119, %v1344
      %v1394 = vadd.f32 %v1120, %v1347
      %v1395 = vadd.f32 %v1121, %v1350
      %v1396 = vadd.f32 %v1122, %v1353
      %v1397 = vadd.f32 %v1123, %v1356
      %v1398 = vadd.f32 %v1124, %v1359
      %v1399 = vadd.f32 %v1125, %v1362
      %1400 = vst.msk [vmem:[#allocation2] sm:$0xff] %vm253, %v1364
      %1401 = vst.msk [vmem:[#allocation2 + $0x8] sm:$0xff] %vm253, %v1365
      %1402 = vst.msk [vmem:[#allocation2 + $0x10] sm:$0xff] %vm253, %v1366
      %1403 = vst.msk [vmem:[#allocation2 + $0x18] sm:$0xff] %vm253, %v1367
      %1404 = vst.msk [vmem:[#allocation2 + $0x20] sm:$0xff] %vm253, %v1368
      %1405 = vst.msk [vmem:[#allocation2 + $0x28] sm:$0xff] %vm253, %v1369
      %1406 = vst.msk [vmem:[#allocation2 + $0x30] sm:$0xff] %vm253, %v1370
      %1407 = vst.msk [vmem:[#allocation2 + $0x38] sm:$0xff] %vm253, %v1371
      %1408 = vst.msk [vmem:[#allocation2 + $0x40] sm:$0xff] %vm253, %v1372
      %1409 = vst.msk [vmem:[#allocation2 + $0x48] sm:$0xff] %vm253, %v1373
      %1410 = vst.msk [vmem:[#allocation2 + $0x50] sm:$0xff] %vm253, %v1374
      %1411 = vst.msk [vmem:[#allocation2 + $0x58] sm:$0xff] %vm253, %v1375
      %1412 = vst.msk [vmem:[#allocation2 + $0x60] sm:$0xff] %vm253, %v1376
      %1413 = vst.msk [vmem:[#allocation2 + $0x68] sm:$0xff] %vm253, %v1377
      %1414 = vst.msk [vmem:[#allocation2 + $0x70] sm:$0xff] %vm253, %v1378
      %1415 = vst.msk [vmem:[#allocation2 + $0x78] sm:$0xff] %vm253, %v1379
      %1416 = vst.msk [vmem:[#allocation2 + $0x80] sm:$0xff] %vm253, %v1380
      %1417 = vst.msk [vmem:[#allocation2 + $0x88] sm:$0xff] %vm253, %v1381
      %1418 = vst.msk [vmem:[#allocation2 + $0x90] sm:$0xff] %vm253, %v1382
      %1419 = vst.msk [vmem:[#allocation2 + $0x98] sm:$0xff] %vm253, %v1383
      %1420 = vst.msk [vmem:[#allocation2 + $0xa0] sm:$0xff] %vm253, %v1384
      %1421 = vst.msk [vmem:[#allocation2 + $0xa8] sm:$0xff] %vm253, %v1385
      %1422 = vst.msk [vmem:[#allocation2 + $0xb0] sm:$0xff] %vm253, %v1386
      %1423 = vst.msk [vmem:[#allocation2 + $0xb8] sm:$0xff] %vm253, %v1387
      %1424 = vst.msk [vmem:[#allocation2 + $0xc0] sm:$0xff] %vm253, %v1388
      %1425 = vst.msk [vmem:[#allocation2 + $0xc8] sm:$0xff] %vm253, %v1389
      %1426 = vst.msk [vmem:[#allocation2 + $0xd0] sm:$0xff] %vm253, %v1390
      %1427 = vst.msk [vmem:[#allocation2 + $0xd8] sm:$0xff] %vm253, %v1391
      %1428 = vst.msk [vmem:[#allocation2 + $0xe0] sm:$0xff] %vm253, %v1392
      %1429 = vst.msk [vmem:[#allocation2 + $0xe8] sm:$0xff] %vm253, %v1393
      %1430 = vst.msk [vmem:[#allocation2 + $0xf0] sm:$0xff] %vm253, %v1394
      %1431 = vst.msk [vmem:[#allocation2 + $0xf8] sm:$0xff] %vm253, %v1395
      %1432 = vst.msk [vmem:[#allocation2 + $0x100] sm:$0xff] %vm253, %v1396
      %1433 = vst.msk [vmem:[#allocation2 + $0x108] sm:$0xff] %vm253, %v1397
      %1434 = vst.msk [vmem:[#allocation2 + $0x110] sm:$0xff] %vm253, %v1398
      %1435 = vst.msk [vmem:[#allocation2 + $0x118] sm:$0xff] %vm253, %v1399
      %v1436 = vld [vmem:[%s241 + $0x12] sm:$0xff]
      %v1437 = vld [vmem:[%s241 + $0x1a] sm:$0xff]
      %v1438 = vld [vmem:[%s241 + $0x22] sm:$0xff]
      %v1439 = vld [vmem:[%s241 + $0x2a] sm:$0xff]
      %v1440 = vld [vmem:[%s241 + $0x32] sm:$0xff]
      %v1441 = vld [vmem:[%s241 + $0x3a] sm:$0xff]
      %v1442 = vld [vmem:[%s241 + $0x42] sm:$0xff]
      %v1443 = vld [vmem:[%s241 + $0x4a] sm:$0xff]
      %v1444 = vld [vmem:[%s241 + $0x52] sm:$0xff]
      %v1445 = vld [vmem:[%s241 + $0x5a] sm:$0xff]
      %v1446 = vld [vmem:[%s241 + $0x62] sm:$0xff]
      %v1447 = vld [vmem:[%s241 + $0x6a] sm:$0xff]
      %v1448 = vld [vmem:[%s241 + $0x72] sm:$0xff]
      %v1449 = vld [vmem:[%s241 + $0x7a] sm:$0xff]
      %v1450 = vld [vmem:[%s241 + $0x82] sm:$0xff]
      %v1451 = vld [vmem:[%s241 + $0x8a] sm:$0xff]
      %v1452 = vld [vmem:[%s241 + $0x92] sm:$0xff]
      %v1453 = vld [vmem:[%s241 + $0x9a] sm:$0xff]
      %v1454 = vld [vmem:[%s241 + $0xa2] sm:$0xff]
      %v1455 = vld [vmem:[%s241 + $0xaa] sm:$0xff]
      %v1456 = vld [vmem:[%s241 + $0xb2] sm:$0xff]
      %v1457 = vld [vmem:[%s241 + $0xba] sm:$0xff]
      %v1458 = vld [vmem:[%s241 + $0xc2] sm:$0xff]
      %v1459 = vld [vmem:[%s241 + $0xca] sm:$0xff]
      %v1460 = vld [vmem:[%s241 + $0xd2] sm:$0xff]
      %v1461 = vld [vmem:[%s241 + $0xda] sm:$0xff]
      %v1462 = vld [vmem:[%s241 + $0xe2] sm:$0xff]
      %v1463 = vld [vmem:[%s241 + $0xea] sm:$0xff]
      %v1464 = vld [vmem:[%s241 + $0xf2] sm:$0xff]
      %v1465 = vld [vmem:[%s241 + $0xfa] sm:$0xff]
      %v1466 = vld [vmem:[%s241 + $0x102] sm:$0xff]
      %v1467 = vld [vmem:[%s241 + $0x10a] sm:$0xff]
      %v1468 = vld [vmem:[%s241 + $0x112] sm:$0xff]
      %v1469 = vld [vmem:[%s241 + $0x11a] sm:$0xff]
      %v1470 = vld [vmem:[%s241 + $0x122] sm:$0xff]
      %v1471 = vld [vmem:[%s241 + $0x12a] sm:$0xff]
      %v1472 = vld [vmem:[#allocation2] sm:$0xff]
      %v1473 = vld [vmem:[#allocation2 + $0x8] sm:$0xff]
      %v1474 = vld [vmem:[#allocation2 + $0x10] sm:$0xff]
      %v1475 = vld [vmem:[#allocation2 + $0x18] sm:$0xff]
      %v1476 = vld [vmem:[#allocation2 + $0x20] sm:$0xff]
      %v1477 = vld [vmem:[#allocation2 + $0x28] sm:$0xff]
      %v1478 = vld [vmem:[#allocation2 + $0x30] sm:$0xff]
      %v1479 = vld [vmem:[#allocation2 + $0x38] sm:$0xff]
      %v1480 = vld [vmem:[#allocation2 + $0x40] sm:$0xff]
      %v1481 = vld [vmem:[#allocation2 + $0x48] sm:$0xff]
      %v1482 = vld [vmem:[#allocation2 + $0x50] sm:$0xff]
      %v1483 = vld [vmem:[#allocation2 + $0x58] sm:$0xff]
      %v1484 = vld [vmem:[#allocation2 + $0x60] sm:$0xff]
      %v1485 = vld [vmem:[#allocation2 + $0x68] sm:$0xff]
      %v1486 = vld [vmem:[#allocation2 + $0x70] sm:$0xff]
      %v1487 = vld [vmem:[#allocation2 + $0x78] sm:$0xff]
      %v1488 = vld [vmem:[#allocation2 + $0x80] sm:$0xff]
      %v1489 = vld [vmem:[#allocation2 + $0x88] sm:$0xff]
      %v1490 = vld [vmem:[#allocation2 + $0x90] sm:$0xff]
      %v1491 = vld [vmem:[#allocation2 + $0x98] sm:$0xff]
      %v1492 = vld [vmem:[#allocation2 + $0xa0] sm:$0xff]
      %v1493 = vld [vmem:[#allocation2 + $0xa8] sm:$0xff]
      %v1494 = vld [vmem:[#allocation2 + $0xb0] sm:$0xff]
      %v1495 = vld [vmem:[#allocation2 + $0xb8] sm:$0xff]
      %v1496 = vld [vmem:[#allocation2 + $0xc0] sm:$0xff]
      %v1497 = vld [vmem:[#allocation2 + $0xc8] sm:$0xff]
      %v1498 = vld [vmem:[#allocation2 + $0xd0] sm:$0xff]
      %v1499 = vld [vmem:[#allocation2 + $0xd8] sm:$0xff]
      %v1500 = vld [vmem:[#allocation2 + $0xe0] sm:$0xff]
      %v1501 = vld [vmem:[#allocation2 + $0xe8] sm:$0xff]
      %v1502 = vld [vmem:[#allocation2 + $0xf0] sm:$0xff]
      %v1503 = vld [vmem:[#allocation2 + $0xf8] sm:$0xff]
      %v1504 = vld [vmem:[#allocation2 + $0x100] sm:$0xff]
      %v1505 = vld [vmem:[#allocation2 + $0x108] sm:$0xff]
      %v1506 = vld [vmem:[#allocation2 + $0x110] sm:$0xff]
      %v1507 = vld [vmem:[#allocation2 + $0x118] sm:$0xff]
      %s1508 = scalar_lea.vmem %s1, 12
      %v1509 = vld [vmem:[%s1508] sm:$0xf]
      %v1511 = vsel %vm253, %v1436, 0
      %v1514 = vsel %vm253, %v1437, 0
      %v1517 = vsel %vm253, %v1438, 0
      %v1520 = vsel %vm253, %v1439, 0
      %v1523 = vsel %vm253, %v1440, 0
      %v1526 = vsel %vm253, %v1441, 0
      %v1529 = vsel %vm253, %v1442, 0
      %v1532 = vsel %vm253, %v1443, 0
      %v1535 = vsel %vm253, %v1444, 0
      %v1538 = vsel %vm253, %v1445, 0
      %v1541 = vsel %vm253, %v1446, 0
      %v1544 = vsel %vm253, %v1447, 0
      %v1547 = vsel %vm253, %v1448, 0
      %v1550 = vsel %vm253, %v1449, 0
      %v1553 = vsel %vm253, %v1450, 0
      %v1556 = vsel %vm253, %v1451, 0
      %v1559 = vsel %vm253, %v1452, 0
      %v1562 = vsel %vm253, %v1453, 0
      %v1565 = vsel %vm253, %v1454, 0
      %v1568 = vsel %vm253, %v1455, 0
      %v1571 = vsel %vm253, %v1456, 0
      %v1574 = vsel %vm253, %v1457, 0
      %v1577 = vsel %vm253, %v1458, 0
      %v1580 = vsel %vm253, %v1459, 0
      %v1583 = vsel %vm253, %v1460, 0
      %v1586 = vsel %vm253, %v1461, 0
      %v1589 = vsel %vm253, %v1462, 0
      %v1592 = vsel %vm253, %v1463, 0
      %v1595 = vsel %vm253, %v1464, 0
      %v1598 = vsel %vm253, %v1465, 0
      %v1601 = vsel %vm253, %v1466, 0
      %v1604 = vsel %vm253, %v1467, 0
      %v1607 = vsel %vm253, %v1468, 0
      %v1610 = vsel %vm253, %v1469, 0
      %v1613 = vsel %vm253, %v1470, 0
      %v1616 = vsel %vm253, %v1471, 0
      %v1619 = vsel %vm471, %v1509, 0
      %1621 = vmatpush.msra.mxu0 0.0
      %1622 = vmatpush.msra.mxu0 0.0
      %1623 = vmatpush.msra.mxu0 0.0
      %1624 = vmatpush.msra.mxu0 0.0
      %1625 = vmatpush.msra.mxu0 0.0
      %1626 = vmatpush.msra.mxu0 0.0
      %1627 = vmatpush.msra.mxu0 0.0
      %1628 = vmatpush.msra.mxu0 0.0
      %1629 = vmatpush.msra.mxu0 0.0
      %1630 = vmatpush.msra.mxu0 0.0
      %1631 = vmatpush.msra.mxu0 0.0
      %1632 = vmatpush.msra.mxu0 0.0
      %1633 = vmatpush.msra.mxu0 0.0
      %1634 = vmatpush.msra.mxu0 0.0
      %1635 = vmatpush.msra.mxu0 0.0
      %1636 = vmatpush.msra.mxu0 %v1619
      %1637 = vmatmul.f32.gmra.mxu0 %v1511
      %v1638 = vpop.f32.mrf.mxu0
      %v1639 = vadd.f32 0.0, %v1638
      %1640 = vmatmul.f32.gmra.mxu0 %v1514
      %v1641 = vpop.f32.mrf.mxu0
      %v1642 = vadd.f32 0.0, %v1641
      %1643 = vmatmul.f32.gmra.mxu0 %v1517
      %v1644 = vpop.f32.mrf.mxu0
      %v1645 = vadd.f32 0.0, %v1644
      %1646 = vmatmul.f32.gmra.mxu0 %v1520
      %v1647 = vpop.f32.mrf.mxu0
      %v1648 = vadd.f32 0.0, %v1647
      %1649 = vmatmul.f32.gmra.mxu0 %v1523
      %v1650 = vpop.f32.mrf.mxu0
      %v1651 = vadd.f32 0.0, %v1650
      %1652 = vmatmul.f32.gmra.mxu0 %v1526
      %v1653 = vpop.f32.mrf.mxu0
      %v1654 = vadd.f32 0.0, %v1653
      %1655 = vmatmul.f32.gmra.mxu0 %v1529
      %v1656 = vpop.f32.mrf.mxu0
      %v1657 = vadd.f32 0.0, %v1656
      %1658 = vmatmul.f32.gmra.mxu0 %v1532
      %v1659 = vpop.f32.mrf.mxu0
      %v1660 = vadd.f32 0.0, %v1659
      %1661 = vmatmul.f32.gmra.mxu0 %v1535
      %v1662 = vpop.f32.mrf.mxu0
      %v1663 = vadd.f32 0.0, %v1662
      %1664 = vmatmul.f32.gmra.mxu0 %v1538
      %v1665 = vpop.f32.mrf.mxu0
      %v1666 = vadd.f32 0.0, %v1665
      %1667 = vmatmul.f32.gmra.mxu0 %v1541
      %v1668 = vpop.f32.mrf.mxu0
      %v1669 = vadd.f32 0.0, %v1668
      %1670 = vmatmul.f32.gmra.mxu0 %v1544
      %v1671 = vpop.f32.mrf.mxu0
      %v1672 = vadd.f32 0.0, %v1671
      %1673 = vmatmul.f32.gmra.mxu0 %v1547
      %v1674 = vpop.f32.mrf.mxu0
      %v1675 = vadd.f32 0.0, %v1674
      %1676 = vmatmul.f32.gmra.mxu0 %v1550
      %v1677 = vpop.f32.mrf.mxu0
      %v1678 = vadd.f32 0.0, %v1677
      %1679 = vmatmul.f32.gmra.mxu0 %v1553
      %v1680 = vpop.f32.mrf.mxu0
      %v1681 = vadd.f32 0.0, %v1680
      %1682 = vmatmul.f32.gmra.mxu0 %v1556
      %v1683 = vpop.f32.mrf.mxu0
      %v1684 = vadd.f32 0.0, %v1683
      %1685 = vmatmul.f32.gmra.mxu0 %v1559
      %v1686 = vpop.f32.mrf.mxu0
      %v1687 = vadd.f32 0.0, %v1686
      %1688 = vmatmul.f32.gmra.mxu0 %v1562
      %v1689 = vpop.f32.mrf.mxu0
      %v1690 = vadd.f32 0.0, %v1689
      %1691 = vmatmul.f32.gmra.mxu0 %v1565
      %v1692 = vpop.f32.mrf.mxu0
      %v1693 = vadd.f32 0.0, %v1692
      %1694 = vmatmul.f32.gmra.mxu0 %v1568
      %v1695 = vpop.f32.mrf.mxu0
      %v1696 = vadd.f32 0.0, %v1695
      %1697 = vmatmul.f32.gmra.mxu0 %v1571
      %v1698 = vpop.f32.mrf.mxu0
      %v1699 = vadd.f32 0.0, %v1698
      %1700 = vmatmul.f32.gmra.mxu0 %v1574
      %v1701 = vpop.f32.mrf.mxu0
      %v1702 = vadd.f32 0.0, %v1701
      %1703 = vmatmul.f32.gmra.mxu0 %v1577
      %v1704 = vpop.f32.mrf.mxu0
      %v1705 = vadd.f32 0.0, %v1704
      %1706 = vmatmul.f32.gmra.mxu0 %v1580
      %v1707 = vpop.f32.mrf.mxu0
      %v1708 = vadd.f32 0.0, %v1707
      %1709 = vmatmul.f32.gmra.mxu0 %v1583
      %v1710 = vpop.f32.mrf.mxu0
      %v1711 = vadd.f32 0.0, %v1710
      %1712 = vmatmul.f32.gmra.mxu0 %v1586
      %v1713 = vpop.f32.mrf.mxu0
      %v1714 = vadd.f32 0.0, %v1713
      %1715 = vmatmul.f32.gmra.mxu0 %v1589
      %v1716 = vpop.f32.mrf.mxu0
      %v1717 = vadd.f32 0.0, %v1716
      %1718 = vmatmul.f32.gmra.mxu0 %v1592
      %v1719 = vpop.f32.mrf.mxu0
      %v1720 = vadd.f32 0.0, %v1719
      %1721 = vmatmul.f32.gmra.mxu0 %v1595
      %v1722 = vpop.f32.mrf.mxu0
      %v1723 = vadd.f32 0.0, %v1722
      %1724 = vmatmul.f32.gmra.mxu0 %v1598
      %v1725 = vpop.f32.mrf.mxu0
      %v1726 = vadd.f32 0.0, %v1725
      %1727 = vmatmul.f32.gmra.mxu0 %v1601
      %v1728 = vpop.f32.mrf.mxu0
      %v1729 = vadd.f32 0.0, %v1728
      %1730 = vmatmul.f32.gmra.mxu0 %v1604
      %v1731 = vpop.f32.mrf.mxu0
      %v1732 = vadd.f32 0.0, %v1731
      %1733 = vmatmul.f32.gmra.mxu0 %v1607
      %v1734 = vpop.f32.mrf.mxu0
      %v1735 = vadd.f32 0.0, %v1734
      %1736 = vmatmul.f32.gmra.mxu0 %v1610
      %v1737 = vpop.f32.mrf.mxu0
      %v1738 = vadd.f32 0.0, %v1737
      %1739 = vmatmul.f32.gmra.mxu0 %v1613
      %v1740 = vpop.f32.mrf.mxu0
      %v1741 = vadd.f32 0.0, %v1740
      %1742 = vmatmul.f32.gmra.mxu0 %v1616
      %v1743 = vpop.f32.mrf.mxu0
      %v1744 = vadd.f32 0.0, %v1743
      %1745 = vdwg.mxu0
      %v1746 = vadd.f32 %v1472, %v1639
      %v1747 = vadd.f32 %v1473, %v1642
      %v1748 = vadd.f32 %v1474, %v1645
      %v1749 = vadd.f32 %v1475, %v1648
      %v1750 = vadd.f32 %v1476, %v1651
      %v1751 = vadd.f32 %v1477, %v1654
      %v1752 = vadd.f32 %v1478, %v1657
      %v1753 = vadd.f32 %v1479, %v1660
      %v1754 = vadd.f32 %v1480, %v1663
      %v1755 = vadd.f32 %v1481, %v1666
      %v1756 = vadd.f32 %v1482, %v1669
      %v1757 = vadd.f32 %v1483, %v1672
      %v1758 = vadd.f32 %v1484, %v1675
      %v1759 = vadd.f32 %v1485, %v1678
      %v1760 = vadd.f32 %v1486, %v1681
      %v1761 = vadd.f32 %v1487, %v1684
      %v1762 = vadd.f32 %v1488, %v1687
      %v1763 = vadd.f32 %v1489, %v1690
      %v1764 = vadd.f32 %v1490, %v1693
      %v1765 = vadd.f32 %v1491, %v1696
      %v1766 = vadd.f32 %v1492, %v1699
      %v1767 = vadd.f32 %v1493, %v1702
      %v1768 = vadd.f32 %v1494, %v1705
      %v1769 = vadd.f32 %v1495, %v1708
      %v1770 = vadd.f32 %v1496, %v1711
      %v1771 = vadd.f32 %v1497, %v1714
      %v1772 = vadd.f32 %v1498, %v1717
      %v1773 = vadd.f32 %v1499, %v1720
      %v1774 = vadd.f32 %v1500, %v1723
      %v1775 = vadd.f32 %v1501, %v1726
      %v1776 = vadd.f32 %v1502, %v1729
      %v1777 = vadd.f32 %v1503, %v1732
      %v1778 = vadd.f32 %v1504, %v1735
      %v1779 = vadd.f32 %v1505, %v1738
      %v1780 = vadd.f32 %v1506, %v1741
      %v1781 = vadd.f32 %v1507, %v1744
      %1782 = vst.msk [vmem:[#allocation2] sm:$0xff] %vm253, %v1746
      %1783 = vst.msk [vmem:[#allocation2 + $0x8] sm:$0xff] %vm253, %v1747
      %1784 = vst.msk [vmem:[#allocation2 + $0x10] sm:$0xff] %vm253, %v1748
      %1785 = vst.msk [vmem:[#allocation2 + $0x18] sm:$0xff] %vm253, %v1749
      %1786 = vst.msk [vmem:[#allocation2 + $0x20] sm:$0xff] %vm253, %v1750
      %1787 = vst.msk [vmem:[#allocation2 + $0x28] sm:$0xff] %vm253, %v1751
      %1788 = vst.msk [vmem:[#allocation2 + $0x30] sm:$0xff] %vm253, %v1752
      %1789 = vst.msk [vmem:[#allocation2 + $0x38] sm:$0xff] %vm253, %v1753
      %1790 = vst.msk [vmem:[#allocation2 + $0x40] sm:$0xff] %vm253, %v1754
      %1791 = vst.msk [vmem:[#allocation2 + $0x48] sm:$0xff] %vm253, %v1755
      %1792 = vst.msk [vmem:[#allocation2 + $0x50] sm:$0xff] %vm253, %v1756
      %1793 = vst.msk [vmem:[#allocation2 + $0x58] sm:$0xff] %vm253, %v1757
      %1794 = vst.msk [vmem:[#allocation2 + $0x60] sm:$0xff] %vm253, %v1758
      %1795 = vst.msk [vmem:[#allocation2 + $0x68] sm:$0xff] %vm253, %v1759
      %1796 = vst.msk [vmem:[#allocation2 + $0x70] sm:$0xff] %vm253, %v1760
      %1797 = vst.msk [vmem:[#allocation2 + $0x78] sm:$0xff] %vm253, %v1761
      %1798 = vst.msk [vmem:[#allocation2 + $0x80] sm:$0xff] %vm253, %v1762
      %1799 = vst.msk [vmem:[#allocation2 + $0x88] sm:$0xff] %vm253, %v1763
      %1800 = vst.msk [vmem:[#allocation2 + $0x90] sm:$0xff] %vm253, %v1764
      %1801 = vst.msk [vmem:[#allocation2 + $0x98] sm:$0xff] %vm253, %v1765
      %1802 = vst.msk [vmem:[#allocation2 + $0xa0] sm:$0xff] %vm253, %v1766
      %1803 = vst.msk [vmem:[#allocation2 + $0xa8] sm:$0xff] %vm253, %v1767
      %1804 = vst.msk [vmem:[#allocation2 + $0xb0] sm:$0xff] %vm253, %v1768
      %1805 = vst.msk [vmem:[#allocation2 + $0xb8] sm:$0xff] %vm253, %v1769
      %1806 = vst.msk [vmem:[#allocation2 + $0xc0] sm:$0xff] %vm253, %v1770
      %1807 = vst.msk [vmem:[#allocation2 + $0xc8] sm:$0xff] %vm253, %v1771
      %1808 = vst.msk [vmem:[#allocation2 + $0xd0] sm:$0xff] %vm253, %v1772
      %1809 = vst.msk [vmem:[#allocation2 + $0xd8] sm:$0xff] %vm253, %v1773
      %1810 = vst.msk [vmem:[#allocation2 + $0xe0] sm:$0xff] %vm253, %v1774
      %1811 = vst.msk [vmem:[#allocation2 + $0xe8] sm:$0xff] %vm253, %v1775
      %1812 = vst.msk [vmem:[#allocation2 + $0xf0] sm:$0xff] %vm253, %v1776
      %1813 = vst.msk [vmem:[#allocation2 + $0xf8] sm:$0xff] %vm253, %v1777
      %1814 = vst.msk [vmem:[#allocation2 + $0x100] sm:$0xff] %vm253, %v1778
      %1815 = vst.msk [vmem:[#allocation2 + $0x108] sm:$0xff] %vm253, %v1779
      %1816 = vst.msk [vmem:[#allocation2 + $0x110] sm:$0xff] %vm253, %v1780
      %1817 = vst.msk [vmem:[#allocation2 + $0x118] sm:$0xff] %vm253, %v1781
      %v1818 = vld [vmem:[%s241 + $0x13] sm:$0xff]
      %v1819 = vld [vmem:[%s241 + $0x1b] sm:$0xff]
      %v1820 = vld [vmem:[%s241 + $0x23] sm:$0xff]
      %v1821 = vld [vmem:[%s241 + $0x2b] sm:$0xff]
      %v1822 = vld [vmem:[%s241 + $0x33] sm:$0xff]
      %v1823 = vld [vmem:[%s241 + $0x3b] sm:$0xff]
      %v1824 = vld [vmem:[%s241 + $0x43] sm:$0xff]
      %v1825 = vld [vmem:[%s241 + $0x4b] sm:$0xff]
      %v1826 = vld [vmem:[%s241 + $0x53] sm:$0xff]
      %v1827 = vld [vmem:[%s241 + $0x5b] sm:$0xff]
      %v1828 = vld [vmem:[%s241 + $0x63] sm:$0xff]
      %v1829 = vld [vmem:[%s241 + $0x6b] sm:$0xff]
      %v1830 = vld [vmem:[%s241 + $0x73] sm:$0xff]
      %v1831 = vld [vmem:[%s241 + $0x7b] sm:$0xff]
      %v1832 = vld [vmem:[%s241 + $0x83] sm:$0xff]
      %v1833 = vld [vmem:[%s241 + $0x8b] sm:$0xff]
      %v1834 = vld [vmem:[%s241 + $0x93] sm:$0xff]
      %v1835 = vld [vmem:[%s241 + $0x9b] sm:$0xff]
      %v1836 = vld [vmem:[%s241 + $0xa3] sm:$0xff]
      %v1837 = vld [vmem:[%s241 + $0xab] sm:$0xff]
      %v1838 = vld [vmem:[%s241 + $0xb3] sm:$0xff]
      %v1839 = vld [vmem:[%s241 + $0xbb] sm:$0xff]
      %v1840 = vld [vmem:[%s241 + $0xc3] sm:$0xff]
      %v1841 = vld [vmem:[%s241 + $0xcb] sm:$0xff]
      %v1842 = vld [vmem:[%s241 + $0xd3] sm:$0xff]
      %v1843 = vld [vmem:[%s241 + $0xdb] sm:$0xff]
      %v1844 = vld [vmem:[%s241 + $0xe3] sm:$0xff]
      %v1845 = vld [vmem:[%s241 + $0xeb] sm:$0xff]
      %v1846 = vld [vmem:[%s241 + $0xf3] sm:$0xff]
      %v1847 = vld [vmem:[%s241 + $0xfb] sm:$0xff]
      %v1848 = vld [vmem:[%s241 + $0x103] sm:$0xff]
      %v1849 = vld [vmem:[%s241 + $0x10b] sm:$0xff]
      %v1850 = vld [vmem:[%s241 + $0x113] sm:$0xff]
      %v1851 = vld [vmem:[%s241 + $0x11b] sm:$0xff]
      %v1852 = vld [vmem:[%s241 + $0x123] sm:$0xff]
      %v1853 = vld [vmem:[%s241 + $0x12b] sm:$0xff]
      %v1854 = vld [vmem:[#allocation2] sm:$0xff]
      %v1855 = vld [vmem:[#allocation2 + $0x8] sm:$0xff]
      %v1856 = vld [vmem:[#allocation2 + $0x10] sm:$0xff]
      %v1857 = vld [vmem:[#allocation2 + $0x18] sm:$0xff]
      %v1858 = vld [vmem:[#allocation2 + $0x20] sm:$0xff]
      %v1859 = vld [vmem:[#allocation2 + $0x28] sm:$0xff]
      %v1860 = vld [vmem:[#allocation2 + $0x30] sm:$0xff]
      %v1861 = vld [vmem:[#allocation2 + $0x38] sm:$0xff]
      %v1862 = vld [vmem:[#allocation2 + $0x40] sm:$0xff]
      %v1863 = vld [vmem:[#allocation2 + $0x48] sm:$0xff]
      %v1864 = vld [vmem:[#allocation2 + $0x50] sm:$0xff]
      %v1865 = vld [vmem:[#allocation2 + $0x58] sm:$0xff]
      %v1866 = vld [vmem:[#allocation2 + $0x60] sm:$0xff]
      %v1867 = vld [vmem:[#allocation2 + $0x68] sm:$0xff]
      %v1868 = vld [vmem:[#allocation2 + $0x70] sm:$0xff]
      %v1869 = vld [vmem:[#allocation2 + $0x78] sm:$0xff]
      %v1870 = vld [vmem:[#allocation2 + $0x80] sm:$0xff]
      %v1871 = vld [vmem:[#allocation2 + $0x88] sm:$0xff]
      %v1872 = vld [vmem:[#allocation2 + $0x90] sm:$0xff]
      %v1873 = vld [vmem:[#allocation2 + $0x98] sm:$0xff]
      %v1874 = vld [vmem:[#allocation2 + $0xa0] sm:$0xff]
      %v1875 = vld [vmem:[#allocation2 + $0xa8] sm:$0xff]
      %v1876 = vld [vmem:[#allocation2 + $0xb0] sm:$0xff]
      %v1877 = vld [vmem:[#allocation2 + $0xb8] sm:$0xff]
      %v1878 = vld [vmem:[#allocation2 + $0xc0] sm:$0xff]
      %v1879 = vld [vmem:[#allocation2 + $0xc8] sm:$0xff]
      %v1880 = vld [vmem:[#allocation2 + $0xd0] sm:$0xff]
      %v1881 = vld [vmem:[#allocation2 + $0xd8] sm:$0xff]
      %v1882 = vld [vmem:[#allocation2 + $0xe0] sm:$0xff]
      %v1883 = vld [vmem:[#allocation2 + $0xe8] sm:$0xff]
      %v1884 = vld [vmem:[#allocation2 + $0xf0] sm:$0xff]
      %v1885 = vld [vmem:[#allocation2 + $0xf8] sm:$0xff]
      %v1886 = vld [vmem:[#allocation2 + $0x100] sm:$0xff]
      %v1887 = vld [vmem:[#allocation2 + $0x108] sm:$0xff]
      %v1888 = vld [vmem:[#allocation2 + $0x110] sm:$0xff]
      %v1889 = vld [vmem:[#allocation2 + $0x118] sm:$0xff]
      %s1890 = scalar_lea.vmem %s1, 16
      %v1891 = vld [vmem:[%s1890] sm:$0xf]
      %v1893 = vsel %vm253, %v1818, 0
      %v1896 = vsel %vm253, %v1819, 0
      %v1899 = vsel %vm253, %v1820, 0
      %v1902 = vsel %vm253, %v1821, 0
      %v1905 = vsel %vm253, %v1822, 0
      %v1908 = vsel %vm253, %v1823, 0
      %v1911 = vsel %vm253, %v1824, 0
      %v1914 = vsel %vm253, %v1825, 0
      %v1917 = vsel %vm253, %v1826, 0
      %v1920 = vsel %vm253, %v1827, 0
      %v1923 = vsel %vm253, %v1828, 0
      %v1926 = vsel %vm253, %v1829, 0
      %v1929 = vsel %vm253, %v1830, 0
      %v1932 = vsel %vm253, %v1831, 0
      %v1935 = vsel %vm253, %v1832, 0
      %v1938 = vsel %vm253, %v1833, 0
      %v1941 = vsel %vm253, %v1834, 0
      %v1944 = vsel %vm253, %v1835, 0
      %v1947 = vsel %vm253, %v1836, 0
      %v1950 = vsel %vm253, %v1837, 0
      %v1953 = vsel %vm253, %v1838, 0
      %v1956 = vsel %vm253, %v1839, 0
      %v1959 = vsel %vm253, %v1840, 0
      %v1962 = vsel %vm253, %v1841, 0
      %v1965 = vsel %vm253, %v1842, 0
      %v1968 = vsel %vm253, %v1843, 0
      %v1971 = vsel %vm253, %v1844, 0
      %v1974 = vsel %vm253, %v1845, 0
      %v1977 = vsel %vm253, %v1846, 0
      %v1980 = vsel %vm253, %v1847, 0
      %v1983 = vsel %vm253, %v1848, 0
      %v1986 = vsel %vm253, %v1849, 0
      %v1989 = vsel %vm253, %v1850, 0
      %v1992 = vsel %vm253, %v1851, 0
      %v1995 = vsel %vm253, %v1852, 0
      %v1998 = vsel %vm253, %v1853, 0
      %v2001 = vsel %vm471, %v1891, 0
      %2003 = vmatpush.msra.mxu0 0.0
      %2004 = vmatpush.msra.mxu0 0.0
      %2005 = vmatpush.msra.mxu0 0.0
      %2006 = vmatpush.msra.mxu0 0.0
      %2007 = vmatpush.msra.mxu0 0.0
      %2008 = vmatpush.msra.mxu0 0.0
      %2009 = vmatpush.msra.mxu0 0.0
      %2010 = vmatpush.msra.mxu0 0.0
      %2011 = vmatpush.msra.mxu0 0.0
      %2012 = vmatpush.msra.mxu0 0.0
      %2013 = vmatpush.msra.mxu0 0.0
      %2014 = vmatpush.msra.mxu0 0.0
      %2015 = vmatpush.msra.mxu0 0.0
      %2016 = vmatpush.msra.mxu0 0.0
      %2017 = vmatpush.msra.mxu0 0.0
      %2018 = vmatpush.msra.mxu0 %v2001
      %2019 = vmatmul.f32.gmra.mxu0 %v1893
      %v2020 = vpop.f32.mrf.mxu0
      %v2021 = vadd.f32 0.0, %v2020
      %2022 = vmatmul.f32.gmra.mxu0 %v1896
      %v2023 = vpop.f32.mrf.mxu0
      %v2024 = vadd.f32 0.0, %v2023
      %2025 = vmatmul.f32.gmra.mxu0 %v1899
      %v2026 = vpop.f32.mrf.mxu0
      %v2027 = vadd.f32 0.0, %v2026
      %2028 = vmatmul.f32.gmra.mxu0 %v1902
      %v2029 = vpop.f32.mrf.mxu0
      %v2030 = vadd.f32 0.0, %v2029
      %2031 = vmatmul.f32.gmra.mxu0 %v1905
      %v2032 = vpop.f32.mrf.mxu0
      %v2033 = vadd.f32 0.0, %v2032
      %2034 = vmatmul.f32.gmra.mxu0 %v1908
      %v2035 = vpop.f32.mrf.mxu0
      %v2036 = vadd.f32 0.0, %v2035
      %2037 = vmatmul.f32.gmra.mxu0 %v1911
      %v2038 = vpop.f32.mrf.mxu0
      %v2039 = vadd.f32 0.0, %v2038
      %2040 = vmatmul.f32.gmra.mxu0 %v1914
      %v2041 = vpop.f32.mrf.mxu0
      %v2042 = vadd.f32 0.0, %v2041
      %2043 = vmatmul.f32.gmra.mxu0 %v1917
      %v2044 = vpop.f32.mrf.mxu0
      %v2045 = vadd.f32 0.0, %v2044
      %2046 = vmatmul.f32.gmra.mxu0 %v1920
      %v2047 = vpop.f32.mrf.mxu0
      %v2048 = vadd.f32 0.0, %v2047
      %2049 = vmatmul.f32.gmra.mxu0 %v1923
      %v2050 = vpop.f32.mrf.mxu0
      %v2051 = vadd.f32 0.0, %v2050
      %2052 = vmatmul.f32.gmra.mxu0 %v1926
      %v2053 = vpop.f32.mrf.mxu0
      %v2054 = vadd.f32 0.0, %v2053
      %2055 = vmatmul.f32.gmra.mxu0 %v1929
      %v2056 = vpop.f32.mrf.mxu0
      %v2057 = vadd.f32 0.0, %v2056
      %2058 = vmatmul.f32.gmra.mxu0 %v1932
      %v2059 = vpop.f32.mrf.mxu0
      %v2060 = vadd.f32 0.0, %v2059
      %2061 = vmatmul.f32.gmra.mxu0 %v1935
      %v2062 = vpop.f32.mrf.mxu0
      %v2063 = vadd.f32 0.0, %v2062
      %2064 = vmatmul.f32.gmra.mxu0 %v1938
      %v2065 = vpop.f32.mrf.mxu0
      %v2066 = vadd.f32 0.0, %v2065
      %2067 = vmatmul.f32.gmra.mxu0 %v1941
      %v2068 = vpop.f32.mrf.mxu0
      %v2069 = vadd.f32 0.0, %v2068
      %2070 = vmatmul.f32.gmra.mxu0 %v1944
      %v2071 = vpop.f32.mrf.mxu0
      %v2072 = vadd.f32 0.0, %v2071
      %2073 = vmatmul.f32.gmra.mxu0 %v1947
      %v2074 = vpop.f32.mrf.mxu0
      %v2075 = vadd.f32 0.0, %v2074
      %2076 = vmatmul.f32.gmra.mxu0 %v1950
      %v2077 = vpop.f32.mrf.mxu0
      %v2078 = vadd.f32 0.0, %v2077
      %2079 = vmatmul.f32.gmra.mxu0 %v1953
      %v2080 = vpop.f32.mrf.mxu0
      %v2081 = vadd.f32 0.0, %v2080
      %2082 = vmatmul.f32.gmra.mxu0 %v1956
      %v2083 = vpop.f32.mrf.mxu0
      %v2084 = vadd.f32 0.0, %v2083
      %2085 = vmatmul.f32.gmra.mxu0 %v1959
      %v2086 = vpop.f32.mrf.mxu0
      %v2087 = vadd.f32 0.0, %v2086
      %2088 = vmatmul.f32.gmra.mxu0 %v1962
      %v2089 = vpop.f32.mrf.mxu0
      %v2090 = vadd.f32 0.0, %v2089
      %2091 = vmatmul.f32.gmra.mxu0 %v1965
      %v2092 = vpop.f32.mrf.mxu0
      %v2093 = vadd.f32 0.0, %v2092
      %2094 = vmatmul.f32.gmra.mxu0 %v1968
      %v2095 = vpop.f32.mrf.mxu0
      %v2096 = vadd.f32 0.0, %v2095
      %2097 = vmatmul.f32.gmra.mxu0 %v1971
      %v2098 = vpop.f32.mrf.mxu0
      %v2099 = vadd.f32 0.0, %v2098
      %2100 = vmatmul.f32.gmra.mxu0 %v1974
      %v2101 = vpop.f32.mrf.mxu0
      %v2102 = vadd.f32 0.0, %v2101
      %2103 = vmatmul.f32.gmra.mxu0 %v1977
      %v2104 = vpop.f32.mrf.mxu0
      %v2105 = vadd.f32 0.0, %v2104
      %2106 = vmatmul.f32.gmra.mxu0 %v1980
      %v2107 = vpop.f32.mrf.mxu0
      %v2108 = vadd.f32 0.0, %v2107
      %2109 = vmatmul.f32.gmra.mxu0 %v1983
      %v2110 = vpop.f32.mrf.mxu0
      %v2111 = vadd.f32 0.0, %v2110
      %2112 = vmatmul.f32.gmra.mxu0 %v1986
      %v2113 = vpop.f32.mrf.mxu0
      %v2114 = vadd.f32 0.0, %v2113
      %2115 = vmatmul.f32.gmra.mxu0 %v1989
      %v2116 = vpop.f32.mrf.mxu0
      %v2117 = vadd.f32 0.0, %v2116
      %2118 = vmatmul.f32.gmra.mxu0 %v1992
      %v2119 = vpop.f32.mrf.mxu0
      %v2120 = vadd.f32 0.0, %v2119
      %2121 = vmatmul.f32.gmra.mxu0 %v1995
      %v2122 = vpop.f32.mrf.mxu0
      %v2123 = vadd.f32 0.0, %v2122
      %2124 = vmatmul.f32.gmra.mxu0 %v1998
      %v2125 = vpop.f32.mrf.mxu0
      %v2126 = vadd.f32 0.0, %v2125
      %2127 = vdwg.mxu0
      %v2128 = vadd.f32 %v1854, %v2021
      %v2129 = vadd.f32 %v1855, %v2024
      %v2130 = vadd.f32 %v1856, %v2027
      %v2131 = vadd.f32 %v1857, %v2030
      %v2132 = vadd.f32 %v1858, %v2033
      %v2133 = vadd.f32 %v1859, %v2036
      %v2134 = vadd.f32 %v1860, %v2039
      %v2135 = vadd.f32 %v1861, %v2042
      %v2136 = vadd.f32 %v1862, %v2045
      %v2137 = vadd.f32 %v1863, %v2048
      %v2138 = vadd.f32 %v1864, %v2051
      %v2139 = vadd.f32 %v1865, %v2054
      %v2140 = vadd.f32 %v1866, %v2057
      %v2141 = vadd.f32 %v1867, %v2060
      %v2142 = vadd.f32 %v1868, %v2063
      %v2143 = vadd.f32 %v1869, %v2066
      %v2144 = vadd.f32 %v1870, %v2069
      %v2145 = vadd.f32 %v1871, %v2072
      %v2146 = vadd.f32 %v1872, %v2075
      %v2147 = vadd.f32 %v1873, %v2078
      %v2148 = vadd.f32 %v1874, %v2081
      %v2149 = vadd.f32 %v1875, %v2084
      %v2150 = vadd.f32 %v1876, %v2087
      %v2151 = vadd.f32 %v1877, %v2090
      %v2152 = vadd.f32 %v1878, %v2093
      %v2153 = vadd.f32 %v1879, %v2096
      %v2154 = vadd.f32 %v1880, %v2099
      %v2155 = vadd.f32 %v1881, %v2102
      %v2156 = vadd.f32 %v1882, %v2105
      %v2157 = vadd.f32 %v1883, %v2108
      %v2158 = vadd.f32 %v1884, %v2111
      %v2159 = vadd.f32 %v1885, %v2114
      %v2160 = vadd.f32 %v1886, %v2117
      %v2161 = vadd.f32 %v1887, %v2120
      %v2162 = vadd.f32 %v1888, %v2123
      %v2163 = vadd.f32 %v1889, %v2126
      %2164 = vst.msk [vmem:[#allocation2] sm:$0xff] %vm253, %v2128
      %2165 = vst.msk [vmem:[#allocation2 + $0x8] sm:$0xff] %vm253, %v2129
      %2166 = vst.msk [vmem:[#allocation2 + $0x10] sm:$0xff] %vm253, %v2130
      %2167 = vst.msk [vmem:[#allocation2 + $0x18] sm:$0xff] %vm253, %v2131
      %2168 = vst.msk [vmem:[#allocation2 + $0x20] sm:$0xff] %vm253, %v2132
      %2169 = vst.msk [vmem:[#allocation2 + $0x28] sm:$0xff] %vm253, %v2133
      %2170 = vst.msk [vmem:[#allocation2 + $0x30] sm:$0xff] %vm253, %v2134
      %2171 = vst.msk [vmem:[#allocation2 + $0x38] sm:$0xff] %vm253, %v2135
      %2172 = vst.msk [vmem:[#allocation2 + $0x40] sm:$0xff] %vm253, %v2136
      %2173 = vst.msk [vmem:[#allocation2 + $0x48] sm:$0xff] %vm253, %v2137
      %2174 = vst.msk [vmem:[#allocation2 + $0x50] sm:$0xff] %vm253, %v2138
      %2175 = vst.msk [vmem:[#allocation2 + $0x58] sm:$0xff] %vm253, %v2139
      %2176 = vst.msk [vmem:[#allocation2 + $0x60] sm:$0xff] %vm253, %v2140
      %2177 = vst.msk [vmem:[#allocation2 + $0x68] sm:$0xff] %vm253, %v2141
      %2178 = vst.msk [vmem:[#allocation2 + $0x70] sm:$0xff] %vm253, %v2142
      %2179 = vst.msk [vmem:[#allocation2 + $0x78] sm:$0xff] %vm253, %v2143
      %2180 = vst.msk [vmem:[#allocation2 + $0x80] sm:$0xff] %vm253, %v2144
      %2181 = vst.msk [vmem:[#allocation2 + $0x88] sm:$0xff] %vm253, %v2145
      %2182 = vst.msk [vmem:[#allocation2 + $0x90] sm:$0xff] %vm253, %v2146
      %2183 = vst.msk [vmem:[#allocation2 + $0x98] sm:$0xff] %vm253, %v2147
      %2184 = vst.msk [vmem:[#allocation2 + $0xa0] sm:$0xff] %vm253, %v2148
      %2185 = vst.msk [vmem:[#allocation2 + $0xa8] sm:$0xff] %vm253, %v2149
      %2186 = vst.msk [vmem:[#allocation2 + $0xb0] sm:$0xff] %vm253, %v2150
      %2187 = vst.msk [vmem:[#allocation2 + $0xb8] sm:$0xff] %vm253, %v2151
      %2188 = vst.msk [vmem:[#allocation2 + $0xc0] sm:$0xff] %vm253, %v2152
      %2189 = vst.msk [vmem:[#allocation2 + $0xc8] sm:$0xff] %vm253, %v2153
      %2190 = vst.msk [vmem:[#allocation2 + $0xd0] sm:$0xff] %vm253, %v2154
      %2191 = vst.msk [vmem:[#allocation2 + $0xd8] sm:$0xff] %vm253, %v2155
      %2192 = vst.msk [vmem:[#allocation2 + $0xe0] sm:$0xff] %vm253, %v2156
      %2193 = vst.msk [vmem:[#allocation2 + $0xe8] sm:$0xff] %vm253, %v2157
      %2194 = vst.msk [vmem:[#allocation2 + $0xf0] sm:$0xff] %vm253, %v2158
      %2195 = vst.msk [vmem:[#allocation2 + $0xf8] sm:$0xff] %vm253, %v2159
      %2196 = vst.msk [vmem:[#allocation2 + $0x100] sm:$0xff] %vm253, %v2160
      %2197 = vst.msk [vmem:[#allocation2 + $0x108] sm:$0xff] %vm253, %v2161
      %2198 = vst.msk [vmem:[#allocation2 + $0x110] sm:$0xff] %vm253, %v2162
      %2199 = vst.msk [vmem:[#allocation2 + $0x118] sm:$0xff] %vm253, %v2163
      %v2200 = vld [vmem:[%s241 + $0x14] sm:$0xff]
      %v2201 = vld [vmem:[%s241 + $0x1c] sm:$0xff]
      %v2202 = vld [vmem:[%s241 + $0x24] sm:$0xff]
      %v2203 = vld [vmem:[%s241 + $0x2c] sm:$0xff]
      %v2204 = vld [vmem:[%s241 + $0x34] sm:$0xff]
      %v2205 = vld [vmem:[%s241 + $0x3c] sm:$0xff]
      %v2206 = vld [vmem:[%s241 + $0x44] sm:$0xff]
      %v2207 = vld [vmem:[%s241 + $0x4c] sm:$0xff]
      %v2208 = vld [vmem:[%s241 + $0x54] sm:$0xff]
      %v2209 = vld [vmem:[%s241 + $0x5c] sm:$0xff]
      %v2210 = vld [vmem:[%s241 + $0x64] sm:$0xff]
      %v2211 = vld [vmem:[%s241 + $0x6c] sm:$0xff]
      %v2212 = vld [vmem:[%s241 + $0x74] sm:$0xff]
      %v2213 = vld [vmem:[%s241 + $0x7c] sm:$0xff]
      %v2214 = vld [vmem:[%s241 + $0x84] sm:$0xff]
      %v2215 = vld [vmem:[%s241 + $0x8c] sm:$0xff]
      %v2216 = vld [vmem:[%s241 + $0x94] sm:$0xff]
      %v2217 = vld [vmem:[%s241 + $0x9c] sm:$0xff]
      %v2218 = vld [vmem:[%s241 + $0xa4] sm:$0xff]
      %v2219 = vld [vmem:[%s241 + $0xac] sm:$0xff]
      %v2220 = vld [vmem:[%s241 + $0xb4] sm:$0xff]
      %v2221 = vld [vmem:[%s241 + $0xbc] sm:$0xff]
      %v2222 = vld [vmem:[%s241 + $0xc4] sm:$0xff]
      %v2223 = vld [vmem:[%s241 + $0xcc] sm:$0xff]
      %v2224 = vld [vmem:[%s241 + $0xd4] sm:$0xff]
      %v2225 = vld [vmem:[%s241 + $0xdc] sm:$0xff]
      %v2226 = vld [vmem:[%s241 + $0xe4] sm:$0xff]
      %v2227 = vld [vmem:[%s241 + $0xec] sm:$0xff]
      %v2228 = vld [vmem:[%s241 + $0xf4] sm:$0xff]
      %v2229 = vld [vmem:[%s241 + $0xfc] sm:$0xff]
      %v2230 = vld [vmem:[%s241 + $0x104] sm:$0xff]
      %v2231 = vld [vmem:[%s241 + $0x10c] sm:$0xff]
      %v2232 = vld [vmem:[%s241 + $0x114] sm:$0xff]
      %v2233 = vld [vmem:[%s241 + $0x11c] sm:$0xff]
      %v2234 = vld [vmem:[%s241 + $0x124] sm:$0xff]
      %v2235 = vld [vmem:[%s241 + $0x12c] sm:$0xff]
      %v2236 = vld [vmem:[#allocation2] sm:$0xff]
      %v2237 = vld [vmem:[#allocation2 + $0x8] sm:$0xff]
      %v2238 = vld [vmem:[#allocation2 + $0x10] sm:$0xff]
      %v2239 = vld [vmem:[#allocation2 + $0x18] sm:$0xff]
      %v2240 = vld [vmem:[#allocation2 + $0x20] sm:$0xff]
      %v2241 = vld [vmem:[#allocation2 + $0x28] sm:$0xff]
      %v2242 = vld [vmem:[#allocation2 + $0x30] sm:$0xff]
      %v2243 = vld [vmem:[#allocation2 + $0x38] sm:$0xff]
      %v2244 = vld [vmem:[#allocation2 + $0x40] sm:$0xff]
      %v2245 = vld [vmem:[#allocation2 + $0x48] sm:$0xff]
      %v2246 = vld [vmem:[#allocation2 + $0x50] sm:$0xff]
      %v2247 = vld [vmem:[#allocation2 + $0x58] sm:$0xff]
      %v2248 = vld [vmem:[#allocation2 + $0x60] sm:$0xff]
      %v2249 = vld [vmem:[#allocation2 + $0x68] sm:$0xff]
      %v2250 = vld [vmem:[#allocation2 + $0x70] sm:$0xff]
      %v2251 = vld [vmem:[#allocation2 + $0x78] sm:$0xff]
      %v2252 = vld [vmem:[#allocation2 + $0x80] sm:$0xff]
      %v2253 = vld [vmem:[#allocation2 + $0x88] sm:$0xff]
      %v2254 = vld [vmem:[#allocation2 + $0x90] sm:$0xff]
      %v2255 = vld [vmem:[#allocation2 + $0x98] sm:$0xff]
      %v2256 = vld [vmem:[#allocation2 + $0xa0] sm:$0xff]
      %v2257 = vld [vmem:[#allocation2 + $0xa8] sm:$0xff]
      %v2258 = vld [vmem:[#allocation2 + $0xb0] sm:$0xff]
      %v2259 = vld [vmem:[#allocation2 + $0xb8] sm:$0xff]
      %v2260 = vld [vmem:[#allocation2 + $0xc0] sm:$0xff]
      %v2261 = vld [vmem:[#allocation2 + $0xc8] sm:$0xff]
      %v2262 = vld [vmem:[#allocation2 + $0xd0] sm:$0xff]
      %v2263 = vld [vmem:[#allocation2 + $0xd8] sm:$0xff]
      %v2264 = vld [vmem:[#allocation2 + $0xe0] sm:$0xff]
      %v2265 = vld [vmem:[#allocation2 + $0xe8] sm:$0xff]
      %v2266 = vld [vmem:[#allocation2 + $0xf0] sm:$0xff]
      %v2267 = vld [vmem:[#allocation2 + $0xf8] sm:$0xff]
      %v2268 = vld [vmem:[#allocation2 + $0x100] sm:$0xff]
      %v2269 = vld [vmem:[#allocation2 + $0x108] sm:$0xff]
      %v2270 = vld [vmem:[#allocation2 + $0x110] sm:$0xff]
      %v2271 = vld [vmem:[#allocation2 + $0x118] sm:$0xff]
      %s2272 = scalar_lea.vmem %s1, 20
      %v2273 = vld [vmem:[%s2272] sm:$0xf]
      %v2275 = vsel %vm253, %v2200, 0
      %v2278 = vsel %vm253, %v2201, 0
      %v2281 = vsel %vm253, %v2202, 0
      %v2284 = vsel %vm253, %v2203, 0
      %v2287 = vsel %vm253, %v2204, 0
      %v2290 = vsel %vm253, %v2205, 0
      %v2293 = vsel %vm253, %v2206, 0
      %v2296 = vsel %vm253, %v2207, 0
      %v2299 = vsel %vm253, %v2208, 0
      %v2302 = vsel %vm253, %v2209, 0
      %v2305 = vsel %vm253, %v2210, 0
      %v2308 = vsel %vm253, %v2211, 0
      %v2311 = vsel %vm253, %v2212, 0
      %v2314 = vsel %vm253, %v2213, 0
      %v2317 = vsel %vm253, %v2214, 0
      %v2320 = vsel %vm253, %v2215, 0
      %v2323 = vsel %vm253, %v2216, 0
      %v2326 = vsel %vm253, %v2217, 0
      %v2329 = vsel %vm253, %v2218, 0
      %v2332 = vsel %vm253, %v2219, 0
      %v2335 = vsel %vm253, %v2220, 0
      %v2338 = vsel %vm253, %v2221, 0
      %v2341 = vsel %vm253, %v2222, 0
      %v2344 = vsel %vm253, %v2223, 0
      %v2347 = vsel %vm253, %v2224, 0
      %v2350 = vsel %vm253, %v2225, 0
      %v2353 = vsel %vm253, %v2226, 0
      %v2356 = vsel %vm253, %v2227, 0
      %v2359 = vsel %vm253, %v2228, 0
      %v2362 = vsel %vm253, %v2229, 0
      %v2365 = vsel %vm253, %v2230, 0
      %v2368 = vsel %vm253, %v2231, 0
      %v2371 = vsel %vm253, %v2232, 0
      %v2374 = vsel %vm253, %v2233, 0
      %v2377 = vsel %vm253, %v2234, 0
      %v2380 = vsel %vm253, %v2235, 0
      %v2383 = vsel %vm471, %v2273, 0
      %2385 = vmatpush.msra.mxu0 0.0
      %2386 = vmatpush.msra.mxu0 0.0
      %2387 = vmatpush.msra.mxu0 0.0
      %2388 = vmatpush.msra.mxu0 0.0
      %2389 = vmatpush.msra.mxu0 0.0
      %2390 = vmatpush.msra.mxu0 0.0
      %2391 = vmatpush.msra.mxu0 0.0
      %2392 = vmatpush.msra.mxu0 0.0
      %2393 = vmatpush.msra.mxu0 0.0
      %2394 = vmatpush.msra.mxu0 0.0
      %2395 = vmatpush.msra.mxu0 0.0
      %2396 = vmatpush.msra.mxu0 0.0
      %2397 = vmatpush.msra.mxu0 0.0
      %2398 = vmatpush.msra.mxu0 0.0
      %2399 = vmatpush.msra.mxu0 0.0
      %2400 = vmatpush.msra.mxu0 %v2383
      %2401 = vmatmul.f32.gmra.mxu0 %v2275
      %v2402 = vpop.f32.mrf.mxu0
      %v2403 = vadd.f32 0.0, %v2402
      %2404 = vmatmul.f32.gmra.mxu0 %v2278
      %v2405 = vpop.f32.mrf.mxu0
      %v2406 = vadd.f32 0.0, %v2405
      %2407 = vmatmul.f32.gmra.mxu0 %v2281
      %v2408 = vpop.f32.mrf.mxu0
      %v2409 = vadd.f32 0.0, %v2408
      %2410 = vmatmul.f32.gmra.mxu0 %v2284
      %v2411 = vpop.f32.mrf.mxu0
      %v2412 = vadd.f32 0.0, %v2411
      %2413 = vmatmul.f32.gmra.mxu0 %v2287
      %v2414 = vpop.f32.mrf.mxu0
      %v2415 = vadd.f32 0.0, %v2414
      %2416 = vmatmul.f32.gmra.mxu0 %v2290
      %v2417 = vpop.f32.mrf.mxu0
      %v2418 = vadd.f32 0.0, %v2417
      %2419 = vmatmul.f32.gmra.mxu0 %v2293
      %v2420 = vpop.f32.mrf.mxu0
      %v2421 = vadd.f32 0.0, %v2420
      %2422 = vmatmul.f32.gmra.mxu0 %v2296
      %v2423 = vpop.f32.mrf.mxu0
      %v2424 = vadd.f32 0.0, %v2423
      %2425 = vmatmul.f32.gmra.mxu0 %v2299
      %v2426 = vpop.f32.mrf.mxu0
      %v2427 = vadd.f32 0.0, %v2426
      %2428 = vmatmul.f32.gmra.mxu0 %v2302
      %v2429 = vpop.f32.mrf.mxu0
      %v2430 = vadd.f32 0.0, %v2429
      %2431 = vmatmul.f32.gmra.mxu0 %v2305
      %v2432 = vpop.f32.mrf.mxu0
      %v2433 = vadd.f32 0.0, %v2432
      %2434 = vmatmul.f32.gmra.mxu0 %v2308
      %v2435 = vpop.f32.mrf.mxu0
      %v2436 = vadd.f32 0.0, %v2435
      %2437 = vmatmul.f32.gmra.mxu0 %v2311
      %v2438 = vpop.f32.mrf.mxu0
      %v2439 = vadd.f32 0.0, %v2438
      %2440 = vmatmul.f32.gmra.mxu0 %v2314
      %v2441 = vpop.f32.mrf.mxu0
      %v2442 = vadd.f32 0.0, %v2441
      %2443 = vmatmul.f32.gmra.mxu0 %v2317
      %v2444 = vpop.f32.mrf.mxu0
      %v2445 = vadd.f32 0.0, %v2444
      %2446 = vmatmul.f32.gmra.mxu0 %v2320
      %v2447 = vpop.f32.mrf.mxu0
      %v2448 = vadd.f32 0.0, %v2447
      %2449 = vmatmul.f32.gmra.mxu0 %v2323
      %v2450 = vpop.f32.mrf.mxu0
      %v2451 = vadd.f32 0.0, %v2450
      %2452 = vmatmul.f32.gmra.mxu0 %v2326
      %v2453 = vpop.f32.mrf.mxu0
      %v2454 = vadd.f32 0.0, %v2453
      %2455 = vmatmul.f32.gmra.mxu0 %v2329
      %v2456 = vpop.f32.mrf.mxu0
      %v2457 = vadd.f32 0.0, %v2456
      %2458 = vmatmul.f32.gmra.mxu0 %v2332
      %v2459 = vpop.f32.mrf.mxu0
      %v2460 = vadd.f32 0.0, %v2459
      %2461 = vmatmul.f32.gmra.mxu0 %v2335
      %v2462 = vpop.f32.mrf.mxu0
      %v2463 = vadd.f32 0.0, %v2462
      %2464 = vmatmul.f32.gmra.mxu0 %v2338
      %v2465 = vpop.f32.mrf.mxu0
      %v2466 = vadd.f32 0.0, %v2465
      %2467 = vmatmul.f32.gmra.mxu0 %v2341
      %v2468 = vpop.f32.mrf.mxu0
      %v2469 = vadd.f32 0.0, %v2468
      %2470 = vmatmul.f32.gmra.mxu0 %v2344
      %v2471 = vpop.f32.mrf.mxu0
      %v2472 = vadd.f32 0.0, %v2471
      %2473 = vmatmul.f32.gmra.mxu0 %v2347
      %v2474 = vpop.f32.mrf.mxu0
      %v2475 = vadd.f32 0.0, %v2474
      %2476 = vmatmul.f32.gmra.mxu0 %v2350
      %v2477 = vpop.f32.mrf.mxu0
      %v2478 = vadd.f32 0.0, %v2477
      %2479 = vmatmul.f32.gmra.mxu0 %v2353
      %v2480 = vpop.f32.mrf.mxu0
      %v2481 = vadd.f32 0.0, %v2480
      %2482 = vmatmul.f32.gmra.mxu0 %v2356
      %v2483 = vpop.f32.mrf.mxu0
      %v2484 = vadd.f32 0.0, %v2483
      %2485 = vmatmul.f32.gmra.mxu0 %v2359
      %v2486 = vpop.f32.mrf.mxu0
      %v2487 = vadd.f32 0.0, %v2486
      %2488 = vmatmul.f32.gmra.mxu0 %v2362
      %v2489 = vpop.f32.mrf.mxu0
      %v2490 = vadd.f32 0.0, %v2489
      %2491 = vmatmul.f32.gmra.mxu0 %v2365
      %v2492 = vpop.f32.mrf.mxu0
      %v2493 = vadd.f32 0.0, %v2492
      %2494 = vmatmul.f32.gmra.mxu0 %v2368
      %v2495 = vpop.f32.mrf.mxu0
      %v2496 = vadd.f32 0.0, %v2495
      %2497 = vmatmul.f32.gmra.mxu0 %v2371
      %v2498 = vpop.f32.mrf.mxu0
      %v2499 = vadd.f32 0.0, %v2498
      %2500 = vmatmul.f32.gmra.mxu0 %v2374
      %v2501 = vpop.f32.mrf.mxu0
      %v2502 = vadd.f32 0.0, %v2501
      %2503 = vmatmul.f32.gmra.mxu0 %v2377
      %v2504 = vpop.f32.mrf.mxu0
      %v2505 = vadd.f32 0.0, %v2504
      %2506 = vmatmul.f32.gmra.mxu0 %v2380
      %v2507 = vpop.f32.mrf.mxu0
      %v2508 = vadd.f32 0.0, %v2507
      %2509 = vdwg.mxu0
      %v2510 = vadd.f32 %v2236, %v2403
      %v2511 = vadd.f32 %v2237, %v2406
      %v2512 = vadd.f32 %v2238, %v2409
      %v2513 = vadd.f32 %v2239, %v2412
      %v2514 = vadd.f32 %v2240, %v2415
      %v2515 = vadd.f32 %v2241, %v2418
      %v2516 = vadd.f32 %v2242, %v2421
      %v2517 = vadd.f32 %v2243, %v2424
      %v2518 = vadd.f32 %v2244, %v2427
      %v2519 = vadd.f32 %v2245, %v2430
      %v2520 = vadd.f32 %v2246, %v2433
      %v2521 = vadd.f32 %v2247, %v2436
      %v2522 = vadd.f32 %v2248, %v2439
      %v2523 = vadd.f32 %v2249, %v2442
      %v2524 = vadd.f32 %v2250, %v2445
      %v2525 = vadd.f32 %v2251, %v2448
      %v2526 = vadd.f32 %v2252, %v2451
      %v2527 = vadd.f32 %v2253, %v2454
      %v2528 = vadd.f32 %v2254, %v2457
      %v2529 = vadd.f32 %v2255, %v2460
      %v2530 = vadd.f32 %v2256, %v2463
      %v2531 = vadd.f32 %v2257, %v2466
      %v2532 = vadd.f32 %v2258, %v2469
      %v2533 = vadd.f32 %v2259, %v2472
      %v2534 = vadd.f32 %v2260, %v2475
      %v2535 = vadd.f32 %v2261, %v2478
      %v2536 = vadd.f32 %v2262, %v2481
      %v2537 = vadd.f32 %v2263, %v2484
      %v2538 = vadd.f32 %v2264, %v2487
      %v2539 = vadd.f32 %v2265, %v2490
      %v2540 = vadd.f32 %v2266, %v2493
      %v2541 = vadd.f32 %v2267, %v2496
      %v2542 = vadd.f32 %v2268, %v2499
      %v2543 = vadd.f32 %v2269, %v2502
      %v2544 = vadd.f32 %v2270, %v2505
      %v2545 = vadd.f32 %v2271, %v2508
      %2546 = vst.msk [vmem:[#allocation2] sm:$0xff] %vm253, %v2510
      %2547 = vst.msk [vmem:[#allocation2 + $0x8] sm:$0xff] %vm253, %v2511
      %2548 = vst.msk [vmem:[#allocation2 + $0x10] sm:$0xff] %vm253, %v2512
      %2549 = vst.msk [vmem:[#allocation2 + $0x18] sm:$0xff] %vm253, %v2513
      %2550 = vst.msk [vmem:[#allocation2 + $0x20] sm:$0xff] %vm253, %v2514
      %2551 = vst.msk [vmem:[#allocation2 + $0x28] sm:$0xff] %vm253, %v2515
      %2552 = vst.msk [vmem:[#allocation2 + $0x30] sm:$0xff] %vm253, %v2516
      %2553 = vst.msk [vmem:[#allocation2 + $0x38] sm:$0xff] %vm253, %v2517
      %2554 = vst.msk [vmem:[#allocation2 + $0x40] sm:$0xff] %vm253, %v2518
      %2555 = vst.msk [vmem:[#allocation2 + $0x48] sm:$0xff] %vm253, %v2519
      %2556 = vst.msk [vmem:[#allocation2 + $0x50] sm:$0xff] %vm253, %v2520
      %2557 = vst.msk [vmem:[#allocation2 + $0x58] sm:$0xff] %vm253, %v2521
      %2558 = vst.msk [vmem:[#allocation2 + $0x60] sm:$0xff] %vm253, %v2522
      %2559 = vst.msk [vmem:[#allocation2 + $0x68] sm:$0xff] %vm253, %v2523
      %2560 = vst.msk [vmem:[#allocation2 + $0x70] sm:$0xff] %vm253, %v2524
      %2561 = vst.msk [vmem:[#allocation2 + $0x78] sm:$0xff] %vm253, %v2525
      %2562 = vst.msk [vmem:[#allocation2 + $0x80] sm:$0xff] %vm253, %v2526
      %2563 = vst.msk [vmem:[#allocation2 + $0x88] sm:$0xff] %vm253, %v2527
      %2564 = vst.msk [vmem:[#allocation2 + $0x90] sm:$0xff] %vm253, %v2528
      %2565 = vst.msk [vmem:[#allocation2 + $0x98] sm:$0xff] %vm253, %v2529
      %2566 = vst.msk [vmem:[#allocation2 + $0xa0] sm:$0xff] %vm253, %v2530
      %2567 = vst.msk [vmem:[#allocation2 + $0xa8] sm:$0xff] %vm253, %v2531
      %2568 = vst.msk [vmem:[#allocation2 + $0xb0] sm:$0xff] %vm253, %v2532
      %2569 = vst.msk [vmem:[#allocation2 + $0xb8] sm:$0xff] %vm253, %v2533
      %2570 = vst.msk [vmem:[#allocation2 + $0xc0] sm:$0xff] %vm253, %v2534
      %2571 = vst.msk [vmem:[#allocation2 + $0xc8] sm:$0xff] %vm253, %v2535
      %2572 = vst.msk [vmem:[#allocation2 + $0xd0] sm:$0xff] %vm253, %v2536
      %2573 = vst.msk [vmem:[#allocation2 + $0xd8] sm:$0xff] %vm253, %v2537
      %2574 = vst.msk [vmem:[#allocation2 + $0xe0] sm:$0xff] %vm253, %v2538
      %2575 = vst.msk [vmem:[#allocation2 + $0xe8] sm:$0xff] %vm253, %v2539
      %2576 = vst.msk [vmem:[#allocation2 + $0xf0] sm:$0xff] %vm253, %v2540
      %2577 = vst.msk [vmem:[#allocation2 + $0xf8] sm:$0xff] %vm253, %v2541
      %2578 = vst.msk [vmem:[#allocation2 + $0x100] sm:$0xff] %vm253, %v2542
      %2579 = vst.msk [vmem:[#allocation2 + $0x108] sm:$0xff] %vm253, %v2543
      %2580 = vst.msk [vmem:[#allocation2 + $0x110] sm:$0xff] %vm253, %v2544
      %2581 = vst.msk [vmem:[#allocation2 + $0x118] sm:$0xff] %vm253, %v2545
      %v2582 = vld [vmem:[%s241 + $0x24] sm:$0xff]
      %v2583 = vld [vmem:[%s241 + $0x2c] sm:$0xff]
      %v2584 = vld [vmem:[%s241 + $0x34] sm:$0xff]
      %v2585 = vld [vmem:[%s241 + $0x3c] sm:$0xff]
      %v2586 = vld [vmem:[%s241 + $0x44] sm:$0xff]
      %v2587 = vld [vmem:[%s241 + $0x4c] sm:$0xff]
      %v2588 = vld [vmem:[%s241 + $0x54] sm:$0xff]
      %v2589 = vld [vmem:[%s241 + $0x5c] sm:$0xff]
      %v2590 = vld [vmem:[%s241 + $0x64] sm:$0xff]
      %v2591 = vld [vmem:[%s241 + $0x6c] sm:$0xff]
      %v2592 = vld [vmem:[%s241 + $0x74] sm:$0xff]
      %v2593 = vld [vmem:[%s241 + $0x7c] sm:$0xff]
      %v2594 = vld [vmem:[%s241 + $0x84] sm:$0xff]
      %v2595 = vld [vmem:[%s241 + $0x8c] sm:$0xff]
      %v2596 = vld [vmem:[%s241 + $0x94] sm:$0xff]
      %v2597 = vld [vmem:[%s241 + $0x9c] sm:$0xff]
      %v2598 = vld [vmem:[%s241 + $0xa4] sm:$0xff]
      %v2599 = vld [vmem:[%s241 + $0xac] sm:$0xff]
      %v2600 = vld [vmem:[%s241 + $0xb4] sm:$0xff]
      %v2601 = vld [vmem:[%s241 + $0xbc] sm:$0xff]
      %v2602 = vld [vmem:[%s241 + $0xc4] sm:$0xff]
      %v2603 = vld [vmem:[%s241 + $0xcc] sm:$0xff]
      %v2604 = vld [vmem:[%s241 + $0xd4] sm:$0xff]
      %v2605 = vld [vmem:[%s241 + $0xdc] sm:$0xff]
      %v2606 = vld [vmem:[%s241 + $0xe4] sm:$0xff]
      %v2607 = vld [vmem:[%s241 + $0xec] sm:$0xff]
      %v2608 = vld [vmem:[%s241 + $0xf4] sm:$0xff]
      %v2609 = vld [vmem:[%s241 + $0xfc] sm:$0xff]
      %v2610 = vld [vmem:[%s241 + $0x104] sm:$0xff]
      %v2611 = vld [vmem:[%s241 + $0x10c] sm:$0xff]
      %v2612 = vld [vmem:[%s241 + $0x114] sm:$0xff]
      %v2613 = vld [vmem:[%s241 + $0x11c] sm:$0xff]
      %v2614 = vld [vmem:[%s241 + $0x124] sm:$0xff]
      %v2615 = vld [vmem:[%s241 + $0x12c] sm:$0xff]
      %v2616 = vld [vmem:[%s241 + $0x134] sm:$0xff]
      %v2617 = vld [vmem:[%s241 + $0x13c] sm:$0xff]
      %v2618 = vld [vmem:[#allocation2] sm:$0xff]
      %v2619 = vld [vmem:[#allocation2 + $0x8] sm:$0xff]
      %v2620 = vld [vmem:[#allocation2 + $0x10] sm:$0xff]
      %v2621 = vld [vmem:[#allocation2 + $0x18] sm:$0xff]
      %v2622 = vld [vmem:[#allocation2 + $0x20] sm:$0xff]
      %v2623 = vld [vmem:[#allocation2 + $0x28] sm:$0xff]
      %v2624 = vld [vmem:[#allocation2 + $0x30] sm:$0xff]
      %v2625 = vld [vmem:[#allocation2 + $0x38] sm:$0xff]
      %v2626 = vld [vmem:[#allocation2 + $0x40] sm:$0xff]
      %v2627 = vld [vmem:[#allocation2 + $0x48] sm:$0xff]
      %v2628 = vld [vmem:[#allocation2 + $0x50] sm:$0xff]
      %v2629 = vld [vmem:[#allocation2 + $0x58] sm:$0xff]
      %v2630 = vld [vmem:[#allocation2 + $0x60] sm:$0xff]
      %v2631 = vld [vmem:[#allocation2 + $0x68] sm:$0xff]
      %v2632 = vld [vmem:[#allocation2 + $0x70] sm:$0xff]
      %v2633 = vld [vmem:[#allocation2 + $0x78] sm:$0xff]
      %v2634 = vld [vmem:[#allocation2 + $0x80] sm:$0xff]
      %v2635 = vld [vmem:[#allocation2 + $0x88] sm:$0xff]
      %v2636 = vld [vmem:[#allocation2 + $0x90] sm:$0xff]
      %v2637 = vld [vmem:[#allocation2 + $0x98] sm:$0xff]
      %v2638 = vld [vmem:[#allocation2 + $0xa0] sm:$0xff]
      %v2639 = vld [vmem:[#allocation2 + $0xa8] sm:$0xff]
      %v2640 = vld [vmem:[#allocation2 + $0xb0] sm:$0xff]
      %v2641 = vld [vmem:[#allocation2 + $0xb8] sm:$0xff]
      %v2642 = vld [vmem:[#allocation2 + $0xc0] sm:$0xff]
      %v2643 = vld [vmem:[#allocation2 + $0xc8] sm:$0xff]
      %v2644 = vld [vmem:[#allocation2 + $0xd0] sm:$0xff]
      %v2645 = vld [vmem:[#allocation2 + $0xd8] sm:$0xff]
      %v2646 = vld [vmem:[#allocation2 + $0xe0] sm:$0xff]
      %v2647 = vld [vmem:[#allocation2 + $0xe8] sm:$0xff]
      %v2648 = vld [vmem:[#allocation2 + $0xf0] sm:$0xff]
      %v2649 = vld [vmem:[#allocation2 + $0xf8] sm:$0xff]
      %v2650 = vld [vmem:[#allocation2 + $0x100] sm:$0xff]
      %v2651 = vld [vmem:[#allocation2 + $0x108] sm:$0xff]
      %v2652 = vld [vmem:[#allocation2 + $0x110] sm:$0xff]
      %v2653 = vld [vmem:[#allocation2 + $0x118] sm:$0xff]
      %s2654 = scalar_lea.vmem %s1, 24
      %v2655 = vld [vmem:[%s2654] sm:$0xf]
      %v2657 = vsel %vm253, %v2582, 0
      %v2660 = vsel %vm253, %v2583, 0
      %v2663 = vsel %vm253, %v2584, 0
      %v2666 = vsel %vm253, %v2585, 0
      %v2669 = vsel %vm253, %v2586, 0
      %v2672 = vsel %vm253, %v2587, 0
      %v2675 = vsel %vm253, %v2588, 0
      %v2678 = vsel %vm253, %v2589, 0
      %v2681 = vsel %vm253, %v2590, 0
      %v2684 = vsel %vm253, %v2591, 0
      %v2687 = vsel %vm253, %v2592, 0
      %v2690 = vsel %vm253, %v2593, 0
      %v2693 = vsel %vm253, %v2594, 0
      %v2696 = vsel %vm253, %v2595, 0
      %v2699 = vsel %vm253, %v2596, 0
      %v2702 = vsel %vm253, %v2597, 0
      %v2705 = vsel %vm253, %v2598, 0
      %v2708 = vsel %vm253, %v2599, 0
      %v2711 = vsel %vm253, %v2600, 0
      %v2714 = vsel %vm253, %v2601, 0
      %v2717 = vsel %vm253, %v2602, 0
      %v2720 = vsel %vm253, %v2603, 0
      %v2723 = vsel %vm253, %v2604, 0
      %v2726 = vsel %vm253, %v2605, 0
      %v2729 = vsel %vm253, %v2606, 0
      %v2732 = vsel %vm253, %v2607, 0
      %v2735 = vsel %vm253, %v2608, 0
      %v2738 = vsel %vm253, %v2609, 0
      %v2741 = vsel %vm253, %v2610, 0
      %v2744 = vsel %vm253, %v2611, 0
      %v2747 = vsel %vm253, %v2612, 0
      %v2750 = vsel %vm253, %v2613, 0
      %v2753 = vsel %vm253, %v2614, 0
      %v2756 = vsel %vm253, %v2615, 0
      %v2759 = vsel %vm253, %v2616, 0
      %v2762 = vsel %vm253, %v2617, 0
      %v2765 = vsel %vm471, %v2655, 0
      %2767 = vmatpush.msra.mxu0 0.0
      %2768 = vmatpush.msra.mxu0 0.0
      %2769 = vmatpush.msra.mxu0 0.0
      %2770 = vmatpush.msra.mxu0 0.0
      %2771 = vmatpush.msra.mxu0 0.0
      %2772 = vmatpush.msra.mxu0 0.0
      %2773 = vmatpush.msra.mxu0 0.0
      %2774 = vmatpush.msra.mxu0 0.0
      %2775 = vmatpush.msra.mxu0 0.0
      %2776 = vmatpush.msra.mxu0 0.0
      %2777 = vmatpush.msra.mxu0 0.0
      %2778 = vmatpush.msra.mxu0 0.0
      %2779 = vmatpush.msra.mxu0 0.0
      %2780 = vmatpush.msra.mxu0 0.0
      %2781 = vmatpush.msra.mxu0 0.0
      %2782 = vmatpush.msra.mxu0 %v2765
      %2783 = vmatmul.f32.gmra.mxu0 %v2657
      %v2784 = vpop.f32.mrf.mxu0
      %v2785 = vadd.f32 0.0, %v2784
      %2786 = vmatmul.f32.gmra.mxu0 %v2660
      %v2787 = vpop.f32.mrf.mxu0
      %v2788 = vadd.f32 0.0, %v2787
      %2789 = vmatmul.f32.gmra.mxu0 %v2663
      %v2790 = vpop.f32.mrf.mxu0
      %v2791 = vadd.f32 0.0, %v2790
      %2792 = vmatmul.f32.gmra.mxu0 %v2666
      %v2793 = vpop.f32.mrf.mxu0
      %v2794 = vadd.f32 0.0, %v2793
      %2795 = vmatmul.f32.gmra.mxu0 %v2669
      %v2796 = vpop.f32.mrf.mxu0
      %v2797 = vadd.f32 0.0, %v2796
      %2798 = vmatmul.f32.gmra.mxu0 %v2672
      %v2799 = vpop.f32.mrf.mxu0
      %v2800 = vadd.f32 0.0, %v2799
      %2801 = vmatmul.f32.gmra.mxu0 %v2675
      %v2802 = vpop.f32.mrf.mxu0
      %v2803 = vadd.f32 0.0, %v2802
      %2804 = vmatmul.f32.gmra.mxu0 %v2678
      %v2805 = vpop.f32.mrf.mxu0
      %v2806 = vadd.f32 0.0, %v2805
      %2807 = vmatmul.f32.gmra.mxu0 %v2681
      %v2808 = vpop.f32.mrf.mxu0
      %v2809 = vadd.f32 0.0, %v2808
      %2810 = vmatmul.f32.gmra.mxu0 %v2684
      %v2811 = vpop.f32.mrf.mxu0
      %v2812 = vadd.f32 0.0, %v2811
      %2813 = vmatmul.f32.gmra.mxu0 %v2687
      %v2814 = vpop.f32.mrf.mxu0
      %v2815 = vadd.f32 0.0, %v2814
      %2816 = vmatmul.f32.gmra.mxu0 %v2690
      %v2817 = vpop.f32.mrf.mxu0
      %v2818 = vadd.f32 0.0, %v2817
      %2819 = vmatmul.f32.gmra.mxu0 %v2693
      %v2820 = vpop.f32.mrf.mxu0
      %v2821 = vadd.f32 0.0, %v2820
      %2822 = vmatmul.f32.gmra.mxu0 %v2696
      %v2823 = vpop.f32.mrf.mxu0
      %v2824 = vadd.f32 0.0, %v2823
      %2825 = vmatmul.f32.gmra.mxu0 %v2699
      %v2826 = vpop.f32.mrf.mxu0
      %v2827 = vadd.f32 0.0, %v2826
      %2828 = vmatmul.f32.gmra.mxu0 %v2702
      %v2829 = vpop.f32.mrf.mxu0
      %v2830 = vadd.f32 0.0, %v2829
      %2831 = vmatmul.f32.gmra.mxu0 %v2705
      %v2832 = vpop.f32.mrf.mxu0
      %v2833 = vadd.f32 0.0, %v2832
      %2834 = vmatmul.f32.gmra.mxu0 %v2708
      %v2835 = vpop.f32.mrf.mxu0
      %v2836 = vadd.f32 0.0, %v2835
      %2837 = vmatmul.f32.gmra.mxu0 %v2711
      %v2838 = vpop.f32.mrf.mxu0
      %v2839 = vadd.f32 0.0, %v2838
      %2840 = vmatmul.f32.gmra.mxu0 %v2714
      %v2841 = vpop.f32.mrf.mxu0
      %v2842 = vadd.f32 0.0, %v2841
      %2843 = vmatmul.f32.gmra.mxu0 %v2717
      %v2844 = vpop.f32.mrf.mxu0
      %v2845 = vadd.f32 0.0, %v2844
      %2846 = vmatmul.f32.gmra.mxu0 %v2720
      %v2847 = vpop.f32.mrf.mxu0
      %v2848 = vadd.f32 0.0, %v2847
      %2849 = vmatmul.f32.gmra.mxu0 %v2723
      %v2850 = vpop.f32.mrf.mxu0
      %v2851 = vadd.f32 0.0, %v2850
      %2852 = vmatmul.f32.gmra.mxu0 %v2726
      %v2853 = vpop.f32.mrf.mxu0
      %v2854 = vadd.f32 0.0, %v2853
      %2855 = vmatmul.f32.gmra.mxu0 %v2729
      %v2856 = vpop.f32.mrf.mxu0
      %v2857 = vadd.f32 0.0, %v2856
      %2858 = vmatmul.f32.gmra.mxu0 %v2732
      %v2859 = vpop.f32.mrf.mxu0
      %v2860 = vadd.f32 0.0, %v2859
      %2861 = vmatmul.f32.gmra.mxu0 %v2735
      %v2862 = vpop.f32.mrf.mxu0
      %v2863 = vadd.f32 0.0, %v2862
      %2864 = vmatmul.f32.gmra.mxu0 %v2738
      %v2865 = vpop.f32.mrf.mxu0
      %v2866 = vadd.f32 0.0, %v2865
      %2867 = vmatmul.f32.gmra.mxu0 %v2741
      %v2868 = vpop.f32.mrf.mxu0
      %v2869 = vadd.f32 0.0, %v2868
      %2870 = vmatmul.f32.gmra.mxu0 %v2744
      %v2871 = vpop.f32.mrf.mxu0
      %v2872 = vadd.f32 0.0, %v2871
      %2873 = vmatmul.f32.gmra.mxu0 %v2747
      %v2874 = vpop.f32.mrf.mxu0
      %v2875 = vadd.f32 0.0, %v2874
      %2876 = vmatmul.f32.gmra.mxu0 %v2750
      %v2877 = vpop.f32.mrf.mxu0
      %v2878 = vadd.f32 0.0, %v2877
      %2879 = vmatmul.f32.gmra.mxu0 %v2753
      %v2880 = vpop.f32.mrf.mxu0
      %v2881 = vadd.f32 0.0, %v2880
      %2882 = vmatmul.f32.gmra.mxu0 %v2756
      %v2883 = vpop.f32.mrf.mxu0
      %v2884 = vadd.f32 0.0, %v2883
      %2885 = vmatmul.f32.gmra.mxu0 %v2759
      %v2886 = vpop.f32.mrf.mxu0
      %v2887 = vadd.f32 0.0, %v2886
      %2888 = vmatmul.f32.gmra.mxu0 %v2762
      %v2889 = vpop.f32.mrf.mxu0
      %v2890 = vadd.f32 0.0, %v2889
      %2891 = vdwg.mxu0
      %v2892 = vadd.f32 %v2618, %v2785
      %v2893 = vadd.f32 %v2619, %v2788
      %v2894 = vadd.f32 %v2620, %v2791
      %v2895 = vadd.f32 %v2621, %v2794
      %v2896 = vadd.f32 %v2622, %v2797
      %v2897 = vadd.f32 %v2623, %v2800
      %v2898 = vadd.f32 %v2624, %v2803
      %v2899 = vadd.f32 %v2625, %v2806
      %v2900 = vadd.f32 %v2626, %v2809
      %v2901 = vadd.f32 %v2627, %v2812
      %v2902 = vadd.f32 %v2628, %v2815
      %v2903 = vadd.f32 %v2629, %v2818
      %v2904 = vadd.f32 %v2630, %v2821
      %v2905 = vadd.f32 %v2631, %v2824
      %v2906 = vadd.f32 %v2632, %v2827
      %v2907 = vadd.f32 %v2633, %v2830
      %v2908 = vadd.f32 %v2634, %v2833
      %v2909 = vadd.f32 %v2635, %v2836
      %v2910 = vadd.f32 %v2636, %v2839
      %v2911 = vadd.f32 %v2637, %v2842
      %v2912 = vadd.f32 %v2638, %v2845
      %v2913 = vadd.f32 %v2639, %v2848
      %v2914 = vadd.f32 %v2640, %v2851
      %v2915 = vadd.f32 %v2641, %v2854
      %v2916 = vadd.f32 %v2642, %v2857
      %v2917 = vadd.f32 %v2643, %v2860
      %v2918 = vadd.f32 %v2644, %v2863
      %v2919 = vadd.f32 %v2645, %v2866
      %v2920 = vadd.f32 %v2646, %v2869
      %v2921 = vadd.f32 %v2647, %v2872
      %v2922 = vadd.f32 %v2648, %v2875
      %v2923 = vadd.f32 %v2649, %v2878
      %v2924 = vadd.f32 %v2650, %v2881
      %v2925 = vadd.f32 %v2651, %v2884
      %v2926 = vadd.f32 %v2652, %v2887
      %v2927 = vadd.f32 %v2653, %v2890
      %2928 = vst.msk [vmem:[#allocation2] sm:$0xff] %vm253, %v2892
      %2929 = vst.msk [vmem:[#allocation2 + $0x8] sm:$0xff] %vm253, %v2893
      %2930 = vst.msk [vmem:[#allocation2 + $0x10] sm:$0xff] %vm253, %v2894
      %2931 = vst.msk [vmem:[#allocation2 + $0x18] sm:$0xff] %vm253, %v2895
      %2932 = vst.msk [vmem:[#allocation2 + $0x20] sm:$0xff] %vm253, %v2896
      %2933 = vst.msk [vmem:[#allocation2 + $0x28] sm:$0xff] %vm253, %v2897
      %2934 = vst.msk [vmem:[#allocation2 + $0x30] sm:$0xff] %vm253, %v2898
      %2935 = vst.msk [vmem:[#allocation2 + $0x38] sm:$0xff] %vm253, %v2899
      %2936 = vst.msk [vmem:[#allocation2 + $0x40] sm:$0xff] %vm253, %v2900
      %2937 = vst.msk [vmem:[#allocation2 + $0x48] sm:$0xff] %vm253, %v2901
      %2938 = vst.msk [vmem:[#allocation2 + $0x50] sm:$0xff] %vm253, %v2902
      %2939 = vst.msk [vmem:[#allocation2 + $0x58] sm:$0xff] %vm253, %v2903
      %2940 = vst.msk [vmem:[#allocation2 + $0x60] sm:$0xff] %vm253, %v2904
      %2941 = vst.msk [vmem:[#allocation2 + $0x68] sm:$0xff] %vm253, %v2905
      %2942 = vst.msk [vmem:[#allocation2 + $0x70] sm:$0xff] %vm253, %v2906
      %2943 = vst.msk [vmem:[#allocation2 + $0x78] sm:$0xff] %vm253, %v2907
      %2944 = vst.msk [vmem:[#allocation2 + $0x80] sm:$0xff] %vm253, %v2908
      %2945 = vst.msk [vmem:[#allocation2 + $0x88] sm:$0xff] %vm253, %v2909
      %2946 = vst.msk [vmem:[#allocation2 + $0x90] sm:$0xff] %vm253, %v2910
      %2947 = vst.msk [vmem:[#allocation2 + $0x98] sm:$0xff] %vm253, %v2911
      %2948 = vst.msk [vmem:[#allocation2 + $0xa0] sm:$0xff] %vm253, %v2912
      %2949 = vst.msk [vmem:[#allocation2 + $0xa8] sm:$0xff] %vm253, %v2913
      %2950 = vst.msk [vmem:[#allocation2 + $0xb0] sm:$0xff] %vm253, %v2914
      %2951 = vst.msk [vmem:[#allocation2 + $0xb8] sm:$0xff] %vm253, %v2915
      %2952 = vst.msk [vmem:[#allocation2 + $0xc0] sm:$0xff] %vm253, %v2916
      %2953 = vst.msk [vmem:[#allocation2 + $0xc8] sm:$0xff] %vm253, %v2917
      %2954 = vst.msk [vmem:[#allocation2 + $0xd0] sm:$0xff] %vm253, %v2918
      %2955 = vst.msk [vmem:[#allocation2 + $0xd8] sm:$0xff] %vm253, %v2919
      %2956 = vst.msk [vmem:[#allocation2 + $0xe0] sm:$0xff] %vm253, %v2920
      %2957 = vst.msk [vmem:[#allocation2 + $0xe8] sm:$0xff] %vm253, %v2921
      %2958 = vst.msk [vmem:[#allocation2 + $0xf0] sm:$0xff] %vm253, %v2922
      %2959 = vst.msk [vmem:[#allocation2 + $0xf8] sm:$0xff] %vm253, %v2923
      %2960 = vst.msk [vmem:[#allocation2 + $0x100] sm:$0xff] %vm253, %v2924
      %2961 = vst.msk [vmem:[#allocation2 + $0x108] sm:$0xff] %vm253, %v2925
      %2962 = vst.msk [vmem:[#allocation2 + $0x110] sm:$0xff] %vm253, %v2926
      %2963 = vst.msk [vmem:[#allocation2 + $0x118] sm:$0xff] %vm253, %v2927
      %v2964 = vld [vmem:[%s241 + $0x25] sm:$0xff]
      %v2965 = vld [vmem:[%s241 + $0x2d] sm:$0xff]
      %v2966 = vld [vmem:[%s241 + $0x35] sm:$0xff]
      %v2967 = vld [vmem:[%s241 + $0x3d] sm:$0xff]
      %v2968 = vld [vmem:[%s241 + $0x45] sm:$0xff]
      %v2969 = vld [vmem:[%s241 + $0x4d] sm:$0xff]
      %v2970 = vld [vmem:[%s241 + $0x55] sm:$0xff]
      %v2971 = vld [vmem:[%s241 + $0x5d] sm:$0xff]
      %v2972 = vld [vmem:[%s241 + $0x65] sm:$0xff]
      %v2973 = vld [vmem:[%s241 + $0x6d] sm:$0xff]
      %v2974 = vld [vmem:[%s241 + $0x75] sm:$0xff]
      %v2975 = vld [vmem:[%s241 + $0x7d] sm:$0xff]
      %v2976 = vld [vmem:[%s241 + $0x85] sm:$0xff]
      %v2977 = vld [vmem:[%s241 + $0x8d] sm:$0xff]
      %v2978 = vld [vmem:[%s241 + $0x95] sm:$0xff]
      %v2979 = vld [vmem:[%s241 + $0x9d] sm:$0xff]
      %v2980 = vld [vmem:[%s241 + $0xa5] sm:$0xff]
      %v2981 = vld [vmem:[%s241 + $0xad] sm:$0xff]
      %v2982 = vld [vmem:[%s241 + $0xb5] sm:$0xff]
      %v2983 = vld [vmem:[%s241 + $0xbd] sm:$0xff]
      %v2984 = vld [vmem:[%s241 + $0xc5] sm:$0xff]
      %v2985 = vld [vmem:[%s241 + $0xcd] sm:$0xff]
      %v2986 = vld [vmem:[%s241 + $0xd5] sm:$0xff]
      %v2987 = vld [vmem:[%s241 + $0xdd] sm:$0xff]
      %v2988 = vld [vmem:[%s241 + $0xe5] sm:$0xff]
      %v2989 = vld [vmem:[%s241 + $0xed] sm:$0xff]
      %v2990 = vld [vmem:[%s241 + $0xf5] sm:$0xff]
      %v2991 = vld [vmem:[%s241 + $0xfd] sm:$0xff]
      %v2992 = vld [vmem:[%s241 + $0x105] sm:$0xff]
      %v2993 = vld [vmem:[%s241 + $0x10d] sm:$0xff]
      %v2994 = vld [vmem:[%s241 + $0x115] sm:$0xff]
      %v2995 = vld [vmem:[%s241 + $0x11d] sm:$0xff]
      %v2996 = vld [vmem:[%s241 + $0x125] sm:$0xff]
      %v2997 = vld [vmem:[%s241 + $0x12d] sm:$0xff]
      %v2998 = vld [vmem:[%s241 + $0x135] sm:$0xff]
      %v2999 = vld [vmem:[%s241 + $0x13d] sm:$0xff]
      %v3000 = vld [vmem:[#allocation2] sm:$0xff]
      %v3001 = vld [vmem:[#allocation2 + $0x8] sm:$0xff]
      %v3002 = vld [vmem:[#allocation2 + $0x10] sm:$0xff]
      %v3003 = vld [vmem:[#allocation2 + $0x18] sm:$0xff]
      %v3004 = vld [vmem:[#allocation2 + $0x20] sm:$0xff]
      %v3005 = vld [vmem:[#allocation2 + $0x28] sm:$0xff]
      %v3006 = vld [vmem:[#allocation2 + $0x30] sm:$0xff]
      %v3007 = vld [vmem:[#allocation2 + $0x38] sm:$0xff]
      %v3008 = vld [vmem:[#allocation2 + $0x40] sm:$0xff]
      %v3009 = vld [vmem:[#allocation2 + $0x48] sm:$0xff]
      %v3010 = vld [vmem:[#allocation2 + $0x50] sm:$0xff]
      %v3011 = vld [vmem:[#allocation2 + $0x58] sm:$0xff]
      %v3012 = vld [vmem:[#allocation2 + $0x60] sm:$0xff]
      %v3013 = vld [vmem:[#allocation2 + $0x68] sm:$0xff]
      %v3014 = vld [vmem:[#allocation2 + $0x70] sm:$0xff]
      %v3015 = vld [vmem:[#allocation2 + $0x78] sm:$0xff]
      %v3016 = vld [vmem:[#allocation2 + $0x80] sm:$0xff]
      %v3017 = vld [vmem:[#allocation2 + $0x88] sm:$0xff]
      %v3018 = vld [vmem:[#allocation2 + $0x90] sm:$0xff]
      %v3019 = vld [vmem:[#allocation2 + $0x98] sm:$0xff]
      %v3020 = vld [vmem:[#allocation2 + $0xa0] sm:$0xff]
      %v3021 = vld [vmem:[#allocation2 + $0xa8] sm:$0xff]
      %v3022 = vld [vmem:[#allocation2 + $0xb0] sm:$0xff]
      %v3023 = vld [vmem:[#allocation2 + $0xb8] sm:$0xff]
      %v3024 = vld [vmem:[#allocation2 + $0xc0] sm:$0xff]
      %v3025 = vld [vmem:[#allocation2 + $0xc8] sm:$0xff]
      %v3026 = vld [vmem:[#allocation2 + $0xd0] sm:$0xff]
      %v3027 = vld [vmem:[#allocation2 + $0xd8] sm:$0xff]
      %v3028 = vld [vmem:[#allocation2 + $0xe0] sm:$0xff]
      %v3029 = vld [vmem:[#allocation2 + $0xe8] sm:$0xff]
      %v3030 = vld [vmem:[#allocation2 + $0xf0] sm:$0xff]
      %v3031 = vld [vmem:[#allocation2 + $0xf8] sm:$0xff]
      %v3032 = vld [vmem:[#allocation2 + $0x100] sm:$0xff]
      %v3033 = vld [vmem:[#allocation2 + $0x108] sm:$0xff]
      %v3034 = vld [vmem:[#allocation2 + $0x110] sm:$0xff]
      %v3035 = vld [vmem:[#allocation2 + $0x118] sm:$0xff]
      %s3036 = scalar_lea.vmem %s1, 28
      %v3037 = vld [vmem:[%s3036] sm:$0xf]
      %v3039 = vsel %vm253, %v2964, 0
      %v3042 = vsel %vm253, %v2965, 0
      %v3045 = vsel %vm253, %v2966, 0
      %v3048 = vsel %vm253, %v2967, 0
      %v3051 = vsel %vm253, %v2968, 0
      %v3054 = vsel %vm253, %v2969, 0
      %v3057 = vsel %vm253, %v2970, 0
      %v3060 = vsel %vm253, %v2971, 0
      %v3063 = vsel %vm253, %v2972, 0
      %v3066 = vsel %vm253, %v2973, 0
      %v3069 = vsel %vm253, %v2974, 0
      %v3072 = vsel %vm253, %v2975, 0
      %v3075 = vsel %vm253, %v2976, 0
      %v3078 = vsel %vm253, %v2977, 0
      %v3081 = vsel %vm253, %v2978, 0
      %v3084 = vsel %vm253, %v2979, 0
      %v3087 = vsel %vm253, %v2980, 0
      %v3090 = vsel %vm253, %v2981, 0
      %v3093 = vsel %vm253, %v2982, 0
      %v3096 = vsel %vm253, %v2983, 0
      %v3099 = vsel %vm253, %v2984, 0
      %v3102 = vsel %vm253, %v2985, 0
      %v3105 = vsel %vm253, %v2986, 0
      %v3108 = vsel %vm253, %v2987, 0
      %v3111 = vsel %vm253, %v2988, 0
      %v3114 = vsel %vm253, %v2989, 0
      %v3117 = vsel %vm253, %v2990, 0
      %v3120 = vsel %vm253, %v2991, 0
      %v3123 = vsel %vm253, %v2992, 0
      %v3126 = vsel %vm253, %v2993, 0
      %v3129 = vsel %vm253, %v2994, 0
      %v3132 = vsel %vm253, %v2995, 0
      %v3135 = vsel %vm253, %v2996, 0
      %v3138 = vsel %vm253, %v2997, 0
      %v3141 = vsel %vm253, %v2998, 0
      %v3144 = vsel %vm253, %v2999, 0
      %v3147 = vsel %vm471, %v3037, 0
      %3149 = vmatpush.msra.mxu0 0.0
      %3150 = vmatpush.msra.mxu0 0.0
      %3151 = vmatpush.msra.mxu0 0.0
      %3152 = vmatpush.msra.mxu0 0.0
      %3153 = vmatpush.msra.mxu0 0.0
      %3154 = vmatpush.msra.mxu0 0.0
      %3155 = vmatpush.msra.mxu0 0.0
      %3156 = vmatpush.msra.mxu0 0.0
      %3157 = vmatpush.msra.mxu0 0.0
      %3158 = vmatpush.msra.mxu0 0.0
      %3159 = vmatpush.msra.mxu0 0.0
      %3160 = vmatpush.msra.mxu0 0.0
      %3161 = vmatpush.msra.mxu0 0.0
      %3162 = vmatpush.msra.mxu0 0.0
      %3163 = vmatpush.msra.mxu0 0.0
      %3164 = vmatpush.msra.mxu0 %v3147
      %3165 = vmatmul.f32.gmra.mxu0 %v3039
      %v3166 = vpop.f32.mrf.mxu0
      %v3167 = vadd.f32 0.0, %v3166
      %3168 = vmatmul.f32.gmra.mxu0 %v3042
      %v3169 = vpop.f32.mrf.mxu0
      %v3170 = vadd.f32 0.0, %v3169
      %3171 = vmatmul.f32.gmra.mxu0 %v3045
      %v3172 = vpop.f32.mrf.mxu0
      %v3173 = vadd.f32 0.0, %v3172
      %3174 = vmatmul.f32.gmra.mxu0 %v3048
      %v3175 = vpop.f32.mrf.mxu0
      %v3176 = vadd.f32 0.0, %v3175
      %3177 = vmatmul.f32.gmra.mxu0 %v3051
      %v3178 = vpop.f32.mrf.mxu0
      %v3179 = vadd.f32 0.0, %v3178
      %3180 = vmatmul.f32.gmra.mxu0 %v3054
      %v3181 = vpop.f32.mrf.mxu0
      %v3182 = vadd.f32 0.0, %v3181
      %3183 = vmatmul.f32.gmra.mxu0 %v3057
      %v3184 = vpop.f32.mrf.mxu0
      %v3185 = vadd.f32 0.0, %v3184
      %3186 = vmatmul.f32.gmra.mxu0 %v3060
      %v3187 = vpop.f32.mrf.mxu0
      %v3188 = vadd.f32 0.0, %v3187
      %3189 = vmatmul.f32.gmra.mxu0 %v3063
      %v3190 = vpop.f32.mrf.mxu0
      %v3191 = vadd.f32 0.0, %v3190
      %3192 = vmatmul.f32.gmra.mxu0 %v3066
      %v3193 = vpop.f32.mrf.mxu0
      %v3194 = vadd.f32 0.0, %v3193
      %3195 = vmatmul.f32.gmra.mxu0 %v3069
      %v3196 = vpop.f32.mrf.mxu0
      %v3197 = vadd.f32 0.0, %v3196
      %3198 = vmatmul.f32.gmra.mxu0 %v3072
      %v3199 = vpop.f32.mrf.mxu0
      %v3200 = vadd.f32 0.0, %v3199
      %3201 = vmatmul.f32.gmra.mxu0 %v3075
      %v3202 = vpop.f32.mrf.mxu0
      %v3203 = vadd.f32 0.0, %v3202
      %3204 = vmatmul.f32.gmra.mxu0 %v3078
      %v3205 = vpop.f32.mrf.mxu0
      %v3206 = vadd.f32 0.0, %v3205
      %3207 = vmatmul.f32.gmra.mxu0 %v3081
      %v3208 = vpop.f32.mrf.mxu0
      %v3209 = vadd.f32 0.0, %v3208
      %3210 = vmatmul.f32.gmra.mxu0 %v3084
      %v3211 = vpop.f32.mrf.mxu0
      %v3212 = vadd.f32 0.0, %v3211
      %3213 = vmatmul.f32.gmra.mxu0 %v3087
      %v3214 = vpop.f32.mrf.mxu0
      %v3215 = vadd.f32 0.0, %v3214
      %3216 = vmatmul.f32.gmra.mxu0 %v3090
      %v3217 = vpop.f32.mrf.mxu0
      %v3218 = vadd.f32 0.0, %v3217
      %3219 = vmatmul.f32.gmra.mxu0 %v3093
      %v3220 = vpop.f32.mrf.mxu0
      %v3221 = vadd.f32 0.0, %v3220
      %3222 = vmatmul.f32.gmra.mxu0 %v3096
      %v3223 = vpop.f32.mrf.mxu0
      %v3224 = vadd.f32 0.0, %v3223
      %3225 = vmatmul.f32.gmra.mxu0 %v3099
      %v3226 = vpop.f32.mrf.mxu0
      %v3227 = vadd.f32 0.0, %v3226
      %3228 = vmatmul.f32.gmra.mxu0 %v3102
      %v3229 = vpop.f32.mrf.mxu0
      %v3230 = vadd.f32 0.0, %v3229
      %3231 = vmatmul.f32.gmra.mxu0 %v3105
      %v3232 = vpop.f32.mrf.mxu0
      %v3233 = vadd.f32 0.0, %v3232
      %3234 = vmatmul.f32.gmra.mxu0 %v3108
      %v3235 = vpop.f32.mrf.mxu0
      %v3236 = vadd.f32 0.0, %v3235
      %3237 = vmatmul.f32.gmra.mxu0 %v3111
      %v3238 = vpop.f32.mrf.mxu0
      %v3239 = vadd.f32 0.0, %v3238
      %3240 = vmatmul.f32.gmra.mxu0 %v3114
      %v3241 = vpop.f32.mrf.mxu0
      %v3242 = vadd.f32 0.0, %v3241
      %3243 = vmatmul.f32.gmra.mxu0 %v3117
      %v3244 = vpop.f32.mrf.mxu0
      %v3245 = vadd.f32 0.0, %v3244
      %3246 = vmatmul.f32.gmra.mxu0 %v3120
      %v3247 = vpop.f32.mrf.mxu0
      %v3248 = vadd.f32 0.0, %v3247
      %3249 = vmatmul.f32.gmra.mxu0 %v3123
      %v3250 = vpop.f32.mrf.mxu0
      %v3251 = vadd.f32 0.0, %v3250
      %3252 = vmatmul.f32.gmra.mxu0 %v3126
      %v3253 = vpop.f32.mrf.mxu0
      %v3254 = vadd.f32 0.0, %v3253
      %3255 = vmatmul.f32.gmra.mxu0 %v3129
      %v3256 = vpop.f32.mrf.mxu0
      %v3257 = vadd.f32 0.0, %v3256
      %3258 = vmatmul.f32.gmra.mxu0 %v3132
      %v3259 = vpop.f32.mrf.mxu0
      %v3260 = vadd.f32 0.0, %v3259
      %3261 = vmatmul.f32.gmra.mxu0 %v3135
      %v3262 = vpop.f32.mrf.mxu0
      %v3263 = vadd.f32 0.0, %v3262
      %3264 = vmatmul.f32.gmra.mxu0 %v3138
      %v3265 = vpop.f32.mrf.mxu0
      %v3266 = vadd.f32 0.0, %v3265
      %3267 = vmatmul.f32.gmra.mxu0 %v3141
      %v3268 = vpop.f32.mrf.mxu0
      %v3269 = vadd.f32 0.0, %v3268
      %3270 = vmatmul.f32.gmra.mxu0 %v3144
      %v3271 = vpop.f32.mrf.mxu0
      %v3272 = vadd.f32 0.0, %v3271
      %3273 = vdwg.mxu0
      %v3274 = vadd.f32 %v3000, %v3167
      %v3275 = vadd.f32 %v3001, %v3170
      %v3276 = vadd.f32 %v3002, %v3173
      %v3277 = vadd.f32 %v3003, %v3176
      %v3278 = vadd.f32 %v3004, %v3179
      %v3279 = vadd.f32 %v3005, %v3182
      %v3280 = vadd.f32 %v3006, %v3185
      %v3281 = vadd.f32 %v3007, %v3188
      %v3282 = vadd.f32 %v3008, %v3191
      %v3283 = vadd.f32 %v3009, %v3194
      %v3284 = vadd.f32 %v3010, %v3197
      %v3285 = vadd.f32 %v3011, %v3200
      %v3286 = vadd.f32 %v3012, %v3203
      %v3287 = vadd.f32 %v3013, %v3206
      %v3288 = vadd.f32 %v3014, %v3209
      %v3289 = vadd.f32 %v3015, %v3212
      %v3290 = vadd.f32 %v3016, %v3215
      %v3291 = vadd.f32 %v3017, %v3218
      %v3292 = vadd.f32 %v3018, %v3221
      %v3293 = vadd.f32 %v3019, %v3224
      %v3294 = vadd.f32 %v3020, %v3227
      %v3295 = vadd.f32 %v3021, %v3230
      %v3296 = vadd.f32 %v3022, %v3233
      %v3297 = vadd.f32 %v3023, %v3236
      %v3298 = vadd.f32 %v3024, %v3239
      %v3299 = vadd.f32 %v3025, %v3242
      %v3300 = vadd.f32 %v3026, %v3245
      %v3301 = vadd.f32 %v3027, %v3248
      %v3302 = vadd.f32 %v3028, %v3251
      %v3303 = vadd.f32 %v3029, %v3254
      %v3304 = vadd.f32 %v3030, %v3257
      %v3305 = vadd.f32 %v3031, %v3260
      %v3306 = vadd.f32 %v3032, %v3263
      %v3307 = vadd.f32 %v3033, %v3266
      %v3308 = vadd.f32 %v3034, %v3269
      %v3309 = vadd.f32 %v3035, %v3272
      %3310 = vst.msk [vmem:[#allocation2] sm:$0xff] %vm253, %v3274
      %3311 = vst.msk [vmem:[#allocation2 + $0x8] sm:$0xff] %vm253, %v3275
      %3312 = vst.msk [vmem:[#allocation2 + $0x10] sm:$0xff] %vm253, %v3276
      %3313 = vst.msk [vmem:[#allocation2 + $0x18] sm:$0xff] %vm253, %v3277
      %3314 = vst.msk [vmem:[#allocation2 + $0x20] sm:$0xff] %vm253, %v3278
      %3315 = vst.msk [vmem:[#allocation2 + $0x28] sm:$0xff] %vm253, %v3279
      %3316 = vst.msk [vmem:[#allocation2 + $0x30] sm:$0xff] %vm253, %v3280
      %3317 = vst.msk [vmem:[#allocation2 + $0x38] sm:$0xff] %vm253, %v3281
      %3318 = vst.msk [vmem:[#allocation2 + $0x40] sm:$0xff] %vm253, %v3282
      %3319 = vst.msk [vmem:[#allocation2 + $0x48] sm:$0xff] %vm253, %v3283
      %3320 = vst.msk [vmem:[#allocation2 + $0x50] sm:$0xff] %vm253, %v3284
      %3321 = vst.msk [vmem:[#allocation2 + $0x58] sm:$0xff] %vm253, %v3285
      %3322 = vst.msk [vmem:[#allocation2 + $0x60] sm:$0xff] %vm253, %v3286
      %3323 = vst.msk [vmem:[#allocation2 + $0x68] sm:$0xff] %vm253, %v3287
      %3324 = vst.msk [vmem:[#allocation2 + $0x70] sm:$0xff] %vm253, %v3288
      %3325 = vst.msk [vmem:[#allocation2 + $0x78] sm:$0xff] %vm253, %v3289
      %3326 = vst.msk [vmem:[#allocation2 + $0x80] sm:$0xff] %vm253, %v3290
      %3327 = vst.msk [vmem:[#allocation2 + $0x88] sm:$0xff] %vm253, %v3291
      %3328 = vst.msk [vmem:[#allocation2 + $0x90] sm:$0xff] %vm253, %v3292
      %3329 = vst.msk [vmem:[#allocation2 + $0x98] sm:$0xff] %vm253, %v3293
      %3330 = vst.msk [vmem:[#allocation2 + $0xa0] sm:$0xff] %vm253, %v3294
      %3331 = vst.msk [vmem:[#allocation2 + $0xa8] sm:$0xff] %vm253, %v3295
      %3332 = vst.msk [vmem:[#allocation2 + $0xb0] sm:$0xff] %vm253, %v3296
      %3333 = vst.msk [vmem:[#allocation2 + $0xb8] sm:$0xff] %vm253, %v3297
      %3334 = vst.msk [vmem:[#allocation2 + $0xc0] sm:$0xff] %vm253, %v3298
      %3335 = vst.msk [vmem:[#allocation2 + $0xc8] sm:$0xff] %vm253, %v3299
      %3336 = vst.msk [vmem:[#allocation2 + $0xd0] sm:$0xff] %vm253, %v3300
      %3337 = vst.msk [vmem:[#allocation2 + $0xd8] sm:$0xff] %vm253, %v3301
      %3338 = vst.msk [vmem:[#allocation2 + $0xe0] sm:$0xff] %vm253, %v3302
      %3339 = vst.msk [vmem:[#allocation2 + $0xe8] sm:$0xff] %vm253, %v3303
      %3340 = vst.msk [vmem:[#allocation2 + $0xf0] sm:$0xff] %vm253, %v3304
      %3341 = vst.msk [vmem:[#allocation2 + $0xf8] sm:$0xff] %vm253, %v3305
      %3342 = vst.msk [vmem:[#allocation2 + $0x100] sm:$0xff] %vm253, %v3306
      %3343 = vst.msk [vmem:[#allocation2 + $0x108] sm:$0xff] %vm253, %v3307
      %3344 = vst.msk [vmem:[#allocation2 + $0x110] sm:$0xff] %vm253, %v3308
      %3345 = vst.msk [vmem:[#allocation2 + $0x118] sm:$0xff] %vm253, %v3309
      %v3346 = vld [vmem:[%s241 + $0x26] sm:$0xff]
      %v3347 = vld [vmem:[%s241 + $0x2e] sm:$0xff]
      %v3348 = vld [vmem:[%s241 + $0x36] sm:$0xff]
      %v3349 = vld [vmem:[%s241 + $0x3e] sm:$0xff]
      %v3350 = vld [vmem:[%s241 + $0x46] sm:$0xff]
      %v3351 = vld [vmem:[%s241 + $0x4e] sm:$0xff]
      %v3352 = vld [vmem:[%s241 + $0x56] sm:$0xff]
      %v3353 = vld [vmem:[%s241 + $0x5e] sm:$0xff]
      %v3354 = vld [vmem:[%s241 + $0x66] sm:$0xff]
      %v3355 = vld [vmem:[%s241 + $0x6e] sm:$0xff]
      %v3356 = vld [vmem:[%s241 + $0x76] sm:$0xff]
      %v3357 = vld [vmem:[%s241 + $0x7e] sm:$0xff]
      %v3358 = vld [vmem:[%s241 + $0x86] sm:$0xff]
      %v3359 = vld [vmem:[%s241 + $0x8e] sm:$0xff]
      %v3360 = vld [vmem:[%s241 + $0x96] sm:$0xff]
      %v3361 = vld [vmem:[%s241 + $0x9e] sm:$0xff]
      %v3362 = vld [vmem:[%s241 + $0xa6] sm:$0xff]
      %v3363 = vld [vmem:[%s241 + $0xae] sm:$0xff]
      %v3364 = vld [vmem:[%s241 + $0xb6] sm:$0xff]
      %v3365 = vld [vmem:[%s241 + $0xbe] sm:$0xff]
      %v3366 = vld [vmem:[%s241 + $0xc6] sm:$0xff]
      %v3367 = vld [vmem:[%s241 + $0xce] sm:$0xff]
      %v3368 = vld [vmem:[%s241 + $0xd6] sm:$0xff]
      %v3369 = vld [vmem:[%s241 + $0xde] sm:$0xff]
      %v3370 = vld [vmem:[%s241 + $0xe6] sm:$0xff]
      %v3371 = vld [vmem:[%s241 + $0xee] sm:$0xff]
      %v3372 = vld [vmem:[%s241 + $0xf6] sm:$0xff]
      %v3373 = vld [vmem:[%s241 + $0xfe] sm:$0xff]
      %v3374 = vld [vmem:[%s241 + $0x106] sm:$0xff]
      %v3375 = vld [vmem:[%s241 + $0x10e] sm:$0xff]
      %v3376 = vld [vmem:[%s241 + $0x116] sm:$0xff]
      %v3377 = vld [vmem:[%s241 + $0x11e] sm:$0xff]
      %v3378 = vld [vmem:[%s241 + $0x126] sm:$0xff]
      %v3379 = vld [vmem:[%s241 + $0x12e] sm:$0xff]
      %v3380 = vld [vmem:[%s241 + $0x136] sm:$0xff]
      %v3381 = vld [vmem:[%s241 + $0x13e] sm:$0xff]
      %v3382 = vld [vmem:[#allocation2] sm:$0xff]
      %v3383 = vld [vmem:[#allocation2 + $0x8] sm:$0xff]
      %v3384 = vld [vmem:[#allocation2 + $0x10] sm:$0xff]
      %v3385 = vld [vmem:[#allocation2 + $0x18] sm:$0xff]
      %v3386 = vld [vmem:[#allocation2 + $0x20] sm:$0xff]
      %v3387 = vld [vmem:[#allocation2 + $0x28] sm:$0xff]
      %v3388 = vld [vmem:[#allocation2 + $0x30] sm:$0xff]
      %v3389 = vld [vmem:[#allocation2 + $0x38] sm:$0xff]
      %v3390 = vld [vmem:[#allocation2 + $0x40] sm:$0xff]
      %v3391 = vld [vmem:[#allocation2 + $0x48] sm:$0xff]
      %v3392 = vld [vmem:[#allocation2 + $0x50] sm:$0xff]
      %v3393 = vld [vmem:[#allocation2 + $0x58] sm:$0xff]
      %v3394 = vld [vmem:[#allocation2 + $0x60] sm:$0xff]
      %v3395 = vld [vmem:[#allocation2 + $0x68] sm:$0xff]
      %v3396 = vld [vmem:[#allocation2 + $0x70] sm:$0xff]
      %v3397 = vld [vmem:[#allocation2 + $0x78] sm:$0xff]
      %v3398 = vld [vmem:[#allocation2 + $0x80] sm:$0xff]
      %v3399 = vld [vmem:[#allocation2 + $0x88] sm:$0xff]
      %v3400 = vld [vmem:[#allocation2 + $0x90] sm:$0xff]
      %v3401 = vld [vmem:[#allocation2 + $0x98] sm:$0xff]
      %v3402 = vld [vmem:[#allocation2 + $0xa0] sm:$0xff]
      %v3403 = vld [vmem:[#allocation2 + $0xa8] sm:$0xff]
      %v3404 = vld [vmem:[#allocation2 + $0xb0] sm:$0xff]
      %v3405 = vld [vmem:[#allocation2 + $0xb8] sm:$0xff]
      %v3406 = vld [vmem:[#allocation2 + $0xc0] sm:$0xff]
      %v3407 = vld [vmem:[#allocation2 + $0xc8] sm:$0xff]
      %v3408 = vld [vmem:[#allocation2 + $0xd0] sm:$0xff]
      %v3409 = vld [vmem:[#allocation2 + $0xd8] sm:$0xff]
      %v3410 = vld [vmem:[#allocation2 + $0xe0] sm:$0xff]
      %v3411 = vld [vmem:[#allocation2 + $0xe8] sm:$0xff]
      %v3412 = vld [vmem:[#allocation2 + $0xf0] sm:$0xff]
      %v3413 = vld [vmem:[#allocation2 + $0xf8] sm:$0xff]
      %v3414 = vld [vmem:[#allocation2 + $0x100] sm:$0xff]
      %v3415 = vld [vmem:[#allocation2 + $0x108] sm:$0xff]
      %v3416 = vld [vmem:[#allocation2 + $0x110] sm:$0xff]
      %v3417 = vld [vmem:[#allocation2 + $0x118] sm:$0xff]
      %s3418 = scalar_lea.vmem %s1, 32
      %v3419 = vld [vmem:[%s3418] sm:$0xf]
      %v3421 = vsel %vm253, %v3346, 0
      %v3424 = vsel %vm253, %v3347, 0
      %v3427 = vsel %vm253, %v3348, 0
      %v3430 = vsel %vm253, %v3349, 0
      %v3433 = vsel %vm253, %v3350, 0
      %v3436 = vsel %vm253, %v3351, 0
      %v3439 = vsel %vm253, %v3352, 0
      %v3442 = vsel %vm253, %v3353, 0
      %v3445 = vsel %vm253, %v3354, 0
      %v3448 = vsel %vm253, %v3355, 0
      %v3451 = vsel %vm253, %v3356, 0
      %v3454 = vsel %vm253, %v3357, 0
      %v3457 = vsel %vm253, %v3358, 0
      %v3460 = vsel %vm253, %v3359, 0
      %v3463 = vsel %vm253, %v3360, 0
      %v3466 = vsel %vm253, %v3361, 0
      %v3469 = vsel %vm253, %v3362, 0
      %v3472 = vsel %vm253, %v3363, 0
      %v3475 = vsel %vm253, %v3364, 0
      %v3478 = vsel %vm253, %v3365, 0
      %v3481 = vsel %vm253, %v3366, 0
      %v3484 = vsel %vm253, %v3367, 0
      %v3487 = vsel %vm253, %v3368, 0
      %v3490 = vsel %vm253, %v3369, 0
      %v3493 = vsel %vm253, %v3370, 0
      %v3496 = vsel %vm253, %v3371, 0
      %v3499 = vsel %vm253, %v3372, 0
      %v3502 = vsel %vm253, %v3373, 0
      %v3505 = vsel %vm253, %v3374, 0
      %v3508 = vsel %vm253, %v3375, 0
      %v3511 = vsel %vm253, %v3376, 0
      %v3514 = vsel %vm253, %v3377, 0
      %v3517 = vsel %vm253, %v3378, 0
      %v3520 = vsel %vm253, %v3379, 0
      %v3523 = vsel %vm253, %v3380, 0
      %v3526 = vsel %vm253, %v3381, 0
      %v3529 = vsel %vm471, %v3419, 0
      %3531 = vmatpush.msra.mxu0 0.0
      %3532 = vmatpush.msra.mxu0 0.0
      %3533 = vmatpush.msra.mxu0 0.0
      %3534 = vmatpush.msra.mxu0 0.0
      %3535 = vmatpush.msra.mxu0 0.0
      %3536 = vmatpush.msra.mxu0 0.0
      %3537 = vmatpush.msra.mxu0 0.0
      %3538 = vmatpush.msra.mxu0 0.0
      %3539 = vmatpush.msra.mxu0 0.0
      %3540 = vmatpush.msra.mxu0 0.0
      %3541 = vmatpush.msra.mxu0 0.0
      %3542 = vmatpush.msra.mxu0 0.0
      %3543 = vmatpush.msra.mxu0 0.0
      %3544 = vmatpush.msra.mxu0 0.0
      %3545 = vmatpush.msra.mxu0 0.0
      %3546 = vmatpush.msra.mxu0 %v3529
      %3547 = vmatmul.f32.gmra.mxu0 %v3421
      %v3548 = vpop.f32.mrf.mxu0
      %v3549 = vadd.f32 0.0, %v3548
      %3550 = vmatmul.f32.gmra.mxu0 %v3424
      %v3551 = vpop.f32.mrf.mxu0
      %v3552 = vadd.f32 0.0, %v3551
      %3553 = vmatmul.f32.gmra.mxu0 %v3427
      %v3554 = vpop.f32.mrf.mxu0
      %v3555 = vadd.f32 0.0, %v3554
      %3556 = vmatmul.f32.gmra.mxu0 %v3430
      %v3557 = vpop.f32.mrf.mxu0
      %v3558 = vadd.f32 0.0, %v3557
      %3559 = vmatmul.f32.gmra.mxu0 %v3433
      %v3560 = vpop.f32.mrf.mxu0
      %v3561 = vadd.f32 0.0, %v3560
      %3562 = vmatmul.f32.gmra.mxu0 %v3436
      %v3563 = vpop.f32.mrf.mxu0
      %v3564 = vadd.f32 0.0, %v3563
      %3565 = vmatmul.f32.gmra.mxu0 %v3439
      %v3566 = vpop.f32.mrf.mxu0
      %v3567 = vadd.f32 0.0, %v3566
      %3568 = vmatmul.f32.gmra.mxu0 %v3442
      %v3569 = vpop.f32.mrf.mxu0
      %v3570 = vadd.f32 0.0, %v3569
      %3571 = vmatmul.f32.gmra.mxu0 %v3445
      %v3572 = vpop.f32.mrf.mxu0
      %v3573 = vadd.f32 0.0, %v3572
      %3574 = vmatmul.f32.gmra.mxu0 %v3448
      %v3575 = vpop.f32.mrf.mxu0
      %v3576 = vadd.f32 0.0, %v3575
      %3577 = vmatmul.f32.gmra.mxu0 %v3451
      %v3578 = vpop.f32.mrf.mxu0
      %v3579 = vadd.f32 0.0, %v3578
      %3580 = vmatmul.f32.gmra.mxu0 %v3454
      %v3581 = vpop.f32.mrf.mxu0
      %v3582 = vadd.f32 0.0, %v3581
      %3583 = vmatmul.f32.gmra.mxu0 %v3457
      %v3584 = vpop.f32.mrf.mxu0
      %v3585 = vadd.f32 0.0, %v3584
      %3586 = vmatmul.f32.gmra.mxu0 %v3460
      %v3587 = vpop.f32.mrf.mxu0
      %v3588 = vadd.f32 0.0, %v3587
      %3589 = vmatmul.f32.gmra.mxu0 %v3463
      %v3590 = vpop.f32.mrf.mxu0
      %v3591 = vadd.f32 0.0, %v3590
      %3592 = vmatmul.f32.gmra.mxu0 %v3466
      %v3593 = vpop.f32.mrf.mxu0
      %v3594 = vadd.f32 0.0, %v3593
      %3595 = vmatmul.f32.gmra.mxu0 %v3469
      %v3596 = vpop.f32.mrf.mxu0
      %v3597 = vadd.f32 0.0, %v3596
      %3598 = vmatmul.f32.gmra.mxu0 %v3472
      %v3599 = vpop.f32.mrf.mxu0
      %v3600 = vadd.f32 0.0, %v3599
      %3601 = vmatmul.f32.gmra.mxu0 %v3475
      %v3602 = vpop.f32.mrf.mxu0
      %v3603 = vadd.f32 0.0, %v3602
      %3604 = vmatmul.f32.gmra.mxu0 %v3478
      %v3605 = vpop.f32.mrf.mxu0
      %v3606 = vadd.f32 0.0, %v3605
      %3607 = vmatmul.f32.gmra.mxu0 %v3481
      %v3608 = vpop.f32.mrf.mxu0
      %v3609 = vadd.f32 0.0, %v3608
      %3610 = vmatmul.f32.gmra.mxu0 %v3484
      %v3611 = vpop.f32.mrf.mxu0
      %v3612 = vadd.f32 0.0, %v3611
      %3613 = vmatmul.f32.gmra.mxu0 %v3487
      %v3614 = vpop.f32.mrf.mxu0
      %v3615 = vadd.f32 0.0, %v3614
      %3616 = vmatmul.f32.gmra.mxu0 %v3490
      %v3617 = vpop.f32.mrf.mxu0
      %v3618 = vadd.f32 0.0, %v3617
      %3619 = vmatmul.f32.gmra.mxu0 %v3493
      %v3620 = vpop.f32.mrf.mxu0
      %v3621 = vadd.f32 0.0, %v3620
      %3622 = vmatmul.f32.gmra.mxu0 %v3496
      %v3623 = vpop.f32.mrf.mxu0
      %v3624 = vadd.f32 0.0, %v3623
      %3625 = vmatmul.f32.gmra.mxu0 %v3499
      %v3626 = vpop.f32.mrf.mxu0
      %v3627 = vadd.f32 0.0, %v3626
      %3628 = vmatmul.f32.gmra.mxu0 %v3502
      %v3629 = vpop.f32.mrf.mxu0
      %v3630 = vadd.f32 0.0, %v3629
      %3631 = vmatmul.f32.gmra.mxu0 %v3505
      %v3632 = vpop.f32.mrf.mxu0
      %v3633 = vadd.f32 0.0, %v3632
      %3634 = vmatmul.f32.gmra.mxu0 %v3508
      %v3635 = vpop.f32.mrf.mxu0
      %v3636 = vadd.f32 0.0, %v3635
      %3637 = vmatmul.f32.gmra.mxu0 %v3511
      %v3638 = vpop.f32.mrf.mxu0
      %v3639 = vadd.f32 0.0, %v3638
      %3640 = vmatmul.f32.gmra.mxu0 %v3514
      %v3641 = vpop.f32.mrf.mxu0
      %v3642 = vadd.f32 0.0, %v3641
      %3643 = vmatmul.f32.gmra.mxu0 %v3517
      %v3644 = vpop.f32.mrf.mxu0
      %v3645 = vadd.f32 0.0, %v3644
      %3646 = vmatmul.f32.gmra.mxu0 %v3520
      %v3647 = vpop.f32.mrf.mxu0
      %v3648 = vadd.f32 0.0, %v3647
      %3649 = vmatmul.f32.gmra.mxu0 %v3523
      %v3650 = vpop.f32.mrf.mxu0
      %v3651 = vadd.f32 0.0, %v3650
      %3652 = vmatmul.f32.gmra.mxu0 %v3526
      %v3653 = vpop.f32.mrf.mxu0
      %v3654 = vadd.f32 0.0, %v3653
      %3655 = vdwg.mxu0
      %v3656 = vadd.f32 %v3382, %v3549
      %v3657 = vadd.f32 %v3383, %v3552
      %v3658 = vadd.f32 %v3384, %v3555
      %v3659 = vadd.f32 %v3385, %v3558
      %v3660 = vadd.f32 %v3386, %v3561
      %v3661 = vadd.f32 %v3387, %v3564
      %v3662 = vadd.f32 %v3388, %v3567
      %v3663 = vadd.f32 %v3389, %v3570
      %v3664 = vadd.f32 %v3390, %v3573
      %v3665 = vadd.f32 %v3391, %v3576
      %v3666 = vadd.f32 %v3392, %v3579
      %v3667 = vadd.f32 %v3393, %v3582
      %v3668 = vadd.f32 %v3394, %v3585
      %v3669 = vadd.f32 %v3395, %v3588
      %v3670 = vadd.f32 %v3396, %v3591
      %v3671 = vadd.f32 %v3397, %v3594
      %v3672 = vadd.f32 %v3398, %v3597
      %v3673 = vadd.f32 %v3399, %v3600
      %v3674 = vadd.f32 %v3400, %v3603
      %v3675 = vadd.f32 %v3401, %v3606
      %v3676 = vadd.f32 %v3402, %v3609
      %v3677 = vadd.f32 %v3403, %v3612
      %v3678 = vadd.f32 %v3404, %v3615
      %v3679 = vadd.f32 %v3405, %v3618
      %v3680 = vadd.f32 %v3406, %v3621
      %v3681 = vadd.f32 %v3407, %v3624
      %v3682 = vadd.f32 %v3408, %v3627
      %v3683 = vadd.f32 %v3409, %v3630
      %v3684 = vadd.f32 %v3410, %v3633
      %v3685 = vadd.f32 %v3411, %v3636
      %v3686 = vadd.f32 %v3412, %v3639
      %v3687 = vadd.f32 %v3413, %v3642
      %v3688 = vadd.f32 %v3414, %v3645
      %v3689 = vadd.f32 %v3415, %v3648
      %v3690 = vadd.f32 %v3416, %v3651
      %v3691 = vadd.f32 %v3417, %v3654
      %3692 = vst.msk [vmem:[#allocation2] sm:$0xff] %vm253, %v3656
      %3693 = vst.msk [vmem:[#allocation2 + $0x8] sm:$0xff] %vm253, %v3657
      %3694 = vst.msk [vmem:[#allocation2 + $0x10] sm:$0xff] %vm253, %v3658
      %3695 = vst.msk [vmem:[#allocation2 + $0x18] sm:$0xff] %vm253, %v3659
      %3696 = vst.msk [vmem:[#allocation2 + $0x20] sm:$0xff] %vm253, %v3660
      %3697 = vst.msk [vmem:[#allocation2 + $0x28] sm:$0xff] %vm253, %v3661
      %3698 = vst.msk [vmem:[#allocation2 + $0x30] sm:$0xff] %vm253, %v3662
      %3699 = vst.msk [vmem:[#allocation2 + $0x38] sm:$0xff] %vm253, %v3663
      %3700 = vst.msk [vmem:[#allocation2 + $0x40] sm:$0xff] %vm253, %v3664
      %3701 = vst.msk [vmem:[#allocation2 + $0x48] sm:$0xff] %vm253, %v3665
      %3702 = vst.msk [vmem:[#allocation2 + $0x50] sm:$0xff] %vm253, %v3666
      %3703 = vst.msk [vmem:[#allocation2 + $0x58] sm:$0xff] %vm253, %v3667
      %3704 = vst.msk [vmem:[#allocation2 + $0x60] sm:$0xff] %vm253, %v3668
      %3705 = vst.msk [vmem:[#allocation2 + $0x68] sm:$0xff] %vm253, %v3669
      %3706 = vst.msk [vmem:[#allocation2 + $0x70] sm:$0xff] %vm253, %v3670
      %3707 = vst.msk [vmem:[#allocation2 + $0x78] sm:$0xff] %vm253, %v3671
      %3708 = vst.msk [vmem:[#allocation2 + $0x80] sm:$0xff] %vm253, %v3672
      %3709 = vst.msk [vmem:[#allocation2 + $0x88] sm:$0xff] %vm253, %v3673
      %3710 = vst.msk [vmem:[#allocation2 + $0x90] sm:$0xff] %vm253, %v3674
      %3711 = vst.msk [vmem:[#allocation2 + $0x98] sm:$0xff] %vm253, %v3675
      %3712 = vst.msk [vmem:[#allocation2 + $0xa0] sm:$0xff] %vm253, %v3676
      %3713 = vst.msk [vmem:[#allocation2 + $0xa8] sm:$0xff] %vm253, %v3677
      %3714 = vst.msk [vmem:[#allocation2 + $0xb0] sm:$0xff] %vm253, %v3678
      %3715 = vst.msk [vmem:[#allocation2 + $0xb8] sm:$0xff] %vm253, %v3679
      %3716 = vst.msk [vmem:[#allocation2 + $0xc0] sm:$0xff] %vm253, %v3680
      %3717 = vst.msk [vmem:[#allocation2 + $0xc8] sm:$0xff] %vm253, %v3681
      %3718 = vst.msk [vmem:[#allocation2 + $0xd0] sm:$0xff] %vm253, %v3682
      %3719 = vst.msk [vmem:[#allocation2 + $0xd8] sm:$0xff] %vm253, %v3683
      %3720 = vst.msk [vmem:[#allocation2 + $0xe0] sm:$0xff] %vm253, %v3684
      %3721 = vst.msk [vmem:[#allocation2 + $0xe8] sm:$0xff] %vm253, %v3685
      %3722 = vst.msk [vmem:[#allocation2 + $0xf0] sm:$0xff] %vm253, %v3686
      %3723 = vst.msk [vmem:[#allocation2 + $0xf8] sm:$0xff] %vm253, %v3687
      %3724 = vst.msk [vmem:[#allocation2 + $0x100] sm:$0xff] %vm253, %v3688
      %3725 = vst.msk [vmem:[#allocation2 + $0x108] sm:$0xff] %vm253, %v3689
      %3726 = vst.msk [vmem:[#allocation2 + $0x110] sm:$0xff] %vm253, %v3690
      %3727 = vst.msk [vmem:[#allocation2 + $0x118] sm:$0xff] %vm253, %v3691
      %v3728 = vld [vmem:[#allocation2] sm:$0xff]
      %v3729 = vld [vmem:[#allocation2 + $0x8] sm:$0xff]
      %v3730 = vld [vmem:[#allocation2 + $0x10] sm:$0xff]
      %v3731 = vld [vmem:[#allocation2 + $0x18] sm:$0xff]
      %v3732 = vld [vmem:[#allocation2 + $0x20] sm:$0xff]
      %v3733 = vld [vmem:[#allocation2 + $0x28] sm:$0xff]
      %v3734 = vld [vmem:[#allocation2 + $0x30] sm:$0xff]
      %v3735 = vld [vmem:[#allocation2 + $0x38] sm:$0xff]
      %v3736 = vld [vmem:[#allocation2 + $0x40] sm:$0xff]
      %v3737 = vld [vmem:[#allocation2 + $0x48] sm:$0xff]
      %v3738 = vld [vmem:[#allocation2 + $0x50] sm:$0xff]
      %v3739 = vld [vmem:[#allocation2 + $0x58] sm:$0xff]
      %v3740 = vld [vmem:[#allocation2 + $0x60] sm:$0xff]
      %v3741 = vld [vmem:[#allocation2 + $0x68] sm:$0xff]
      %v3742 = vld [vmem:[#allocation2 + $0x70] sm:$0xff]
      %v3743 = vld [vmem:[#allocation2 + $0x78] sm:$0xff]
      %v3744 = vld [vmem:[#allocation2 + $0x80] sm:$0xff]
      %v3745 = vld [vmem:[#allocation2 + $0x88] sm:$0xff]
      %v3746 = vld [vmem:[#allocation2 + $0x90] sm:$0xff]
      %v3747 = vld [vmem:[#allocation2 + $0x98] sm:$0xff]
      %v3748 = vld [vmem:[#allocation2 + $0xa0] sm:$0xff]
      %v3749 = vld [vmem:[#allocation2 + $0xa8] sm:$0xff]
      %v3750 = vld [vmem:[#allocation2 + $0xb0] sm:$0xff]
      %v3751 = vld [vmem:[#allocation2 + $0xb8] sm:$0xff]
      %v3752 = vld [vmem:[#allocation2 + $0xc0] sm:$0xff]
      %v3753 = vld [vmem:[#allocation2 + $0xc8] sm:$0xff]
      %v3754 = vld [vmem:[#allocation2 + $0xd0] sm:$0xff]
      %v3755 = vld [vmem:[#allocation2 + $0xd8] sm:$0xff]
      %v3756 = vld [vmem:[#allocation2 + $0xe0] sm:$0xff]
      %v3757 = vld [vmem:[#allocation2 + $0xe8] sm:$0xff]
      %v3758 = vld [vmem:[#allocation2 + $0xf0] sm:$0xff]
      %v3759 = vld [vmem:[#allocation2 + $0xf8] sm:$0xff]
      %v3760 = vld [vmem:[#allocation2 + $0x100] sm:$0xff]
      %v3761 = vld [vmem:[#allocation2 + $0x108] sm:$0xff]
      %v3762 = vld [vmem:[#allocation2 + $0x110] sm:$0xff]
      %v3763 = vld [vmem:[#allocation2 + $0x118] sm:$0xff]
      %v3764 = vld [vmem:[%s4] sm:$0x7]
      %v3766 = vperm.slane %v3764, 0
      %v3767 = vperm.slane %v3764, 1
      %v3768 = vperm.slane %v3764, 2
      %vm3771 = vcmask 261120
      %v3772 = vsel %vm3771, %v3768, 0
      %3774 = vmatpush.msra.mxu0 %v3743
      %3775 = vmatpush.msra.mxu0 %v3742
      %3776 = vmatpush.msra.mxu0 %v3741
      %3777 = vmatpush.msra.mxu0 %v3740
      %3778 = vmatpush.msra.mxu0 %v3739
      %3779 = vmatpush.msra.mxu0 %v3738
      %3780 = vmatpush.msra.mxu0 %v3737
      %3781 = vmatpush.msra.mxu0 %v3736
      %3782 = vmatpush.msra.mxu0 %v3735
      %3783 = vmatpush.msra.mxu0 %v3734
      %3784 = vmatpush.msra.mxu0 %v3733
      %3785 = vmatpush.msra.mxu0 %v3732
      %3786 = vmatpush.msra.mxu0 %v3731
      %3787 = vmatpush.msra.mxu0 %v3730
      %3788 = vmatpush.msra.mxu0 %v3729
      %3789 = vmatpush.msra.mxu0 %v3728
      %3790 = vmatmul.f32.gmra.mxu0 %v3766
      %v3791 = vpop.f32.mrf.mxu0
      %v3792 = vadd.f32 0.0, %v3791
      %3793 = vdwg.mxu0
      %3794 = vmatpush.msra.mxu0 %v3759
      %3795 = vmatpush.msra.mxu0 %v3758
      %3796 = vmatpush.msra.mxu0 %v3757
      %3797 = vmatpush.msra.mxu0 %v3756
      %3798 = vmatpush.msra.mxu0 %v3755
      %3799 = vmatpush.msra.mxu0 %v3754
      %3800 = vmatpush.msra.mxu0 %v3753
      %3801 = vmatpush.msra.mxu0 %v3752
      %3802 = vmatpush.msra.mxu0 %v3751
      %3803 = vmatpush.msra.mxu0 %v3750
      %3804 = vmatpush.msra.mxu0 %v3749
      %3805 = vmatpush.msra.mxu0 %v3748
      %3806 = vmatpush.msra.mxu0 %v3747
      %3807 = vmatpush.msra.mxu0 %v3746
      %3808 = vmatpush.msra.mxu0 %v3745
      %3809 = vmatpush.msra.mxu0 %v3744
      %3810 = vmatmul.f32.gmra.mxu0 %v3767
      %v3811 = vpop.f32.mrf.mxu0
      %v3812 = vadd.f32 %v3792, %v3811
      %3813 = vdwg.mxu0
      %3814 = vmatpush.msra.mxu0 0.0
      %3815 = vmatpush.msra.mxu0 0.0
      %3816 = vmatpush.msra.mxu0 0.0
      %3817 = vmatpush.msra.mxu0 0.0
      %3818 = vmatpush.msra.mxu0 0.0
      %3819 = vmatpush.msra.mxu0 0.0
      %3820 = vmatpush.msra.mxu0 0.0
      %3821 = vmatpush.msra.mxu0 0.0
      %3822 = vmatpush.msra.mxu0 0.0
      %3823 = vmatpush.msra.mxu0 0.0
      %3824 = vmatpush.msra.mxu0 0.0
      %3825 = vmatpush.msra.mxu0 0.0
      %3826 = vmatpush.msra.mxu0 %v3763
      %3827 = vmatpush.msra.mxu0 %v3762
      %3828 = vmatpush.msra.mxu0 %v3761
      %3829 = vmatpush.msra.mxu0 %v3760
      %3830 = vmatmul.f32.gmra.mxu0 %v3772
      %v3831 = vpop.f32.mrf.mxu0
      %v3832 = vadd.f32 %v3812, %v3831
      %3833 = vdwg.mxu0
      %v3834 = vmul.f32 %v3832, 0.00390625
      %v3835 = vmul.f32 %v3728, %v3728
      %v3836 = vmul.f32 %v3729, %v3729
      %v3837 = vmul.f32 %v3730, %v3730
      %v3838 = vmul.f32 %v3731, %v3731
      %v3839 = vmul.f32 %v3732, %v3732
      %v3840 = vmul.f32 %v3733, %v3733
      %v3841 = vmul.f32 %v3734, %v3734
      %v3842 = vmul.f32 %v3735, %v3735
      %v3843 = vmul.f32 %v3736, %v3736
      %v3844 = vmul.f32 %v3737, %v3737
      %v3845 = vmul.f32 %v3738, %v3738
      %v3846 = vmul.f32 %v3739, %v3739
      %v3847 = vmul.f32 %v3740, %v3740
      %v3848 = vmul.f32 %v3741, %v3741
      %v3849 = vmul.f32 %v3742, %v3742
      %v3850 = vmul.f32 %v3743, %v3743
      %v3851 = vmul.f32 %v3744, %v3744
      %v3852 = vmul.f32 %v3745, %v3745
      %v3853 = vmul.f32 %v3746, %v3746
      %v3854 = vmul.f32 %v3747, %v3747
      %v3855 = vmul.f32 %v3748, %v3748
      %v3856 = vmul.f32 %v3749, %v3749
      %v3857 = vmul.f32 %v3750, %v3750
      %v3858 = vmul.f32 %v3751, %v3751
      %v3859 = vmul.f32 %v3752, %v3752
      %v3860 = vmul.f32 %v3753, %v3753
      %v3861 = vmul.f32 %v3754, %v3754
      %v3862 = vmul.f32 %v3755, %v3755
      %v3863 = vmul.f32 %v3756, %v3756
      %v3864 = vmul.f32 %v3757, %v3757
      %v3865 = vmul.f32 %v3758, %v3758
      %v3866 = vmul.f32 %v3759, %v3759
      %v3867 = vmul.f32 %v3760, %v3760
      %v3868 = vmul.f32 %v3761, %v3761
      %v3869 = vmul.f32 %v3762, %v3762
      %v3870 = vmul.f32 %v3763, %v3763
      %3871 = vmatpush.msra.mxu0 %v3850
      %3872 = vmatpush.msra.mxu0 %v3849
      %3873 = vmatpush.msra.mxu0 %v3848
      %3874 = vmatpush.msra.mxu0 %v3847
      %3875 = vmatpush.msra.mxu0 %v3846
      %3876 = vmatpush.msra.mxu0 %v3845
      %3877 = vmatpush.msra.mxu0 %v3844
      %3878 = vmatpush.msra.mxu0 %v3843
      %3879 = vmatpush.msra.mxu0 %v3842
      %3880 = vmatpush.msra.mxu0 %v3841
      %3881 = vmatpush.msra.mxu0 %v3840
      %3882 = vmatpush.msra.mxu0 %v3839
      %3883 = vmatpush.msra.mxu0 %v3838
      %3884 = vmatpush.msra.mxu0 %v3837
      %3885 = vmatpush.msra.mxu0 %v3836
      %3886 = vmatpush.msra.mxu0 %v3835
      %3887 = vmatmul.f32.gmra.mxu0 %v3766
      %v3888 = vpop.f32.mrf.mxu0
      %v3889 = vadd.f32 0.0, %v3888
      %3890 = vdwg.mxu0
      %3891 = vmatpush.msra.mxu0 %v3866
      %3892 = vmatpush.msra.mxu0 %v3865
      %3893 = vmatpush.msra.mxu0 %v3864
      %3894 = vmatpush.msra.mxu0 %v3863
      %3895 = vmatpush.msra.mxu0 %v3862
      %3896 = vmatpush.msra.mxu0 %v3861
      %3897 = vmatpush.msra.mxu0 %v3860
      %3898 = vmatpush.msra.mxu0 %v3859
      %3899 = vmatpush.msra.mxu0 %v3858
      %3900 = vmatpush.msra.mxu0 %v3857
      %3901 = vmatpush.msra.mxu0 %v3856
      %3902 = vmatpush.msra.mxu0 %v3855
      %3903 = vmatpush.msra.mxu0 %v3854
      %3904 = vmatpush.msra.mxu0 %v3853
      %3905 = vmatpush.msra.mxu0 %v3852
      %3906 = vmatpush.msra.mxu0 %v3851
      %3907 = vmatmul.f32.gmra.mxu0 %v3767
      %v3908 = vpop.f32.mrf.mxu0
      %v3909 = vadd.f32 %v3889, %v3908
      %3910 = vdwg.mxu0
      %3911 = vmatpush.msra.mxu0 0.0
      %3912 = vmatpush.msra.mxu0 0.0
      %3913 = vmatpush.msra.mxu0 0.0
      %3914 = vmatpush.msra.mxu0 0.0
      %3915 = vmatpush.msra.mxu0 0.0
      %3916 = vmatpush.msra.mxu0 0.0
      %3917 = vmatpush.msra.mxu0 0.0
      %3918 = vmatpush.msra.mxu0 0.0
      %3919 = vmatpush.msra.mxu0 0.0
      %3920 = vmatpush.msra.mxu0 0.0
      %3921 = vmatpush.msra.mxu0 0.0
      %3922 = vmatpush.msra.mxu0 0.0
      %3923 = vmatpush.msra.mxu0 %v3870
      %3924 = vmatpush.msra.mxu0 %v3869
      %3925 = vmatpush.msra.mxu0 %v3868
      %3926 = vmatpush.msra.mxu0 %v3867
      %3927 = vmatmul.f32.gmra.mxu0 %v3772
      %v3928 = vpop.f32.mrf.mxu0
      %v3929 = vadd.f32 %v3909, %v3928
      %3930 = vdwg.mxu0
      %v3931 = vmul.f32 %v3929, 0.00390625
      %v3932 = vmul.f32 %v3834, %v3834
      %v3933 = vsub.f32 %v3931, %v3932
      %v3934 = vadd.f32 %v3933, 1e-08
      %v3935 = vrsqrt.pop %v3934
      %v3936 = vmul.f32 %v3935, %v3934
      %v3937 = vmul.f32 %v3936, %v3935
      %v3938 = vmul.f32 0.5, %v3937
      %v3939 = vsub.f32 1.5, %v3938
      %v3940 = vmul.f32 %v3935, %v3939
      %vm3941 = vweird.f32 %v3934
      %vm3942 = vweird.f32 %v3935
      %vm3943 = vmor %vm3941, %vm3942
      %v3944 = vsel %vm3943, %v3935, %v3940
      %v3945 = vld [vmem:[%s244] sm:$0x1]
      %v3946 = vmul.f32 %v3944, %v3945
      %v3947 = vld [vmem:[%s247] sm:$0x1]
      %v3948 = vmul.f32 %v3834, %v3946
      %v3949 = vsub.f32 %v3947, %v3948
      %v3950 = vperm.slane %v3946, 0
      %v3951 = vmul.f32 %v3728, %v3950
      %v3952 = vmul.f32 %v3729, %v3950
      %v3953 = vmul.f32 %v3730, %v3950
      %v3954 = vmul.f32 %v3731, %v3950
      %v3955 = vmul.f32 %v3732, %v3950
      %v3956 = vmul.f32 %v3733, %v3950
      %v3957 = vmul.f32 %v3734, %v3950
      %v3958 = vmul.f32 %v3735, %v3950
      %v3959 = vmul.f32 %v3736, %v3950
      %v3960 = vmul.f32 %v3737, %v3950
      %v3961 = vmul.f32 %v3738, %v3950
      %v3962 = vmul.f32 %v3739, %v3950
      %v3963 = vmul.f32 %v3740, %v3950
      %v3964 = vmul.f32 %v3741, %v3950
      %v3965 = vmul.f32 %v3742, %v3950
      %v3966 = vmul.f32 %v3743, %v3950
      %v3967 = vmul.f32 %v3744, %v3950
      %v3968 = vmul.f32 %v3745, %v3950
      %v3969 = vmul.f32 %v3746, %v3950
      %v3970 = vmul.f32 %v3747, %v3950
      %v3971 = vmul.f32 %v3748, %v3950
      %v3972 = vmul.f32 %v3749, %v3950
      %v3973 = vmul.f32 %v3750, %v3950
      %v3974 = vmul.f32 %v3751, %v3950
      %v3975 = vmul.f32 %v3752, %v3950
      %v3976 = vmul.f32 %v3753, %v3950
      %v3977 = vmul.f32 %v3754, %v3950
      %v3978 = vmul.f32 %v3755, %v3950
      %v3979 = vmul.f32 %v3756, %v3950
      %v3980 = vmul.f32 %v3757, %v3950
      %v3981 = vmul.f32 %v3758, %v3950
      %v3982 = vmul.f32 %v3759, %v3950
      %v3983 = vmul.f32 %v3760, %v3950
      %v3984 = vmul.f32 %v3761, %v3950
      %v3985 = vmul.f32 %v3762, %v3950
      %v3986 = vmul.f32 %v3763, %v3950
      %v3988 = vperm.slane %v3949, 0
      %v3990 = vadd.f32 %v3951, %v3988
      %v3991 = vadd.f32 %v3952, %v3988
      %v3992 = vadd.f32 %v3953, %v3988
      %v3993 = vadd.f32 %v3954, %v3988
      %v3994 = vadd.f32 %v3955, %v3988
      %v3995 = vadd.f32 %v3956, %v3988
      %v3996 = vadd.f32 %v3957, %v3988
      %v3997 = vadd.f32 %v3958, %v3988
      %v3998 = vadd.f32 %v3959, %v3988
      %v3999 = vadd.f32 %v3960, %v3988
      %v4000 = vadd.f32 %v3961, %v3988
      %v4001 = vadd.f32 %v3962, %v3988
      %v4002 = vadd.f32 %v3963, %v3988
      %v4003 = vadd.f32 %v3964, %v3988
      %v4004 = vadd.f32 %v3965, %v3988
      %v4005 = vadd.f32 %v3966, %v3988
      %v4006 = vadd.f32 %v3967, %v3988
      %v4007 = vadd.f32 %v3968, %v3988
      %v4008 = vadd.f32 %v3969, %v3988
      %v4009 = vadd.f32 %v3970, %v3988
      %v4010 = vadd.f32 %v3971, %v3988
      %v4011 = vadd.f32 %v3972, %v3988
      %v4012 = vadd.f32 %v3973, %v3988
      %v4013 = vadd.f32 %v3974, %v3988
      %v4014 = vadd.f32 %v3975, %v3988
      %v4015 = vadd.f32 %v3976, %v3988
      %v4016 = vadd.f32 %v3977, %v3988
      %v4017 = vadd.f32 %v3978, %v3988
      %v4018 = vadd.f32 %v3979, %v3988
      %v4019 = vadd.f32 %v3980, %v3988
      %v4020 = vadd.f32 %v3981, %v3988
      %v4021 = vadd.f32 %v3982, %v3988
      %v4022 = vadd.f32 %v3983, %v3988
      %v4023 = vadd.f32 %v3984, %v3988
      %v4024 = vadd.f32 %v3985, %v3988
      %v4025 = vadd.f32 %v3986, %v3988
      %v4026 = vmax.f32 %v3990, 0.0
      %v4027 = vmax.f32 %v3991, 0.0
      %v4028 = vmax.f32 %v3992, 0.0
      %v4029 = vmax.f32 %v3993, 0.0
      %v4030 = vmax.f32 %v3994, 0.0
      %v4031 = vmax.f32 %v3995, 0.0
      %v4032 = vmax.f32 %v3996, 0.0
      %v4033 = vmax.f32 %v3997, 0.0
      %v4034 = vmax.f32 %v3998, 0.0
      %v4035 = vmax.f32 %v3999, 0.0
      %v4036 = vmax.f32 %v4000, 0.0
      %v4037 = vmax.f32 %v4001, 0.0
      %v4038 = vmax.f32 %v4002, 0.0
      %v4039 = vmax.f32 %v4003, 0.0
      %v4040 = vmax.f32 %v4004, 0.0
      %v4041 = vmax.f32 %v4005, 0.0
      %v4042 = vmax.f32 %v4006, 0.0
      %v4043 = vmax.f32 %v4007, 0.0
      %v4044 = vmax.f32 %v4008, 0.0
      %v4045 = vmax.f32 %v4009, 0.0
      %v4046 = vmax.f32 %v4010, 0.0
      %v4047 = vmax.f32 %v4011, 0.0
      %v4048 = vmax.f32 %v4012, 0.0
      %v4049 = vmax.f32 %v4013, 0.0
      %v4050 = vmax.f32 %v4014, 0.0
      %v4051 = vmax.f32 %v4015, 0.0
      %v4052 = vmax.f32 %v4016, 0.0
      %v4053 = vmax.f32 %v4017, 0.0
      %v4054 = vmax.f32 %v4018, 0.0
      %v4055 = vmax.f32 %v4019, 0.0
      %v4056 = vmax.f32 %v4020, 0.0
      %v4057 = vmax.f32 %v4021, 0.0
      %v4058 = vmax.f32 %v4022, 0.0
      %v4059 = vmax.f32 %v4023, 0.0
      %v4060 = vmax.f32 %v4024, 0.0
      %v4061 = vmax.f32 %v4025, 0.0
      %4062 = vst.msk [vmem:[%s252] sm:$0xff] %vm253, %v4026
      %4063 = vst.msk [vmem:[%s252 + $0x8] sm:$0xff] %vm253, %v4027
      %4064 = vst.msk [vmem:[%s252 + $0x10] sm:$0xff] %vm253, %v4028
      %4065 = vst.msk [vmem:[%s252 + $0x18] sm:$0xff] %vm253, %v4029
      %4066 = vst.msk [vmem:[%s252 + $0x20] sm:$0xff] %vm253, %v4030
      %4067 = vst.msk [vmem:[%s252 + $0x28] sm:$0xff] %vm253, %v4031
      %4068 = vst.msk [vmem:[%s252 + $0x30] sm:$0xff] %vm253, %v4032
      %4069 = vst.msk [vmem:[%s252 + $0x38] sm:$0xff] %vm253, %v4033
      %4070 = vst.msk [vmem:[%s252 + $0x40] sm:$0xff] %vm253, %v4034
      %4071 = vst.msk [vmem:[%s252 + $0x48] sm:$0xff] %vm253, %v4035
      %4072 = vst.msk [vmem:[%s252 + $0x50] sm:$0xff] %vm253, %v4036
      %4073 = vst.msk [vmem:[%s252 + $0x58] sm:$0xff] %vm253, %v4037
      %4074 = vst.msk [vmem:[%s252 + $0x60] sm:$0xff] %vm253, %v4038
      %4075 = vst.msk [vmem:[%s252 + $0x68] sm:$0xff] %vm253, %v4039
      %4076 = vst.msk [vmem:[%s252 + $0x70] sm:$0xff] %vm253, %v4040
      %4077 = vst.msk [vmem:[%s252 + $0x78] sm:$0xff] %vm253, %v4041
      %4078 = vst.msk [vmem:[%s252 + $0x80] sm:$0xff] %vm253, %v4042
      %4079 = vst.msk [vmem:[%s252 + $0x88] sm:$0xff] %vm253, %v4043
      %4080 = vst.msk [vmem:[%s252 + $0x90] sm:$0xff] %vm253, %v4044
      %4081 = vst.msk [vmem:[%s252 + $0x98] sm:$0xff] %vm253, %v4045
      %4082 = vst.msk [vmem:[%s252 + $0xa0] sm:$0xff] %vm253, %v4046
      %4083 = vst.msk [vmem:[%s252 + $0xa8] sm:$0xff] %vm253, %v4047
      %4084 = vst.msk [vmem:[%s252 + $0xb0] sm:$0xff] %vm253, %v4048
      %4085 = vst.msk [vmem:[%s252 + $0xb8] sm:$0xff] %vm253, %v4049
      %4086 = vst.msk [vmem:[%s252 + $0xc0] sm:$0xff] %vm253, %v4050
      %4087 = vst.msk [vmem:[%s252 + $0xc8] sm:$0xff] %vm253, %v4051
      %4088 = vst.msk [vmem:[%s252 + $0xd0] sm:$0xff] %vm253, %v4052
      %4089 = vst.msk [vmem:[%s252 + $0xd8] sm:$0xff] %vm253, %v4053
      %4090 = vst.msk [vmem:[%s252 + $0xe0] sm:$0xff] %vm253, %v4054
      %4091 = vst.msk [vmem:[%s252 + $0xe8] sm:$0xff] %vm253, %v4055
      %4092 = vst.msk [vmem:[%s252 + $0xf0] sm:$0xff] %vm253, %v4056
      %4093 = vst.msk [vmem:[%s252 + $0xf8] sm:$0xff] %vm253, %v4057
      %4094 = vst.msk [vmem:[%s252 + $0x100] sm:$0xff] %vm253, %v4058
      %4095 = vst.msk [vmem:[%s252 + $0x108] sm:$0xff] %vm253, %v4059
      %4096 = vst.msk [vmem:[%s252 + $0x110] sm:$0xff] %vm253, %v4060
      %4097 = vst.msk [vmem:[%s252 + $0x118] sm:$0xff] %vm253, %v4061
      %p4098 = scmp.lt.s32.totalorder %s16, 1
      %s4099 = scalar_select %p4098, %s16, 1
      %s4100 = smul.addr %s4099, 36
      %s4101 = smul.addr %s4100, 8
      %s4102 = scalar_lea.vmem %s5, %s4101
      // Predicated region
      $region41: #{resnet_block_adain.2} parent=39 // pred_check
        %p4103 = pneg %p154
      $region42: #{resnet_block_adain.2} parent=39 // pred_check_branch
        %4105 = sbr.rel (%p4103) target = $region44
      $region43: #{resnet_block_adain.2} parent=39 // pred_region
        _
      $region44: #{resnet_block_adain.2} parent=39 // pred_fallthru
        _
    $region40: #{resnet_block_adain.2} parent=5 // pred_fallthru
      _
    %p4106 = scmp.le.s32.totalorder 2, %s11
    // Predicated region
    $region45: #{resnet_block_adain.2} parent=5 // pred_check
      %p4107 = pneg %p4106
    $region46: #{resnet_block_adain.2} parent=5 // pred_check_branch
      %4109 = sbr.rel (%p4107) target = $region48
    $region47: #{resnet_block_adain.2} parent=5 // pred_region
      %s4110 = ssub.s32 %s11, 2
      // Predicated region
      $region49: #{resnet_block_adain.2} parent=47 // pred_check
        %p4111 = pneg %p160
      $region50: #{resnet_block_adain.2} parent=47 // pred_check_branch
        %4113 = sbr.rel (%p4111) target = $region52
      $region51: #{resnet_block_adain.2} parent=47 // pred_region
        %p4114 = scmp.lt.s32.totalorder %s17, 1
        %s4115 = scalar_select %p4114, %s17, 1
        %s4116 = smul.addr %s4115, 36
        %s4117 = smul.addr %s4116, 8
        %s4118 = scalar_lea.vmem %s5, %s4117
      $region52: #{resnet_block_adain.2} parent=47 // pred_fallthru
        _
    $region48: #{resnet_block_adain.2} parent=5 // pred_fallthru
      _
  $region6: #{resnet_block_adain.2} parent=0 // loop_footer
    %s15 = sadd.s32 1, %s11
  $region7: #{resnet_block_adain.2} parent=0 // loop_footer_branch
    %10 = sbr.rel target = $region3
  $region8: #{resnet_block_adain.2} parent=0 // loop_exit
    _

// kernel: resnet_block_adain.3
$region0: #{resnet_block_adain.3}
  #allocation0 [shape = 'u32[]', space=smem, size = 0x4, offset = 0x4, fixed_abs, tag = 'smem constant byte address 0x4 - core index']
  #allocation1 [shape = 'u32[72,128]{1,0:T(1,128)}', space=vmem, size = 0x9000, scoped, tag = 'internal scratch']
  #allocation2 [shape = 'f32[288,4]{1,0:T(8,128)}', space=vmem, size = 0x24000, scoped, tag = 'scratch operand']
  %s0 = inlined_call_operand.vmem [shape: f32[2,326,4], index: 0, kind: input, shape index: {}]
  %s1 = inlined_call_operand.vmem [shape: f32[9,4,4], index: 1, kind: input, shape index: {}]
  %s2 = inlined_call_operand.vmem [shape: f32[2,1,4], index: 2, kind: input, shape index: {}]
  %s3 = inlined_call_operand.vmem [shape: f32[2,1,4], index: 3, kind: input, shape index: {}]
  %s4 = inlined_call_operand.vmem [shape: f32[1,288], index: 4, kind: input, shape index: {}]
  %s5 = inlined_call_operand.vmem [shape: f32[2,326,4], index: 5, kind: input, shape index: {}]
  %s6 = inlined_call_operand.vmem [shape: f32[2,288,4], index: 6, kind: output, shape index: {}]
  %s7 = sld [smem:[#allocation0]]
  $region57: #{resnet_block_adain.3} parent=0
    _
  %s9 = ssub.s32 1, %s7
  %s10 = scalar_select 0, %s9, %s7
  loop: start=0, step=1, limit=4
  $region2: #{resnet_block_adain.3} parent=0 // loop_pre_header
    _
  $region3: #{resnet_block_adain.3} parent=0 // loop_header
    %s12 = sphi 0, %s16
    %p13 = scmp.ge.s32.totalorder %s12, 4
    %s22 = sphi 0, %s24
    %s25 = sphi 0, %s22
    %s26 = sphi 0, %s25
    %s42 = sphi 0, %s26
    %s46 = sphi 0, %s46
    %s48 = sphi 0, %s46
    %s49 = sphi 0, %s48
    %s63 = sphi 0, %s49
    %s69 = sphi 0, %s71
    %s72 = sphi 0, %s69
    %s73 = sphi 0, %s72
    %s89 = sphi 0, %s73
    %s95 = sphi 0, %s97
    %s98 = sphi 0, %s95
    %s99 = sphi 0, %s98
    %s115 = sphi 0, %s99
    %s119 = sphi 0, %s119
    %s121 = sphi 0, %s119
    %s122 = sphi 0, %s121
    %s136 = sphi 0, %s122
    %s142 = sphi 0, %s144
    %s145 = sphi 0, %s142
    %s146 = sphi 0, %s145
    %s162 = sphi 0, %s146
    %s168 = sphi 0, %s170
    %s171 = sphi 0, %s168
    %s172 = sphi 0, %s171
    %s188 = sphi 0, %s172
  $region4: #{resnet_block_adain.3} parent=0 // loop_header_branch
    %15 = sbr.rel (%p13) target = $region8
  $region5: #{resnet_block_adain.3} parent=0 // loop_body
    %s17 = ssub.s32 %s12, 1
    %s18 = ssub.s32 %s12, 2
    %s19 = sadd.s32 %s12, 1
    %s20 = ssub.s32 %s12, %s19
    %p21 = scmp.eq.s32.totalorder %s20, 0
    %s23 = sadd.s32 %s22, 1
    %s24 = scalar_select %p21, %s22, %s23
    %p27 = pneg %p21
    %p28 = scmp.eq.s32.totalorder %s12, 1
    %p29 = por %p27, %p28
    %p30 = scmp.ne.s32.totalorder %s22, %s25
    %p31 = scmp.eq.s32.totalorder %s12, 0
    %p32 = por %p30, %p31
    %p33 = scmp.ne.s32.totalorder %s22, %s25
    %p34 = scmp.eq.s32.totalorder %s17, 1
    %p35 = por %p33, %p34
    %p36 = scmp.ne.s32.totalorder %s25, %s26
    %p37 = scmp.eq.s32.totalorder %s17, 0
    %p38 = por %p36, %p37
    %p39 = scmp.ne.s32.totalorder %s25, %s26
    %p40 = scmp.eq.s32.totalorder %s18, 1
    %p41 = por %p39, %p40
    %p43 = scmp.ne.s32.totalorder %s26, %s42
    %p44 = scmp.eq.s32.totalorder %s18, 0
    %p45 = por %p43, %p44
    %s47 = sadd.s32 %s46, 1
    %p50 = scmp.eq.s32.totalorder %s12, 1
    %p51 = scmp.ne.s32.totalorder %s46, %s48
    %p52 = scmp.eq.s32.totalorder %s12, 0
    %p53 = por %p51, %p52
    %p54 = scmp.ne.s32.totalorder %s46, %s48
    %p55 = scmp.eq.s32.totalorder %s17, 1
    %p56 = por %p54, %p55
    %p57 = scmp.ne.s32.totalorder %s48, %s49
    %p58 = scmp.eq.s32.totalorder %s17, 0
    %p59 = por %p57, %p58
    %p60 = scmp.ne.s32.totalorder %s48, %s49
    %p61 = scmp.eq.s32.totalorder %s18, 1
    %p62 = por %p60, %p61
    %p64 = scmp.ne.s32.totalorder %s49, %s63
    %p65 = scmp.eq.s32.totalorder %s18, 0
    %p66 = por %p64, %p65
    %s67 = ssub.s32 %s12, %s19
    %p68 = scmp.eq.s32.totalorder %s67, 0
    %s70 = sadd.s32 %s69, 1
    %s71 = scalar_select %p68, %s69, %s70
    %p74 = pneg %p68
    %p75 = scmp.eq.s32.totalorder %s12, 1
    %p76 = por %p74, %p75
    %p77 = scmp.ne.s32.totalorder %s69, %s72
    %p78 = scmp.eq.s32.totalorder %s12, 0
    %p79 = por %p77, %p78
    %p80 = scmp.ne.s32.totalorder %s69, %s72
    %p81 = scmp.eq.s32.totalorder %s17, 1
    %p82 = por %p80, %p81
    %p83 = scmp.ne.s32.totalorder %s72, %s73
    %p84 = scmp.eq.s32.totalorder %s17, 0
    %p85 = por %p83, %p84
    %p86 = scmp.ne.s32.totalorder %s72, %s73
    %p87 = scmp.eq.s32.totalorder %s18, 1
    %p88 = por %p86, %p87
    %p90 = scmp.ne.s32.totalorder %s73, %s89
    %p91 = scmp.eq.s32.totalorder %s18, 0
    %p92 = por %p90, %p91
    %s93 = ssub.s32 %s12, %s19
    %p94 = scmp.eq.s32.totalorder %s93, 0
    %s96 = sadd.s32 %s95, 1
    %s97 = scalar_select %p94, %s95, %s96
    %p100 = pneg %p94
    %p101 = scmp.eq.s32.totalorder %s12, 1
    %p102 = por %p100, %p101
    %p103 = scmp.ne.s32.totalorder %s95, %s98
    %p104 = scmp.eq.s32.totalorder %s12, 0
    %p105 = por %p103, %p104
    %p106 = scmp.ne.s32.totalorder %s95, %s98
    %p107 = scmp.eq.s32.totalorder %s17, 1
    %p108 = por %p106, %p107
    %p109 = scmp.ne.s32.totalorder %s98, %s99
    %p110 = scmp.eq.s32.totalorder %s17, 0
    %p111 = por %p109, %p110
    %p112 = scmp.ne.s32.totalorder %s98, %s99
    %p113 = scmp.eq.s32.totalorder %s18, 1
    %p114 = por %p112, %p113
    %p116 = scmp.ne.s32.totalorder %s99, %s115
    %p117 = scmp.eq.s32.totalorder %s18, 0
    %p118 = por %p116, %p117
    %s120 = sadd.s32 %s119, 1
    %p123 = scmp.eq.s32.totalorder %s12, 1
    %p124 = scmp.ne.s32.totalorder %s119, %s121
    %p125 = scmp.eq.s32.totalorder %s12, 0
    %p126 = por %p124, %p125
    %p127 = scmp.ne.s32.totalorder %s119, %s121
    %p128 = scmp.eq.s32.totalorder %s17, 1
    %p129 = por %p127, %p128
    %p130 = scmp.ne.s32.totalorder %s121, %s122
    %p131 = scmp.eq.s32.totalorder %s17, 0
    %p132 = por %p130, %p131
    %p133 = scmp.ne.s32.totalorder %s121, %s122
    %p134 = scmp.eq.s32.totalorder %s18, 1
    %p135 = por %p133, %p134
    %p137 = scmp.ne.s32.totalorder %s122, %s136
    %p138 = scmp.eq.s32.totalorder %s18, 0
    %p139 = por %p137, %p138
    %s140 = ssub.s32 %s12, %s19
    %p141 = scmp.eq.s32.totalorder %s140, 0
    %s143 = sadd.s32 %s142, 1
    %s144 = scalar_select %p141, %s142, %s143
    %p147 = pneg %p141
    %p148 = scmp.eq.s32.totalorder %s12, 1
    %p149 = por %p147, %p148
    %p150 = scmp.ne.s32.totalorder %s142, %s145
    %p151 = scmp.eq.s32.totalorder %s12, 0
    %p152 = por %p150, %p151
    %p153 = scmp.ne.s32.totalorder %s142, %s145
    %p154 = scmp.eq.s32.totalorder %s17, 1
    %p155 = por %p153, %p154
    %p156 = scmp.ne.s32.totalorder %s145, %s146
    %p157 = scmp.eq.s32.totalorder %s17, 0
    %p158 = por %p156, %p157
    %p159 = scmp.ne.s32.totalorder %s145, %s146
    %p160 = scmp.eq.s32.totalorder %s18, 1
    %p161 = por %p159, %p160
    %p163 = scmp.ne.s32.totalorder %s146, %s162
    %p164 = scmp.eq.s32.totalorder %s18, 0
    %p165 = por %p163, %p164
    %s166 = ssub.s32 %s12, %s19
    %p167 = scmp.eq.s32.totalorder %s166, 0
    %s169 = sadd.s32 %s168, 1
    %s170 = scalar_select %p167, %s168, %s169
    %p173 = pneg %p167
    %p174 = scmp.eq.s32.totalorder %s12, 1
    %p175 = por %p173, %p174
    %p176 = scmp.ne.s32.totalorder %s168, %s171
    %p177 = scmp.eq.s32.totalorder %s12, 0
    %p178 = por %p176, %p177
    %p179 = scmp.ne.s32.totalorder %s168, %s171
    %p180 = scmp.eq.s32.totalorder %s17, 1
    %p181 = por %p179, %p180
    %p182 = scmp.ne.s32.totalorder %s171, %s172
    %p183 = scmp.eq.s32.totalorder %s17, 0
    %p184 = por %p182, %p183
    %p185 = scmp.ne.s32.totalorder %s171, %s172
    %p186 = scmp.eq.s32.totalorder %s18, 1
    %p187 = por %p185, %p186
    %p189 = scmp.ne.s32.totalorder %s172, %s188
    %p190 = scmp.eq.s32.totalorder %s18, 0
    %p191 = por %p189, %p190
    %p192 = scmp.le.s32.totalorder 1, %s12
    %p193 = scmp.lt.s32.totalorder %s12, 3
    %p194 = pnand %p192, %p193
    %p195 = pneg %p194
    // Predicated region
    $region9: #{resnet_block_adain.3} parent=5 // pred_check
      _
    $region10: #{resnet_block_adain.3} parent=5 // pred_check_branch
      %197 = sbr.rel (%p194) target = $region12
    $region11: #{resnet_block_adain.3} parent=5 // pred_region
      %s198 = ssub.s32 %s12, 1
      // Predicated region
      $region13: #{resnet_block_adain.3} parent=11 // pred_check
        %p199 = pneg %p59
      $region14: #{resnet_block_adain.3} parent=11 // pred_check_branch
        %201 = sbr.rel (%p199) target = $region16
      $region15: #{resnet_block_adain.3} parent=11 // pred_region
        _
      $region16: #{resnet_block_adain.3} parent=11 // pred_fallthru
        _
      // Predicated region
      $region17: #{resnet_block_adain.3} parent=11 // pred_check
        %p202 = pneg %p132
      $region18: #{resnet_block_adain.3} parent=11 // pred_check_branch
        %204 = sbr.rel (%p202) target = $region20
      $region19: #{resnet_block_adain.3} parent=11 // pred_region
        _
      $region20: #{resnet_block_adain.3} parent=11 // pred_fallthru
        _
    $region12: #{resnet_block_adain.3} parent=5 // pred_fallthru
      _
    %p205 = scmp.lt.s32.totalorder %s12, 2
    // Predicated region
    $region21: #{resnet_block_adain.3} parent=5 // pred_check
      %p206 = pneg %p205
    $region22: #{resnet_block_adain.3} parent=5 // pred_check_branch
      %208 = sbr.rel (%p206) target = $region24
    $region23: #{resnet_block_adain.3} parent=5 // pred_region
      // Predicated region
      $region25: #{resnet_block_adain.3} parent=23 // pred_check
        %p209 = pneg %p32
      $region26: #{resnet_block_adain.3} parent=23 // pred_check_branch
        %211 = sbr.rel (%p209) target = $region28
      $region27: #{resnet_block_adain.3} parent=23 // pred_region
        %p212 = scmp.lt.s32.totalorder %s12, 1
        %s213 = scalar_select %p212, %s12, 1
        %s214 = smul.addr %s213, 41
        %s215 = smul.addr %s214, 8
        %s216 = scalar_lea.vmem %s0, %s215
      $region28: #{resnet_block_adain.3} parent=23 // pred_fallthru
        _
      // Predicated region
      $region29: #{resnet_block_adain.3} parent=23 // pred_check
        %p217 = pneg %p79
      $region30: #{resnet_block_adain.3} parent=23 // pred_check_branch
        %219 = sbr.rel (%p217) target = $region32
      $region31: #{resnet_block_adain.3} parent=23 // pred_region
        %p220 = scmp.lt.s32.totalorder %s12, 1
        %s221 = scalar_select %p220, %s12, 1
        %s222 = scalar_lea.vmem %s2, %s221
      $region32: #{resnet_block_adain.3} parent=23 // pred_fallthru
        _
      // Predicated region
      $region33: #{resnet_block_adain.3} parent=23 // pred_check
        %p223 = pneg %p105
      $region34: #{resnet_block_adain.3} parent=23 // pred_check_branch
        %225 = sbr.rel (%p223) target = $region36
      $region35: #{resnet_block_adain.3} parent=23 // pred_region
        %p226 = scmp.lt.s32.totalorder %s12, 1
        %s227 = scalar_select %p226, %s12, 1
        %s228 = scalar_lea.vmem %s3, %s227
      $region36: #{resnet_block_adain.3} parent=23 // pred_fallthru
        _
      // Predicated region
      $region37: #{resnet_block_adain.3} parent=23 // pred_check
        %p229 = pneg %p152
      $region38: #{resnet_block_adain.3} parent=23 // pred_check_branch
        %231 = sbr.rel (%p229) target = $region40
      $region39: #{resnet_block_adain.3} parent=23 // pred_region
        %p232 = scmp.lt.s32.totalorder %s12, 1
        %s233 = scalar_select %p232, %s12, 1
        %s234 = smul.addr %s233, 41
        %s235 = smul.addr %s234, 8
        %s236 = scalar_lea.vmem %s5, %s235
      $region40: #{resnet_block_adain.3} parent=23 // pred_fallthru
        _
    $region24: #{resnet_block_adain.3} parent=5 // pred_fallthru
      _
    %p237 = scmp.le.s32.totalorder 1, %s12
    %p238 = scmp.lt.s32.totalorder %s12, 3
    %p239 = pnand %p237, %p238
    %p240 = pneg %p239
    // Predicated region
    $region41: #{resnet_block_adain.3} parent=5 // pred_check
      _
    $region42: #{resnet_block_adain.3} parent=5 // pred_check_branch
      %242 = sbr.rel (%p239) target = $region44
    $region43: #{resnet_block_adain.3} parent=5 // pred_region
      %s243 = ssub.s32 %s12, 1
      %p244 = scmp.lt.s32.totalorder %s17, 1
      %s245 = scalar_select %p244, %s17, 1
      %s246 = smul.addr %s245, 41
      %s247 = smul.addr %s246, 8
      %s248 = scalar_lea.vmem %s0, %s247
      %p249 = pneg %p38
      %p250 = pneg %p35
      %p251 = pneg %p59
      %p252 = pneg %p56
      %p253 = scmp.lt.s32.totalorder %s17, 1
      %s254 = scalar_select %p253, %s17, 1
      %s255 = scalar_lea.vmem %s2, %s254
      %p256 = pneg %p85
      %p257 = pneg %p82
      %p258 = scmp.lt.s32.totalorder %s17, 1
      %s259 = scalar_select %p258, %s17, 1
      %s260 = scalar_lea.vmem %s3, %s259
      %p261 = pneg %p111
      %p262 = pneg %p108
      %p263 = pneg %p132
      %p264 = pneg %p129
      %p265 = scmp.lt.s32.totalorder %s17, 1
      %s266 = scalar_select %p265, %s17, 1
      %s267 = smul.addr %s266, 41
      %s268 = smul.addr %s267, 8
      %s269 = scalar_lea.vmem %s5, %s268
      %p270 = pneg %p158
      %p271 = pneg %p155
      %p272 = pneg %p184
      %p273 = pneg %p181
      %p274 = scmp.lt.s32.totalorder %s17, 1
      %s275 = scalar_select %p274, %s17, 1
      %s276 = smul.addr %s275, 36
      %s277 = smul.addr %s276, 8
      %s278 = scalar_lea.vmem %s6, %s277
      %p279 = scmp.lt.s32.totalorder %s17, 1
      %s280 = scalar_select %p279, %s17, 1
      %s281 = smul.addr %s280, 41
      %s282 = smul.addr %s281, 8
      %s283 = scalar_lea.vmem %s0, %s282
      %p284 = scmp.lt.s32.totalorder %s17, 1
      %s285 = scalar_select %p284, %s17, 1
      %s286 = scalar_lea.vmem %s2, %s285
      %p287 = scmp.lt.s32.totalorder %s17, 1
      %s288 = scalar_select %p287, %s17, 1
      %s289 = scalar_lea.vmem %s3, %s288
      %p290 = scmp.lt.s32.totalorder %s17, 1
      %s291 = scalar_select %p290, %s17, 1
      %s292 = smul.addr %s291, 41
      %s293 = smul.addr %s292, 8
      %s294 = scalar_lea.vmem %s5, %s293
      %p295 = scmp.lt.s32.totalorder %s17, 1
      %s296 = scalar_select %p295, %s17, 1
      %s297 = smul.addr %s296, 36
      %s298 = smul.addr %s297, 8
      %s299 = scalar_lea.vmem %s6, %s298
      %vm300 = vcmask 31744
      %301 = vst.msk [vmem:[#allocation2] sm:$0xff] %vm300, 0.0
      %302 = vst.msk [vmem:[#allocation2 + $0x8] sm:$0xff] %vm300, 0.0
      %303 = vst.msk [vmem:[#allocation2 + $0x10] sm:$0xff] %vm300, 0.0
      %304 = vst.msk [vmem:[#allocation2 + $0x18] sm:$0xff] %vm300, 0.0
      %305 = vst.msk [vmem:[#allocation2 + $0x20] sm:$0xff] %vm300, 0.0
      %306 = vst.msk [vmem:[#allocation2 + $0x28] sm:$0xff] %vm300, 0.0
      %307 = vst.msk [vmem:[#allocation2 + $0x30] sm:$0xff] %vm300, 0.0
      %308 = vst.msk [vmem:[#allocation2 + $0x38] sm:$0xff] %vm300, 0.0
      %309 = vst.msk [vmem:[#allocation2 + $0x40] sm:$0xff] %vm300, 0.0
      %310 = vst.msk [vmem:[#allocation2 + $0x48] sm:$0xff] %vm300, 0.0
      %311 = vst.msk [vmem:[#allocation2 + $0x50] sm:$0xff] %vm300, 0.0
      %312 = vst.msk [vmem:[#allocation2 + $0x58] sm:$0xff] %vm300, 0.0
      %313 = vst.msk [vmem:[#allocation2 + $0x60] sm:$0xff] %vm300, 0.0
      %314 = vst.msk [vmem:[#allocation2 + $0x68] sm:$0xff] %vm300, 0.0
      %315 = vst.msk [vmem:[#allocation2 + $0x70] sm:$0xff] %vm300, 0.0
      %316 = vst.msk [vmem:[#allocation2 + $0x78] sm:$0xff] %vm300, 0.0
      %317 = vst.msk [vmem:[#allocation2 + $0x80] sm:$0xff] %vm300, 0.0
      %318 = vst.msk [vmem:[#allocation2 + $0x88] sm:$0xff] %vm300, 0.0
      %319 = vst.msk [vmem:[#allocation2 + $0x90] sm:$0xff] %vm300, 0.0
      %320 = vst.msk [vmem:[#allocation2 + $0x98] sm:$0xff] %vm300, 0.0
      %321 = vst.msk [vmem:[#allocation2 + $0xa0] sm:$0xff] %vm300, 0.0
      %322 = vst.msk [vmem:[#allocation2 + $0xa8] sm:$0xff] %vm300, 0.0
      %323 = vst.msk [vmem:[#allocation2 + $0xb0] sm:$0xff] %vm300, 0.0
      %324 = vst.msk [vmem:[#allocation2 + $0xb8] sm:$0xff] %vm300, 0.0
      %325 = vst.msk [vmem:[#allocation2 + $0xc0] sm:$0xff] %vm300, 0.0
      %326 = vst.msk [vmem:[#allocation2 + $0xc8] sm:$0xff] %vm300, 0.0
      %327 = vst.msk [vmem:[#allocation2 + $0xd0] sm:$0xff] %vm300, 0.0
      %328 = vst.msk [vmem:[#allocation2 + $0xd8] sm:$0xff] %vm300, 0.0
      %329 = vst.msk [vmem:[#allocation2 + $0xe0] sm:$0xff] %vm300, 0.0
      %330 = vst.msk [vmem:[#allocation2 + $0xe8] sm:$0xff] %vm300, 0.0
      %331 = vst.msk [vmem:[#allocation2 + $0xf0] sm:$0xff] %vm300, 0.0
      %332 = vst.msk [vmem:[#allocation2 + $0xf8] sm:$0xff] %vm300, 0.0
      %333 = vst.msk [vmem:[#allocation2 + $0x100] sm:$0xff] %vm300, 0.0
      %334 = vst.msk [vmem:[#allocation2 + $0x108] sm:$0xff] %vm300, 0.0
      %335 = vst.msk [vmem:[#allocation2 + $0x110] sm:$0xff] %vm300, 0.0
      %336 = vst.msk [vmem:[#allocation2 + $0x118] sm:$0xff] %vm300, 0.0
      %v337 = vld [vmem:[%s283] sm:$0xff]
      %v338 = vld [vmem:[%s283 + $0x8] sm:$0xff]
      %v339 = vld [vmem:[%s283 + $0x10] sm:$0xff]
      %v340 = vld [vmem:[%s283 + $0x18] sm:$0xff]
      %v341 = vld [vmem:[%s283 + $0x20] sm:$0xff]
      %v342 = vld [vmem:[%s283 + $0x28] sm:$0xff]
      %v343 = vld [vmem:[%s283 + $0x30] sm:$0xff]
      %v344 = vld [vmem:[%s283 + $0x38] sm:$0xff]
      %v345 = vld [vmem:[%s283 + $0x40] sm:$0xff]
      %v346 = vld [vmem:[%s283 + $0x48] sm:$0xff]
      %v347 = vld [vmem:[%s283 + $0x50] sm:$0xff]
      %v348 = vld [vmem:[%s283 + $0x58] sm:$0xff]
      %v349 = vld [vmem:[%s283 + $0x60] sm:$0xff]
      %v350 = vld [vmem:[%s283 + $0x68] sm:$0xff]
      %v351 = vld [vmem:[%s283 + $0x70] sm:$0xff]
      %v352 = vld [vmem:[%s283 + $0x78] sm:$0xff]
      %v353 = vld [vmem:[%s283 + $0x80] sm:$0xff]
      %v354 = vld [vmem:[%s283 + $0x88] sm:$0xff]
      %v355 = vld [vmem:[%s283 + $0x90] sm:$0xff]
      %v356 = vld [vmem:[%s283 + $0x98] sm:$0xff]
      %v357 = vld [vmem:[%s283 + $0xa0] sm:$0xff]
      %v358 = vld [vmem:[%s283 + $0xa8] sm:$0xff]
      %v359 = vld [vmem:[%s283 + $0xb0] sm:$0xff]
      %v360 = vld [vmem:[%s283 + $0xb8] sm:$0xff]
      %v361 = vld [vmem:[%s283 + $0xc0] sm:$0xff]
      %v362 = vld [vmem:[%s283 + $0xc8] sm:$0xff]
      %v363 = vld [vmem:[%s283 + $0xd0] sm:$0xff]
      %v364 = vld [vmem:[%s283 + $0xd8] sm:$0xff]
      %v365 = vld [vmem:[%s283 + $0xe0] sm:$0xff]
      %v366 = vld [vmem:[%s283 + $0xe8] sm:$0xff]
      %v367 = vld [vmem:[%s283 + $0xf0] sm:$0xff]
      %v368 = vld [vmem:[%s283 + $0xf8] sm:$0xff]
      %v369 = vld [vmem:[%s283 + $0x100] sm:$0xff]
      %v370 = vld [vmem:[%s283 + $0x108] sm:$0xff]
      %v371 = vld [vmem:[%s283 + $0x110] sm:$0xff]
      %v372 = vld [vmem:[%s283 + $0x118] sm:$0xff]
      %v373 = vld [vmem:[#allocation2] sm:$0xff]
      %v374 = vld [vmem:[#allocation2 + $0x8] sm:$0xff]
      %v375 = vld [vmem:[#allocation2 + $0x10] sm:$0xff]
      %v376 = vld [vmem:[#allocation2 + $0x18] sm:$0xff]
      %v377 = vld [vmem:[#allocation2 + $0x20] sm:$0xff]
      %v378 = vld [vmem:[#allocation2 + $0x28] sm:$0xff]
      %v379 = vld [vmem:[#allocation2 + $0x30] sm:$0xff]
      %v380 = vld [vmem:[#allocation2 + $0x38] sm:$0xff]
      %v381 = vld [vmem:[#allocation2 + $0x40] sm:$0xff]
      %v382 = vld [vmem:[#allocation2 + $0x48] sm:$0xff]
      %v383 = vld [vmem:[#allocation2 + $0x50] sm:$0xff]
      %v384 = vld [vmem:[#allocation2 + $0x58] sm:$0xff]
      %v385 = vld [vmem:[#allocation2 + $0x60] sm:$0xff]
      %v386 = vld [vmem:[#allocation2 + $0x68] sm:$0xff]
      %v387 = vld [vmem:[#allocation2 + $0x70] sm:$0xff]
      %v388 = vld [vmem:[#allocation2 + $0x78] sm:$0xff]
      %v389 = vld [vmem:[#allocation2 + $0x80] sm:$0xff]
      %v390 = vld [vmem:[#allocation2 + $0x88] sm:$0xff]
      %v391 = vld [vmem:[#allocation2 + $0x90] sm:$0xff]
      %v392 = vld [vmem:[#allocation2 + $0x98] sm:$0xff]
      %v393 = vld [vmem:[#allocation2 + $0xa0] sm:$0xff]
      %v394 = vld [vmem:[#allocation2 + $0xa8] sm:$0xff]
      %v395 = vld [vmem:[#allocation2 + $0xb0] sm:$0xff]
      %v396 = vld [vmem:[#allocation2 + $0xb8] sm:$0xff]
      %v397 = vld [vmem:[#allocation2 + $0xc0] sm:$0xff]
      %v398 = vld [vmem:[#allocation2 + $0xc8] sm:$0xff]
      %v399 = vld [vmem:[#allocation2 + $0xd0] sm:$0xff]
      %v400 = vld [vmem:[#allocation2 + $0xd8] sm:$0xff]
      %v401 = vld [vmem:[#allocation2 + $0xe0] sm:$0xff]
      %v402 = vld [vmem:[#allocation2 + $0xe8] sm:$0xff]
      %v403 = vld [vmem:[#allocation2 + $0xf0] sm:$0xff]
      %v404 = vld [vmem:[#allocation2 + $0xf8] sm:$0xff]
      %v405 = vld [vmem:[#allocation2 + $0x100] sm:$0xff]
      %v406 = vld [vmem:[#allocation2 + $0x108] sm:$0xff]
      %v407 = vld [vmem:[#allocation2 + $0x110] sm:$0xff]
      %v408 = vld [vmem:[#allocation2 + $0x118] sm:$0xff]
      %v409 = vld [vmem:[%s1] sm:$0xf]
      %v411 = vsel %vm300, %v337, 0
      %v414 = vsel %vm300, %v338, 0
      %v417 = vsel %vm300, %v339, 0
      %v420 = vsel %vm300, %v340, 0
      %v423 = vsel %vm300, %v341, 0
      %v426 = vsel %vm300, %v342, 0
      %v429 = vsel %vm300, %v343, 0
      %v432 = vsel %vm300, %v344, 0
      %v435 = vsel %vm300, %v345, 0
      %v438 = vsel %vm300, %v346, 0
      %v441 = vsel %vm300, %v347, 0
      %v444 = vsel %vm300, %v348, 0
      %v447 = vsel %vm300, %v349, 0
      %v450 = vsel %vm300, %v350, 0
      %v453 = vsel %vm300, %v351, 0
      %v456 = vsel %vm300, %v352, 0
      %v459 = vsel %vm300, %v353, 0
      %v462 = vsel %vm300, %v354, 0
      %v465 = vsel %vm300, %v355, 0
      %v468 = vsel %vm300, %v356, 0
      %v471 = vsel %vm300, %v357, 0
      %v474 = vsel %vm300, %v358, 0
      %v477 = vsel %vm300, %v359, 0
      %v480 = vsel %vm300, %v360, 0
      %v483 = vsel %vm300, %v361, 0
      %v486 = vsel %vm300, %v362, 0
      %v489 = vsel %vm300, %v363, 0
      %v492 = vsel %vm300, %v364, 0
      %v495 = vsel %vm300, %v365, 0
      %v498 = vsel %vm300, %v366, 0
      %v501 = vsel %vm300, %v367, 0
      %v504 = vsel %vm300, %v368, 0
      %v507 = vsel %vm300, %v369, 0
      %v510 = vsel %vm300, %v370, 0
      %v513 = vsel %vm300, %v371, 0
      %v516 = vsel %vm300, %v372, 0
      %vm518 = vcmask 1043456
      %v520 = vsel %vm518, %v409, 0
      %522 = vmatpush.msra.mxu0 0.0
      %523 = vmatpush.msra.mxu0 0.0
      %524 = vmatpush.msra.mxu0 0.0
      %525 = vmatpush.msra.mxu0 0.0
      %526 = vmatpush.msra.mxu0 0.0
      %527 = vmatpush.msra.mxu0 0.0
      %528 = vmatpush.msra.mxu0 0.0
      %529 = vmatpush.msra.mxu0 0.0
      %530 = vmatpush.msra.mxu0 0.0
      %531 = vmatpush.msra.mxu0 0.0
      %532 = vmatpush.msra.mxu0 0.0
      %533 = vmatpush.msra.mxu0 0.0
      %534 = vmatpush.msra.mxu0 0.0
      %535 = vmatpush.msra.mxu0 0.0
      %536 = vmatpush.msra.mxu0 0.0
      %537 = vmatpush.msra.mxu0 %v520
      %538 = vmatmul.f32.gmra.mxu0 %v411
      %v539 = vpop.f32.mrf.mxu0
      %v540 = vadd.f32 0.0, %v539
      %541 = vmatmul.f32.gmra.mxu0 %v414
      %v542 = vpop.f32.mrf.mxu0
      %v543 = vadd.f32 0.0, %v542
      %544 = vmatmul.f32.gmra.mxu0 %v417
      %v545 = vpop.f32.mrf.mxu0
      %v546 = vadd.f32 0.0, %v545
      %547 = vmatmul.f32.gmra.mxu0 %v420
      %v548 = vpop.f32.mrf.mxu0
      %v549 = vadd.f32 0.0, %v548
      %550 = vmatmul.f32.gmra.mxu0 %v423
      %v551 = vpop.f32.mrf.mxu0
      %v552 = vadd.f32 0.0, %v551
      %553 = vmatmul.f32.gmra.mxu0 %v426
      %v554 = vpop.f32.mrf.mxu0
      %v555 = vadd.f32 0.0, %v554
      %556 = vmatmul.f32.gmra.mxu0 %v429
      %v557 = vpop.f32.mrf.mxu0
      %v558 = vadd.f32 0.0, %v557
      %559 = vmatmul.f32.gmra.mxu0 %v432
      %v560 = vpop.f32.mrf.mxu0
      %v561 = vadd.f32 0.0, %v560
      %562 = vmatmul.f32.gmra.mxu0 %v435
      %v563 = vpop.f32.mrf.mxu0
      %v564 = vadd.f32 0.0, %v563
      %565 = vmatmul.f32.gmra.mxu0 %v438
      %v566 = vpop.f32.mrf.mxu0
      %v567 = vadd.f32 0.0, %v566
      %568 = vmatmul.f32.gmra.mxu0 %v441
      %v569 = vpop.f32.mrf.mxu0
      %v570 = vadd.f32 0.0, %v569
      %571 = vmatmul.f32.gmra.mxu0 %v444
      %v572 = vpop.f32.mrf.mxu0
      %v573 = vadd.f32 0.0, %v572
      %574 = vmatmul.f32.gmra.mxu0 %v447
      %v575 = vpop.f32.mrf.mxu0
      %v576 = vadd.f32 0.0, %v575
      %577 = vmatmul.f32.gmra.mxu0 %v450
      %v578 = vpop.f32.mrf.mxu0
      %v579 = vadd.f32 0.0, %v578
      %580 = vmatmul.f32.gmra.mxu0 %v453
      %v581 = vpop.f32.mrf.mxu0
      %v582 = vadd.f32 0.0, %v581
      %583 = vmatmul.f32.gmra.mxu0 %v456
      %v584 = vpop.f32.mrf.mxu0
      %v585 = vadd.f32 0.0, %v584
      %586 = vmatmul.f32.gmra.mxu0 %v459
      %v587 = vpop.f32.mrf.mxu0
      %v588 = vadd.f32 0.0, %v587
      %589 = vmatmul.f32.gmra.mxu0 %v462
      %v590 = vpop.f32.mrf.mxu0
      %v591 = vadd.f32 0.0, %v590
      %592 = vmatmul.f32.gmra.mxu0 %v465
      %v593 = vpop.f32.mrf.mxu0
      %v594 = vadd.f32 0.0, %v593
      %595 = vmatmul.f32.gmra.mxu0 %v468
      %v596 = vpop.f32.mrf.mxu0
      %v597 = vadd.f32 0.0, %v596
      %598 = vmatmul.f32.gmra.mxu0 %v471
      %v599 = vpop.f32.mrf.mxu0
      %v600 = vadd.f32 0.0, %v599
      %601 = vmatmul.f32.gmra.mxu0 %v474
      %v602 = vpop.f32.mrf.mxu0
      %v603 = vadd.f32 0.0, %v602
      %604 = vmatmul.f32.gmra.mxu0 %v477
      %v605 = vpop.f32.mrf.mxu0
      %v606 = vadd.f32 0.0, %v605
      %607 = vmatmul.f32.gmra.mxu0 %v480
      %v608 = vpop.f32.mrf.mxu0
      %v609 = vadd.f32 0.0, %v608
      %610 = vmatmul.f32.gmra.mxu0 %v483
      %v611 = vpop.f32.mrf.mxu0
      %v612 = vadd.f32 0.0, %v611
      %613 = vmatmul.f32.gmra.mxu0 %v486
      %v614 = vpop.f32.mrf.mxu0
      %v615 = vadd.f32 0.0, %v614
      %616 = vmatmul.f32.gmra.mxu0 %v489
      %v617 = vpop.f32.mrf.mxu0
      %v618 = vadd.f32 0.0, %v617
      %619 = vmatmul.f32.gmra.mxu0 %v492
      %v620 = vpop.f32.mrf.mxu0
      %v621 = vadd.f32 0.0, %v620
      %622 = vmatmul.f32.gmra.mxu0 %v495
      %v623 = vpop.f32.mrf.mxu0
      %v624 = vadd.f32 0.0, %v623
      %625 = vmatmul.f32.gmra.mxu0 %v498
      %v626 = vpop.f32.mrf.mxu0
      %v627 = vadd.f32 0.0, %v626
      %628 = vmatmul.f32.gmra.mxu0 %v501
      %v629 = vpop.f32.mrf.mxu0
      %v630 = vadd.f32 0.0, %v629
      %631 = vmatmul.f32.gmra.mxu0 %v504
      %v632 = vpop.f32.mrf.mxu0
      %v633 = vadd.f32 0.0, %v632
      %634 = vmatmul.f32.gmra.mxu0 %v507
      %v635 = vpop.f32.mrf.mxu0
      %v636 = vadd.f32 0.0, %v635
      %637 = vmatmul.f32.gmra.mxu0 %v510
      %v638 = vpop.f32.mrf.mxu0
      %v639 = vadd.f32 0.0, %v638
      %640 = vmatmul.f32.gmra.mxu0 %v513
      %v641 = vpop.f32.mrf.mxu0
      %v642 = vadd.f32 0.0, %v641
      %643 = vmatmul.f32.gmra.mxu0 %v516
      %v644 = vpop.f32.mrf.mxu0
      %v645 = vadd.f32 0.0, %v644
      %646 = vdwg.mxu0
      %v647 = vadd.f32 %v373, %v540
      %v648 = vadd.f32 %v374, %v543
      %v649 = vadd.f32 %v375, %v546
      %v650 = vadd.f32 %v376, %v549
      %v651 = vadd.f32 %v377, %v552
      %v652 = vadd.f32 %v378, %v555
      %v653 = vadd.f32 %v379, %v558
      %v654 = vadd.f32 %v380, %v561
      %v655 = vadd.f32 %v381, %v564
      %v656 = vadd.f32 %v382, %v567
      %v657 = vadd.f32 %v383, %v570
      %v658 = vadd.f32 %v384, %v573
      %v659 = vadd.f32 %v385, %v576
      %v660 = vadd.f32 %v386, %v579
      %v661 = vadd.f32 %v387, %v582
      %v662 = vadd.f32 %v388, %v585
      %v663 = vadd.f32 %v389, %v588
      %v664 = vadd.f32 %v390, %v591
      %v665 = vadd.f32 %v391, %v594
      %v666 = vadd.f32 %v392, %v597
      %v667 = vadd.f32 %v393, %v600
      %v668 = vadd.f32 %v394, %v603
      %v669 = vadd.f32 %v395, %v606
      %v670 = vadd.f32 %v396, %v609
      %v671 = vadd.f32 %v397, %v612
      %v672 = vadd.f32 %v398, %v615
      %v673 = vadd.f32 %v399, %v618
      %v674 = vadd.f32 %v400, %v621
      %v675 = vadd.f32 %v401, %v624
      %v676 = vadd.f32 %v402, %v627
      %v677 = vadd.f32 %v403, %v630
      %v678 = vadd.f32 %v404, %v633
      %v679 = vadd.f32 %v405, %v636
      %v680 = vadd.f32 %v406, %v639
      %v681 = vadd.f32 %v407, %v642
      %v682 = vadd.f32 %v408, %v645
      %683 = vst.msk [vmem:[#allocation2] sm:$0xff] %vm300, %v647
      %684 = vst.msk [vmem:[#allocation2 + $0x8] sm:$0xff] %vm300, %v648
      %685 = vst.msk [vmem:[#allocation2 + $0x10] sm:$0xff] %vm300, %v649
      %686 = vst.msk [vmem:[#allocation2 + $0x18] sm:$0xff] %vm300, %v650
      %687 = vst.msk [vmem:[#allocation2 + $0x20] sm:$0xff] %vm300, %v651
      %688 = vst.msk [vmem:[#allocation2 + $0x28] sm:$0xff] %vm300, %v652
      %689 = vst.msk [vmem:[#allocation2 + $0x30] sm:$0xff] %vm300, %v653
      %690 = vst.msk [vmem:[#allocation2 + $0x38] sm:$0xff] %vm300, %v654
      %691 = vst.msk [vmem:[#allocation2 + $0x40] sm:$0xff] %vm300, %v655
      %692 = vst.msk [vmem:[#allocation2 + $0x48] sm:$0xff] %vm300, %v656
      %693 = vst.msk [vmem:[#allocation2 + $0x50] sm:$0xff] %vm300, %v657
      %694 = vst.msk [vmem:[#allocation2 + $0x58] sm:$0xff] %vm300, %v658
      %695 = vst.msk [vmem:[#allocation2 + $0x60] sm:$0xff] %vm300, %v659
      %696 = vst.msk [vmem:[#allocation2 + $0x68] sm:$0xff] %vm300, %v660
      %697 = vst.msk [vmem:[#allocation2 + $0x70] sm:$0xff] %vm300, %v661
      %698 = vst.msk [vmem:[#allocation2 + $0x78] sm:$0xff] %vm300, %v662
      %699 = vst.msk [vmem:[#allocation2 + $0x80] sm:$0xff] %vm300, %v663
      %700 = vst.msk [vmem:[#allocation2 + $0x88] sm:$0xff] %vm300, %v664
      %701 = vst.msk [vmem:[#allocation2 + $0x90] sm:$0xff] %vm300, %v665
      %702 = vst.msk [vmem:[#allocation2 + $0x98] sm:$0xff] %vm300, %v666
      %703 = vst.msk [vmem:[#allocation2 + $0xa0] sm:$0xff] %vm300, %v667
      %704 = vst.msk [vmem:[#allocation2 + $0xa8] sm:$0xff] %vm300, %v668
      %705 = vst.msk [vmem:[#allocation2 + $0xb0] sm:$0xff] %vm300, %v669
      %706 = vst.msk [vmem:[#allocation2 + $0xb8] sm:$0xff] %vm300, %v670
      %707 = vst.msk [vmem:[#allocation2 + $0xc0] sm:$0xff] %vm300, %v671
      %708 = vst.msk [vmem:[#allocation2 + $0xc8] sm:$0xff] %vm300, %v672
      %709 = vst.msk [vmem:[#allocation2 + $0xd0] sm:$0xff] %vm300, %v673
      %710 = vst.msk [vmem:[#allocation2 + $0xd8] sm:$0xff] %vm300, %v674
      %711 = vst.msk [vmem:[#allocation2 + $0xe0] sm:$0xff] %vm300, %v675
      %712 = vst.msk [vmem:[#allocation2 + $0xe8] sm:$0xff] %vm300, %v676
      %713 = vst.msk [vmem:[#allocation2 + $0xf0] sm:$0xff] %vm300, %v677
      %714 = vst.msk [vmem:[#allocation2 + $0xf8] sm:$0xff] %vm300, %v678
      %715 = vst.msk [vmem:[#allocation2 + $0x100] sm:$0xff] %vm300, %v679
      %716 = vst.msk [vmem:[#allocation2 + $0x108] sm:$0xff] %vm300, %v680
      %717 = vst.msk [vmem:[#allocation2 + $0x110] sm:$0xff] %vm300, %v681
      %718 = vst.msk [vmem:[#allocation2 + $0x118] sm:$0xff] %vm300, %v682
      %v719 = vld [vmem:[%s283 + $0x1] sm:$0xff]
      %v720 = vld [vmem:[%s283 + $0x9] sm:$0xff]
      %v721 = vld [vmem:[%s283 + $0x11] sm:$0xff]
      %v722 = vld [vmem:[%s283 + $0x19] sm:$0xff]
      %v723 = vld [vmem:[%s283 + $0x21] sm:$0xff]
      %v724 = vld [vmem:[%s283 + $0x29] sm:$0xff]
      %v725 = vld [vmem:[%s283 + $0x31] sm:$0xff]
      %v726 = vld [vmem:[%s283 + $0x39] sm:$0xff]
      %v727 = vld [vmem:[%s283 + $0x41] sm:$0xff]
      %v728 = vld [vmem:[%s283 + $0x49] sm:$0xff]
      %v729 = vld [vmem:[%s283 + $0x51] sm:$0xff]
      %v730 = vld [vmem:[%s283 + $0x59] sm:$0xff]
      %v731 = vld [vmem:[%s283 + $0x61] sm:$0xff]
      %v732 = vld [vmem:[%s283 + $0x69] sm:$0xff]
      %v733 = vld [vmem:[%s283 + $0x71] sm:$0xff]
      %v734 = vld [vmem:[%s283 + $0x79] sm:$0xff]
      %v735 = vld [vmem:[%s283 + $0x81] sm:$0xff]
      %v736 = vld [vmem:[%s283 + $0x89] sm:$0xff]
      %v737 = vld [vmem:[%s283 + $0x91] sm:$0xff]
      %v738 = vld [vmem:[%s283 + $0x99] sm:$0xff]
      %v739 = vld [vmem:[%s283 + $0xa1] sm:$0xff]
      %v740 = vld [vmem:[%s283 + $0xa9] sm:$0xff]
      %v741 = vld [vmem:[%s283 + $0xb1] sm:$0xff]
      %v742 = vld [vmem:[%s283 + $0xb9] sm:$0xff]
      %v743 = vld [vmem:[%s283 + $0xc1] sm:$0xff]
      %v744 = vld [vmem:[%s283 + $0xc9] sm:$0xff]
      %v745 = vld [vmem:[%s283 + $0xd1] sm:$0xff]
      %v746 = vld [vmem:[%s283 + $0xd9] sm:$0xff]
      %v747 = vld [vmem:[%s283 + $0xe1] sm:$0xff]
      %v748 = vld [vmem:[%s283 + $0xe9] sm:$0xff]
      %v749 = vld [vmem:[%s283 + $0xf1] sm:$0xff]
      %v750 = vld [vmem:[%s283 + $0xf9] sm:$0xff]
      %v751 = vld [vmem:[%s283 + $0x101] sm:$0xff]
      %v752 = vld [vmem:[%s283 + $0x109] sm:$0xff]
      %v753 = vld [vmem:[%s283 + $0x111] sm:$0xff]
      %v754 = vld [vmem:[%s283 + $0x119] sm:$0xff]
      %v755 = vld [vmem:[#allocation2] sm:$0xff]
      %v756 = vld [vmem:[#allocation2 + $0x8] sm:$0xff]
      %v757 = vld [vmem:[#allocation2 + $0x10] sm:$0xff]
      %v758 = vld [vmem:[#allocation2 + $0x18] sm:$0xff]
      %v759 = vld [vmem:[#allocation2 + $0x20] sm:$0xff]
      %v760 = vld [vmem:[#allocation2 + $0x28] sm:$0xff]
      %v761 = vld [vmem:[#allocation2 + $0x30] sm:$0xff]
      %v762 = vld [vmem:[#allocation2 + $0x38] sm:$0xff]
      %v763 = vld [vmem:[#allocation2 + $0x40] sm:$0xff]
      %v764 = vld [vmem:[#allocation2 + $0x48] sm:$0xff]
      %v765 = vld [vmem:[#allocation2 + $0x50] sm:$0xff]
      %v766 = vld [vmem:[#allocation2 + $0x58] sm:$0xff]
      %v767 = vld [vmem:[#allocation2 + $0x60] sm:$0xff]
      %v768 = vld [vmem:[#allocation2 + $0x68] sm:$0xff]
      %v769 = vld [vmem:[#allocation2 + $0x70] sm:$0xff]
      %v770 = vld [vmem:[#allocation2 + $0x78] sm:$0xff]
      %v771 = vld [vmem:[#allocation2 + $0x80] sm:$0xff]
      %v772 = vld [vmem:[#allocation2 + $0x88] sm:$0xff]
      %v773 = vld [vmem:[#allocation2 + $0x90] sm:$0xff]
      %v774 = vld [vmem:[#allocation2 + $0x98] sm:$0xff]
      %v775 = vld [vmem:[#allocation2 + $0xa0] sm:$0xff]
      %v776 = vld [vmem:[#allocation2 + $0xa8] sm:$0xff]
      %v777 = vld [vmem:[#allocation2 + $0xb0] sm:$0xff]
      %v778 = vld [vmem:[#allocation2 + $0xb8] sm:$0xff]
      %v779 = vld [vmem:[#allocation2 + $0xc0] sm:$0xff]
      %v780 = vld [vmem:[#allocation2 + $0xc8] sm:$0xff]
      %v781 = vld [vmem:[#allocation2 + $0xd0] sm:$0xff]
      %v782 = vld [vmem:[#allocation2 + $0xd8] sm:$0xff]
      %v783 = vld [vmem:[#allocation2 + $0xe0] sm:$0xff]
      %v784 = vld [vmem:[#allocation2 + $0xe8] sm:$0xff]
      %v785 = vld [vmem:[#allocation2 + $0xf0] sm:$0xff]
      %v786 = vld [vmem:[#allocation2 + $0xf8] sm:$0xff]
      %v787 = vld [vmem:[#allocation2 + $0x100] sm:$0xff]
      %v788 = vld [vmem:[#allocation2 + $0x108] sm:$0xff]
      %v789 = vld [vmem:[#allocation2 + $0x110] sm:$0xff]
      %v790 = vld [vmem:[#allocation2 + $0x118] sm:$0xff]
      %s791 = scalar_lea.vmem %s1, 4
      %v792 = vld [vmem:[%s791] sm:$0xf]
      %v794 = vsel %vm300, %v719, 0
      %v797 = vsel %vm300, %v720, 0
      %v800 = vsel %vm300, %v721, 0
      %v803 = vsel %vm300, %v722, 0
      %v806 = vsel %vm300, %v723, 0
      %v809 = vsel %vm300, %v724, 0
      %v812 = vsel %vm300, %v725, 0
      %v815 = vsel %vm300, %v726, 0
      %v818 = vsel %vm300, %v727, 0
      %v821 = vsel %vm300, %v728, 0
      %v824 = vsel %vm300, %v729, 0
      %v827 = vsel %vm300, %v730, 0
      %v830 = vsel %vm300, %v731, 0
      %v833 = vsel %vm300, %v732, 0
      %v836 = vsel %vm300, %v733, 0
      %v839 = vsel %vm300, %v734, 0
      %v842 = vsel %vm300, %v735, 0
      %v845 = vsel %vm300, %v736, 0
      %v848 = vsel %vm300, %v737, 0
      %v851 = vsel %vm300, %v738, 0
      %v854 = vsel %vm300, %v739, 0
      %v857 = vsel %vm300, %v740, 0
      %v860 = vsel %vm300, %v741, 0
      %v863 = vsel %vm300, %v742, 0
      %v866 = vsel %vm300, %v743, 0
      %v869 = vsel %vm300, %v744, 0
      %v872 = vsel %vm300, %v745, 0
      %v875 = vsel %vm300, %v746, 0
      %v878 = vsel %vm300, %v747, 0
      %v881 = vsel %vm300, %v748, 0
      %v884 = vsel %vm300, %v749, 0
      %v887 = vsel %vm300, %v750, 0
      %v890 = vsel %vm300, %v751, 0
      %v893 = vsel %vm300, %v752, 0
      %v896 = vsel %vm300, %v753, 0
      %v899 = vsel %vm300, %v754, 0
      %v902 = vsel %vm518, %v792, 0
      %904 = vmatpush.msra.mxu0 0.0
      %905 = vmatpush.msra.mxu0 0.0
      %906 = vmatpush.msra.mxu0 0.0
      %907 = vmatpush.msra.mxu0 0.0
      %908 = vmatpush.msra.mxu0 0.0
      %909 = vmatpush.msra.mxu0 0.0
      %910 = vmatpush.msra.mxu0 0.0
      %911 = vmatpush.msra.mxu0 0.0
      %912 = vmatpush.msra.mxu0 0.0
      %913 = vmatpush.msra.mxu0 0.0
      %914 = vmatpush.msra.mxu0 0.0
      %915 = vmatpush.msra.mxu0 0.0
      %916 = vmatpush.msra.mxu0 0.0
      %917 = vmatpush.msra.mxu0 0.0
      %918 = vmatpush.msra.mxu0 0.0
      %919 = vmatpush.msra.mxu0 %v902
      %920 = vmatmul.f32.gmra.mxu0 %v794
      %v921 = vpop.f32.mrf.mxu0
      %v922 = vadd.f32 0.0, %v921
      %923 = vmatmul.f32.gmra.mxu0 %v797
      %v924 = vpop.f32.mrf.mxu0
      %v925 = vadd.f32 0.0, %v924
      %926 = vmatmul.f32.gmra.mxu0 %v800
      %v927 = vpop.f32.mrf.mxu0
      %v928 = vadd.f32 0.0, %v927
      %929 = vmatmul.f32.gmra.mxu0 %v803
      %v930 = vpop.f32.mrf.mxu0
      %v931 = vadd.f32 0.0, %v930
      %932 = vmatmul.f32.gmra.mxu0 %v806
      %v933 = vpop.f32.mrf.mxu0
      %v934 = vadd.f32 0.0, %v933
      %935 = vmatmul.f32.gmra.mxu0 %v809
      %v936 = vpop.f32.mrf.mxu0
      %v937 = vadd.f32 0.0, %v936
      %938 = vmatmul.f32.gmra.mxu0 %v812
      %v939 = vpop.f32.mrf.mxu0
      %v940 = vadd.f32 0.0, %v939
      %941 = vmatmul.f32.gmra.mxu0 %v815
      %v942 = vpop.f32.mrf.mxu0
      %v943 = vadd.f32 0.0, %v942
      %944 = vmatmul.f32.gmra.mxu0 %v818
      %v945 = vpop.f32.mrf.mxu0
      %v946 = vadd.f32 0.0, %v945
      %947 = vmatmul.f32.gmra.mxu0 %v821
      %v948 = vpop.f32.mrf.mxu0
      %v949 = vadd.f32 0.0, %v948
      %950 = vmatmul.f32.gmra.mxu0 %v824
      %v951 = vpop.f32.mrf.mxu0
      %v952 = vadd.f32 0.0, %v951
      %953 = vmatmul.f32.gmra.mxu0 %v827
      %v954 = vpop.f32.mrf.mxu0
      %v955 = vadd.f32 0.0, %v954
      %956 = vmatmul.f32.gmra.mxu0 %v830
      %v957 = vpop.f32.mrf.mxu0
      %v958 = vadd.f32 0.0, %v957
      %959 = vmatmul.f32.gmra.mxu0 %v833
      %v960 = vpop.f32.mrf.mxu0
      %v961 = vadd.f32 0.0, %v960
      %962 = vmatmul.f32.gmra.mxu0 %v836
      %v963 = vpop.f32.mrf.mxu0
      %v964 = vadd.f32 0.0, %v963
      %965 = vmatmul.f32.gmra.mxu0 %v839
      %v966 = vpop.f32.mrf.mxu0
      %v967 = vadd.f32 0.0, %v966
      %968 = vmatmul.f32.gmra.mxu0 %v842
      %v969 = vpop.f32.mrf.mxu0
      %v970 = vadd.f32 0.0, %v969
      %971 = vmatmul.f32.gmra.mxu0 %v845
      %v972 = vpop.f32.mrf.mxu0
      %v973 = vadd.f32 0.0, %v972
      %974 = vmatmul.f32.gmra.mxu0 %v848
      %v975 = vpop.f32.mrf.mxu0
      %v976 = vadd.f32 0.0, %v975
      %977 = vmatmul.f32.gmra.mxu0 %v851
      %v978 = vpop.f32.mrf.mxu0
      %v979 = vadd.f32 0.0, %v978
      %980 = vmatmul.f32.gmra.mxu0 %v854
      %v981 = vpop.f32.mrf.mxu0
      %v982 = vadd.f32 0.0, %v981
      %983 = vmatmul.f32.gmra.mxu0 %v857
      %v984 = vpop.f32.mrf.mxu0
      %v985 = vadd.f32 0.0, %v984
      %986 = vmatmul.f32.gmra.mxu0 %v860
      %v987 = vpop.f32.mrf.mxu0
      %v988 = vadd.f32 0.0, %v987
      %989 = vmatmul.f32.gmra.mxu0 %v863
      %v990 = vpop.f32.mrf.mxu0
      %v991 = vadd.f32 0.0, %v990
      %992 = vmatmul.f32.gmra.mxu0 %v866
      %v993 = vpop.f32.mrf.mxu0
      %v994 = vadd.f32 0.0, %v993
      %995 = vmatmul.f32.gmra.mxu0 %v869
      %v996 = vpop.f32.mrf.mxu0
      %v997 = vadd.f32 0.0, %v996
      %998 = vmatmul.f32.gmra.mxu0 %v872
      %v999 = vpop.f32.mrf.mxu0
      %v1000 = vadd.f32 0.0, %v999
      %1001 = vmatmul.f32.gmra.mxu0 %v875
      %v1002 = vpop.f32.mrf.mxu0
      %v1003 = vadd.f32 0.0, %v1002
      %1004 = vmatmul.f32.gmra.mxu0 %v878
      %v1005 = vpop.f32.mrf.mxu0
      %v1006 = vadd.f32 0.0, %v1005
      %1007 = vmatmul.f32.gmra.mxu0 %v881
      %v1008 = vpop.f32.mrf.mxu0
      %v1009 = vadd.f32 0.0, %v1008
      %1010 = vmatmul.f32.gmra.mxu0 %v884
      %v1011 = vpop.f32.mrf.mxu0
      %v1012 = vadd.f32 0.0, %v1011
      %1013 = vmatmul.f32.gmra.mxu0 %v887
      %v1014 = vpop.f32.mrf.mxu0
      %v1015 = vadd.f32 0.0, %v1014
      %1016 = vmatmul.f32.gmra.mxu0 %v890
      %v1017 = vpop.f32.mrf.mxu0
      %v1018 = vadd.f32 0.0, %v1017
      %1019 = vmatmul.f32.gmra.mxu0 %v893
      %v1020 = vpop.f32.mrf.mxu0
      %v1021 = vadd.f32 0.0, %v1020
      %1022 = vmatmul.f32.gmra.mxu0 %v896
      %v1023 = vpop.f32.mrf.mxu0
      %v1024 = vadd.f32 0.0, %v1023
      %1025 = vmatmul.f32.gmra.mxu0 %v899
      %v1026 = vpop.f32.mrf.mxu0
      %v1027 = vadd.f32 0.0, %v1026
      %1028 = vdwg.mxu0
      %v1029 = vadd.f32 %v755, %v922
      %v1030 = vadd.f32 %v756, %v925
      %v1031 = vadd.f32 %v757, %v928
      %v1032 = vadd.f32 %v758, %v931
      %v1033 = vadd.f32 %v759, %v934
      %v1034 = vadd.f32 %v760, %v937
      %v1035 = vadd.f32 %v761, %v940
      %v1036 = vadd.f32 %v762, %v943
      %v1037 = vadd.f32 %v763, %v946
      %v1038 = vadd.f32 %v764, %v949
      %v1039 = vadd.f32 %v765, %v952
      %v1040 = vadd.f32 %v766, %v955
      %v1041 = vadd.f32 %v767, %v958
      %v1042 = vadd.f32 %v768, %v961
      %v1043 = vadd.f32 %v769, %v964
      %v1044 = vadd.f32 %v770, %v967
      %v1045 = vadd.f32 %v771, %v970
      %v1046 = vadd.f32 %v772, %v973
      %v1047 = vadd.f32 %v773, %v976
      %v1048 = vadd.f32 %v774, %v979
      %v1049 = vadd.f32 %v775, %v982
      %v1050 = vadd.f32 %v776, %v985
      %v1051 = vadd.f32 %v777, %v988
      %v1052 = vadd.f32 %v778, %v991
      %v1053 = vadd.f32 %v779, %v994
      %v1054 = vadd.f32 %v780, %v997
      %v1055 = vadd.f32 %v781, %v1000
      %v1056 = vadd.f32 %v782, %v1003
      %v1057 = vadd.f32 %v783, %v1006
      %v1058 = vadd.f32 %v784, %v1009
      %v1059 = vadd.f32 %v785, %v1012
      %v1060 = vadd.f32 %v786, %v1015
      %v1061 = vadd.f32 %v787, %v1018
      %v1062 = vadd.f32 %v788, %v1021
      %v1063 = vadd.f32 %v789, %v1024
      %v1064 = vadd.f32 %v790, %v1027
      %1065 = vst.msk [vmem:[#allocation2] sm:$0xff] %vm300, %v1029
      %1066 = vst.msk [vmem:[#allocation2 + $0x8] sm:$0xff] %vm300, %v1030
      %1067 = vst.msk [vmem:[#allocation2 + $0x10] sm:$0xff] %vm300, %v1031
      %1068 = vst.msk [vmem:[#allocation2 + $0x18] sm:$0xff] %vm300, %v1032
      %1069 = vst.msk [vmem:[#allocation2 + $0x20] sm:$0xff] %vm300, %v1033
      %1070 = vst.msk [vmem:[#allocation2 + $0x28] sm:$0xff] %vm300, %v1034
      %1071 = vst.msk [vmem:[#allocation2 + $0x30] sm:$0xff] %vm300, %v1035
      %1072 = vst.msk [vmem:[#allocation2 + $0x38] sm:$0xff] %vm300, %v1036
      %1073 = vst.msk [vmem:[#allocation2 + $0x40] sm:$0xff] %vm300, %v1037
      %1074 = vst.msk [vmem:[#allocation2 + $0x48] sm:$0xff] %vm300, %v1038
      %1075 = vst.msk [vmem:[#allocation2 + $0x50] sm:$0xff] %vm300, %v1039
      %1076 = vst.msk [vmem:[#allocation2 + $0x58] sm:$0xff] %vm300, %v1040
      %1077 = vst.msk [vmem:[#allocation2 + $0x60] sm:$0xff] %vm300, %v1041
      %1078 = vst.msk [vmem:[#allocation2 + $0x68] sm:$0xff] %vm300, %v1042
      %1079 = vst.msk [vmem:[#allocation2 + $0x70] sm:$0xff] %vm300, %v1043
      %1080 = vst.msk [vmem:[#allocation2 + $0x78] sm:$0xff] %vm300, %v1044
      %1081 = vst.msk [vmem:[#allocation2 + $0x80] sm:$0xff] %vm300, %v1045
      %1082 = vst.msk [vmem:[#allocation2 + $0x88] sm:$0xff] %vm300, %v1046
      %1083 = vst.msk [vmem:[#allocation2 + $0x90] sm:$0xff] %vm300, %v1047
      %1084 = vst.msk [vmem:[#allocation2 + $0x98] sm:$0xff] %vm300, %v1048
      %1085 = vst.msk [vmem:[#allocation2 + $0xa0] sm:$0xff] %vm300, %v1049
      %1086 = vst.msk [vmem:[#allocation2 + $0xa8] sm:$0xff] %vm300, %v1050
      %1087 = vst.msk [vmem:[#allocation2 + $0xb0] sm:$0xff] %vm300, %v1051
      %1088 = vst.msk [vmem:[#allocation2 + $0xb8] sm:$0xff] %vm300, %v1052
      %1089 = vst.msk [vmem:[#allocation2 + $0xc0] sm:$0xff] %vm300, %v1053
      %1090 = vst.msk [vmem:[#allocation2 + $0xc8] sm:$0xff] %vm300, %v1054
      %1091 = vst.msk [vmem:[#allocation2 + $0xd0] sm:$0xff] %vm300, %v1055
      %1092 = vst.msk [vmem:[#allocation2 + $0xd8] sm:$0xff] %vm300, %v1056
      %1093 = vst.msk [vmem:[#allocation2 + $0xe0] sm:$0xff] %vm300, %v1057
      %1094 = vst.msk [vmem:[#allocation2 + $0xe8] sm:$0xff] %vm300, %v1058
      %1095 = vst.msk [vmem:[#allocation2 + $0xf0] sm:$0xff] %vm300, %v1059
      %1096 = vst.msk [vmem:[#allocation2 + $0xf8] sm:$0xff] %vm300, %v1060
      %1097 = vst.msk [vmem:[#allocation2 + $0x100] sm:$0xff] %vm300, %v1061
      %1098 = vst.msk [vmem:[#allocation2 + $0x108] sm:$0xff] %vm300, %v1062
      %1099 = vst.msk [vmem:[#allocation2 + $0x110] sm:$0xff] %vm300, %v1063
      %1100 = vst.msk [vmem:[#allocation2 + $0x118] sm:$0xff] %vm300, %v1064
      %v1101 = vld [vmem:[%s283 + $0x2] sm:$0xff]
      %v1102 = vld [vmem:[%s283 + $0xa] sm:$0xff]
      %v1103 = vld [vmem:[%s283 + $0x12] sm:$0xff]
      %v1104 = vld [vmem:[%s283 + $0x1a] sm:$0xff]
      %v1105 = vld [vmem:[%s283 + $0x22] sm:$0xff]
      %v1106 = vld [vmem:[%s283 + $0x2a] sm:$0xff]
      %v1107 = vld [vmem:[%s283 + $0x32] sm:$0xff]
      %v1108 = vld [vmem:[%s283 + $0x3a] sm:$0xff]
      %v1109 = vld [vmem:[%s283 + $0x42] sm:$0xff]
      %v1110 = vld [vmem:[%s283 + $0x4a] sm:$0xff]
      %v1111 = vld [vmem:[%s283 + $0x52] sm:$0xff]
      %v1112 = vld [vmem:[%s283 + $0x5a] sm:$0xff]
      %v1113 = vld [vmem:[%s283 + $0x62] sm:$0xff]
      %v1114 = vld [vmem:[%s283 + $0x6a] sm:$0xff]
      %v1115 = vld [vmem:[%s283 + $0x72] sm:$0xff]
      %v1116 = vld [vmem:[%s283 + $0x7a] sm:$0xff]
      %v1117 = vld [vmem:[%s283 + $0x82] sm:$0xff]
      %v1118 = vld [vmem:[%s283 + $0x8a] sm:$0xff]
      %v1119 = vld [vmem:[%s283 + $0x92] sm:$0xff]
      %v1120 = vld [vmem:[%s283 + $0x9a] sm:$0xff]
      %v1121 = vld [vmem:[%s283 + $0xa2] sm:$0xff]
      %v1122 = vld [vmem:[%s283 + $0xaa] sm:$0xff]
      %v1123 = vld [vmem:[%s283 + $0xb2] sm:$0xff]
      %v1124 = vld [vmem:[%s283 + $0xba] sm:$0xff]
      %v1125 = vld [vmem:[%s283 + $0xc2] sm:$0xff]
      %v1126 = vld [vmem:[%s283 + $0xca] sm:$0xff]
      %v1127 = vld [vmem:[%s283 + $0xd2] sm:$0xff]
      %v1128 = vld [vmem:[%s283 + $0xda] sm:$0xff]
      %v1129 = vld [vmem:[%s283 + $0xe2] sm:$0xff]
      %v1130 = vld [vmem:[%s283 + $0xea] sm:$0xff]
      %v1131 = vld [vmem:[%s283 + $0xf2] sm:$0xff]
      %v1132 = vld [vmem:[%s283 + $0xfa] sm:$0xff]
      %v1133 = vld [vmem:[%s283 + $0x102] sm:$0xff]
      %v1134 = vld [vmem:[%s283 + $0x10a] sm:$0xff]
      %v1135 = vld [vmem:[%s283 + $0x112] sm:$0xff]
      %v1136 = vld [vmem:[%s283 + $0x11a] sm:$0xff]
      %v1137 = vld [vmem:[#allocation2] sm:$0xff]
      %v1138 = vld [vmem:[#allocation2 + $0x8] sm:$0xff]
      %v1139 = vld [vmem:[#allocation2 + $0x10] sm:$0xff]
      %v1140 = vld [vmem:[#allocation2 + $0x18] sm:$0xff]
      %v1141 = vld [vmem:[#allocation2 + $0x20] sm:$0xff]
      %v1142 = vld [vmem:[#allocation2 + $0x28] sm:$0xff]
      %v1143 = vld [vmem:[#allocation2 + $0x30] sm:$0xff]
      %v1144 = vld [vmem:[#allocation2 + $0x38] sm:$0xff]
      %v1145 = vld [vmem:[#allocation2 + $0x40] sm:$0xff]
      %v1146 = vld [vmem:[#allocation2 + $0x48] sm:$0xff]
      %v1147 = vld [vmem:[#allocation2 + $0x50] sm:$0xff]
      %v1148 = vld [vmem:[#allocation2 + $0x58] sm:$0xff]
      %v1149 = vld [vmem:[#allocation2 + $0x60] sm:$0xff]
      %v1150 = vld [vmem:[#allocation2 + $0x68] sm:$0xff]
      %v1151 = vld [vmem:[#allocation2 + $0x70] sm:$0xff]
      %v1152 = vld [vmem:[#allocation2 + $0x78] sm:$0xff]
      %v1153 = vld [vmem:[#allocation2 + $0x80] sm:$0xff]
      %v1154 = vld [vmem:[#allocation2 + $0x88] sm:$0xff]
      %v1155 = vld [vmem:[#allocation2 + $0x90] sm:$0xff]
      %v1156 = vld [vmem:[#allocation2 + $0x98] sm:$0xff]
      %v1157 = vld [vmem:[#allocation2 + $0xa0] sm:$0xff]
      %v1158 = vld [vmem:[#allocation2 + $0xa8] sm:$0xff]
      %v1159 = vld [vmem:[#allocation2 + $0xb0] sm:$0xff]
      %v1160 = vld [vmem:[#allocation2 + $0xb8] sm:$0xff]
      %v1161 = vld [vmem:[#allocation2 + $0xc0] sm:$0xff]
      %v1162 = vld [vmem:[#allocation2 + $0xc8] sm:$0xff]
      %v1163 = vld [vmem:[#allocation2 + $0xd0] sm:$0xff]
      %v1164 = vld [vmem:[#allocation2 + $0xd8] sm:$0xff]
      %v1165 = vld [vmem:[#allocation2 + $0xe0] sm:$0xff]
      %v1166 = vld [vmem:[#allocation2 + $0xe8] sm:$0xff]
      %v1167 = vld [vmem:[#allocation2 + $0xf0] sm:$0xff]
      %v1168 = vld [vmem:[#allocation2 + $0xf8] sm:$0xff]
      %v1169 = vld [vmem:[#allocation2 + $0x100] sm:$0xff]
      %v1170 = vld [vmem:[#allocation2 + $0x108] sm:$0xff]
      %v1171 = vld [vmem:[#allocation2 + $0x110] sm:$0xff]
      %v1172 = vld [vmem:[#allocation2 + $0x118] sm:$0xff]
      %s1173 = scalar_lea.vmem %s1, 8
      %v1174 = vld [vmem:[%s1173] sm:$0xf]
      %v1176 = vsel %vm300, %v1101, 0
      %v1179 = vsel %vm300, %v1102, 0
      %v1182 = vsel %vm300, %v1103, 0
      %v1185 = vsel %vm300, %v1104, 0
      %v1188 = vsel %vm300, %v1105, 0
      %v1191 = vsel %vm300, %v1106, 0
      %v1194 = vsel %vm300, %v1107, 0
      %v1197 = vsel %vm300, %v1108, 0
      %v1200 = vsel %vm300, %v1109, 0
      %v1203 = vsel %vm300, %v1110, 0
      %v1206 = vsel %vm300, %v1111, 0
      %v1209 = vsel %vm300, %v1112, 0
      %v1212 = vsel %vm300, %v1113, 0
      %v1215 = vsel %vm300, %v1114, 0
      %v1218 = vsel %vm300, %v1115, 0
      %v1221 = vsel %vm300, %v1116, 0
      %v1224 = vsel %vm300, %v1117, 0
      %v1227 = vsel %vm300, %v1118, 0
      %v1230 = vsel %vm300, %v1119, 0
      %v1233 = vsel %vm300, %v1120, 0
      %v1236 = vsel %vm300, %v1121, 0
      %v1239 = vsel %vm300, %v1122, 0
      %v1242 = vsel %vm300, %v1123, 0
      %v1245 = vsel %vm300, %v1124, 0
      %v1248 = vsel %vm300, %v1125, 0
      %v1251 = vsel %vm300, %v1126, 0
      %v1254 = vsel %vm300, %v1127, 0
      %v1257 = vsel %vm300, %v1128, 0
      %v1260 = vsel %vm300, %v1129, 0
      %v1263 = vsel %vm300, %v1130, 0
      %v1266 = vsel %vm300, %v1131, 0
      %v1269 = vsel %vm300, %v1132, 0
      %v1272 = vsel %vm300, %v1133, 0
      %v1275 = vsel %vm300, %v1134, 0
      %v1278 = vsel %vm300, %v1135, 0
      %v1281 = vsel %vm300, %v1136, 0
      %v1284 = vsel %vm518, %v1174, 0
      %1286 = vmatpush.msra.mxu0 0.0
      %1287 = vmatpush.msra.mxu0 0.0
      %1288 = vmatpush.msra.mxu0 0.0
      %1289 = vmatpush.msra.mxu0 0.0
      %1290 = vmatpush.msra.mxu0 0.0
      %1291 = vmatpush.msra.mxu0 0.0
      %1292 = vmatpush.msra.mxu0 0.0
      %1293 = vmatpush.msra.mxu0 0.0
      %1294 = vmatpush.msra.mxu0 0.0
      %1295 = vmatpush.msra.mxu0 0.0
      %1296 = vmatpush.msra.mxu0 0.0
      %1297 = vmatpush.msra.mxu0 0.0
      %1298 = vmatpush.msra.mxu0 0.0
      %1299 = vmatpush.msra.mxu0 0.0
      %1300 = vmatpush.msra.mxu0 0.0
      %1301 = vmatpush.msra.mxu0 %v1284
      %1302 = vmatmul.f32.gmra.mxu0 %v1176
      %v1303 = vpop.f32.mrf.mxu0
      %v1304 = vadd.f32 0.0, %v1303
      %1305 = vmatmul.f32.gmra.mxu0 %v1179
      %v1306 = vpop.f32.mrf.mxu0
      %v1307 = vadd.f32 0.0, %v1306
      %1308 = vmatmul.f32.gmra.mxu0 %v1182
      %v1309 = vpop.f32.mrf.mxu0
      %v1310 = vadd.f32 0.0, %v1309
      %1311 = vmatmul.f32.gmra.mxu0 %v1185
      %v1312 = vpop.f32.mrf.mxu0
      %v1313 = vadd.f32 0.0, %v1312
      %1314 = vmatmul.f32.gmra.mxu0 %v1188
      %v1315 = vpop.f32.mrf.mxu0
      %v1316 = vadd.f32 0.0, %v1315
      %1317 = vmatmul.f32.gmra.mxu0 %v1191
      %v1318 = vpop.f32.mrf.mxu0
      %v1319 = vadd.f32 0.0, %v1318
      %1320 = vmatmul.f32.gmra.mxu0 %v1194
      %v1321 = vpop.f32.mrf.mxu0
      %v1322 = vadd.f32 0.0, %v1321
      %1323 = vmatmul.f32.gmra.mxu0 %v1197
      %v1324 = vpop.f32.mrf.mxu0
      %v1325 = vadd.f32 0.0, %v1324
      %1326 = vmatmul.f32.gmra.mxu0 %v1200
      %v1327 = vpop.f32.mrf.mxu0
      %v1328 = vadd.f32 0.0, %v1327
      %1329 = vmatmul.f32.gmra.mxu0 %v1203
      %v1330 = vpop.f32.mrf.mxu0
      %v1331 = vadd.f32 0.0, %v1330
      %1332 = vmatmul.f32.gmra.mxu0 %v1206
      %v1333 = vpop.f32.mrf.mxu0
      %v1334 = vadd.f32 0.0, %v1333
      %1335 = vmatmul.f32.gmra.mxu0 %v1209
      %v1336 = vpop.f32.mrf.mxu0
      %v1337 = vadd.f32 0.0, %v1336
      %1338 = vmatmul.f32.gmra.mxu0 %v1212
      %v1339 = vpop.f32.mrf.mxu0
      %v1340 = vadd.f32 0.0, %v1339
      %1341 = vmatmul.f32.gmra.mxu0 %v1215
      %v1342 = vpop.f32.mrf.mxu0
      %v1343 = vadd.f32 0.0, %v1342
      %1344 = vmatmul.f32.gmra.mxu0 %v1218
      %v1345 = vpop.f32.mrf.mxu0
      %v1346 = vadd.f32 0.0, %v1345
      %1347 = vmatmul.f32.gmra.mxu0 %v1221
      %v1348 = vpop.f32.mrf.mxu0
      %v1349 = vadd.f32 0.0, %v1348
      %1350 = vmatmul.f32.gmra.mxu0 %v1224
      %v1351 = vpop.f32.mrf.mxu0
      %v1352 = vadd.f32 0.0, %v1351
      %1353 = vmatmul.f32.gmra.mxu0 %v1227
      %v1354 = vpop.f32.mrf.mxu0
      %v1355 = vadd.f32 0.0, %v1354
      %1356 = vmatmul.f32.gmra.mxu0 %v1230
      %v1357 = vpop.f32.mrf.mxu0
      %v1358 = vadd.f32 0.0, %v1357
      %1359 = vmatmul.f32.gmra.mxu0 %v1233
      %v1360 = vpop.f32.mrf.mxu0
      %v1361 = vadd.f32 0.0, %v1360
      %1362 = vmatmul.f32.gmra.mxu0 %v1236
      %v1363 = vpop.f32.mrf.mxu0
      %v1364 = vadd.f32 0.0, %v1363
      %1365 = vmatmul.f32.gmra.mxu0 %v1239
      %v1366 = vpop.f32.mrf.mxu0
      %v1367 = vadd.f32 0.0, %v1366
      %1368 = vmatmul.f32.gmra.mxu0 %v1242
      %v1369 = vpop.f32.mrf.mxu0
      %v1370 = vadd.f32 0.0, %v1369
      %1371 = vmatmul.f32.gmra.mxu0 %v1245
      %v1372 = vpop.f32.mrf.mxu0
      %v1373 = vadd.f32 0.0, %v1372
      %1374 = vmatmul.f32.gmra.mxu0 %v1248
      %v1375 = vpop.f32.mrf.mxu0
      %v1376 = vadd.f32 0.0, %v1375
      %1377 = vmatmul.f32.gmra.mxu0 %v1251
      %v1378 = vpop.f32.mrf.mxu0
      %v1379 = vadd.f32 0.0, %v1378
      %1380 = vmatmul.f32.gmra.mxu0 %v1254
      %v1381 = vpop.f32.mrf.mxu0
      %v1382 = vadd.f32 0.0, %v1381
      %1383 = vmatmul.f32.gmra.mxu0 %v1257
      %v1384 = vpop.f32.mrf.mxu0
      %v1385 = vadd.f32 0.0, %v1384
      %1386 = vmatmul.f32.gmra.mxu0 %v1260
      %v1387 = vpop.f32.mrf.mxu0
      %v1388 = vadd.f32 0.0, %v1387
      %1389 = vmatmul.f32.gmra.mxu0 %v1263
      %v1390 = vpop.f32.mrf.mxu0
      %v1391 = vadd.f32 0.0, %v1390
      %1392 = vmatmul.f32.gmra.mxu0 %v1266
      %v1393 = vpop.f32.mrf.mxu0
      %v1394 = vadd.f32 0.0, %v1393
      %1395 = vmatmul.f32.gmra.mxu0 %v1269
      %v1396 = vpop.f32.mrf.mxu0
      %v1397 = vadd.f32 0.0, %v1396
      %1398 = vmatmul.f32.gmra.mxu0 %v1272
      %v1399 = vpop.f32.mrf.mxu0
      %v1400 = vadd.f32 0.0, %v1399
      %1401 = vmatmul.f32.gmra.mxu0 %v1275
      %v1402 = vpop.f32.mrf.mxu0
      %v1403 = vadd.f32 0.0, %v1402
      %1404 = vmatmul.f32.gmra.mxu0 %v1278
      %v1405 = vpop.f32.mrf.mxu0
      %v1406 = vadd.f32 0.0, %v1405
      %1407 = vmatmul.f32.gmra.mxu0 %v1281
      %v1408 = vpop.f32.mrf.mxu0
      %v1409 = vadd.f32 0.0, %v1408
      %1410 = vdwg.mxu0
      %v1411 = vadd.f32 %v1137, %v1304
      %v1412 = vadd.f32 %v1138, %v1307
      %v1413 = vadd.f32 %v1139, %v1310
      %v1414 = vadd.f32 %v1140, %v1313
      %v1415 = vadd.f32 %v1141, %v1316
      %v1416 = vadd.f32 %v1142, %v1319
      %v1417 = vadd.f32 %v1143, %v1322
      %v1418 = vadd.f32 %v1144, %v1325
      %v1419 = vadd.f32 %v1145, %v1328
      %v1420 = vadd.f32 %v1146, %v1331
      %v1421 = vadd.f32 %v1147, %v1334
      %v1422 = vadd.f32 %v1148, %v1337
      %v1423 = vadd.f32 %v1149, %v1340
      %v1424 = vadd.f32 %v1150, %v1343
      %v1425 = vadd.f32 %v1151, %v1346
      %v1426 = vadd.f32 %v1152, %v1349
      %v1427 = vadd.f32 %v1153, %v1352
      %v1428 = vadd.f32 %v1154, %v1355
      %v1429 = vadd.f32 %v1155, %v1358
      %v1430 = vadd.f32 %v1156, %v1361
      %v1431 = vadd.f32 %v1157, %v1364
      %v1432 = vadd.f32 %v1158, %v1367
      %v1433 = vadd.f32 %v1159, %v1370
      %v1434 = vadd.f32 %v1160, %v1373
      %v1435 = vadd.f32 %v1161, %v1376
      %v1436 = vadd.f32 %v1162, %v1379
      %v1437 = vadd.f32 %v1163, %v1382
      %v1438 = vadd.f32 %v1164, %v1385
      %v1439 = vadd.f32 %v1165, %v1388
      %v1440 = vadd.f32 %v1166, %v1391
      %v1441 = vadd.f32 %v1167, %v1394
      %v1442 = vadd.f32 %v1168, %v1397
      %v1443 = vadd.f32 %v1169, %v1400
      %v1444 = vadd.f32 %v1170, %v1403
      %v1445 = vadd.f32 %v1171, %v1406
      %v1446 = vadd.f32 %v1172, %v1409
      %1447 = vst.msk [vmem:[#allocation2] sm:$0xff] %vm300, %v1411
      %1448 = vst.msk [vmem:[#allocation2 + $0x8] sm:$0xff] %vm300, %v1412
      %1449 = vst.msk [vmem:[#allocation2 + $0x10] sm:$0xff] %vm300, %v1413
      %1450 = vst.msk [vmem:[#allocation2 + $0x18] sm:$0xff] %vm300, %v1414
      %1451 = vst.msk [vmem:[#allocation2 + $0x20] sm:$0xff] %vm300, %v1415
      %1452 = vst.msk [vmem:[#allocation2 + $0x28] sm:$0xff] %vm300, %v1416
      %1453 = vst.msk [vmem:[#allocation2 + $0x30] sm:$0xff] %vm300, %v1417
      %1454 = vst.msk [vmem:[#allocation2 + $0x38] sm:$0xff] %vm300, %v1418
      %1455 = vst.msk [vmem:[#allocation2 + $0x40] sm:$0xff] %vm300, %v1419
      %1456 = vst.msk [vmem:[#allocation2 + $0x48] sm:$0xff] %vm300, %v1420
      %1457 = vst.msk [vmem:[#allocation2 + $0x50] sm:$0xff] %vm300, %v1421
      %1458 = vst.msk [vmem:[#allocation2 + $0x58] sm:$0xff] %vm300, %v1422
      %1459 = vst.msk [vmem:[#allocation2 + $0x60] sm:$0xff] %vm300, %v1423
      %1460 = vst.msk [vmem:[#allocation2 + $0x68] sm:$0xff] %vm300, %v1424
      %1461 = vst.msk [vmem:[#allocation2 + $0x70] sm:$0xff] %vm300, %v1425
      %1462 = vst.msk [vmem:[#allocation2 + $0x78] sm:$0xff] %vm300, %v1426
      %1463 = vst.msk [vmem:[#allocation2 + $0x80] sm:$0xff] %vm300, %v1427
      %1464 = vst.msk [vmem:[#allocation2 + $0x88] sm:$0xff] %vm300, %v1428
      %1465 = vst.msk [vmem:[#allocation2 + $0x90] sm:$0xff] %vm300, %v1429
      %1466 = vst.msk [vmem:[#allocation2 + $0x98] sm:$0xff] %vm300, %v1430
      %1467 = vst.msk [vmem:[#allocation2 + $0xa0] sm:$0xff] %vm300, %v1431
      %1468 = vst.msk [vmem:[#allocation2 + $0xa8] sm:$0xff] %vm300, %v1432
      %1469 = vst.msk [vmem:[#allocation2 + $0xb0] sm:$0xff] %vm300, %v1433
      %1470 = vst.msk [vmem:[#allocation2 + $0xb8] sm:$0xff] %vm300, %v1434
      %1471 = vst.msk [vmem:[#allocation2 + $0xc0] sm:$0xff] %vm300, %v1435
      %1472 = vst.msk [vmem:[#allocation2 + $0xc8] sm:$0xff] %vm300, %v1436
      %1473 = vst.msk [vmem:[#allocation2 + $0xd0] sm:$0xff] %vm300, %v1437
      %1474 = vst.msk [vmem:[#allocation2 + $0xd8] sm:$0xff] %vm300, %v1438
      %1475 = vst.msk [vmem:[#allocation2 + $0xe0] sm:$0xff] %vm300, %v1439
      %1476 = vst.msk [vmem:[#allocation2 + $0xe8] sm:$0xff] %vm300, %v1440
      %1477 = vst.msk [vmem:[#allocation2 + $0xf0] sm:$0xff] %vm300, %v1441
      %1478 = vst.msk [vmem:[#allocation2 + $0xf8] sm:$0xff] %vm300, %v1442
      %1479 = vst.msk [vmem:[#allocation2 + $0x100] sm:$0xff] %vm300, %v1443
      %1480 = vst.msk [vmem:[#allocation2 + $0x108] sm:$0xff] %vm300, %v1444
      %1481 = vst.msk [vmem:[#allocation2 + $0x110] sm:$0xff] %vm300, %v1445
      %1482 = vst.msk [vmem:[#allocation2 + $0x118] sm:$0xff] %vm300, %v1446
      %v1483 = vld [vmem:[%s283 + $0x12] sm:$0xff]
      %v1484 = vld [vmem:[%s283 + $0x1a] sm:$0xff]
      %v1485 = vld [vmem:[%s283 + $0x22] sm:$0xff]
      %v1486 = vld [vmem:[%s283 + $0x2a] sm:$0xff]
      %v1487 = vld [vmem:[%s283 + $0x32] sm:$0xff]
      %v1488 = vld [vmem:[%s283 + $0x3a] sm:$0xff]
      %v1489 = vld [vmem:[%s283 + $0x42] sm:$0xff]
      %v1490 = vld [vmem:[%s283 + $0x4a] sm:$0xff]
      %v1491 = vld [vmem:[%s283 + $0x52] sm:$0xff]
      %v1492 = vld [vmem:[%s283 + $0x5a] sm:$0xff]
      %v1493 = vld [vmem:[%s283 + $0x62] sm:$0xff]
      %v1494 = vld [vmem:[%s283 + $0x6a] sm:$0xff]
      %v1495 = vld [vmem:[%s283 + $0x72] sm:$0xff]
      %v1496 = vld [vmem:[%s283 + $0x7a] sm:$0xff]
      %v1497 = vld [vmem:[%s283 + $0x82] sm:$0xff]
      %v1498 = vld [vmem:[%s283 + $0x8a] sm:$0xff]
      %v1499 = vld [vmem:[%s283 + $0x92] sm:$0xff]
      %v1500 = vld [vmem:[%s283 + $0x9a] sm:$0xff]
      %v1501 = vld [vmem:[%s283 + $0xa2] sm:$0xff]
      %v1502 = vld [vmem:[%s283 + $0xaa] sm:$0xff]
      %v1503 = vld [vmem:[%s283 + $0xb2] sm:$0xff]
      %v1504 = vld [vmem:[%s283 + $0xba] sm:$0xff]
      %v1505 = vld [vmem:[%s283 + $0xc2] sm:$0xff]
      %v1506 = vld [vmem:[%s283 + $0xca] sm:$0xff]
      %v1507 = vld [vmem:[%s283 + $0xd2] sm:$0xff]
      %v1508 = vld [vmem:[%s283 + $0xda] sm:$0xff]
      %v1509 = vld [vmem:[%s283 + $0xe2] sm:$0xff]
      %v1510 = vld [vmem:[%s283 + $0xea] sm:$0xff]
      %v1511 = vld [vmem:[%s283 + $0xf2] sm:$0xff]
      %v1512 = vld [vmem:[%s283 + $0xfa] sm:$0xff]
      %v1513 = vld [vmem:[%s283 + $0x102] sm:$0xff]
      %v1514 = vld [vmem:[%s283 + $0x10a] sm:$0xff]
      %v1515 = vld [vmem:[%s283 + $0x112] sm:$0xff]
      %v1516 = vld [vmem:[%s283 + $0x11a] sm:$0xff]
      %v1517 = vld [vmem:[%s283 + $0x122] sm:$0xff]
      %v1518 = vld [vmem:[%s283 + $0x12a] sm:$0xff]
      %v1519 = vld [vmem:[#allocation2] sm:$0xff]
      %v1520 = vld [vmem:[#allocation2 + $0x8] sm:$0xff]
      %v1521 = vld [vmem:[#allocation2 + $0x10] sm:$0xff]
      %v1522 = vld [vmem:[#allocation2 + $0x18] sm:$0xff]
      %v1523 = vld [vmem:[#allocation2 + $0x20] sm:$0xff]
      %v1524 = vld [vmem:[#allocation2 + $0x28] sm:$0xff]
      %v1525 = vld [vmem:[#allocation2 + $0x30] sm:$0xff]
      %v1526 = vld [vmem:[#allocation2 + $0x38] sm:$0xff]
      %v1527 = vld [vmem:[#allocation2 + $0x40] sm:$0xff]
      %v1528 = vld [vmem:[#allocation2 + $0x48] sm:$0xff]
      %v1529 = vld [vmem:[#allocation2 + $0x50] sm:$0xff]
      %v1530 = vld [vmem:[#allocation2 + $0x58] sm:$0xff]
      %v1531 = vld [vmem:[#allocation2 + $0x60] sm:$0xff]
      %v1532 = vld [vmem:[#allocation2 + $0x68] sm:$0xff]
      %v1533 = vld [vmem:[#allocation2 + $0x70] sm:$0xff]
      %v1534 = vld [vmem:[#allocation2 + $0x78] sm:$0xff]
      %v1535 = vld [vmem:[#allocation2 + $0x80] sm:$0xff]
      %v1536 = vld [vmem:[#allocation2 + $0x88] sm:$0xff]
      %v1537 = vld [vmem:[#allocation2 + $0x90] sm:$0xff]
      %v1538 = vld [vmem:[#allocation2 + $0x98] sm:$0xff]
      %v1539 = vld [vmem:[#allocation2 + $0xa0] sm:$0xff]
      %v1540 = vld [vmem:[#allocation2 + $0xa8] sm:$0xff]
      %v1541 = vld [vmem:[#allocation2 + $0xb0] sm:$0xff]
      %v1542 = vld [vmem:[#allocation2 + $0xb8] sm:$0xff]
      %v1543 = vld [vmem:[#allocation2 + $0xc0] sm:$0xff]
      %v1544 = vld [vmem:[#allocation2 + $0xc8] sm:$0xff]
      %v1545 = vld [vmem:[#allocation2 + $0xd0] sm:$0xff]
      %v1546 = vld [vmem:[#allocation2 + $0xd8] sm:$0xff]
      %v1547 = vld [vmem:[#allocation2 + $0xe0] sm:$0xff]
      %v1548 = vld [vmem:[#allocation2 + $0xe8] sm:$0xff]
      %v1549 = vld [vmem:[#allocation2 + $0xf0] sm:$0xff]
      %v1550 = vld [vmem:[#allocation2 + $0xf8] sm:$0xff]
      %v1551 = vld [vmem:[#allocation2 + $0x100] sm:$0xff]
      %v1552 = vld [vmem:[#allocation2 + $0x108] sm:$0xff]
      %v1553 = vld [vmem:[#allocation2 + $0x110] sm:$0xff]
      %v1554 = vld [vmem:[#allocation2 + $0x118] sm:$0xff]
      %s1555 = scalar_lea.vmem %s1, 12
      %v1556 = vld [vmem:[%s1555] sm:$0xf]
      %v1558 = vsel %vm300, %v1483, 0
      %v1561 = vsel %vm300, %v1484, 0
      %v1564 = vsel %vm300, %v1485, 0
      %v1567 = vsel %vm300, %v1486, 0
      %v1570 = vsel %vm300, %v1487, 0
      %v1573 = vsel %vm300, %v1488, 0
      %v1576 = vsel %vm300, %v1489, 0
      %v1579 = vsel %vm300, %v1490, 0
      %v1582 = vsel %vm300, %v1491, 0
      %v1585 = vsel %vm300, %v1492, 0
      %v1588 = vsel %vm300, %v1493, 0
      %v1591 = vsel %vm300, %v1494, 0
      %v1594 = vsel %vm300, %v1495, 0
      %v1597 = vsel %vm300, %v1496, 0
      %v1600 = vsel %vm300, %v1497, 0
      %v1603 = vsel %vm300, %v1498, 0
      %v1606 = vsel %vm300, %v1499, 0
      %v1609 = vsel %vm300, %v1500, 0
      %v1612 = vsel %vm300, %v1501, 0
      %v1615 = vsel %vm300, %v1502, 0
      %v1618 = vsel %vm300, %v1503, 0
      %v1621 = vsel %vm300, %v1504, 0
      %v1624 = vsel %vm300, %v1505, 0
      %v1627 = vsel %vm300, %v1506, 0
      %v1630 = vsel %vm300, %v1507, 0
      %v1633 = vsel %vm300, %v1508, 0
      %v1636 = vsel %vm300, %v1509, 0
      %v1639 = vsel %vm300, %v1510, 0
      %v1642 = vsel %vm300, %v1511, 0
      %v1645 = vsel %vm300, %v1512, 0
      %v1648 = vsel %vm300, %v1513, 0
      %v1651 = vsel %vm300, %v1514, 0
      %v1654 = vsel %vm300, %v1515, 0
      %v1657 = vsel %vm300, %v1516, 0
      %v1660 = vsel %vm300, %v1517, 0
      %v1663 = vsel %vm300, %v1518, 0
      %v1666 = vsel %vm518, %v1556, 0
      %1668 = vmatpush.msra.mxu0 0.0
      %1669 = vmatpush.msra.mxu0 0.0
      %1670 = vmatpush.msra.mxu0 0.0
      %1671 = vmatpush.msra.mxu0 0.0
      %1672 = vmatpush.msra.mxu0 0.0
      %1673 = vmatpush.msra.mxu0 0.0
      %1674 = vmatpush.msra.mxu0 0.0
      %1675 = vmatpush.msra.mxu0 0.0
      %1676 = vmatpush.msra.mxu0 0.0
      %1677 = vmatpush.msra.mxu0 0.0
      %1678 = vmatpush.msra.mxu0 0.0
      %1679 = vmatpush.msra.mxu0 0.0
      %1680 = vmatpush.msra.mxu0 0.0
      %1681 = vmatpush.msra.mxu0 0.0
      %1682 = vmatpush.msra.mxu0 0.0
      %1683 = vmatpush.msra.mxu0 %v1666
      %1684 = vmatmul.f32.gmra.mxu0 %v1558
      %v1685 = vpop.f32.mrf.mxu0
      %v1686 = vadd.f32 0.0, %v1685
      %1687 = vmatmul.f32.gmra.mxu0 %v1561
      %v1688 = vpop.f32.mrf.mxu0
      %v1689 = vadd.f32 0.0, %v1688
      %1690 = vmatmul.f32.gmra.mxu0 %v1564
      %v1691 = vpop.f32.mrf.mxu0
      %v1692 = vadd.f32 0.0, %v1691
      %1693 = vmatmul.f32.gmra.mxu0 %v1567
      %v1694 = vpop.f32.mrf.mxu0
      %v1695 = vadd.f32 0.0, %v1694
      %1696 = vmatmul.f32.gmra.mxu0 %v1570
      %v1697 = vpop.f32.mrf.mxu0
      %v1698 = vadd.f32 0.0, %v1697
      %1699 = vmatmul.f32.gmra.mxu0 %v1573
      %v1700 = vpop.f32.mrf.mxu0
      %v1701 = vadd.f32 0.0, %v1700
      %1702 = vmatmul.f32.gmra.mxu0 %v1576
      %v1703 = vpop.f32.mrf.mxu0
      %v1704 = vadd.f32 0.0, %v1703
      %1705 = vmatmul.f32.gmra.mxu0 %v1579
      %v1706 = vpop.f32.mrf.mxu0
      %v1707 = vadd.f32 0.0, %v1706
      %1708 = vmatmul.f32.gmra.mxu0 %v1582
      %v1709 = vpop.f32.mrf.mxu0
      %v1710 = vadd.f32 0.0, %v1709
      %1711 = vmatmul.f32.gmra.mxu0 %v1585
      %v1712 = vpop.f32.mrf.mxu0
      %v1713 = vadd.f32 0.0, %v1712
      %1714 = vmatmul.f32.gmra.mxu0 %v1588
      %v1715 = vpop.f32.mrf.mxu0
      %v1716 = vadd.f32 0.0, %v1715
      %1717 = vmatmul.f32.gmra.mxu0 %v1591
      %v1718 = vpop.f32.mrf.mxu0
      %v1719 = vadd.f32 0.0, %v1718
      %1720 = vmatmul.f32.gmra.mxu0 %v1594
      %v1721 = vpop.f32.mrf.mxu0
      %v1722 = vadd.f32 0.0, %v1721
      %1723 = vmatmul.f32.gmra.mxu0 %v1597
      %v1724 = vpop.f32.mrf.mxu0
      %v1725 = vadd.f32 0.0, %v1724
      %1726 = vmatmul.f32.gmra.mxu0 %v1600
      %v1727 = vpop.f32.mrf.mxu0
      %v1728 = vadd.f32 0.0, %v1727
      %1729 = vmatmul.f32.gmra.mxu0 %v1603
      %v1730 = vpop.f32.mrf.mxu0
      %v1731 = vadd.f32 0.0, %v1730
      %1732 = vmatmul.f32.gmra.mxu0 %v1606
      %v1733 = vpop.f32.mrf.mxu0
      %v1734 = vadd.f32 0.0, %v1733
      %1735 = vmatmul.f32.gmra.mxu0 %v1609
      %v1736 = vpop.f32.mrf.mxu0
      %v1737 = vadd.f32 0.0, %v1736
      %1738 = vmatmul.f32.gmra.mxu0 %v1612
      %v1739 = vpop.f32.mrf.mxu0
      %v1740 = vadd.f32 0.0, %v1739
      %1741 = vmatmul.f32.gmra.mxu0 %v1615
      %v1742 = vpop.f32.mrf.mxu0
      %v1743 = vadd.f32 0.0, %v1742
      %1744 = vmatmul.f32.gmra.mxu0 %v1618
      %v1745 = vpop.f32.mrf.mxu0
      %v1746 = vadd.f32 0.0, %v1745
      %1747 = vmatmul.f32.gmra.mxu0 %v1621
      %v1748 = vpop.f32.mrf.mxu0
      %v1749 = vadd.f32 0.0, %v1748
      %1750 = vmatmul.f32.gmra.mxu0 %v1624
      %v1751 = vpop.f32.mrf.mxu0
      %v1752 = vadd.f32 0.0, %v1751
      %1753 = vmatmul.f32.gmra.mxu0 %v1627
      %v1754 = vpop.f32.mrf.mxu0
      %v1755 = vadd.f32 0.0, %v1754
      %1756 = vmatmul.f32.gmra.mxu0 %v1630
      %v1757 = vpop.f32.mrf.mxu0
      %v1758 = vadd.f32 0.0, %v1757
      %1759 = vmatmul.f32.gmra.mxu0 %v1633
      %v1760 = vpop.f32.mrf.mxu0
      %v1761 = vadd.f32 0.0, %v1760
      %1762 = vmatmul.f32.gmra.mxu0 %v1636
      %v1763 = vpop.f32.mrf.mxu0
      %v1764 = vadd.f32 0.0, %v1763
      %1765 = vmatmul.f32.gmra.mxu0 %v1639
      %v1766 = vpop.f32.mrf.mxu0
      %v1767 = vadd.f32 0.0, %v1766
      %1768 = vmatmul.f32.gmra.mxu0 %v1642
      %v1769 = vpop.f32.mrf.mxu0
      %v1770 = vadd.f32 0.0, %v1769
      %1771 = vmatmul.f32.gmra.mxu0 %v1645
      %v1772 = vpop.f32.mrf.mxu0
      %v1773 = vadd.f32 0.0, %v1772
      %1774 = vmatmul.f32.gmra.mxu0 %v1648
      %v1775 = vpop.f32.mrf.mxu0
      %v1776 = vadd.f32 0.0, %v1775
      %1777 = vmatmul.f32.gmra.mxu0 %v1651
      %v1778 = vpop.f32.mrf.mxu0
      %v1779 = vadd.f32 0.0, %v1778
      %1780 = vmatmul.f32.gmra.mxu0 %v1654
      %v1781 = vpop.f32.mrf.mxu0
      %v1782 = vadd.f32 0.0, %v1781
      %1783 = vmatmul.f32.gmra.mxu0 %v1657
      %v1784 = vpop.f32.mrf.mxu0
      %v1785 = vadd.f32 0.0, %v1784
      %1786 = vmatmul.f32.gmra.mxu0 %v1660
      %v1787 = vpop.f32.mrf.mxu0
      %v1788 = vadd.f32 0.0, %v1787
      %1789 = vmatmul.f32.gmra.mxu0 %v1663
      %v1790 = vpop.f32.mrf.mxu0
      %v1791 = vadd.f32 0.0, %v1790
      %1792 = vdwg.mxu0
      %v1793 = vadd.f32 %v1519, %v1686
      %v1794 = vadd.f32 %v1520, %v1689
      %v1795 = vadd.f32 %v1521, %v1692
      %v1796 = vadd.f32 %v1522, %v1695
      %v1797 = vadd.f32 %v1523, %v1698
      %v1798 = vadd.f32 %v1524, %v1701
      %v1799 = vadd.f32 %v1525, %v1704
      %v1800 = vadd.f32 %v1526, %v1707
      %v1801 = vadd.f32 %v1527, %v1710
      %v1802 = vadd.f32 %v1528, %v1713
      %v1803 = vadd.f32 %v1529, %v1716
      %v1804 = vadd.f32 %v1530, %v1719
      %v1805 = vadd.f32 %v1531, %v1722
      %v1806 = vadd.f32 %v1532, %v1725
      %v1807 = vadd.f32 %v1533, %v1728
      %v1808 = vadd.f32 %v1534, %v1731
      %v1809 = vadd.f32 %v1535, %v1734
      %v1810 = vadd.f32 %v1536, %v1737
      %v1811 = vadd.f32 %v1537, %v1740
      %v1812 = vadd.f32 %v1538, %v1743
      %v1813 = vadd.f32 %v1539, %v1746
      %v1814 = vadd.f32 %v1540, %v1749
      %v1815 = vadd.f32 %v1541, %v1752
      %v1816 = vadd.f32 %v1542, %v1755
      %v1817 = vadd.f32 %v1543, %v1758
      %v1818 = vadd.f32 %v1544, %v1761
      %v1819 = vadd.f32 %v1545, %v1764
      %v1820 = vadd.f32 %v1546, %v1767
      %v1821 = vadd.f32 %v1547, %v1770
      %v1822 = vadd.f32 %v1548, %v1773
      %v1823 = vadd.f32 %v1549, %v1776
      %v1824 = vadd.f32 %v1550, %v1779
      %v1825 = vadd.f32 %v1551, %v1782
      %v1826 = vadd.f32 %v1552, %v1785
      %v1827 = vadd.f32 %v1553, %v1788
      %v1828 = vadd.f32 %v1554, %v1791
      %1829 = vst.msk [vmem:[#allocation2] sm:$0xff] %vm300, %v1793
      %1830 = vst.msk [vmem:[#allocation2 + $0x8] sm:$0xff] %vm300, %v1794
      %1831 = vst.msk [vmem:[#allocation2 + $0x10] sm:$0xff] %vm300, %v1795
      %1832 = vst.msk [vmem:[#allocation2 + $0x18] sm:$0xff] %vm300, %v1796
      %1833 = vst.msk [vmem:[#allocation2 + $0x20] sm:$0xff] %vm300, %v1797
      %1834 = vst.msk [vmem:[#allocation2 + $0x28] sm:$0xff] %vm300, %v1798
      %1835 = vst.msk [vmem:[#allocation2 + $0x30] sm:$0xff] %vm300, %v1799
      %1836 = vst.msk [vmem:[#allocation2 + $0x38] sm:$0xff] %vm300, %v1800
      %1837 = vst.msk [vmem:[#allocation2 + $0x40] sm:$0xff] %vm300, %v1801
      %1838 = vst.msk [vmem:[#allocation2 + $0x48] sm:$0xff] %vm300, %v1802
      %1839 = vst.msk [vmem:[#allocation2 + $0x50] sm:$0xff] %vm300, %v1803
      %1840 = vst.msk [vmem:[#allocation2 + $0x58] sm:$0xff] %vm300, %v1804
      %1841 = vst.msk [vmem:[#allocation2 + $0x60] sm:$0xff] %vm300, %v1805
      %1842 = vst.msk [vmem:[#allocation2 + $0x68] sm:$0xff] %vm300, %v1806
      %1843 = vst.msk [vmem:[#allocation2 + $0x70] sm:$0xff] %vm300, %v1807
      %1844 = vst.msk [vmem:[#allocation2 + $0x78] sm:$0xff] %vm300, %v1808
      %1845 = vst.msk [vmem:[#allocation2 + $0x80] sm:$0xff] %vm300, %v1809
      %1846 = vst.msk [vmem:[#allocation2 + $0x88] sm:$0xff] %vm300, %v1810
      %1847 = vst.msk [vmem:[#allocation2 + $0x90] sm:$0xff] %vm300, %v1811
      %1848 = vst.msk [vmem:[#allocation2 + $0x98] sm:$0xff] %vm300, %v1812
      %1849 = vst.msk [vmem:[#allocation2 + $0xa0] sm:$0xff] %vm300, %v1813
      %1850 = vst.msk [vmem:[#allocation2 + $0xa8] sm:$0xff] %vm300, %v1814
      %1851 = vst.msk [vmem:[#allocation2 + $0xb0] sm:$0xff] %vm300, %v1815
      %1852 = vst.msk [vmem:[#allocation2 + $0xb8] sm:$0xff] %vm300, %v1816
      %1853 = vst.msk [vmem:[#allocation2 + $0xc0] sm:$0xff] %vm300, %v1817
      %1854 = vst.msk [vmem:[#allocation2 + $0xc8] sm:$0xff] %vm300, %v1818
      %1855 = vst.msk [vmem:[#allocation2 + $0xd0] sm:$0xff] %vm300, %v1819
      %1856 = vst.msk [vmem:[#allocation2 + $0xd8] sm:$0xff] %vm300, %v1820
      %1857 = vst.msk [vmem:[#allocation2 + $0xe0] sm:$0xff] %vm300, %v1821
      %1858 = vst.msk [vmem:[#allocation2 + $0xe8] sm:$0xff] %vm300, %v1822
      %1859 = vst.msk [vmem:[#allocation2 + $0xf0] sm:$0xff] %vm300, %v1823
      %1860 = vst.msk [vmem:[#allocation2 + $0xf8] sm:$0xff] %vm300, %v1824
      %1861 = vst.msk [vmem:[#allocation2 + $0x100] sm:$0xff] %vm300, %v1825
      %1862 = vst.msk [vmem:[#allocation2 + $0x108] sm:$0xff] %vm300, %v1826
      %1863 = vst.msk [vmem:[#allocation2 + $0x110] sm:$0xff] %vm300, %v1827
      %1864 = vst.msk [vmem:[#allocation2 + $0x118] sm:$0xff] %vm300, %v1828
      %v1865 = vld [vmem:[%s283 + $0x13] sm:$0xff]
      %v1866 = vld [vmem:[%s283 + $0x1b] sm:$0xff]
      %v1867 = vld [vmem:[%s283 + $0x23] sm:$0xff]
      %v1868 = vld [vmem:[%s283 + $0x2b] sm:$0xff]
      %v1869 = vld [vmem:[%s283 + $0x33] sm:$0xff]
      %v1870 = vld [vmem:[%s283 + $0x3b] sm:$0xff]
      %v1871 = vld [vmem:[%s283 + $0x43] sm:$0xff]
      %v1872 = vld [vmem:[%s283 + $0x4b] sm:$0xff]
      %v1873 = vld [vmem:[%s283 + $0x53] sm:$0xff]
      %v1874 = vld [vmem:[%s283 + $0x5b] sm:$0xff]
      %v1875 = vld [vmem:[%s283 + $0x63] sm:$0xff]
      %v1876 = vld [vmem:[%s283 + $0x6b] sm:$0xff]
      %v1877 = vld [vmem:[%s283 + $0x73] sm:$0xff]
      %v1878 = vld [vmem:[%s283 + $0x7b] sm:$0xff]
      %v1879 = vld [vmem:[%s283 + $0x83] sm:$0xff]
      %v1880 = vld [vmem:[%s283 + $0x8b] sm:$0xff]
      %v1881 = vld [vmem:[%s283 + $0x93] sm:$0xff]
      %v1882 = vld [vmem:[%s283 + $0x9b] sm:$0xff]
      %v1883 = vld [vmem:[%s283 + $0xa3] sm:$0xff]
      %v1884 = vld [vmem:[%s283 + $0xab] sm:$0xff]
      %v1885 = vld [vmem:[%s283 + $0xb3] sm:$0xff]
      %v1886 = vld [vmem:[%s283 + $0xbb] sm:$0xff]
      %v1887 = vld [vmem:[%s283 + $0xc3] sm:$0xff]
      %v1888 = vld [vmem:[%s283 + $0xcb] sm:$0xff]
      %v1889 = vld [vmem:[%s283 + $0xd3] sm:$0xff]
      %v1890 = vld [vmem:[%s283 + $0xdb] sm:$0xff]
      %v1891 = vld [vmem:[%s283 + $0xe3] sm:$0xff]
      %v1892 = vld [vmem:[%s283 + $0xeb] sm:$0xff]
      %v1893 = vld [vmem:[%s283 + $0xf3] sm:$0xff]
      %v1894 = vld [vmem:[%s283 + $0xfb] sm:$0xff]
      %v1895 = vld [vmem:[%s283 + $0x103] sm:$0xff]
      %v1896 = vld [vmem:[%s283 + $0x10b] sm:$0xff]
      %v1897 = vld [vmem:[%s283 + $0x113] sm:$0xff]
      %v1898 = vld [vmem:[%s283 + $0x11b] sm:$0xff]
      %v1899 = vld [vmem:[%s283 + $0x123] sm:$0xff]
      %v1900 = vld [vmem:[%s283 + $0x12b] sm:$0xff]
      %v1901 = vld [vmem:[#allocation2] sm:$0xff]
      %v1902 = vld [vmem:[#allocation2 + $0x8] sm:$0xff]
      %v1903 = vld [vmem:[#allocation2 + $0x10] sm:$0xff]
      %v1904 = vld [vmem:[#allocation2 + $0x18] sm:$0xff]
      %v1905 = vld [vmem:[#allocation2 + $0x20] sm:$0xff]
      %v1906 = vld [vmem:[#allocation2 + $0x28] sm:$0xff]
      %v1907 = vld [vmem:[#allocation2 + $0x30] sm:$0xff]
      %v1908 = vld [vmem:[#allocation2 + $0x38] sm:$0xff]
      %v1909 = vld [vmem:[#allocation2 + $0x40] sm:$0xff]
      %v1910 = vld [vmem:[#allocation2 + $0x48] sm:$0xff]
      %v1911 = vld [vmem:[#allocation2 + $0x50] sm:$0xff]
      %v1912 = vld [vmem:[#allocation2 + $0x58] sm:$0xff]
      %v1913 = vld [vmem:[#allocation2 + $0x60] sm:$0xff]
      %v1914 = vld [vmem:[#allocation2 + $0x68] sm:$0xff]
      %v1915 = vld [vmem:[#allocation2 + $0x70] sm:$0xff]
      %v1916 = vld [vmem:[#allocation2 + $0x78] sm:$0xff]
      %v1917 = vld [vmem:[#allocation2 + $0x80] sm:$0xff]
      %v1918 = vld [vmem:[#allocation2 + $0x88] sm:$0xff]
      %v1919 = vld [vmem:[#allocation2 + $0x90] sm:$0xff]
      %v1920 = vld [vmem:[#allocation2 + $0x98] sm:$0xff]
      %v1921 = vld [vmem:[#allocation2 + $0xa0] sm:$0xff]
      %v1922 = vld [vmem:[#allocation2 + $0xa8] sm:$0xff]
      %v1923 = vld [vmem:[#allocation2 + $0xb0] sm:$0xff]
      %v1924 = vld [vmem:[#allocation2 + $0xb8] sm:$0xff]
      %v1925 = vld [vmem:[#allocation2 + $0xc0] sm:$0xff]
      %v1926 = vld [vmem:[#allocation2 + $0xc8] sm:$0xff]
      %v1927 = vld [vmem:[#allocation2 + $0xd0] sm:$0xff]
      %v1928 = vld [vmem:[#allocation2 + $0xd8] sm:$0xff]
      %v1929 = vld [vmem:[#allocation2 + $0xe0] sm:$0xff]
      %v1930 = vld [vmem:[#allocation2 + $0xe8] sm:$0xff]
      %v1931 = vld [vmem:[#allocation2 + $0xf0] sm:$0xff]
      %v1932 = vld [vmem:[#allocation2 + $0xf8] sm:$0xff]
      %v1933 = vld [vmem:[#allocation2 + $0x100] sm:$0xff]
      %v1934 = vld [vmem:[#allocation2 + $0x108] sm:$0xff]
      %v1935 = vld [vmem:[#allocation2 + $0x110] sm:$0xff]
      %v1936 = vld [vmem:[#allocation2 + $0x118] sm:$0xff]
      %s1937 = scalar_lea.vmem %s1, 16
      %v1938 = vld [vmem:[%s1937] sm:$0xf]
      %v1940 = vsel %vm300, %v1865, 0
      %v1943 = vsel %vm300, %v1866, 0
      %v1946 = vsel %vm300, %v1867, 0
      %v1949 = vsel %vm300, %v1868, 0
      %v1952 = vsel %vm300, %v1869, 0
      %v1955 = vsel %vm300, %v1870, 0
      %v1958 = vsel %vm300, %v1871, 0
      %v1961 = vsel %vm300, %v1872, 0
      %v1964 = vsel %vm300, %v1873, 0
      %v1967 = vsel %vm300, %v1874, 0
      %v1970 = vsel %vm300, %v1875, 0
      %v1973 = vsel %vm300, %v1876, 0
      %v1976 = vsel %vm300, %v1877, 0
      %v1979 = vsel %vm300, %v1878, 0
      %v1982 = vsel %vm300, %v1879, 0
      %v1985 = vsel %vm300, %v1880, 0
      %v1988 = vsel %vm300, %v1881, 0
      %v1991 = vsel %vm300, %v1882, 0
      %v1994 = vsel %vm300, %v1883, 0
      %v1997 = vsel %vm300, %v1884, 0
      %v2000 = vsel %vm300, %v1885, 0
      %v2003 = vsel %vm300, %v1886, 0
      %v2006 = vsel %vm300, %v1887, 0
      %v2009 = vsel %vm300, %v1888, 0
      %v2012 = vsel %vm300, %v1889, 0
      %v2015 = vsel %vm300, %v1890, 0
      %v2018 = vsel %vm300, %v1891, 0
      %v2021 = vsel %vm300, %v1892, 0
      %v2024 = vsel %vm300, %v1893, 0
      %v2027 = vsel %vm300, %v1894, 0
      %v2030 = vsel %vm300, %v1895, 0
      %v2033 = vsel %vm300, %v1896, 0
      %v2036 = vsel %vm300, %v1897, 0
      %v2039 = vsel %vm300, %v1898, 0
      %v2042 = vsel %vm300, %v1899, 0
      %v2045 = vsel %vm300, %v1900, 0
      %v2048 = vsel %vm518, %v1938, 0
      %2050 = vmatpush.msra.mxu0 0.0
      %2051 = vmatpush.msra.mxu0 0.0
      %2052 = vmatpush.msra.mxu0 0.0
      %2053 = vmatpush.msra.mxu0 0.0
      %2054 = vmatpush.msra.mxu0 0.0
      %2055 = vmatpush.msra.mxu0 0.0
      %2056 = vmatpush.msra.mxu0 0.0
      %2057 = vmatpush.msra.mxu0 0.0
      %2058 = vmatpush.msra.mxu0 0.0
      %2059 = vmatpush.msra.mxu0 0.0
      %2060 = vmatpush.msra.mxu0 0.0
      %2061 = vmatpush.msra.mxu0 0.0
      %2062 = vmatpush.msra.mxu0 0.0
      %2063 = vmatpush.msra.mxu0 0.0
      %2064 = vmatpush.msra.mxu0 0.0
      %2065 = vmatpush.msra.mxu0 %v2048
      %2066 = vmatmul.f32.gmra.mxu0 %v1940
      %v2067 = vpop.f32.mrf.mxu0
      %v2068 = vadd.f32 0.0, %v2067
      %2069 = vmatmul.f32.gmra.mxu0 %v1943
      %v2070 = vpop.f32.mrf.mxu0
      %v2071 = vadd.f32 0.0, %v2070
      %2072 = vmatmul.f32.gmra.mxu0 %v1946
      %v2073 = vpop.f32.mrf.mxu0
      %v2074 = vadd.f32 0.0, %v2073
      %2075 = vmatmul.f32.gmra.mxu0 %v1949
      %v2076 = vpop.f32.mrf.mxu0
      %v2077 = vadd.f32 0.0, %v2076
      %2078 = vmatmul.f32.gmra.mxu0 %v1952
      %v2079 = vpop.f32.mrf.mxu0
      %v2080 = vadd.f32 0.0, %v2079
      %2081 = vmatmul.f32.gmra.mxu0 %v1955
      %v2082 = vpop.f32.mrf.mxu0
      %v2083 = vadd.f32 0.0, %v2082
      %2084 = vmatmul.f32.gmra.mxu0 %v1958
      %v2085 = vpop.f32.mrf.mxu0
      %v2086 = vadd.f32 0.0, %v2085
      %2087 = vmatmul.f32.gmra.mxu0 %v1961
      %v2088 = vpop.f32.mrf.mxu0
      %v2089 = vadd.f32 0.0, %v2088
      %2090 = vmatmul.f32.gmra.mxu0 %v1964
      %v2091 = vpop.f32.mrf.mxu0
      %v2092 = vadd.f32 0.0, %v2091
      %2093 = vmatmul.f32.gmra.mxu0 %v1967
      %v2094 = vpop.f32.mrf.mxu0
      %v2095 = vadd.f32 0.0, %v2094
      %2096 = vmatmul.f32.gmra.mxu0 %v1970
      %v2097 = vpop.f32.mrf.mxu0
      %v2098 = vadd.f32 0.0, %v2097
      %2099 = vmatmul.f32.gmra.mxu0 %v1973
      %v2100 = vpop.f32.mrf.mxu0
      %v2101 = vadd.f32 0.0, %v2100
      %2102 = vmatmul.f32.gmra.mxu0 %v1976
      %v2103 = vpop.f32.mrf.mxu0
      %v2104 = vadd.f32 0.0, %v2103
      %2105 = vmatmul.f32.gmra.mxu0 %v1979
      %v2106 = vpop.f32.mrf.mxu0
      %v2107 = vadd.f32 0.0, %v2106
      %2108 = vmatmul.f32.gmra.mxu0 %v1982
      %v2109 = vpop.f32.mrf.mxu0
      %v2110 = vadd.f32 0.0, %v2109
      %2111 = vmatmul.f32.gmra.mxu0 %v1985
      %v2112 = vpop.f32.mrf.mxu0
      %v2113 = vadd.f32 0.0, %v2112
      %2114 = vmatmul.f32.gmra.mxu0 %v1988
      %v2115 = vpop.f32.mrf.mxu0
      %v2116 = vadd.f32 0.0, %v2115
      %2117 = vmatmul.f32.gmra.mxu0 %v1991
      %v2118 = vpop.f32.mrf.mxu0
      %v2119 = vadd.f32 0.0, %v2118
      %2120 = vmatmul.f32.gmra.mxu0 %v1994
      %v2121 = vpop.f32.mrf.mxu0
      %v2122 = vadd.f32 0.0, %v2121
      %2123 = vmatmul.f32.gmra.mxu0 %v1997
      %v2124 = vpop.f32.mrf.mxu0
      %v2125 = vadd.f32 0.0, %v2124
      %2126 = vmatmul.f32.gmra.mxu0 %v2000
      %v2127 = vpop.f32.mrf.mxu0
      %v2128 = vadd.f32 0.0, %v2127
      %2129 = vmatmul.f32.gmra.mxu0 %v2003
      %v2130 = vpop.f32.mrf.mxu0
      %v2131 = vadd.f32 0.0, %v2130
      %2132 = vmatmul.f32.gmra.mxu0 %v2006
      %v2133 = vpop.f32.mrf.mxu0
      %v2134 = vadd.f32 0.0, %v2133
      %2135 = vmatmul.f32.gmra.mxu0 %v2009
      %v2136 = vpop.f32.mrf.mxu0
      %v2137 = vadd.f32 0.0, %v2136
      %2138 = vmatmul.f32.gmra.mxu0 %v2012
      %v2139 = vpop.f32.mrf.mxu0
      %v2140 = vadd.f32 0.0, %v2139
      %2141 = vmatmul.f32.gmra.mxu0 %v2015
      %v2142 = vpop.f32.mrf.mxu0
      %v2143 = vadd.f32 0.0, %v2142
      %2144 = vmatmul.f32.gmra.mxu0 %v2018
      %v2145 = vpop.f32.mrf.mxu0
      %v2146 = vadd.f32 0.0, %v2145
      %2147 = vmatmul.f32.gmra.mxu0 %v2021
      %v2148 = vpop.f32.mrf.mxu0
      %v2149 = vadd.f32 0.0, %v2148
      %2150 = vmatmul.f32.gmra.mxu0 %v2024
      %v2151 = vpop.f32.mrf.mxu0
      %v2152 = vadd.f32 0.0, %v2151
      %2153 = vmatmul.f32.gmra.mxu0 %v2027
      %v2154 = vpop.f32.mrf.mxu0
      %v2155 = vadd.f32 0.0, %v2154
      %2156 = vmatmul.f32.gmra.mxu0 %v2030
      %v2157 = vpop.f32.mrf.mxu0
      %v2158 = vadd.f32 0.0, %v2157
      %2159 = vmatmul.f32.gmra.mxu0 %v2033
      %v2160 = vpop.f32.mrf.mxu0
      %v2161 = vadd.f32 0.0, %v2160
      %2162 = vmatmul.f32.gmra.mxu0 %v2036
      %v2163 = vpop.f32.mrf.mxu0
      %v2164 = vadd.f32 0.0, %v2163
      %2165 = vmatmul.f32.gmra.mxu0 %v2039
      %v2166 = vpop.f32.mrf.mxu0
      %v2167 = vadd.f32 0.0, %v2166
      %2168 = vmatmul.f32.gmra.mxu0 %v2042
      %v2169 = vpop.f32.mrf.mxu0
      %v2170 = vadd.f32 0.0, %v2169
      %2171 = vmatmul.f32.gmra.mxu0 %v2045
      %v2172 = vpop.f32.mrf.mxu0
      %v2173 = vadd.f32 0.0, %v2172
      %2174 = vdwg.mxu0
      %v2175 = vadd.f32 %v1901, %v2068
      %v2176 = vadd.f32 %v1902, %v2071
      %v2177 = vadd.f32 %v1903, %v2074
      %v2178 = vadd.f32 %v1904, %v2077
      %v2179 = vadd.f32 %v1905, %v2080
      %v2180 = vadd.f32 %v1906, %v2083
      %v2181 = vadd.f32 %v1907, %v2086
      %v2182 = vadd.f32 %v1908, %v2089
      %v2183 = vadd.f32 %v1909, %v2092
      %v2184 = vadd.f32 %v1910, %v2095
      %v2185 = vadd.f32 %v1911, %v2098
      %v2186 = vadd.f32 %v1912, %v2101
      %v2187 = vadd.f32 %v1913, %v2104
      %v2188 = vadd.f32 %v1914, %v2107
      %v2189 = vadd.f32 %v1915, %v2110
      %v2190 = vadd.f32 %v1916, %v2113
      %v2191 = vadd.f32 %v1917, %v2116
      %v2192 = vadd.f32 %v1918, %v2119
      %v2193 = vadd.f32 %v1919, %v2122
      %v2194 = vadd.f32 %v1920, %v2125
      %v2195 = vadd.f32 %v1921, %v2128
      %v2196 = vadd.f32 %v1922, %v2131
      %v2197 = vadd.f32 %v1923, %v2134
      %v2198 = vadd.f32 %v1924, %v2137
      %v2199 = vadd.f32 %v1925, %v2140
      %v2200 = vadd.f32 %v1926, %v2143
      %v2201 = vadd.f32 %v1927, %v2146
      %v2202 = vadd.f32 %v1928, %v2149
      %v2203 = vadd.f32 %v1929, %v2152
      %v2204 = vadd.f32 %v1930, %v2155
      %v2205 = vadd.f32 %v1931, %v2158
      %v2206 = vadd.f32 %v1932, %v2161
      %v2207 = vadd.f32 %v1933, %v2164
      %v2208 = vadd.f32 %v1934, %v2167
      %v2209 = vadd.f32 %v1935, %v2170
      %v2210 = vadd.f32 %v1936, %v2173
      %2211 = vst.msk [vmem:[#allocation2] sm:$0xff] %vm300, %v2175
      %2212 = vst.msk [vmem:[#allocation2 + $0x8] sm:$0xff] %vm300, %v2176
      %2213 = vst.msk [vmem:[#allocation2 + $0x10] sm:$0xff] %vm300, %v2177
      %2214 = vst.msk [vmem:[#allocation2 + $0x18] sm:$0xff] %vm300, %v2178
      %2215 = vst.msk [vmem:[#allocation2 + $0x20] sm:$0xff] %vm300, %v2179
      %2216 = vst.msk [vmem:[#allocation2 + $0x28] sm:$0xff] %vm300, %v2180
      %2217 = vst.msk [vmem:[#allocation2 + $0x30] sm:$0xff] %vm300, %v2181
      %2218 = vst.msk [vmem:[#allocation2 + $0x38] sm:$0xff] %vm300, %v2182
      %2219 = vst.msk [vmem:[#allocation2 + $0x40] sm:$0xff] %vm300, %v2183
      %2220 = vst.msk [vmem:[#allocation2 + $0x48] sm:$0xff] %vm300, %v2184
      %2221 = vst.msk [vmem:[#allocation2 + $0x50] sm:$0xff] %vm300, %v2185
      %2222 = vst.msk [vmem:[#allocation2 + $0x58] sm:$0xff] %vm300, %v2186
      %2223 = vst.msk [vmem:[#allocation2 + $0x60] sm:$0xff] %vm300, %v2187
      %2224 = vst.msk [vmem:[#allocation2 + $0x68] sm:$0xff] %vm300, %v2188
      %2225 = vst.msk [vmem:[#allocation2 + $0x70] sm:$0xff] %vm300, %v2189
      %2226 = vst.msk [vmem:[#allocation2 + $0x78] sm:$0xff] %vm300, %v2190
      %2227 = vst.msk [vmem:[#allocation2 + $0x80] sm:$0xff] %vm300, %v2191
      %2228 = vst.msk [vmem:[#allocation2 + $0x88] sm:$0xff] %vm300, %v2192
      %2229 = vst.msk [vmem:[#allocation2 + $0x90] sm:$0xff] %vm300, %v2193
      %2230 = vst.msk [vmem:[#allocation2 + $0x98] sm:$0xff] %vm300, %v2194
      %2231 = vst.msk [vmem:[#allocation2 + $0xa0] sm:$0xff] %vm300, %v2195
      %2232 = vst.msk [vmem:[#allocation2 + $0xa8] sm:$0xff] %vm300, %v2196
      %2233 = vst.msk [vmem:[#allocation2 + $0xb0] sm:$0xff] %vm300, %v2197
      %2234 = vst.msk [vmem:[#allocation2 + $0xb8] sm:$0xff] %vm300, %v2198
      %2235 = vst.msk [vmem:[#allocation2 + $0xc0] sm:$0xff] %vm300, %v2199
      %2236 = vst.msk [vmem:[#allocation2 + $0xc8] sm:$0xff] %vm300, %v2200
      %2237 = vst.msk [vmem:[#allocation2 + $0xd0] sm:$0xff] %vm300, %v2201
      %2238 = vst.msk [vmem:[#allocation2 + $0xd8] sm:$0xff] %vm300, %v2202
      %2239 = vst.msk [vmem:[#allocation2 + $0xe0] sm:$0xff] %vm300, %v2203
      %2240 = vst.msk [vmem:[#allocation2 + $0xe8] sm:$0xff] %vm300, %v2204
      %2241 = vst.msk [vmem:[#allocation2 + $0xf0] sm:$0xff] %vm300, %v2205
      %2242 = vst.msk [vmem:[#allocation2 + $0xf8] sm:$0xff] %vm300, %v2206
      %2243 = vst.msk [vmem:[#allocation2 + $0x100] sm:$0xff] %vm300, %v2207
      %2244 = vst.msk [vmem:[#allocation2 + $0x108] sm:$0xff] %vm300, %v2208
      %2245 = vst.msk [vmem:[#allocation2 + $0x110] sm:$0xff] %vm300, %v2209
      %2246 = vst.msk [vmem:[#allocation2 + $0x118] sm:$0xff] %vm300, %v2210
      %v2247 = vld [vmem:[%s283 + $0x14] sm:$0xff]
      %v2248 = vld [vmem:[%s283 + $0x1c] sm:$0xff]
      %v2249 = vld [vmem:[%s283 + $0x24] sm:$0xff]
      %v2250 = vld [vmem:[%s283 + $0x2c] sm:$0xff]
      %v2251 = vld [vmem:[%s283 + $0x34] sm:$0xff]
      %v2252 = vld [vmem:[%s283 + $0x3c] sm:$0xff]
      %v2253 = vld [vmem:[%s283 + $0x44] sm:$0xff]
      %v2254 = vld [vmem:[%s283 + $0x4c] sm:$0xff]
      %v2255 = vld [vmem:[%s283 + $0x54] sm:$0xff]
      %v2256 = vld [vmem:[%s283 + $0x5c] sm:$0xff]
      %v2257 = vld [vmem:[%s283 + $0x64] sm:$0xff]
      %v2258 = vld [vmem:[%s283 + $0x6c] sm:$0xff]
      %v2259 = vld [vmem:[%s283 + $0x74] sm:$0xff]
      %v2260 = vld [vmem:[%s283 + $0x7c] sm:$0xff]
      %v2261 = vld [vmem:[%s283 + $0x84] sm:$0xff]
      %v2262 = vld [vmem:[%s283 + $0x8c] sm:$0xff]
      %v2263 = vld [vmem:[%s283 + $0x94] sm:$0xff]
      %v2264 = vld [vmem:[%s283 + $0x9c] sm:$0xff]
      %v2265 = vld [vmem:[%s283 + $0xa4] sm:$0xff]
      %v2266 = vld [vmem:[%s283 + $0xac] sm:$0xff]
      %v2267 = vld [vmem:[%s283 + $0xb4] sm:$0xff]
      %v2268 = vld [vmem:[%s283 + $0xbc] sm:$0xff]
      %v2269 = vld [vmem:[%s283 + $0xc4] sm:$0xff]
      %v2270 = vld [vmem:[%s283 + $0xcc] sm:$0xff]
      %v2271 = vld [vmem:[%s283 + $0xd4] sm:$0xff]
      %v2272 = vld [vmem:[%s283 + $0xdc] sm:$0xff]
      %v2273 = vld [vmem:[%s283 + $0xe4] sm:$0xff]
      %v2274 = vld [vmem:[%s283 + $0xec] sm:$0xff]
      %v2275 = vld [vmem:[%s283 + $0xf4] sm:$0xff]
      %v2276 = vld [vmem:[%s283 + $0xfc] sm:$0xff]
      %v2277 = vld [vmem:[%s283 + $0x104] sm:$0xff]
      %v2278 = vld [vmem:[%s283 + $0x10c] sm:$0xff]
      %v2279 = vld [vmem:[%s283 + $0x114] sm:$0xff]
      %v2280 = vld [vmem:[%s283 + $0x11c] sm:$0xff]
      %v2281 = vld [vmem:[%s283 + $0x124] sm:$0xff]
      %v2282 = vld [vmem:[%s283 + $0x12c] sm:$0xff]
      %v2283 = vld [vmem:[#allocation2] sm:$0xff]
      %v2284 = vld [vmem:[#allocation2 + $0x8] sm:$0xff]
      %v2285 = vld [vmem:[#allocation2 + $0x10] sm:$0xff]
      %v2286 = vld [vmem:[#allocation2 + $0x18] sm:$0xff]
      %v2287 = vld [vmem:[#allocation2 + $0x20] sm:$0xff]
      %v2288 = vld [vmem:[#allocation2 + $0x28] sm:$0xff]
      %v2289 = vld [vmem:[#allocation2 + $0x30] sm:$0xff]
      %v2290 = vld [vmem:[#allocation2 + $0x38] sm:$0xff]
      %v2291 = vld [vmem:[#allocation2 + $0x40] sm:$0xff]
      %v2292 = vld [vmem:[#allocation2 + $0x48] sm:$0xff]
      %v2293 = vld [vmem:[#allocation2 + $0x50] sm:$0xff]
      %v2294 = vld [vmem:[#allocation2 + $0x58] sm:$0xff]
      %v2295 = vld [vmem:[#allocation2 + $0x60] sm:$0xff]
      %v2296 = vld [vmem:[#allocation2 + $0x68] sm:$0xff]
      %v2297 = vld [vmem:[#allocation2 + $0x70] sm:$0xff]
      %v2298 = vld [vmem:[#allocation2 + $0x78] sm:$0xff]
      %v2299 = vld [vmem:[#allocation2 + $0x80] sm:$0xff]
      %v2300 = vld [vmem:[#allocation2 + $0x88] sm:$0xff]
      %v2301 = vld [vmem:[#allocation2 + $0x90] sm:$0xff]
      %v2302 = vld [vmem:[#allocation2 + $0x98] sm:$0xff]
      %v2303 = vld [vmem:[#allocation2 + $0xa0] sm:$0xff]
      %v2304 = vld [vmem:[#allocation2 + $0xa8] sm:$0xff]
      %v2305 = vld [vmem:[#allocation2 + $0xb0] sm:$0xff]
      %v2306 = vld [vmem:[#allocation2 + $0xb8] sm:$0xff]
      %v2307 = vld [vmem:[#allocation2 + $0xc0] sm:$0xff]
      %v2308 = vld [vmem:[#allocation2 + $0xc8] sm:$0xff]
      %v2309 = vld [vmem:[#allocation2 + $0xd0] sm:$0xff]
      %v2310 = vld [vmem:[#allocation2 + $0xd8] sm:$0xff]
      %v2311 = vld [vmem:[#allocation2 + $0xe0] sm:$0xff]
      %v2312 = vld [vmem:[#allocation2 + $0xe8] sm:$0xff]
      %v2313 = vld [vmem:[#allocation2 + $0xf0] sm:$0xff]
      %v2314 = vld [vmem:[#allocation2 + $0xf8] sm:$0xff]
      %v2315 = vld [vmem:[#allocation2 + $0x100] sm:$0xff]
      %v2316 = vld [vmem:[#allocation2 + $0x108] sm:$0xff]
      %v2317 = vld [vmem:[#allocation2 + $0x110] sm:$0xff]
      %v2318 = vld [vmem:[#allocation2 + $0x118] sm:$0xff]
      %s2319 = scalar_lea.vmem %s1, 20
      %v2320 = vld [vmem:[%s2319] sm:$0xf]
      %v2322 = vsel %vm300, %v2247, 0
      %v2325 = vsel %vm300, %v2248, 0
      %v2328 = vsel %vm300, %v2249, 0
      %v2331 = vsel %vm300, %v2250, 0
      %v2334 = vsel %vm300, %v2251, 0
      %v2337 = vsel %vm300, %v2252, 0
      %v2340 = vsel %vm300, %v2253, 0
      %v2343 = vsel %vm300, %v2254, 0
      %v2346 = vsel %vm300, %v2255, 0
      %v2349 = vsel %vm300, %v2256, 0
      %v2352 = vsel %vm300, %v2257, 0
      %v2355 = vsel %vm300, %v2258, 0
      %v2358 = vsel %vm300, %v2259, 0
      %v2361 = vsel %vm300, %v2260, 0
      %v2364 = vsel %vm300, %v2261, 0
      %v2367 = vsel %vm300, %v2262, 0
      %v2370 = vsel %vm300, %v2263, 0
      %v2373 = vsel %vm300, %v2264, 0
      %v2376 = vsel %vm300, %v2265, 0
      %v2379 = vsel %vm300, %v2266, 0
      %v2382 = vsel %vm300, %v2267, 0
      %v2385 = vsel %vm300, %v2268, 0
      %v2388 = vsel %vm300, %v2269, 0
      %v2391 = vsel %vm300, %v2270, 0
      %v2394 = vsel %vm300, %v2271, 0
      %v2397 = vsel %vm300, %v2272, 0
      %v2400 = vsel %vm300, %v2273, 0
      %v2403 = vsel %vm300, %v2274, 0
      %v2406 = vsel %vm300, %v2275, 0
      %v2409 = vsel %vm300, %v2276, 0
      %v2412 = vsel %vm300, %v2277, 0
      %v2415 = vsel %vm300, %v2278, 0
      %v2418 = vsel %vm300, %v2279, 0
      %v2421 = vsel %vm300, %v2280, 0
      %v2424 = vsel %vm300, %v2281, 0
      %v2427 = vsel %vm300, %v2282, 0
      %v2430 = vsel %vm518, %v2320, 0
      %2432 = vmatpush.msra.mxu0 0.0
      %2433 = vmatpush.msra.mxu0 0.0
      %2434 = vmatpush.msra.mxu0 0.0
      %2435 = vmatpush.msra.mxu0 0.0
      %2436 = vmatpush.msra.mxu0 0.0
      %2437 = vmatpush.msra.mxu0 0.0
      %2438 = vmatpush.msra.mxu0 0.0
      %2439 = vmatpush.msra.mxu0 0.0
      %2440 = vmatpush.msra.mxu0 0.0
      %2441 = vmatpush.msra.mxu0 0.0
      %2442 = vmatpush.msra.mxu0 0.0
      %2443 = vmatpush.msra.mxu0 0.0
      %2444 = vmatpush.msra.mxu0 0.0
      %2445 = vmatpush.msra.mxu0 0.0
      %2446 = vmatpush.msra.mxu0 0.0
      %2447 = vmatpush.msra.mxu0 %v2430
      %2448 = vmatmul.f32.gmra.mxu0 %v2322
      %v2449 = vpop.f32.mrf.mxu0
      %v2450 = vadd.f32 0.0, %v2449
      %2451 = vmatmul.f32.gmra.mxu0 %v2325
      %v2452 = vpop.f32.mrf.mxu0
      %v2453 = vadd.f32 0.0, %v2452
      %2454 = vmatmul.f32.gmra.mxu0 %v2328
      %v2455 = vpop.f32.mrf.mxu0
      %v2456 = vadd.f32 0.0, %v2455
      %2457 = vmatmul.f32.gmra.mxu0 %v2331
      %v2458 = vpop.f32.mrf.mxu0
      %v2459 = vadd.f32 0.0, %v2458
      %2460 = vmatmul.f32.gmra.mxu0 %v2334
      %v2461 = vpop.f32.mrf.mxu0
      %v2462 = vadd.f32 0.0, %v2461
      %2463 = vmatmul.f32.gmra.mxu0 %v2337
      %v2464 = vpop.f32.mrf.mxu0
      %v2465 = vadd.f32 0.0, %v2464
      %2466 = vmatmul.f32.gmra.mxu0 %v2340
      %v2467 = vpop.f32.mrf.mxu0
      %v2468 = vadd.f32 0.0, %v2467
      %2469 = vmatmul.f32.gmra.mxu0 %v2343
      %v2470 = vpop.f32.mrf.mxu0
      %v2471 = vadd.f32 0.0, %v2470
      %2472 = vmatmul.f32.gmra.mxu0 %v2346
      %v2473 = vpop.f32.mrf.mxu0
      %v2474 = vadd.f32 0.0, %v2473
      %2475 = vmatmul.f32.gmra.mxu0 %v2349
      %v2476 = vpop.f32.mrf.mxu0
      %v2477 = vadd.f32 0.0, %v2476
      %2478 = vmatmul.f32.gmra.mxu0 %v2352
      %v2479 = vpop.f32.mrf.mxu0
      %v2480 = vadd.f32 0.0, %v2479
      %2481 = vmatmul.f32.gmra.mxu0 %v2355
      %v2482 = vpop.f32.mrf.mxu0
      %v2483 = vadd.f32 0.0, %v2482
      %2484 = vmatmul.f32.gmra.mxu0 %v2358
      %v2485 = vpop.f32.mrf.mxu0
      %v2486 = vadd.f32 0.0, %v2485
      %2487 = vmatmul.f32.gmra.mxu0 %v2361
      %v2488 = vpop.f32.mrf.mxu0
      %v2489 = vadd.f32 0.0, %v2488
      %2490 = vmatmul.f32.gmra.mxu0 %v2364
      %v2491 = vpop.f32.mrf.mxu0
      %v2492 = vadd.f32 0.0, %v2491
      %2493 = vmatmul.f32.gmra.mxu0 %v2367
      %v2494 = vpop.f32.mrf.mxu0
      %v2495 = vadd.f32 0.0, %v2494
      %2496 = vmatmul.f32.gmra.mxu0 %v2370
      %v2497 = vpop.f32.mrf.mxu0
      %v2498 = vadd.f32 0.0, %v2497
      %2499 = vmatmul.f32.gmra.mxu0 %v2373
      %v2500 = vpop.f32.mrf.mxu0
      %v2501 = vadd.f32 0.0, %v2500
      %2502 = vmatmul.f32.gmra.mxu0 %v2376
      %v2503 = vpop.f32.mrf.mxu0
      %v2504 = vadd.f32 0.0, %v2503
      %2505 = vmatmul.f32.gmra.mxu0 %v2379
      %v2506 = vpop.f32.mrf.mxu0
      %v2507 = vadd.f32 0.0, %v2506
      %2508 = vmatmul.f32.gmra.mxu0 %v2382
      %v2509 = vpop.f32.mrf.mxu0
      %v2510 = vadd.f32 0.0, %v2509
      %2511 = vmatmul.f32.gmra.mxu0 %v2385
      %v2512 = vpop.f32.mrf.mxu0
      %v2513 = vadd.f32 0.0, %v2512
      %2514 = vmatmul.f32.gmra.mxu0 %v2388
      %v2515 = vpop.f32.mrf.mxu0
      %v2516 = vadd.f32 0.0, %v2515
      %2517 = vmatmul.f32.gmra.mxu0 %v2391
      %v2518 = vpop.f32.mrf.mxu0
      %v2519 = vadd.f32 0.0, %v2518
      %2520 = vmatmul.f32.gmra.mxu0 %v2394
      %v2521 = vpop.f32.mrf.mxu0
      %v2522 = vadd.f32 0.0, %v2521
      %2523 = vmatmul.f32.gmra.mxu0 %v2397
      %v2524 = vpop.f32.mrf.mxu0
      %v2525 = vadd.f32 0.0, %v2524
      %2526 = vmatmul.f32.gmra.mxu0 %v2400
      %v2527 = vpop.f32.mrf.mxu0
      %v2528 = vadd.f32 0.0, %v2527
      %2529 = vmatmul.f32.gmra.mxu0 %v2403
      %v2530 = vpop.f32.mrf.mxu0
      %v2531 = vadd.f32 0.0, %v2530
      %2532 = vmatmul.f32.gmra.mxu0 %v2406
      %v2533 = vpop.f32.mrf.mxu0
      %v2534 = vadd.f32 0.0, %v2533
      %2535 = vmatmul.f32.gmra.mxu0 %v2409
      %v2536 = vpop.f32.mrf.mxu0
      %v2537 = vadd.f32 0.0, %v2536
      %2538 = vmatmul.f32.gmra.mxu0 %v2412
      %v2539 = vpop.f32.mrf.mxu0
      %v2540 = vadd.f32 0.0, %v2539
      %2541 = vmatmul.f32.gmra.mxu0 %v2415
      %v2542 = vpop.f32.mrf.mxu0
      %v2543 = vadd.f32 0.0, %v2542
      %2544 = vmatmul.f32.gmra.mxu0 %v2418
      %v2545 = vpop.f32.mrf.mxu0
      %v2546 = vadd.f32 0.0, %v2545
      %2547 = vmatmul.f32.gmra.mxu0 %v2421
      %v2548 = vpop.f32.mrf.mxu0
      %v2549 = vadd.f32 0.0, %v2548
      %2550 = vmatmul.f32.gmra.mxu0 %v2424
      %v2551 = vpop.f32.mrf.mxu0
      %v2552 = vadd.f32 0.0, %v2551
      %2553 = vmatmul.f32.gmra.mxu0 %v2427
      %v2554 = vpop.f32.mrf.mxu0
      %v2555 = vadd.f32 0.0, %v2554
      %2556 = vdwg.mxu0
      %v2557 = vadd.f32 %v2283, %v2450
      %v2558 = vadd.f32 %v2284, %v2453
      %v2559 = vadd.f32 %v2285, %v2456
      %v2560 = vadd.f32 %v2286, %v2459
      %v2561 = vadd.f32 %v2287, %v2462
      %v2562 = vadd.f32 %v2288, %v2465
      %v2563 = vadd.f32 %v2289, %v2468
      %v2564 = vadd.f32 %v2290, %v2471
      %v2565 = vadd.f32 %v2291, %v2474
      %v2566 = vadd.f32 %v2292, %v2477
      %v2567 = vadd.f32 %v2293, %v2480
      %v2568 = vadd.f32 %v2294, %v2483
      %v2569 = vadd.f32 %v2295, %v2486
      %v2570 = vadd.f32 %v2296, %v2489
      %v2571 = vadd.f32 %v2297, %v2492
      %v2572 = vadd.f32 %v2298, %v2495
      %v2573 = vadd.f32 %v2299, %v2498
      %v2574 = vadd.f32 %v2300, %v2501
      %v2575 = vadd.f32 %v2301, %v2504
      %v2576 = vadd.f32 %v2302, %v2507
      %v2577 = vadd.f32 %v2303, %v2510
      %v2578 = vadd.f32 %v2304, %v2513
      %v2579 = vadd.f32 %v2305, %v2516
      %v2580 = vadd.f32 %v2306, %v2519
      %v2581 = vadd.f32 %v2307, %v2522
      %v2582 = vadd.f32 %v2308, %v2525
      %v2583 = vadd.f32 %v2309, %v2528
      %v2584 = vadd.f32 %v2310, %v2531
      %v2585 = vadd.f32 %v2311, %v2534
      %v2586 = vadd.f32 %v2312, %v2537
      %v2587 = vadd.f32 %v2313, %v2540
      %v2588 = vadd.f32 %v2314, %v2543
      %v2589 = vadd.f32 %v2315, %v2546
      %v2590 = vadd.f32 %v2316, %v2549
      %v2591 = vadd.f32 %v2317, %v2552
      %v2592 = vadd.f32 %v2318, %v2555
      %2593 = vst.msk [vmem:[#allocation2] sm:$0xff] %vm300, %v2557
      %2594 = vst.msk [vmem:[#allocation2 + $0x8] sm:$0xff] %vm300, %v2558
      %2595 = vst.msk [vmem:[#allocation2 + $0x10] sm:$0xff] %vm300, %v2559
      %2596 = vst.msk [vmem:[#allocation2 + $0x18] sm:$0xff] %vm300, %v2560
      %2597 = vst.msk [vmem:[#allocation2 + $0x20] sm:$0xff] %vm300, %v2561
      %2598 = vst.msk [vmem:[#allocation2 + $0x28] sm:$0xff] %vm300, %v2562
      %2599 = vst.msk [vmem:[#allocation2 + $0x30] sm:$0xff] %vm300, %v2563
      %2600 = vst.msk [vmem:[#allocation2 + $0x38] sm:$0xff] %vm300, %v2564
      %2601 = vst.msk [vmem:[#allocation2 + $0x40] sm:$0xff] %vm300, %v2565
      %2602 = vst.msk [vmem:[#allocation2 + $0x48] sm:$0xff] %vm300, %v2566
      %2603 = vst.msk [vmem:[#allocation2 + $0x50] sm:$0xff] %vm300, %v2567
      %2604 = vst.msk [vmem:[#allocation2 + $0x58] sm:$0xff] %vm300, %v2568
      %2605 = vst.msk [vmem:[#allocation2 + $0x60] sm:$0xff] %vm300, %v2569
      %2606 = vst.msk [vmem:[#allocation2 + $0x68] sm:$0xff] %vm300, %v2570
      %2607 = vst.msk [vmem:[#allocation2 + $0x70] sm:$0xff] %vm300, %v2571
      %2608 = vst.msk [vmem:[#allocation2 + $0x78] sm:$0xff] %vm300, %v2572
      %2609 = vst.msk [vmem:[#allocation2 + $0x80] sm:$0xff] %vm300, %v2573
      %2610 = vst.msk [vmem:[#allocation2 + $0x88] sm:$0xff] %vm300, %v2574
      %2611 = vst.msk [vmem:[#allocation2 + $0x90] sm:$0xff] %vm300, %v2575
      %2612 = vst.msk [vmem:[#allocation2 + $0x98] sm:$0xff] %vm300, %v2576
      %2613 = vst.msk [vmem:[#allocation2 + $0xa0] sm:$0xff] %vm300, %v2577
      %2614 = vst.msk [vmem:[#allocation2 + $0xa8] sm:$0xff] %vm300, %v2578
      %2615 = vst.msk [vmem:[#allocation2 + $0xb0] sm:$0xff] %vm300, %v2579
      %2616 = vst.msk [vmem:[#allocation2 + $0xb8] sm:$0xff] %vm300, %v2580
      %2617 = vst.msk [vmem:[#allocation2 + $0xc0] sm:$0xff] %vm300, %v2581
      %2618 = vst.msk [vmem:[#allocation2 + $0xc8] sm:$0xff] %vm300, %v2582
      %2619 = vst.msk [vmem:[#allocation2 + $0xd0] sm:$0xff] %vm300, %v2583
      %2620 = vst.msk [vmem:[#allocation2 + $0xd8] sm:$0xff] %vm300, %v2584
      %2621 = vst.msk [vmem:[#allocation2 + $0xe0] sm:$0xff] %vm300, %v2585
      %2622 = vst.msk [vmem:[#allocation2 + $0xe8] sm:$0xff] %vm300, %v2586
      %2623 = vst.msk [vmem:[#allocation2 + $0xf0] sm:$0xff] %vm300, %v2587
      %2624 = vst.msk [vmem:[#allocation2 + $0xf8] sm:$0xff] %vm300, %v2588
      %2625 = vst.msk [vmem:[#allocation2 + $0x100] sm:$0xff] %vm300, %v2589
      %2626 = vst.msk [vmem:[#allocation2 + $0x108] sm:$0xff] %vm300, %v2590
      %2627 = vst.msk [vmem:[#allocation2 + $0x110] sm:$0xff] %vm300, %v2591
      %2628 = vst.msk [vmem:[#allocation2 + $0x118] sm:$0xff] %vm300, %v2592
      %v2629 = vld [vmem:[%s283 + $0x24] sm:$0xff]
      %v2630 = vld [vmem:[%s283 + $0x2c] sm:$0xff]
      %v2631 = vld [vmem:[%s283 + $0x34] sm:$0xff]
      %v2632 = vld [vmem:[%s283 + $0x3c] sm:$0xff]
      %v2633 = vld [vmem:[%s283 + $0x44] sm:$0xff]
      %v2634 = vld [vmem:[%s283 + $0x4c] sm:$0xff]
      %v2635 = vld [vmem:[%s283 + $0x54] sm:$0xff]
      %v2636 = vld [vmem:[%s283 + $0x5c] sm:$0xff]
      %v2637 = vld [vmem:[%s283 + $0x64] sm:$0xff]
      %v2638 = vld [vmem:[%s283 + $0x6c] sm:$0xff]
      %v2639 = vld [vmem:[%s283 + $0x74] sm:$0xff]
      %v2640 = vld [vmem:[%s283 + $0x7c] sm:$0xff]
      %v2641 = vld [vmem:[%s283 + $0x84] sm:$0xff]
      %v2642 = vld [vmem:[%s283 + $0x8c] sm:$0xff]
      %v2643 = vld [vmem:[%s283 + $0x94] sm:$0xff]
      %v2644 = vld [vmem:[%s283 + $0x9c] sm:$0xff]
      %v2645 = vld [vmem:[%s283 + $0xa4] sm:$0xff]
      %v2646 = vld [vmem:[%s283 + $0xac] sm:$0xff]
      %v2647 = vld [vmem:[%s283 + $0xb4] sm:$0xff]
      %v2648 = vld [vmem:[%s283 + $0xbc] sm:$0xff]
      %v2649 = vld [vmem:[%s283 + $0xc4] sm:$0xff]
      %v2650 = vld [vmem:[%s283 + $0xcc] sm:$0xff]
      %v2651 = vld [vmem:[%s283 + $0xd4] sm:$0xff]
      %v2652 = vld [vmem:[%s283 + $0xdc] sm:$0xff]
      %v2653 = vld [vmem:[%s283 + $0xe4] sm:$0xff]
      %v2654 = vld [vmem:[%s283 + $0xec] sm:$0xff]
      %v2655 = vld [vmem:[%s283 + $0xf4] sm:$0xff]
      %v2656 = vld [vmem:[%s283 + $0xfc] sm:$0xff]
      %v2657 = vld [vmem:[%s283 + $0x104] sm:$0xff]
      %v2658 = vld [vmem:[%s283 + $0x10c] sm:$0xff]
      %v2659 = vld [vmem:[%s283 + $0x114] sm:$0xff]
      %v2660 = vld [vmem:[%s283 + $0x11c] sm:$0xff]
      %v2661 = vld [vmem:[%s283 + $0x124] sm:$0xff]
      %v2662 = vld [vmem:[%s283 + $0x12c] sm:$0xff]
      %v2663 = vld [vmem:[%s283 + $0x134] sm:$0xff]
      %v2664 = vld [vmem:[%s283 + $0x13c] sm:$0xff]
      %v2665 = vld [vmem:[#allocation2] sm:$0xff]
      %v2666 = vld [vmem:[#allocation2 + $0x8] sm:$0xff]
      %v2667 = vld [vmem:[#allocation2 + $0x10] sm:$0xff]
      %v2668 = vld [vmem:[#allocation2 + $0x18] sm:$0xff]
      %v2669 = vld [vmem:[#allocation2 + $0x20] sm:$0xff]
      %v2670 = vld [vmem:[#allocation2 + $0x28] sm:$0xff]
      %v2671 = vld [vmem:[#allocation2 + $0x30] sm:$0xff]
      %v2672 = vld [vmem:[#allocation2 + $0x38] sm:$0xff]
      %v2673 = vld [vmem:[#allocation2 + $0x40] sm:$0xff]
      %v2674 = vld [vmem:[#allocation2 + $0x48] sm:$0xff]
      %v2675 = vld [vmem:[#allocation2 + $0x50] sm:$0xff]
      %v2676 = vld [vmem:[#allocation2 + $0x58] sm:$0xff]
      %v2677 = vld [vmem:[#allocation2 + $0x60] sm:$0xff]
      %v2678 = vld [vmem:[#allocation2 + $0x68] sm:$0xff]
      %v2679 = vld [vmem:[#allocation2 + $0x70] sm:$0xff]
      %v2680 = vld [vmem:[#allocation2 + $0x78] sm:$0xff]
      %v2681 = vld [vmem:[#allocation2 + $0x80] sm:$0xff]
      %v2682 = vld [vmem:[#allocation2 + $0x88] sm:$0xff]
      %v2683 = vld [vmem:[#allocation2 + $0x90] sm:$0xff]
      %v2684 = vld [vmem:[#allocation2 + $0x98] sm:$0xff]
      %v2685 = vld [vmem:[#allocation2 + $0xa0] sm:$0xff]
      %v2686 = vld [vmem:[#allocation2 + $0xa8] sm:$0xff]
      %v2687 = vld [vmem:[#allocation2 + $0xb0] sm:$0xff]
      %v2688 = vld [vmem:[#allocation2 + $0xb8] sm:$0xff]
      %v2689 = vld [vmem:[#allocation2 + $0xc0] sm:$0xff]
      %v2690 = vld [vmem:[#allocation2 + $0xc8] sm:$0xff]
      %v2691 = vld [vmem:[#allocation2 + $0xd0] sm:$0xff]
      %v2692 = vld [vmem:[#allocation2 + $0xd8] sm:$0xff]
      %v2693 = vld [vmem:[#allocation2 + $0xe0] sm:$0xff]
      %v2694 = vld [vmem:[#allocation2 + $0xe8] sm:$0xff]
      %v2695 = vld [vmem:[#allocation2 + $0xf0] sm:$0xff]
      %v2696 = vld [vmem:[#allocation2 + $0xf8] sm:$0xff]
      %v2697 = vld [vmem:[#allocation2 + $0x100] sm:$0xff]
      %v2698 = vld [vmem:[#allocation2 + $0x108] sm:$0xff]
      %v2699 = vld [vmem:[#allocation2 + $0x110] sm:$0xff]
      %v2700 = vld [vmem:[#allocation2 + $0x118] sm:$0xff]
      %s2701 = scalar_lea.vmem %s1, 24
      %v2702 = vld [vmem:[%s2701] sm:$0xf]
      %v2704 = vsel %vm300, %v2629, 0
      %v2707 = vsel %vm300, %v2630, 0
      %v2710 = vsel %vm300, %v2631, 0
      %v2713 = vsel %vm300, %v2632, 0
      %v2716 = vsel %vm300, %v2633, 0
      %v2719 = vsel %vm300, %v2634, 0
      %v2722 = vsel %vm300, %v2635, 0
      %v2725 = vsel %vm300, %v2636, 0
      %v2728 = vsel %vm300, %v2637, 0
      %v2731 = vsel %vm300, %v2638, 0
      %v2734 = vsel %vm300, %v2639, 0
      %v2737 = vsel %vm300, %v2640, 0
      %v2740 = vsel %vm300, %v2641, 0
      %v2743 = vsel %vm300, %v2642, 0
      %v2746 = vsel %vm300, %v2643, 0
      %v2749 = vsel %vm300, %v2644, 0
      %v2752 = vsel %vm300, %v2645, 0
      %v2755 = vsel %vm300, %v2646, 0
      %v2758 = vsel %vm300, %v2647, 0
      %v2761 = vsel %vm300, %v2648, 0
      %v2764 = vsel %vm300, %v2649, 0
      %v2767 = vsel %vm300, %v2650, 0
      %v2770 = vsel %vm300, %v2651, 0
      %v2773 = vsel %vm300, %v2652, 0
      %v2776 = vsel %vm300, %v2653, 0
      %v2779 = vsel %vm300, %v2654, 0
      %v2782 = vsel %vm300, %v2655, 0
      %v2785 = vsel %vm300, %v2656, 0
      %v2788 = vsel %vm300, %v2657, 0
      %v2791 = vsel %vm300, %v2658, 0
      %v2794 = vsel %vm300, %v2659, 0
      %v2797 = vsel %vm300, %v2660, 0
      %v2800 = vsel %vm300, %v2661, 0
      %v2803 = vsel %vm300, %v2662, 0
      %v2806 = vsel %vm300, %v2663, 0
      %v2809 = vsel %vm300, %v2664, 0
      %v2812 = vsel %vm518, %v2702, 0
      %2814 = vmatpush.msra.mxu0 0.0
      %2815 = vmatpush.msra.mxu0 0.0
      %2816 = vmatpush.msra.mxu0 0.0
      %2817 = vmatpush.msra.mxu0 0.0
      %2818 = vmatpush.msra.mxu0 0.0
      %2819 = vmatpush.msra.mxu0 0.0
      %2820 = vmatpush.msra.mxu0 0.0
      %2821 = vmatpush.msra.mxu0 0.0
      %2822 = vmatpush.msra.mxu0 0.0
      %2823 = vmatpush.msra.mxu0 0.0
      %2824 = vmatpush.msra.mxu0 0.0
      %2825 = vmatpush.msra.mxu0 0.0
      %2826 = vmatpush.msra.mxu0 0.0
      %2827 = vmatpush.msra.mxu0 0.0
      %2828 = vmatpush.msra.mxu0 0.0
      %2829 = vmatpush.msra.mxu0 %v2812
      %2830 = vmatmul.f32.gmra.mxu0 %v2704
      %v2831 = vpop.f32.mrf.mxu0
      %v2832 = vadd.f32 0.0, %v2831
      %2833 = vmatmul.f32.gmra.mxu0 %v2707
      %v2834 = vpop.f32.mrf.mxu0
      %v2835 = vadd.f32 0.0, %v2834
      %2836 = vmatmul.f32.gmra.mxu0 %v2710
      %v2837 = vpop.f32.mrf.mxu0
      %v2838 = vadd.f32 0.0, %v2837
      %2839 = vmatmul.f32.gmra.mxu0 %v2713
      %v2840 = vpop.f32.mrf.mxu0
      %v2841 = vadd.f32 0.0, %v2840
      %2842 = vmatmul.f32.gmra.mxu0 %v2716
      %v2843 = vpop.f32.mrf.mxu0
      %v2844 = vadd.f32 0.0, %v2843
      %2845 = vmatmul.f32.gmra.mxu0 %v2719
      %v2846 = vpop.f32.mrf.mxu0
      %v2847 = vadd.f32 0.0, %v2846
      %2848 = vmatmul.f32.gmra.mxu0 %v2722
      %v2849 = vpop.f32.mrf.mxu0
      %v2850 = vadd.f32 0.0, %v2849
      %2851 = vmatmul.f32.gmra.mxu0 %v2725
      %v2852 = vpop.f32.mrf.mxu0
      %v2853 = vadd.f32 0.0, %v2852
      %2854 = vmatmul.f32.gmra.mxu0 %v2728
      %v2855 = vpop.f32.mrf.mxu0
      %v2856 = vadd.f32 0.0, %v2855
      %2857 = vmatmul.f32.gmra.mxu0 %v2731
      %v2858 = vpop.f32.mrf.mxu0
      %v2859 = vadd.f32 0.0, %v2858
      %2860 = vmatmul.f32.gmra.mxu0 %v2734
      %v2861 = vpop.f32.mrf.mxu0
      %v2862 = vadd.f32 0.0, %v2861
      %2863 = vmatmul.f32.gmra.mxu0 %v2737
      %v2864 = vpop.f32.mrf.mxu0
      %v2865 = vadd.f32 0.0, %v2864
      %2866 = vmatmul.f32.gmra.mxu0 %v2740
      %v2867 = vpop.f32.mrf.mxu0
      %v2868 = vadd.f32 0.0, %v2867
      %2869 = vmatmul.f32.gmra.mxu0 %v2743
      %v2870 = vpop.f32.mrf.mxu0
      %v2871 = vadd.f32 0.0, %v2870
      %2872 = vmatmul.f32.gmra.mxu0 %v2746
      %v2873 = vpop.f32.mrf.mxu0
      %v2874 = vadd.f32 0.0, %v2873
      %2875 = vmatmul.f32.gmra.mxu0 %v2749
      %v2876 = vpop.f32.mrf.mxu0
      %v2877 = vadd.f32 0.0, %v2876
      %2878 = vmatmul.f32.gmra.mxu0 %v2752
      %v2879 = vpop.f32.mrf.mxu0
      %v2880 = vadd.f32 0.0, %v2879
      %2881 = vmatmul.f32.gmra.mxu0 %v2755
      %v2882 = vpop.f32.mrf.mxu0
      %v2883 = vadd.f32 0.0, %v2882
      %2884 = vmatmul.f32.gmra.mxu0 %v2758
      %v2885 = vpop.f32.mrf.mxu0
      %v2886 = vadd.f32 0.0, %v2885
      %2887 = vmatmul.f32.gmra.mxu0 %v2761
      %v2888 = vpop.f32.mrf.mxu0
      %v2889 = vadd.f32 0.0, %v2888
      %2890 = vmatmul.f32.gmra.mxu0 %v2764
      %v2891 = vpop.f32.mrf.mxu0
      %v2892 = vadd.f32 0.0, %v2891
      %2893 = vmatmul.f32.gmra.mxu0 %v2767
      %v2894 = vpop.f32.mrf.mxu0
      %v2895 = vadd.f32 0.0, %v2894
      %2896 = vmatmul.f32.gmra.mxu0 %v2770
      %v2897 = vpop.f32.mrf.mxu0
      %v2898 = vadd.f32 0.0, %v2897
      %2899 = vmatmul.f32.gmra.mxu0 %v2773
      %v2900 = vpop.f32.mrf.mxu0
      %v2901 = vadd.f32 0.0, %v2900
      %2902 = vmatmul.f32.gmra.mxu0 %v2776
      %v2903 = vpop.f32.mrf.mxu0
      %v2904 = vadd.f32 0.0, %v2903
      %2905 = vmatmul.f32.gmra.mxu0 %v2779
      %v2906 = vpop.f32.mrf.mxu0
      %v2907 = vadd.f32 0.0, %v2906
      %2908 = vmatmul.f32.gmra.mxu0 %v2782
      %v2909 = vpop.f32.mrf.mxu0
      %v2910 = vadd.f32 0.0, %v2909
      %2911 = vmatmul.f32.gmra.mxu0 %v2785
      %v2912 = vpop.f32.mrf.mxu0
      %v2913 = vadd.f32 0.0, %v2912
      %2914 = vmatmul.f32.gmra.mxu0 %v2788
      %v2915 = vpop.f32.mrf.mxu0
      %v2916 = vadd.f32 0.0, %v2915
      %2917 = vmatmul.f32.gmra.mxu0 %v2791
      %v2918 = vpop.f32.mrf.mxu0
      %v2919 = vadd.f32 0.0, %v2918
      %2920 = vmatmul.f32.gmra.mxu0 %v2794
      %v2921 = vpop.f32.mrf.mxu0
      %v2922 = vadd.f32 0.0, %v2921
      %2923 = vmatmul.f32.gmra.mxu0 %v2797
      %v2924 = vpop.f32.mrf.mxu0
      %v2925 = vadd.f32 0.0, %v2924
      %2926 = vmatmul.f32.gmra.mxu0 %v2800
      %v2927 = vpop.f32.mrf.mxu0
      %v2928 = vadd.f32 0.0, %v2927
      %2929 = vmatmul.f32.gmra.mxu0 %v2803
      %v2930 = vpop.f32.mrf.mxu0
      %v2931 = vadd.f32 0.0, %v2930
      %2932 = vmatmul.f32.gmra.mxu0 %v2806
      %v2933 = vpop.f32.mrf.mxu0
      %v2934 = vadd.f32 0.0, %v2933
      %2935 = vmatmul.f32.gmra.mxu0 %v2809
      %v2936 = vpop.f32.mrf.mxu0
      %v2937 = vadd.f32 0.0, %v2936
      %2938 = vdwg.mxu0
      %v2939 = vadd.f32 %v2665, %v2832
      %v2940 = vadd.f32 %v2666, %v2835
      %v2941 = vadd.f32 %v2667, %v2838
      %v2942 = vadd.f32 %v2668, %v2841
      %v2943 = vadd.f32 %v2669, %v2844
      %v2944 = vadd.f32 %v2670, %v2847
      %v2945 = vadd.f32 %v2671, %v2850
      %v2946 = vadd.f32 %v2672, %v2853
      %v2947 = vadd.f32 %v2673, %v2856
      %v2948 = vadd.f32 %v2674, %v2859
      %v2949 = vadd.f32 %v2675, %v2862
      %v2950 = vadd.f32 %v2676, %v2865
      %v2951 = vadd.f32 %v2677, %v2868
      %v2952 = vadd.f32 %v2678, %v2871
      %v2953 = vadd.f32 %v2679, %v2874
      %v2954 = vadd.f32 %v2680, %v2877
      %v2955 = vadd.f32 %v2681, %v2880
      %v2956 = vadd.f32 %v2682, %v2883
      %v2957 = vadd.f32 %v2683, %v2886
      %v2958 = vadd.f32 %v2684, %v2889
      %v2959 = vadd.f32 %v2685, %v2892
      %v2960 = vadd.f32 %v2686, %v2895
      %v2961 = vadd.f32 %v2687, %v2898
      %v2962 = vadd.f32 %v2688, %v2901
      %v2963 = vadd.f32 %v2689, %v2904
      %v2964 = vadd.f32 %v2690, %v2907
      %v2965 = vadd.f32 %v2691, %v2910
      %v2966 = vadd.f32 %v2692, %v2913
      %v2967 = vadd.f32 %v2693, %v2916
      %v2968 = vadd.f32 %v2694, %v2919
      %v2969 = vadd.f32 %v2695, %v2922
      %v2970 = vadd.f32 %v2696, %v2925
      %v2971 = vadd.f32 %v2697, %v2928
      %v2972 = vadd.f32 %v2698, %v2931
      %v2973 = vadd.f32 %v2699, %v2934
      %v2974 = vadd.f32 %v2700, %v2937
      %2975 = vst.msk [vmem:[#allocation2] sm:$0xff] %vm300, %v2939
      %2976 = vst.msk [vmem:[#allocation2 + $0x8] sm:$0xff] %vm300, %v2940
      %2977 = vst.msk [vmem:[#allocation2 + $0x10] sm:$0xff] %vm300, %v2941
      %2978 = vst.msk [vmem:[#allocation2 + $0x18] sm:$0xff] %vm300, %v2942
      %2979 = vst.msk [vmem:[#allocation2 + $0x20] sm:$0xff] %vm300, %v2943
      %2980 = vst.msk [vmem:[#allocation2 + $0x28] sm:$0xff] %vm300, %v2944
      %2981 = vst.msk [vmem:[#allocation2 + $0x30] sm:$0xff] %vm300, %v2945
      %2982 = vst.msk [vmem:[#allocation2 + $0x38] sm:$0xff] %vm300, %v2946
      %2983 = vst.msk [vmem:[#allocation2 + $0x40] sm:$0xff] %vm300, %v2947
      %2984 = vst.msk [vmem:[#allocation2 + $0x48] sm:$0xff] %vm300, %v2948
      %2985 = vst.msk [vmem:[#allocation2 + $0x50] sm:$0xff] %vm300, %v2949
      %2986 = vst.msk [vmem:[#allocation2 + $0x58] sm:$0xff] %vm300, %v2950
      %2987 = vst.msk [vmem:[#allocation2 + $0x60] sm:$0xff] %vm300, %v2951
      %2988 = vst.msk [vmem:[#allocation2 + $0x68] sm:$0xff] %vm300, %v2952
      %2989 = vst.msk [vmem:[#allocation2 + $0x70] sm:$0xff] %vm300, %v2953
      %2990 = vst.msk [vmem:[#allocation2 + $0x78] sm:$0xff] %vm300, %v2954
      %2991 = vst.msk [vmem:[#allocation2 + $0x80] sm:$0xff] %vm300, %v2955
      %2992 = vst.msk [vmem:[#allocation2 + $0x88] sm:$0xff] %vm300, %v2956
      %2993 = vst.msk [vmem:[#allocation2 + $0x90] sm:$0xff] %vm300, %v2957
      %2994 = vst.msk [vmem:[#allocation2 + $0x98] sm:$0xff] %vm300, %v2958
      %2995 = vst.msk [vmem:[#allocation2 + $0xa0] sm:$0xff] %vm300, %v2959
      %2996 = vst.msk [vmem:[#allocation2 + $0xa8] sm:$0xff] %vm300, %v2960
      %2997 = vst.msk [vmem:[#allocation2 + $0xb0] sm:$0xff] %vm300, %v2961
      %2998 = vst.msk [vmem:[#allocation2 + $0xb8] sm:$0xff] %vm300, %v2962
      %2999 = vst.msk [vmem:[#allocation2 + $0xc0] sm:$0xff] %vm300, %v2963
      %3000 = vst.msk [vmem:[#allocation2 + $0xc8] sm:$0xff] %vm300, %v2964
      %3001 = vst.msk [vmem:[#allocation2 + $0xd0] sm:$0xff] %vm300, %v2965
      %3002 = vst.msk [vmem:[#allocation2 + $0xd8] sm:$0xff] %vm300, %v2966
      %3003 = vst.msk [vmem:[#allocation2 + $0xe0] sm:$0xff] %vm300, %v2967
      %3004 = vst.msk [vmem:[#allocation2 + $0xe8] sm:$0xff] %vm300, %v2968
      %3005 = vst.msk [vmem:[#allocation2 + $0xf0] sm:$0xff] %vm300, %v2969
      %3006 = vst.msk [vmem:[#allocation2 + $0xf8] sm:$0xff] %vm300, %v2970
      %3007 = vst.msk [vmem:[#allocation2 + $0x100] sm:$0xff] %vm300, %v2971
      %3008 = vst.msk [vmem:[#allocation2 + $0x108] sm:$0xff] %vm300, %v2972
      %3009 = vst.msk [vmem:[#allocation2 + $0x110] sm:$0xff] %vm300, %v2973
      %3010 = vst.msk [vmem:[#allocation2 + $0x118] sm:$0xff] %vm300, %v2974
      %v3011 = vld [vmem:[%s283 + $0x25] sm:$0xff]
      %v3012 = vld [vmem:[%s283 + $0x2d] sm:$0xff]
      %v3013 = vld [vmem:[%s283 + $0x35] sm:$0xff]
      %v3014 = vld [vmem:[%s283 + $0x3d] sm:$0xff]
      %v3015 = vld [vmem:[%s283 + $0x45] sm:$0xff]
      %v3016 = vld [vmem:[%s283 + $0x4d] sm:$0xff]
      %v3017 = vld [vmem:[%s283 + $0x55] sm:$0xff]
      %v3018 = vld [vmem:[%s283 + $0x5d] sm:$0xff]
      %v3019 = vld [vmem:[%s283 + $0x65] sm:$0xff]
      %v3020 = vld [vmem:[%s283 + $0x6d] sm:$0xff]
      %v3021 = vld [vmem:[%s283 + $0x75] sm:$0xff]
      %v3022 = vld [vmem:[%s283 + $0x7d] sm:$0xff]
      %v3023 = vld [vmem:[%s283 + $0x85] sm:$0xff]
      %v3024 = vld [vmem:[%s283 + $0x8d] sm:$0xff]
      %v3025 = vld [vmem:[%s283 + $0x95] sm:$0xff]
      %v3026 = vld [vmem:[%s283 + $0x9d] sm:$0xff]
      %v3027 = vld [vmem:[%s283 + $0xa5] sm:$0xff]
      %v3028 = vld [vmem:[%s283 + $0xad] sm:$0xff]
      %v3029 = vld [vmem:[%s283 + $0xb5] sm:$0xff]
      %v3030 = vld [vmem:[%s283 + $0xbd] sm:$0xff]
      %v3031 = vld [vmem:[%s283 + $0xc5] sm:$0xff]
      %v3032 = vld [vmem:[%s283 + $0xcd] sm:$0xff]
      %v3033 = vld [vmem:[%s283 + $0xd5] sm:$0xff]
      %v3034 = vld [vmem:[%s283 + $0xdd] sm:$0xff]
      %v3035 = vld [vmem:[%s283 + $0xe5] sm:$0xff]
      %v3036 = vld [vmem:[%s283 + $0xed] sm:$0xff]
      %v3037 = vld [vmem:[%s283 + $0xf5] sm:$0xff]
      %v3038 = vld [vmem:[%s283 + $0xfd] sm:$0xff]
      %v3039 = vld [vmem:[%s283 + $0x105] sm:$0xff]
      %v3040 = vld [vmem:[%s283 + $0x10d] sm:$0xff]
      %v3041 = vld [vmem:[%s283 + $0x115] sm:$0xff]
      %v3042 = vld [vmem:[%s283 + $0x11d] sm:$0xff]
      %v3043 = vld [vmem:[%s283 + $0x125] sm:$0xff]
      %v3044 = vld [vmem:[%s283 + $0x12d] sm:$0xff]
      %v3045 = vld [vmem:[%s283 + $0x135] sm:$0xff]
      %v3046 = vld [vmem:[%s283 + $0x13d] sm:$0xff]
      %v3047 = vld [vmem:[#allocation2] sm:$0xff]
      %v3048 = vld [vmem:[#allocation2 + $0x8] sm:$0xff]
      %v3049 = vld [vmem:[#allocation2 + $0x10] sm:$0xff]
      %v3050 = vld [vmem:[#allocation2 + $0x18] sm:$0xff]
      %v3051 = vld [vmem:[#allocation2 + $0x20] sm:$0xff]
      %v3052 = vld [vmem:[#allocation2 + $0x28] sm:$0xff]
      %v3053 = vld [vmem:[#allocation2 + $0x30] sm:$0xff]
      %v3054 = vld [vmem:[#allocation2 + $0x38] sm:$0xff]
      %v3055 = vld [vmem:[#allocation2 + $0x40] sm:$0xff]
      %v3056 = vld [vmem:[#allocation2 + $0x48] sm:$0xff]
      %v3057 = vld [vmem:[#allocation2 + $0x50] sm:$0xff]
      %v3058 = vld [vmem:[#allocation2 + $0x58] sm:$0xff]
      %v3059 = vld [vmem:[#allocation2 + $0x60] sm:$0xff]
      %v3060 = vld [vmem:[#allocation2 + $0x68] sm:$0xff]
      %v3061 = vld [vmem:[#allocation2 + $0x70] sm:$0xff]
      %v3062 = vld [vmem:[#allocation2 + $0x78] sm:$0xff]
      %v3063 = vld [vmem:[#allocation2 + $0x80] sm:$0xff]
      %v3064 = vld [vmem:[#allocation2 + $0x88] sm:$0xff]
      %v3065 = vld [vmem:[#allocation2 + $0x90] sm:$0xff]
      %v3066 = vld [vmem:[#allocation2 + $0x98] sm:$0xff]
      %v3067 = vld [vmem:[#allocation2 + $0xa0] sm:$0xff]
      %v3068 = vld [vmem:[#allocation2 + $0xa8] sm:$0xff]
      %v3069 = vld [vmem:[#allocation2 + $0xb0] sm:$0xff]
      %v3070 = vld [vmem:[#allocation2 + $0xb8] sm:$0xff]
      %v3071 = vld [vmem:[#allocation2 + $0xc0] sm:$0xff]
      %v3072 = vld [vmem:[#allocation2 + $0xc8] sm:$0xff]
      %v3073 = vld [vmem:[#allocation2 + $0xd0] sm:$0xff]
      %v3074 = vld [vmem:[#allocation2 + $0xd8] sm:$0xff]
      %v3075 = vld [vmem:[#allocation2 + $0xe0] sm:$0xff]
      %v3076 = vld [vmem:[#allocation2 + $0xe8] sm:$0xff]
      %v3077 = vld [vmem:[#allocation2 + $0xf0] sm:$0xff]
      %v3078 = vld [vmem:[#allocation2 + $0xf8] sm:$0xff]
      %v3079 = vld [vmem:[#allocation2 + $0x100] sm:$0xff]
      %v3080 = vld [vmem:[#allocation2 + $0x108] sm:$0xff]
      %v3081 = vld [vmem:[#allocation2 + $0x110] sm:$0xff]
      %v3082 = vld [vmem:[#allocation2 + $0x118] sm:$0xff]
      %s3083 = scalar_lea.vmem %s1, 28
      %v3084 = vld [vmem:[%s3083] sm:$0xf]
      %v3086 = vsel %vm300, %v3011, 0
      %v3089 = vsel %vm300, %v3012, 0
      %v3092 = vsel %vm300, %v3013, 0
      %v3095 = vsel %vm300, %v3014, 0
      %v3098 = vsel %vm300, %v3015, 0
      %v3101 = vsel %vm300, %v3016, 0
      %v3104 = vsel %vm300, %v3017, 0
      %v3107 = vsel %vm300, %v3018, 0
      %v3110 = vsel %vm300, %v3019, 0
      %v3113 = vsel %vm300, %v3020, 0
      %v3116 = vsel %vm300, %v3021, 0
      %v3119 = vsel %vm300, %v3022, 0
      %v3122 = vsel %vm300, %v3023, 0
      %v3125 = vsel %vm300, %v3024, 0
      %v3128 = vsel %vm300, %v3025, 0
      %v3131 = vsel %vm300, %v3026, 0
      %v3134 = vsel %vm300, %v3027, 0
      %v3137 = vsel %vm300, %v3028, 0
      %v3140 = vsel %vm300, %v3029, 0
      %v3143 = vsel %vm300, %v3030, 0
      %v3146 = vsel %vm300, %v3031, 0
      %v3149 = vsel %vm300, %v3032, 0
      %v3152 = vsel %vm300, %v3033, 0
      %v3155 = vsel %vm300, %v3034, 0
      %v3158 = vsel %vm300, %v3035, 0
      %v3161 = vsel %vm300, %v3036, 0
      %v3164 = vsel %vm300, %v3037, 0
      %v3167 = vsel %vm300, %v3038, 0
      %v3170 = vsel %vm300, %v3039, 0
      %v3173 = vsel %vm300, %v3040, 0
      %v3176 = vsel %vm300, %v3041, 0
      %v3179 = vsel %vm300, %v3042, 0
      %v3182 = vsel %vm300, %v3043, 0
      %v3185 = vsel %vm300, %v3044, 0
      %v3188 = vsel %vm300, %v3045, 0
      %v3191 = vsel %vm300, %v3046, 0
      %v3194 = vsel %vm518, %v3084, 0
      %3196 = vmatpush.msra.mxu0 0.0
      %3197 = vmatpush.msra.mxu0 0.0
      %3198 = vmatpush.msra.mxu0 0.0
      %3199 = vmatpush.msra.mxu0 0.0
      %3200 = vmatpush.msra.mxu0 0.0
      %3201 = vmatpush.msra.mxu0 0.0
      %3202 = vmatpush.msra.mxu0 0.0
      %3203 = vmatpush.msra.mxu0 0.0
      %3204 = vmatpush.msra.mxu0 0.0
      %3205 = vmatpush.msra.mxu0 0.0
      %3206 = vmatpush.msra.mxu0 0.0
      %3207 = vmatpush.msra.mxu0 0.0
      %3208 = vmatpush.msra.mxu0 0.0
      %3209 = vmatpush.msra.mxu0 0.0
      %3210 = vmatpush.msra.mxu0 0.0
      %3211 = vmatpush.msra.mxu0 %v3194
      %3212 = vmatmul.f32.gmra.mxu0 %v3086
      %v3213 = vpop.f32.mrf.mxu0
      %v3214 = vadd.f32 0.0, %v3213
      %3215 = vmatmul.f32.gmra.mxu0 %v3089
      %v3216 = vpop.f32.mrf.mxu0
      %v3217 = vadd.f32 0.0, %v3216
      %3218 = vmatmul.f32.gmra.mxu0 %v3092
      %v3219 = vpop.f32.mrf.mxu0
      %v3220 = vadd.f32 0.0, %v3219
      %3221 = vmatmul.f32.gmra.mxu0 %v3095
      %v3222 = vpop.f32.mrf.mxu0
      %v3223 = vadd.f32 0.0, %v3222
      %3224 = vmatmul.f32.gmra.mxu0 %v3098
      %v3225 = vpop.f32.mrf.mxu0
      %v3226 = vadd.f32 0.0, %v3225
      %3227 = vmatmul.f32.gmra.mxu0 %v3101
      %v3228 = vpop.f32.mrf.mxu0
      %v3229 = vadd.f32 0.0, %v3228
      %3230 = vmatmul.f32.gmra.mxu0 %v3104
      %v3231 = vpop.f32.mrf.mxu0
      %v3232 = vadd.f32 0.0, %v3231
      %3233 = vmatmul.f32.gmra.mxu0 %v3107
      %v3234 = vpop.f32.mrf.mxu0
      %v3235 = vadd.f32 0.0, %v3234
      %3236 = vmatmul.f32.gmra.mxu0 %v3110
      %v3237 = vpop.f32.mrf.mxu0
      %v3238 = vadd.f32 0.0, %v3237
      %3239 = vmatmul.f32.gmra.mxu0 %v3113
      %v3240 = vpop.f32.mrf.mxu0
      %v3241 = vadd.f32 0.0, %v3240
      %3242 = vmatmul.f32.gmra.mxu0 %v3116
      %v3243 = vpop.f32.mrf.mxu0
      %v3244 = vadd.f32 0.0, %v3243
      %3245 = vmatmul.f32.gmra.mxu0 %v3119
      %v3246 = vpop.f32.mrf.mxu0
      %v3247 = vadd.f32 0.0, %v3246
      %3248 = vmatmul.f32.gmra.mxu0 %v3122
      %v3249 = vpop.f32.mrf.mxu0
      %v3250 = vadd.f32 0.0, %v3249
      %3251 = vmatmul.f32.gmra.mxu0 %v3125
      %v3252 = vpop.f32.mrf.mxu0
      %v3253 = vadd.f32 0.0, %v3252
      %3254 = vmatmul.f32.gmra.mxu0 %v3128
      %v3255 = vpop.f32.mrf.mxu0
      %v3256 = vadd.f32 0.0, %v3255
      %3257 = vmatmul.f32.gmra.mxu0 %v3131
      %v3258 = vpop.f32.mrf.mxu0
      %v3259 = vadd.f32 0.0, %v3258
      %3260 = vmatmul.f32.gmra.mxu0 %v3134
      %v3261 = vpop.f32.mrf.mxu0
      %v3262 = vadd.f32 0.0, %v3261
      %3263 = vmatmul.f32.gmra.mxu0 %v3137
      %v3264 = vpop.f32.mrf.mxu0
      %v3265 = vadd.f32 0.0, %v3264
      %3266 = vmatmul.f32.gmra.mxu0 %v3140
      %v3267 = vpop.f32.mrf.mxu0
      %v3268 = vadd.f32 0.0, %v3267
      %3269 = vmatmul.f32.gmra.mxu0 %v3143
      %v3270 = vpop.f32.mrf.mxu0
      %v3271 = vadd.f32 0.0, %v3270
      %3272 = vmatmul.f32.gmra.mxu0 %v3146
      %v3273 = vpop.f32.mrf.mxu0
      %v3274 = vadd.f32 0.0, %v3273
      %3275 = vmatmul.f32.gmra.mxu0 %v3149
      %v3276 = vpop.f32.mrf.mxu0
      %v3277 = vadd.f32 0.0, %v3276
      %3278 = vmatmul.f32.gmra.mxu0 %v3152
      %v3279 = vpop.f32.mrf.mxu0
      %v3280 = vadd.f32 0.0, %v3279
      %3281 = vmatmul.f32.gmra.mxu0 %v3155
      %v3282 = vpop.f32.mrf.mxu0
      %v3283 = vadd.f32 0.0, %v3282
      %3284 = vmatmul.f32.gmra.mxu0 %v3158
      %v3285 = vpop.f32.mrf.mxu0
      %v3286 = vadd.f32 0.0, %v3285
      %3287 = vmatmul.f32.gmra.mxu0 %v3161
      %v3288 = vpop.f32.mrf.mxu0
      %v3289 = vadd.f32 0.0, %v3288
      %3290 = vmatmul.f32.gmra.mxu0 %v3164
      %v3291 = vpop.f32.mrf.mxu0
      %v3292 = vadd.f32 0.0, %v3291
      %3293 = vmatmul.f32.gmra.mxu0 %v3167
      %v3294 = vpop.f32.mrf.mxu0
      %v3295 = vadd.f32 0.0, %v3294
      %3296 = vmatmul.f32.gmra.mxu0 %v3170
      %v3297 = vpop.f32.mrf.mxu0
      %v3298 = vadd.f32 0.0, %v3297
      %3299 = vmatmul.f32.gmra.mxu0 %v3173
      %v3300 = vpop.f32.mrf.mxu0
      %v3301 = vadd.f32 0.0, %v3300
      %3302 = vmatmul.f32.gmra.mxu0 %v3176
      %v3303 = vpop.f32.mrf.mxu0
      %v3304 = vadd.f32 0.0, %v3303
      %3305 = vmatmul.f32.gmra.mxu0 %v3179
      %v3306 = vpop.f32.mrf.mxu0
      %v3307 = vadd.f32 0.0, %v3306
      %3308 = vmatmul.f32.gmra.mxu0 %v3182
      %v3309 = vpop.f32.mrf.mxu0
      %v3310 = vadd.f32 0.0, %v3309
      %3311 = vmatmul.f32.gmra.mxu0 %v3185
      %v3312 = vpop.f32.mrf.mxu0
      %v3313 = vadd.f32 0.0, %v3312
      %3314 = vmatmul.f32.gmra.mxu0 %v3188
      %v3315 = vpop.f32.mrf.mxu0
      %v3316 = vadd.f32 0.0, %v3315
      %3317 = vmatmul.f32.gmra.mxu0 %v3191
      %v3318 = vpop.f32.mrf.mxu0
      %v3319 = vadd.f32 0.0, %v3318
      %3320 = vdwg.mxu0
      %v3321 = vadd.f32 %v3047, %v3214
      %v3322 = vadd.f32 %v3048, %v3217
      %v3323 = vadd.f32 %v3049, %v3220
      %v3324 = vadd.f32 %v3050, %v3223
      %v3325 = vadd.f32 %v3051, %v3226
      %v3326 = vadd.f32 %v3052, %v3229
      %v3327 = vadd.f32 %v3053, %v3232
      %v3328 = vadd.f32 %v3054, %v3235
      %v3329 = vadd.f32 %v3055, %v3238
      %v3330 = vadd.f32 %v3056, %v3241
      %v3331 = vadd.f32 %v3057, %v3244
      %v3332 = vadd.f32 %v3058, %v3247
      %v3333 = vadd.f32 %v3059, %v3250
      %v3334 = vadd.f32 %v3060, %v3253
      %v3335 = vadd.f32 %v3061, %v3256
      %v3336 = vadd.f32 %v3062, %v3259
      %v3337 = vadd.f32 %v3063, %v3262
      %v3338 = vadd.f32 %v3064, %v3265
      %v3339 = vadd.f32 %v3065, %v3268
      %v3340 = vadd.f32 %v3066, %v3271
      %v3341 = vadd.f32 %v3067, %v3274
      %v3342 = vadd.f32 %v3068, %v3277
      %v3343 = vadd.f32 %v3069, %v3280
      %v3344 = vadd.f32 %v3070, %v3283
      %v3345 = vadd.f32 %v3071, %v3286
      %v3346 = vadd.f32 %v3072, %v3289
      %v3347 = vadd.f32 %v3073, %v3292
      %v3348 = vadd.f32 %v3074, %v3295
      %v3349 = vadd.f32 %v3075, %v3298
      %v3350 = vadd.f32 %v3076, %v3301
      %v3351 = vadd.f32 %v3077, %v3304
      %v3352 = vadd.f32 %v3078, %v3307
      %v3353 = vadd.f32 %v3079, %v3310
      %v3354 = vadd.f32 %v3080, %v3313
      %v3355 = vadd.f32 %v3081, %v3316
      %v3356 = vadd.f32 %v3082, %v3319
      %3357 = vst.msk [vmem:[#allocation2] sm:$0xff] %vm300, %v3321
      %3358 = vst.msk [vmem:[#allocation2 + $0x8] sm:$0xff] %vm300, %v3322
      %3359 = vst.msk [vmem:[#allocation2 + $0x10] sm:$0xff] %vm300, %v3323
      %3360 = vst.msk [vmem:[#allocation2 + $0x18] sm:$0xff] %vm300, %v3324
      %3361 = vst.msk [vmem:[#allocation2 + $0x20] sm:$0xff] %vm300, %v3325
      %3362 = vst.msk [vmem:[#allocation2 + $0x28] sm:$0xff] %vm300, %v3326
      %3363 = vst.msk [vmem:[#allocation2 + $0x30] sm:$0xff] %vm300, %v3327
      %3364 = vst.msk [vmem:[#allocation2 + $0x38] sm:$0xff] %vm300, %v3328
      %3365 = vst.msk [vmem:[#allocation2 + $0x40] sm:$0xff] %vm300, %v3329
      %3366 = vst.msk [vmem:[#allocation2 + $0x48] sm:$0xff] %vm300, %v3330
      %3367 = vst.msk [vmem:[#allocation2 + $0x50] sm:$0xff] %vm300, %v3331
      %3368 = vst.msk [vmem:[#allocation2 + $0x58] sm:$0xff] %vm300, %v3332
      %3369 = vst.msk [vmem:[#allocation2 + $0x60] sm:$0xff] %vm300, %v3333
      %3370 = vst.msk [vmem:[#allocation2 + $0x68] sm:$0xff] %vm300, %v3334
      %3371 = vst.msk [vmem:[#allocation2 + $0x70] sm:$0xff] %vm300, %v3335
      %3372 = vst.msk [vmem:[#allocation2 + $0x78] sm:$0xff] %vm300, %v3336
      %3373 = vst.msk [vmem:[#allocation2 + $0x80] sm:$0xff] %vm300, %v3337
      %3374 = vst.msk [vmem:[#allocation2 + $0x88] sm:$0xff] %vm300, %v3338
      %3375 = vst.msk [vmem:[#allocation2 + $0x90] sm:$0xff] %vm300, %v3339
      %3376 = vst.msk [vmem:[#allocation2 + $0x98] sm:$0xff] %vm300, %v3340
      %3377 = vst.msk [vmem:[#allocation2 + $0xa0] sm:$0xff] %vm300, %v3341
      %3378 = vst.msk [vmem:[#allocation2 + $0xa8] sm:$0xff] %vm300, %v3342
      %3379 = vst.msk [vmem:[#allocation2 + $0xb0] sm:$0xff] %vm300, %v3343
      %3380 = vst.msk [vmem:[#allocation2 + $0xb8] sm:$0xff] %vm300, %v3344
      %3381 = vst.msk [vmem:[#allocation2 + $0xc0] sm:$0xff] %vm300, %v3345
      %3382 = vst.msk [vmem:[#allocation2 + $0xc8] sm:$0xff] %vm300, %v3346
      %3383 = vst.msk [vmem:[#allocation2 + $0xd0] sm:$0xff] %vm300, %v3347
      %3384 = vst.msk [vmem:[#allocation2 + $0xd8] sm:$0xff] %vm300, %v3348
      %3385 = vst.msk [vmem:[#allocation2 + $0xe0] sm:$0xff] %vm300, %v3349
      %3386 = vst.msk [vmem:[#allocation2 + $0xe8] sm:$0xff] %vm300, %v3350
      %3387 = vst.msk [vmem:[#allocation2 + $0xf0] sm:$0xff] %vm300, %v3351
      %3388 = vst.msk [vmem:[#allocation2 + $0xf8] sm:$0xff] %vm300, %v3352
      %3389 = vst.msk [vmem:[#allocation2 + $0x100] sm:$0xff] %vm300, %v3353
      %3390 = vst.msk [vmem:[#allocation2 + $0x108] sm:$0xff] %vm300, %v3354
      %3391 = vst.msk [vmem:[#allocation2 + $0x110] sm:$0xff] %vm300, %v3355
      %3392 = vst.msk [vmem:[#allocation2 + $0x118] sm:$0xff] %vm300, %v3356
      %v3393 = vld [vmem:[%s283 + $0x26] sm:$0xff]
      %v3394 = vld [vmem:[%s283 + $0x2e] sm:$0xff]
      %v3395 = vld [vmem:[%s283 + $0x36] sm:$0xff]
      %v3396 = vld [vmem:[%s283 + $0x3e] sm:$0xff]
      %v3397 = vld [vmem:[%s283 + $0x46] sm:$0xff]
      %v3398 = vld [vmem:[%s283 + $0x4e] sm:$0xff]
      %v3399 = vld [vmem:[%s283 + $0x56] sm:$0xff]
      %v3400 = vld [vmem:[%s283 + $0x5e] sm:$0xff]
      %v3401 = vld [vmem:[%s283 + $0x66] sm:$0xff]
      %v3402 = vld [vmem:[%s283 + $0x6e] sm:$0xff]
      %v3403 = vld [vmem:[%s283 + $0x76] sm:$0xff]
      %v3404 = vld [vmem:[%s283 + $0x7e] sm:$0xff]
      %v3405 = vld [vmem:[%s283 + $0x86] sm:$0xff]
      %v3406 = vld [vmem:[%s283 + $0x8e] sm:$0xff]
      %v3407 = vld [vmem:[%s283 + $0x96] sm:$0xff]
      %v3408 = vld [vmem:[%s283 + $0x9e] sm:$0xff]
      %v3409 = vld [vmem:[%s283 + $0xa6] sm:$0xff]
      %v3410 = vld [vmem:[%s283 + $0xae] sm:$0xff]
      %v3411 = vld [vmem:[%s283 + $0xb6] sm:$0xff]
      %v3412 = vld [vmem:[%s283 + $0xbe] sm:$0xff]
      %v3413 = vld [vmem:[%s283 + $0xc6] sm:$0xff]
      %v3414 = vld [vmem:[%s283 + $0xce] sm:$0xff]
      %v3415 = vld [vmem:[%s283 + $0xd6] sm:$0xff]
      %v3416 = vld [vmem:[%s283 + $0xde] sm:$0xff]
      %v3417 = vld [vmem:[%s283 + $0xe6] sm:$0xff]
      %v3418 = vld [vmem:[%s283 + $0xee] sm:$0xff]
      %v3419 = vld [vmem:[%s283 + $0xf6] sm:$0xff]
      %v3420 = vld [vmem:[%s283 + $0xfe] sm:$0xff]
      %v3421 = vld [vmem:[%s283 + $0x106] sm:$0xff]
      %v3422 = vld [vmem:[%s283 + $0x10e] sm:$0xff]
      %v3423 = vld [vmem:[%s283 + $0x116] sm:$0xff]
      %v3424 = vld [vmem:[%s283 + $0x11e] sm:$0xff]
      %v3425 = vld [vmem:[%s283 + $0x126] sm:$0xff]
      %v3426 = vld [vmem:[%s283 + $0x12e] sm:$0xff]
      %v3427 = vld [vmem:[%s283 + $0x136] sm:$0xff]
      %v3428 = vld [vmem:[%s283 + $0x13e] sm:$0xff]
      %v3429 = vld [vmem:[#allocation2] sm:$0xff]
      %v3430 = vld [vmem:[#allocation2 + $0x8] sm:$0xff]
      %v3431 = vld [vmem:[#allocation2 + $0x10] sm:$0xff]
      %v3432 = vld [vmem:[#allocation2 + $0x18] sm:$0xff]
      %v3433 = vld [vmem:[#allocation2 + $0x20] sm:$0xff]
      %v3434 = vld [vmem:[#allocation2 + $0x28] sm:$0xff]
      %v3435 = vld [vmem:[#allocation2 + $0x30] sm:$0xff]
      %v3436 = vld [vmem:[#allocation2 + $0x38] sm:$0xff]
      %v3437 = vld [vmem:[#allocation2 + $0x40] sm:$0xff]
      %v3438 = vld [vmem:[#allocation2 + $0x48] sm:$0xff]
      %v3439 = vld [vmem:[#allocation2 + $0x50] sm:$0xff]
      %v3440 = vld [vmem:[#allocation2 + $0x58] sm:$0xff]
      %v3441 = vld [vmem:[#allocation2 + $0x60] sm:$0xff]
      %v3442 = vld [vmem:[#allocation2 + $0x68] sm:$0xff]
      %v3443 = vld [vmem:[#allocation2 + $0x70] sm:$0xff]
      %v3444 = vld [vmem:[#allocation2 + $0x78] sm:$0xff]
      %v3445 = vld [vmem:[#allocation2 + $0x80] sm:$0xff]
      %v3446 = vld [vmem:[#allocation2 + $0x88] sm:$0xff]
      %v3447 = vld [vmem:[#allocation2 + $0x90] sm:$0xff]
      %v3448 = vld [vmem:[#allocation2 + $0x98] sm:$0xff]
      %v3449 = vld [vmem:[#allocation2 + $0xa0] sm:$0xff]
      %v3450 = vld [vmem:[#allocation2 + $0xa8] sm:$0xff]
      %v3451 = vld [vmem:[#allocation2 + $0xb0] sm:$0xff]
      %v3452 = vld [vmem:[#allocation2 + $0xb8] sm:$0xff]
      %v3453 = vld [vmem:[#allocation2 + $0xc0] sm:$0xff]
      %v3454 = vld [vmem:[#allocation2 + $0xc8] sm:$0xff]
      %v3455 = vld [vmem:[#allocation2 + $0xd0] sm:$0xff]
      %v3456 = vld [vmem:[#allocation2 + $0xd8] sm:$0xff]
      %v3457 = vld [vmem:[#allocation2 + $0xe0] sm:$0xff]
      %v3458 = vld [vmem:[#allocation2 + $0xe8] sm:$0xff]
      %v3459 = vld [vmem:[#allocation2 + $0xf0] sm:$0xff]
      %v3460 = vld [vmem:[#allocation2 + $0xf8] sm:$0xff]
      %v3461 = vld [vmem:[#allocation2 + $0x100] sm:$0xff]
      %v3462 = vld [vmem:[#allocation2 + $0x108] sm:$0xff]
      %v3463 = vld [vmem:[#allocation2 + $0x110] sm:$0xff]
      %v3464 = vld [vmem:[#allocation2 + $0x118] sm:$0xff]
      %s3465 = scalar_lea.vmem %s1, 32
      %v3466 = vld [vmem:[%s3465] sm:$0xf]
      %v3468 = vsel %vm300, %v3393, 0
      %v3471 = vsel %vm300, %v3394, 0
      %v3474 = vsel %vm300, %v3395, 0
      %v3477 = vsel %vm300, %v3396, 0
      %v3480 = vsel %vm300, %v3397, 0
      %v3483 = vsel %vm300, %v3398, 0
      %v3486 = vsel %vm300, %v3399, 0
      %v3489 = vsel %vm300, %v3400, 0
      %v3492 = vsel %vm300, %v3401, 0
      %v3495 = vsel %vm300, %v3402, 0
      %v3498 = vsel %vm300, %v3403, 0
      %v3501 = vsel %vm300, %v3404, 0
      %v3504 = vsel %vm300, %v3405, 0
      %v3507 = vsel %vm300, %v3406, 0
      %v3510 = vsel %vm300, %v3407, 0
      %v3513 = vsel %vm300, %v3408, 0
      %v3516 = vsel %vm300, %v3409, 0
      %v3519 = vsel %vm300, %v3410, 0
      %v3522 = vsel %vm300, %v3411, 0
      %v3525 = vsel %vm300, %v3412, 0
      %v3528 = vsel %vm300, %v3413, 0
      %v3531 = vsel %vm300, %v3414, 0
      %v3534 = vsel %vm300, %v3415, 0
      %v3537 = vsel %vm300, %v3416, 0
      %v3540 = vsel %vm300, %v3417, 0
      %v3543 = vsel %vm300, %v3418, 0
      %v3546 = vsel %vm300, %v3419, 0
      %v3549 = vsel %vm300, %v3420, 0
      %v3552 = vsel %vm300, %v3421, 0
      %v3555 = vsel %vm300, %v3422, 0
      %v3558 = vsel %vm300, %v3423, 0
      %v3561 = vsel %vm300, %v3424, 0
      %v3564 = vsel %vm300, %v3425, 0
      %v3567 = vsel %vm300, %v3426, 0
      %v3570 = vsel %vm300, %v3427, 0
      %v3573 = vsel %vm300, %v3428, 0
      %v3576 = vsel %vm518, %v3466, 0
      %3578 = vmatpush.msra.mxu0 0.0
      %3579 = vmatpush.msra.mxu0 0.0
      %3580 = vmatpush.msra.mxu0 0.0
      %3581 = vmatpush.msra.mxu0 0.0
      %3582 = vmatpush.msra.mxu0 0.0
      %3583 = vmatpush.msra.mxu0 0.0
      %3584 = vmatpush.msra.mxu0 0.0
      %3585 = vmatpush.msra.mxu0 0.0
      %3586 = vmatpush.msra.mxu0 0.0
      %3587 = vmatpush.msra.mxu0 0.0
      %3588 = vmatpush.msra.mxu0 0.0
      %3589 = vmatpush.msra.mxu0 0.0
      %3590 = vmatpush.msra.mxu0 0.0
      %3591 = vmatpush.msra.mxu0 0.0
      %3592 = vmatpush.msra.mxu0 0.0
      %3593 = vmatpush.msra.mxu0 %v3576
      %3594 = vmatmul.f32.gmra.mxu0 %v3468
      %v3595 = vpop.f32.mrf.mxu0
      %v3596 = vadd.f32 0.0, %v3595
      %3597 = vmatmul.f32.gmra.mxu0 %v3471
      %v3598 = vpop.f32.mrf.mxu0
      %v3599 = vadd.f32 0.0, %v3598
      %3600 = vmatmul.f32.gmra.mxu0 %v3474
      %v3601 = vpop.f32.mrf.mxu0
      %v3602 = vadd.f32 0.0, %v3601
      %3603 = vmatmul.f32.gmra.mxu0 %v3477
      %v3604 = vpop.f32.mrf.mxu0
      %v3605 = vadd.f32 0.0, %v3604
      %3606 = vmatmul.f32.gmra.mxu0 %v3480
      %v3607 = vpop.f32.mrf.mxu0
      %v3608 = vadd.f32 0.0, %v3607
      %3609 = vmatmul.f32.gmra.mxu0 %v3483
      %v3610 = vpop.f32.mrf.mxu0
      %v3611 = vadd.f32 0.0, %v3610
      %3612 = vmatmul.f32.gmra.mxu0 %v3486
      %v3613 = vpop.f32.mrf.mxu0
      %v3614 = vadd.f32 0.0, %v3613
      %3615 = vmatmul.f32.gmra.mxu0 %v3489
      %v3616 = vpop.f32.mrf.mxu0
      %v3617 = vadd.f32 0.0, %v3616
      %3618 = vmatmul.f32.gmra.mxu0 %v3492
      %v3619 = vpop.f32.mrf.mxu0
      %v3620 = vadd.f32 0.0, %v3619
      %3621 = vmatmul.f32.gmra.mxu0 %v3495
      %v3622 = vpop.f32.mrf.mxu0
      %v3623 = vadd.f32 0.0, %v3622
      %3624 = vmatmul.f32.gmra.mxu0 %v3498
      %v3625 = vpop.f32.mrf.mxu0
      %v3626 = vadd.f32 0.0, %v3625
      %3627 = vmatmul.f32.gmra.mxu0 %v3501
      %v3628 = vpop.f32.mrf.mxu0
      %v3629 = vadd.f32 0.0, %v3628
      %3630 = vmatmul.f32.gmra.mxu0 %v3504
      %v3631 = vpop.f32.mrf.mxu0
      %v3632 = vadd.f32 0.0, %v3631
      %3633 = vmatmul.f32.gmra.mxu0 %v3507
      %v3634 = vpop.f32.mrf.mxu0
      %v3635 = vadd.f32 0.0, %v3634
      %3636 = vmatmul.f32.gmra.mxu0 %v3510
      %v3637 = vpop.f32.mrf.mxu0
      %v3638 = vadd.f32 0.0, %v3637
      %3639 = vmatmul.f32.gmra.mxu0 %v3513
      %v3640 = vpop.f32.mrf.mxu0
      %v3641 = vadd.f32 0.0, %v3640
      %3642 = vmatmul.f32.gmra.mxu0 %v3516
      %v3643 = vpop.f32.mrf.mxu0
      %v3644 = vadd.f32 0.0, %v3643
      %3645 = vmatmul.f32.gmra.mxu0 %v3519
      %v3646 = vpop.f32.mrf.mxu0
      %v3647 = vadd.f32 0.0, %v3646
      %3648 = vmatmul.f32.gmra.mxu0 %v3522
      %v3649 = vpop.f32.mrf.mxu0
      %v3650 = vadd.f32 0.0, %v3649
      %3651 = vmatmul.f32.gmra.mxu0 %v3525
      %v3652 = vpop.f32.mrf.mxu0
      %v3653 = vadd.f32 0.0, %v3652
      %3654 = vmatmul.f32.gmra.mxu0 %v3528
      %v3655 = vpop.f32.mrf.mxu0
      %v3656 = vadd.f32 0.0, %v3655
      %3657 = vmatmul.f32.gmra.mxu0 %v3531
      %v3658 = vpop.f32.mrf.mxu0
      %v3659 = vadd.f32 0.0, %v3658
      %3660 = vmatmul.f32.gmra.mxu0 %v3534
      %v3661 = vpop.f32.mrf.mxu0
      %v3662 = vadd.f32 0.0, %v3661
      %3663 = vmatmul.f32.gmra.mxu0 %v3537
      %v3664 = vpop.f32.mrf.mxu0
      %v3665 = vadd.f32 0.0, %v3664
      %3666 = vmatmul.f32.gmra.mxu0 %v3540
      %v3667 = vpop.f32.mrf.mxu0
      %v3668 = vadd.f32 0.0, %v3667
      %3669 = vmatmul.f32.gmra.mxu0 %v3543
      %v3670 = vpop.f32.mrf.mxu0
      %v3671 = vadd.f32 0.0, %v3670
      %3672 = vmatmul.f32.gmra.mxu0 %v3546
      %v3673 = vpop.f32.mrf.mxu0
      %v3674 = vadd.f32 0.0, %v3673
      %3675 = vmatmul.f32.gmra.mxu0 %v3549
      %v3676 = vpop.f32.mrf.mxu0
      %v3677 = vadd.f32 0.0, %v3676
      %3678 = vmatmul.f32.gmra.mxu0 %v3552
      %v3679 = vpop.f32.mrf.mxu0
      %v3680 = vadd.f32 0.0, %v3679
      %3681 = vmatmul.f32.gmra.mxu0 %v3555
      %v3682 = vpop.f32.mrf.mxu0
      %v3683 = vadd.f32 0.0, %v3682
      %3684 = vmatmul.f32.gmra.mxu0 %v3558
      %v3685 = vpop.f32.mrf.mxu0
      %v3686 = vadd.f32 0.0, %v3685
      %3687 = vmatmul.f32.gmra.mxu0 %v3561
      %v3688 = vpop.f32.mrf.mxu0
      %v3689 = vadd.f32 0.0, %v3688
      %3690 = vmatmul.f32.gmra.mxu0 %v3564
      %v3691 = vpop.f32.mrf.mxu0
      %v3692 = vadd.f32 0.0, %v3691
      %3693 = vmatmul.f32.gmra.mxu0 %v3567
      %v3694 = vpop.f32.mrf.mxu0
      %v3695 = vadd.f32 0.0, %v3694
      %3696 = vmatmul.f32.gmra.mxu0 %v3570
      %v3697 = vpop.f32.mrf.mxu0
      %v3698 = vadd.f32 0.0, %v3697
      %3699 = vmatmul.f32.gmra.mxu0 %v3573
      %v3700 = vpop.f32.mrf.mxu0
      %v3701 = vadd.f32 0.0, %v3700
      %3702 = vdwg.mxu0
      %v3703 = vadd.f32 %v3429, %v3596
      %v3704 = vadd.f32 %v3430, %v3599
      %v3705 = vadd.f32 %v3431, %v3602
      %v3706 = vadd.f32 %v3432, %v3605
      %v3707 = vadd.f32 %v3433, %v3608
      %v3708 = vadd.f32 %v3434, %v3611
      %v3709 = vadd.f32 %v3435, %v3614
      %v3710 = vadd.f32 %v3436, %v3617
      %v3711 = vadd.f32 %v3437, %v3620
      %v3712 = vadd.f32 %v3438, %v3623
      %v3713 = vadd.f32 %v3439, %v3626
      %v3714 = vadd.f32 %v3440, %v3629
      %v3715 = vadd.f32 %v3441, %v3632
      %v3716 = vadd.f32 %v3442, %v3635
      %v3717 = vadd.f32 %v3443, %v3638
      %v3718 = vadd.f32 %v3444, %v3641
      %v3719 = vadd.f32 %v3445, %v3644
      %v3720 = vadd.f32 %v3446, %v3647
      %v3721 = vadd.f32 %v3447, %v3650
      %v3722 = vadd.f32 %v3448, %v3653
      %v3723 = vadd.f32 %v3449, %v3656
      %v3724 = vadd.f32 %v3450, %v3659
      %v3725 = vadd.f32 %v3451, %v3662
      %v3726 = vadd.f32 %v3452, %v3665
      %v3727 = vadd.f32 %v3453, %v3668
      %v3728 = vadd.f32 %v3454, %v3671
      %v3729 = vadd.f32 %v3455, %v3674
      %v3730 = vadd.f32 %v3456, %v3677
      %v3731 = vadd.f32 %v3457, %v3680
      %v3732 = vadd.f32 %v3458, %v3683
      %v3733 = vadd.f32 %v3459, %v3686
      %v3734 = vadd.f32 %v3460, %v3689
      %v3735 = vadd.f32 %v3461, %v3692
      %v3736 = vadd.f32 %v3462, %v3695
      %v3737 = vadd.f32 %v3463, %v3698
      %v3738 = vadd.f32 %v3464, %v3701
      %3739 = vst.msk [vmem:[#allocation2] sm:$0xff] %vm300, %v3703
      %3740 = vst.msk [vmem:[#allocation2 + $0x8] sm:$0xff] %vm300, %v3704
      %3741 = vst.msk [vmem:[#allocation2 + $0x10] sm:$0xff] %vm300, %v3705
      %3742 = vst.msk [vmem:[#allocation2 + $0x18] sm:$0xff] %vm300, %v3706
      %3743 = vst.msk [vmem:[#allocation2 + $0x20] sm:$0xff] %vm300, %v3707
      %3744 = vst.msk [vmem:[#allocation2 + $0x28] sm:$0xff] %vm300, %v3708
      %3745 = vst.msk [vmem:[#allocation2 + $0x30] sm:$0xff] %vm300, %v3709
      %3746 = vst.msk [vmem:[#allocation2 + $0x38] sm:$0xff] %vm300, %v3710
      %3747 = vst.msk [vmem:[#allocation2 + $0x40] sm:$0xff] %vm300, %v3711
      %3748 = vst.msk [vmem:[#allocation2 + $0x48] sm:$0xff] %vm300, %v3712
      %3749 = vst.msk [vmem:[#allocation2 + $0x50] sm:$0xff] %vm300, %v3713
      %3750 = vst.msk [vmem:[#allocation2 + $0x58] sm:$0xff] %vm300, %v3714
      %3751 = vst.msk [vmem:[#allocation2 + $0x60] sm:$0xff] %vm300, %v3715
      %3752 = vst.msk [vmem:[#allocation2 + $0x68] sm:$0xff] %vm300, %v3716
      %3753 = vst.msk [vmem:[#allocation2 + $0x70] sm:$0xff] %vm300, %v3717
      %3754 = vst.msk [vmem:[#allocation2 + $0x78] sm:$0xff] %vm300, %v3718
      %3755 = vst.msk [vmem:[#allocation2 + $0x80] sm:$0xff] %vm300, %v3719
      %3756 = vst.msk [vmem:[#allocation2 + $0x88] sm:$0xff] %vm300, %v3720
      %3757 = vst.msk [vmem:[#allocation2 + $0x90] sm:$0xff] %vm300, %v3721
      %3758 = vst.msk [vmem:[#allocation2 + $0x98] sm:$0xff] %vm300, %v3722
      %3759 = vst.msk [vmem:[#allocation2 + $0xa0] sm:$0xff] %vm300, %v3723
      %3760 = vst.msk [vmem:[#allocation2 + $0xa8] sm:$0xff] %vm300, %v3724
      %3761 = vst.msk [vmem:[#allocation2 + $0xb0] sm:$0xff] %vm300, %v3725
      %3762 = vst.msk [vmem:[#allocation2 + $0xb8] sm:$0xff] %vm300, %v3726
      %3763 = vst.msk [vmem:[#allocation2 + $0xc0] sm:$0xff] %vm300, %v3727
      %3764 = vst.msk [vmem:[#allocation2 + $0xc8] sm:$0xff] %vm300, %v3728
      %3765 = vst.msk [vmem:[#allocation2 + $0xd0] sm:$0xff] %vm300, %v3729
      %3766 = vst.msk [vmem:[#allocation2 + $0xd8] sm:$0xff] %vm300, %v3730
      %3767 = vst.msk [vmem:[#allocation2 + $0xe0] sm:$0xff] %vm300, %v3731
      %3768 = vst.msk [vmem:[#allocation2 + $0xe8] sm:$0xff] %vm300, %v3732
      %3769 = vst.msk [vmem:[#allocation2 + $0xf0] sm:$0xff] %vm300, %v3733
      %3770 = vst.msk [vmem:[#allocation2 + $0xf8] sm:$0xff] %vm300, %v3734
      %3771 = vst.msk [vmem:[#allocation2 + $0x100] sm:$0xff] %vm300, %v3735
      %3772 = vst.msk [vmem:[#allocation2 + $0x108] sm:$0xff] %vm300, %v3736
      %3773 = vst.msk [vmem:[#allocation2 + $0x110] sm:$0xff] %vm300, %v3737
      %3774 = vst.msk [vmem:[#allocation2 + $0x118] sm:$0xff] %vm300, %v3738
      %v3775 = vld [vmem:[#allocation2] sm:$0xff]
      %v3776 = vld [vmem:[#allocation2 + $0x8] sm:$0xff]
      %v3777 = vld [vmem:[#allocation2 + $0x10] sm:$0xff]
      %v3778 = vld [vmem:[#allocation2 + $0x18] sm:$0xff]
      %v3779 = vld [vmem:[#allocation2 + $0x20] sm:$0xff]
      %v3780 = vld [vmem:[#allocation2 + $0x28] sm:$0xff]
      %v3781 = vld [vmem:[#allocation2 + $0x30] sm:$0xff]
      %v3782 = vld [vmem:[#allocation2 + $0x38] sm:$0xff]
      %v3783 = vld [vmem:[#allocation2 + $0x40] sm:$0xff]
      %v3784 = vld [vmem:[#allocation2 + $0x48] sm:$0xff]
      %v3785 = vld [vmem:[#allocation2 + $0x50] sm:$0xff]
      %v3786 = vld [vmem:[#allocation2 + $0x58] sm:$0xff]
      %v3787 = vld [vmem:[#allocation2 + $0x60] sm:$0xff]
      %v3788 = vld [vmem:[#allocation2 + $0x68] sm:$0xff]
      %v3789 = vld [vmem:[#allocation2 + $0x70] sm:$0xff]
      %v3790 = vld [vmem:[#allocation2 + $0x78] sm:$0xff]
      %v3791 = vld [vmem:[#allocation2 + $0x80] sm:$0xff]
      %v3792 = vld [vmem:[#allocation2 + $0x88] sm:$0xff]
      %v3793 = vld [vmem:[#allocation2 + $0x90] sm:$0xff]
      %v3794 = vld [vmem:[#allocation2 + $0x98] sm:$0xff]
      %v3795 = vld [vmem:[#allocation2 + $0xa0] sm:$0xff]
      %v3796 = vld [vmem:[#allocation2 + $0xa8] sm:$0xff]
      %v3797 = vld [vmem:[#allocation2 + $0xb0] sm:$0xff]
      %v3798 = vld [vmem:[#allocation2 + $0xb8] sm:$0xff]
      %v3799 = vld [vmem:[#allocation2 + $0xc0] sm:$0xff]
      %v3800 = vld [vmem:[#allocation2 + $0xc8] sm:$0xff]
      %v3801 = vld [vmem:[#allocation2 + $0xd0] sm:$0xff]
      %v3802 = vld [vmem:[#allocation2 + $0xd8] sm:$0xff]
      %v3803 = vld [vmem:[#allocation2 + $0xe0] sm:$0xff]
      %v3804 = vld [vmem:[#allocation2 + $0xe8] sm:$0xff]
      %v3805 = vld [vmem:[#allocation2 + $0xf0] sm:$0xff]
      %v3806 = vld [vmem:[#allocation2 + $0xf8] sm:$0xff]
      %v3807 = vld [vmem:[#allocation2 + $0x100] sm:$0xff]
      %v3808 = vld [vmem:[#allocation2 + $0x108] sm:$0xff]
      %v3809 = vld [vmem:[#allocation2 + $0x110] sm:$0xff]
      %v3810 = vld [vmem:[#allocation2 + $0x118] sm:$0xff]
      %v3811 = vld [vmem:[%s4] sm:$0x7]
      %v3813 = vperm.slane %v3811, 0
      %v3814 = vperm.slane %v3811, 1
      %v3815 = vperm.slane %v3811, 2
      %vm3818 = vcmask 261120
      %v3819 = vsel %vm3818, %v3815, 0
      %3821 = vmatpush.msra.mxu0 %v3790
      %3822 = vmatpush.msra.mxu0 %v3789
      %3823 = vmatpush.msra.mxu0 %v3788
      %3824 = vmatpush.msra.mxu0 %v3787
      %3825 = vmatpush.msra.mxu0 %v3786
      %3826 = vmatpush.msra.mxu0 %v3785
      %3827 = vmatpush.msra.mxu0 %v3784
      %3828 = vmatpush.msra.mxu0 %v3783
      %3829 = vmatpush.msra.mxu0 %v3782
      %3830 = vmatpush.msra.mxu0 %v3781
      %3831 = vmatpush.msra.mxu0 %v3780
      %3832 = vmatpush.msra.mxu0 %v3779
      %3833 = vmatpush.msra.mxu0 %v3778
      %3834 = vmatpush.msra.mxu0 %v3777
      %3835 = vmatpush.msra.mxu0 %v3776
      %3836 = vmatpush.msra.mxu0 %v3775
      %3837 = vmatmul.f32.gmra.mxu0 %v3813
      %v3838 = vpop.f32.mrf.mxu0
      %v3839 = vadd.f32 0.0, %v3838
      %3840 = vdwg.mxu0
      %3841 = vmatpush.msra.mxu0 %v3806
      %3842 = vmatpush.msra.mxu0 %v3805
      %3843 = vmatpush.msra.mxu0 %v3804
      %3844 = vmatpush.msra.mxu0 %v3803
      %3845 = vmatpush.msra.mxu0 %v3802
      %3846 = vmatpush.msra.mxu0 %v3801
      %3847 = vmatpush.msra.mxu0 %v3800
      %3848 = vmatpush.msra.mxu0 %v3799
      %3849 = vmatpush.msra.mxu0 %v3798
      %3850 = vmatpush.msra.mxu0 %v3797
      %3851 = vmatpush.msra.mxu0 %v3796
      %3852 = vmatpush.msra.mxu0 %v3795
      %3853 = vmatpush.msra.mxu0 %v3794
      %3854 = vmatpush.msra.mxu0 %v3793
      %3855 = vmatpush.msra.mxu0 %v3792
      %3856 = vmatpush.msra.mxu0 %v3791
      %3857 = vmatmul.f32.gmra.mxu0 %v3814
      %v3858 = vpop.f32.mrf.mxu0
      %v3859 = vadd.f32 %v3839, %v3858
      %3860 = vdwg.mxu0
      %3861 = vmatpush.msra.mxu0 0.0
      %3862 = vmatpush.msra.mxu0 0.0
      %3863 = vmatpush.msra.mxu0 0.0
      %3864 = vmatpush.msra.mxu0 0.0
      %3865 = vmatpush.msra.mxu0 0.0
      %3866 = vmatpush.msra.mxu0 0.0
      %3867 = vmatpush.msra.mxu0 0.0
      %3868 = vmatpush.msra.mxu0 0.0
      %3869 = vmatpush.msra.mxu0 0.0
      %3870 = vmatpush.msra.mxu0 0.0
      %3871 = vmatpush.msra.mxu0 0.0
      %3872 = vmatpush.msra.mxu0 0.0
      %3873 = vmatpush.msra.mxu0 %v3810
      %3874 = vmatpush.msra.mxu0 %v3809
      %3875 = vmatpush.msra.mxu0 %v3808
      %3876 = vmatpush.msra.mxu0 %v3807
      %3877 = vmatmul.f32.gmra.mxu0 %v3819
      %v3878 = vpop.f32.mrf.mxu0
      %v3879 = vadd.f32 %v3859, %v3878
      %3880 = vdwg.mxu0
      %v3881 = vmul.f32 %v3879, 0.00390625
      %v3882 = vmul.f32 %v3775, %v3775
      %v3883 = vmul.f32 %v3776, %v3776
      %v3884 = vmul.f32 %v3777, %v3777
      %v3885 = vmul.f32 %v3778, %v3778
      %v3886 = vmul.f32 %v3779, %v3779
      %v3887 = vmul.f32 %v3780, %v3780
      %v3888 = vmul.f32 %v3781, %v3781
      %v3889 = vmul.f32 %v3782, %v3782
      %v3890 = vmul.f32 %v3783, %v3783
      %v3891 = vmul.f32 %v3784, %v3784
      %v3892 = vmul.f32 %v3785, %v3785
      %v3893 = vmul.f32 %v3786, %v3786
      %v3894 = vmul.f32 %v3787, %v3787
      %v3895 = vmul.f32 %v3788, %v3788
      %v3896 = vmul.f32 %v3789, %v3789
      %v3897 = vmul.f32 %v3790, %v3790
      %v3898 = vmul.f32 %v3791, %v3791
      %v3899 = vmul.f32 %v3792, %v3792
      %v3900 = vmul.f32 %v3793, %v3793
      %v3901 = vmul.f32 %v3794, %v3794
      %v3902 = vmul.f32 %v3795, %v3795
      %v3903 = vmul.f32 %v3796, %v3796
      %v3904 = vmul.f32 %v3797, %v3797
      %v3905 = vmul.f32 %v3798, %v3798
      %v3906 = vmul.f32 %v3799, %v3799
      %v3907 = vmul.f32 %v3800, %v3800
      %v3908 = vmul.f32 %v3801, %v3801
      %v3909 = vmul.f32 %v3802, %v3802
      %v3910 = vmul.f32 %v3803, %v3803
      %v3911 = vmul.f32 %v3804, %v3804
      %v3912 = vmul.f32 %v3805, %v3805
      %v3913 = vmul.f32 %v3806, %v3806
      %v3914 = vmul.f32 %v3807, %v3807
      %v3915 = vmul.f32 %v3808, %v3808
      %v3916 = vmul.f32 %v3809, %v3809
      %v3917 = vmul.f32 %v3810, %v3810
      %3918 = vmatpush.msra.mxu0 %v3897
      %3919 = vmatpush.msra.mxu0 %v3896
      %3920 = vmatpush.msra.mxu0 %v3895
      %3921 = vmatpush.msra.mxu0 %v3894
      %3922 = vmatpush.msra.mxu0 %v3893
      %3923 = vmatpush.msra.mxu0 %v3892
      %3924 = vmatpush.msra.mxu0 %v3891
      %3925 = vmatpush.msra.mxu0 %v3890
      %3926 = vmatpush.msra.mxu0 %v3889
      %3927 = vmatpush.msra.mxu0 %v3888
      %3928 = vmatpush.msra.mxu0 %v3887
      %3929 = vmatpush.msra.mxu0 %v3886
      %3930 = vmatpush.msra.mxu0 %v3885
      %3931 = vmatpush.msra.mxu0 %v3884
      %3932 = vmatpush.msra.mxu0 %v3883
      %3933 = vmatpush.msra.mxu0 %v3882
      %3934 = vmatmul.f32.gmra.mxu0 %v3813
      %v3935 = vpop.f32.mrf.mxu0
      %v3936 = vadd.f32 0.0, %v3935
      %3937 = vdwg.mxu0
      %3938 = vmatpush.msra.mxu0 %v3913
      %3939 = vmatpush.msra.mxu0 %v3912
      %3940 = vmatpush.msra.mxu0 %v3911
      %3941 = vmatpush.msra.mxu0 %v3910
      %3942 = vmatpush.msra.mxu0 %v3909
      %3943 = vmatpush.msra.mxu0 %v3908
      %3944 = vmatpush.msra.mxu0 %v3907
      %3945 = vmatpush.msra.mxu0 %v3906
      %3946 = vmatpush.msra.mxu0 %v3905
      %3947 = vmatpush.msra.mxu0 %v3904
      %3948 = vmatpush.msra.mxu0 %v3903
      %3949 = vmatpush.msra.mxu0 %v3902
      %3950 = vmatpush.msra.mxu0 %v3901
      %3951 = vmatpush.msra.mxu0 %v3900
      %3952 = vmatpush.msra.mxu0 %v3899
      %3953 = vmatpush.msra.mxu0 %v3898
      %3954 = vmatmul.f32.gmra.mxu0 %v3814
      %v3955 = vpop.f32.mrf.mxu0
      %v3956 = vadd.f32 %v3936, %v3955
      %3957 = vdwg.mxu0
      %3958 = vmatpush.msra.mxu0 0.0
      %3959 = vmatpush.msra.mxu0 0.0
      %3960 = vmatpush.msra.mxu0 0.0
      %3961 = vmatpush.msra.mxu0 0.0
      %3962 = vmatpush.msra.mxu0 0.0
      %3963 = vmatpush.msra.mxu0 0.0
      %3964 = vmatpush.msra.mxu0 0.0
      %3965 = vmatpush.msra.mxu0 0.0
      %3966 = vmatpush.msra.mxu0 0.0
      %3967 = vmatpush.msra.mxu0 0.0
      %3968 = vmatpush.msra.mxu0 0.0
      %3969 = vmatpush.msra.mxu0 0.0
      %3970 = vmatpush.msra.mxu0 %v3917
      %3971 = vmatpush.msra.mxu0 %v3916
      %3972 = vmatpush.msra.mxu0 %v3915
      %3973 = vmatpush.msra.mxu0 %v3914
      %3974 = vmatmul.f32.gmra.mxu0 %v3819
      %v3975 = vpop.f32.mrf.mxu0
      %v3976 = vadd.f32 %v3956, %v3975
      %3977 = vdwg.mxu0
      %v3978 = vmul.f32 %v3976, 0.00390625
      %v3979 = vmul.f32 %v3881, %v3881
      %v3980 = vsub.f32 %v3978, %v3979
      %v3981 = vadd.f32 %v3980, 1e-08
      %v3982 = vrsqrt.pop %v3981
      %v3983 = vmul.f32 %v3982, %v3981
      %v3984 = vmul.f32 %v3983, %v3982
      %v3985 = vmul.f32 0.5, %v3984
      %v3986 = vsub.f32 1.5, %v3985
      %v3987 = vmul.f32 %v3982, %v3986
      %vm3988 = vweird.f32 %v3981
      %vm3989 = vweird.f32 %v3982
      %vm3990 = vmor %vm3988, %vm3989
      %v3991 = vsel %vm3990, %v3982, %v3987
      %v3992 = vld [vmem:[%s286] sm:$0x1]
      %v3993 = vmul.f32 %v3991, %v3992
      %v3994 = vld [vmem:[%s289] sm:$0x1]
      %v3995 = vmul.f32 %v3881, %v3993
      %v3996 = vsub.f32 %v3994, %v3995
      %v3997 = vperm.slane %v3993, 0
      %v3998 = vmul.f32 %v3775, %v3997
      %v3999 = vmul.f32 %v3776, %v3997
      %v4000 = vmul.f32 %v3777, %v3997
      %v4001 = vmul.f32 %v3778, %v3997
      %v4002 = vmul.f32 %v3779, %v3997
      %v4003 = vmul.f32 %v3780, %v3997
      %v4004 = vmul.f32 %v3781, %v3997
      %v4005 = vmul.f32 %v3782, %v3997
      %v4006 = vmul.f32 %v3783, %v3997
      %v4007 = vmul.f32 %v3784, %v3997
      %v4008 = vmul.f32 %v3785, %v3997
      %v4009 = vmul.f32 %v3786, %v3997
      %v4010 = vmul.f32 %v3787, %v3997
      %v4011 = vmul.f32 %v3788, %v3997
      %v4012 = vmul.f32 %v3789, %v3997
      %v4013 = vmul.f32 %v3790, %v3997
      %v4014 = vmul.f32 %v3791, %v3997
      %v4015 = vmul.f32 %v3792, %v3997
      %v4016 = vmul.f32 %v3793, %v3997
      %v4017 = vmul.f32 %v3794, %v3997
      %v4018 = vmul.f32 %v3795, %v3997
      %v4019 = vmul.f32 %v3796, %v3997
      %v4020 = vmul.f32 %v3797, %v3997
      %v4021 = vmul.f32 %v3798, %v3997
      %v4022 = vmul.f32 %v3799, %v3997
      %v4023 = vmul.f32 %v3800, %v3997
      %v4024 = vmul.f32 %v3801, %v3997
      %v4025 = vmul.f32 %v3802, %v3997
      %v4026 = vmul.f32 %v3803, %v3997
      %v4027 = vmul.f32 %v3804, %v3997
      %v4028 = vmul.f32 %v3805, %v3997
      %v4029 = vmul.f32 %v3806, %v3997
      %v4030 = vmul.f32 %v3807, %v3997
      %v4031 = vmul.f32 %v3808, %v3997
      %v4032 = vmul.f32 %v3809, %v3997
      %v4033 = vmul.f32 %v3810, %v3997
      %v4035 = vperm.slane %v3996, 0
      %v4037 = vadd.f32 %v3998, %v4035
      %v4038 = vadd.f32 %v3999, %v4035
      %v4039 = vadd.f32 %v4000, %v4035
      %v4040 = vadd.f32 %v4001, %v4035
      %v4041 = vadd.f32 %v4002, %v4035
      %v4042 = vadd.f32 %v4003, %v4035
      %v4043 = vadd.f32 %v4004, %v4035
      %v4044 = vadd.f32 %v4005, %v4035
      %v4045 = vadd.f32 %v4006, %v4035
      %v4046 = vadd.f32 %v4007, %v4035
      %v4047 = vadd.f32 %v4008, %v4035
      %v4048 = vadd.f32 %v4009, %v4035
      %v4049 = vadd.f32 %v4010, %v4035
      %v4050 = vadd.f32 %v4011, %v4035
      %v4051 = vadd.f32 %v4012, %v4035
      %v4052 = vadd.f32 %v4013, %v4035
      %v4053 = vadd.f32 %v4014, %v4035
      %v4054 = vadd.f32 %v4015, %v4035
      %v4055 = vadd.f32 %v4016, %v4035
      %v4056 = vadd.f32 %v4017, %v4035
      %v4057 = vadd.f32 %v4018, %v4035
      %v4058 = vadd.f32 %v4019, %v4035
      %v4059 = vadd.f32 %v4020, %v4035
      %v4060 = vadd.f32 %v4021, %v4035
      %v4061 = vadd.f32 %v4022, %v4035
      %v4062 = vadd.f32 %v4023, %v4035
      %v4063 = vadd.f32 %v4024, %v4035
      %v4064 = vadd.f32 %v4025, %v4035
      %v4065 = vadd.f32 %v4026, %v4035
      %v4066 = vadd.f32 %v4027, %v4035
      %v4067 = vadd.f32 %v4028, %v4035
      %v4068 = vadd.f32 %v4029, %v4035
      %v4069 = vadd.f32 %v4030, %v4035
      %v4070 = vadd.f32 %v4031, %v4035
      %v4071 = vadd.f32 %v4032, %v4035
      %v4072 = vadd.f32 %v4033, %v4035
      %v4073 = vld [vmem:[%s294 + $0x13] sm:$0xff]
      %v4074 = vld [vmem:[%s294 + $0x1b] sm:$0xff]
      %v4075 = vld [vmem:[%s294 + $0x23] sm:$0xff]
      %v4076 = vld [vmem:[%s294 + $0x2b] sm:$0xff]
      %v4077 = vld [vmem:[%s294 + $0x33] sm:$0xff]
      %v4078 = vld [vmem:[%s294 + $0x3b] sm:$0xff]
      %v4079 = vld [vmem:[%s294 + $0x43] sm:$0xff]
      %v4080 = vld [vmem:[%s294 + $0x4b] sm:$0xff]
      %v4081 = vld [vmem:[%s294 + $0x53] sm:$0xff]
      %v4082 = vld [vmem:[%s294 + $0x5b] sm:$0xff]
      %v4083 = vld [vmem:[%s294 + $0x63] sm:$0xff]
      %v4084 = vld [vmem:[%s294 + $0x6b] sm:$0xff]
      %v4085 = vld [vmem:[%s294 + $0x73] sm:$0xff]
      %v4086 = vld [vmem:[%s294 + $0x7b] sm:$0xff]
      %v4087 = vld [vmem:[%s294 + $0x83] sm:$0xff]
      %v4088 = vld [vmem:[%s294 + $0x8b] sm:$0xff]
      %v4089 = vld [vmem:[%s294 + $0x93] sm:$0xff]
      %v4090 = vld [vmem:[%s294 + $0x9b] sm:$0xff]
      %v4091 = vld [vmem:[%s294 + $0xa3] sm:$0xff]
      %v4092 = vld [vmem:[%s294 + $0xab] sm:$0xff]
      %v4093 = vld [vmem:[%s294 + $0xb3] sm:$0xff]
      %v4094 = vld [vmem:[%s294 + $0xbb] sm:$0xff]
      %v4095 = vld [vmem:[%s294 + $0xc3] sm:$0xff]
      %v4096 = vld [vmem:[%s294 + $0xcb] sm:$0xff]
      %v4097 = vld [vmem:[%s294 + $0xd3] sm:$0xff]
      %v4098 = vld [vmem:[%s294 + $0xdb] sm:$0xff]
      %v4099 = vld [vmem:[%s294 + $0xe3] sm:$0xff]
      %v4100 = vld [vmem:[%s294 + $0xeb] sm:$0xff]
      %v4101 = vld [vmem:[%s294 + $0xf3] sm:$0xff]
      %v4102 = vld [vmem:[%s294 + $0xfb] sm:$0xff]
      %v4103 = vld [vmem:[%s294 + $0x103] sm:$0xff]
      %v4104 = vld [vmem:[%s294 + $0x10b] sm:$0xff]
      %v4105 = vld [vmem:[%s294 + $0x113] sm:$0xff]
      %v4106 = vld [vmem:[%s294 + $0x11b] sm:$0xff]
      %v4107 = vld [vmem:[%s294 + $0x123] sm:$0xff]
      %v4108 = vld [vmem:[%s294 + $0x12b] sm:$0xff]
      %v4109 = vadd.f32 %v4037, %v4073
      %v4110 = vadd.f32 %v4038, %v4074
      %v4111 = vadd.f32 %v4039, %v4075
      %v4112 = vadd.f32 %v4040, %v4076
      %v4113 = vadd.f32 %v4041, %v4077
      %v4114 = vadd.f32 %v4042, %v4078
      %v4115 = vadd.f32 %v4043, %v4079
      %v4116 = vadd.f32 %v4044, %v4080
      %v4117 = vadd.f32 %v4045, %v4081
      %v4118 = vadd.f32 %v4046, %v4082
      %v4119 = vadd.f32 %v4047, %v4083
      %v4120 = vadd.f32 %v4048, %v4084
      %v4121 = vadd.f32 %v4049, %v4085
      %v4122 = vadd.f32 %v4050, %v4086
      %v4123 = vadd.f32 %v4051, %v4087
      %v4124 = vadd.f32 %v4052, %v4088
      %v4125 = vadd.f32 %v4053, %v4089
      %v4126 = vadd.f32 %v4054, %v4090
      %v4127 = vadd.f32 %v4055, %v4091
      %v4128 = vadd.f32 %v4056, %v4092
      %v4129 = vadd.f32 %v4057, %v4093
      %v4130 = vadd.f32 %v4058, %v4094
      %v4131 = vadd.f32 %v4059, %v4095
      %v4132 = vadd.f32 %v4060, %v4096
      %v4133 = vadd.f32 %v4061, %v4097
      %v4134 = vadd.f32 %v4062, %v4098
      %v4135 = vadd.f32 %v4063, %v4099
      %v4136 = vadd.f32 %v4064, %v4100
      %v4137 = vadd.f32 %v4065, %v4101
      %v4138 = vadd.f32 %v4066, %v4102
      %v4139 = vadd.f32 %v4067, %v4103
      %v4140 = vadd.f32 %v4068, %v4104
      %v4141 = vadd.f32 %v4069, %v4105
      %v4142 = vadd.f32 %v4070, %v4106
      %v4143 = vadd.f32 %v4071, %v4107
      %v4144 = vadd.f32 %v4072, %v4108
      %4145 = vst.msk [vmem:[%s299] sm:$0xff] %vm300, %v4109
      %4146 = vst.msk [vmem:[%s299 + $0x8] sm:$0xff] %vm300, %v4110
      %4147 = vst.msk [vmem:[%s299 + $0x10] sm:$0xff] %vm300, %v4111
      %4148 = vst.msk [vmem:[%s299 + $0x18] sm:$0xff] %vm300, %v4112
      %4149 = vst.msk [vmem:[%s299 + $0x20] sm:$0xff] %vm300, %v4113
      %4150 = vst.msk [vmem:[%s299 + $0x28] sm:$0xff] %vm300, %v4114
      %4151 = vst.msk [vmem:[%s299 + $0x30] sm:$0xff] %vm300, %v4115
      %4152 = vst.msk [vmem:[%s299 + $0x38] sm:$0xff] %vm300, %v4116
      %4153 = vst.msk [vmem:[%s299 + $0x40] sm:$0xff] %vm300, %v4117
      %4154 = vst.msk [vmem:[%s299 + $0x48] sm:$0xff] %vm300, %v4118
      %4155 = vst.msk [vmem:[%s299 + $0x50] sm:$0xff] %vm300, %v4119
      %4156 = vst.msk [vmem:[%s299 + $0x58] sm:$0xff] %vm300, %v4120
      %4157 = vst.msk [vmem:[%s299 + $0x60] sm:$0xff] %vm300, %v4121
      %4158 = vst.msk [vmem:[%s299 + $0x68] sm:$0xff] %vm300, %v4122
      %4159 = vst.msk [vmem:[%s299 + $0x70] sm:$0xff] %vm300, %v4123
      %4160 = vst.msk [vmem:[%s299 + $0x78] sm:$0xff] %vm300, %v4124
      %4161 = vst.msk [vmem:[%s299 + $0x80] sm:$0xff] %vm300, %v4125
      %4162 = vst.msk [vmem:[%s299 + $0x88] sm:$0xff] %vm300, %v4126
      %4163 = vst.msk [vmem:[%s299 + $0x90] sm:$0xff] %vm300, %v4127
      %4164 = vst.msk [vmem:[%s299 + $0x98] sm:$0xff] %vm300, %v4128
      %4165 = vst.msk [vmem:[%s299 + $0xa0] sm:$0xff] %vm300, %v4129
      %4166 = vst.msk [vmem:[%s299 + $0xa8] sm:$0xff] %vm300, %v4130
      %4167 = vst.msk [vmem:[%s299 + $0xb0] sm:$0xff] %vm300, %v4131
      %4168 = vst.msk [vmem:[%s299 + $0xb8] sm:$0xff] %vm300, %v4132
      %4169 = vst.msk [vmem:[%s299 + $0xc0] sm:$0xff] %vm300, %v4133
      %4170 = vst.msk [vmem:[%s299 + $0xc8] sm:$0xff] %vm300, %v4134
      %4171 = vst.msk [vmem:[%s299 + $0xd0] sm:$0xff] %vm300, %v4135
      %4172 = vst.msk [vmem:[%s299 + $0xd8] sm:$0xff] %vm300, %v4136
      %4173 = vst.msk [vmem:[%s299 + $0xe0] sm:$0xff] %vm300, %v4137
      %4174 = vst.msk [vmem:[%s299 + $0xe8] sm:$0xff] %vm300, %v4138
      %4175 = vst.msk [vmem:[%s299 + $0xf0] sm:$0xff] %vm300, %v4139
      %4176 = vst.msk [vmem:[%s299 + $0xf8] sm:$0xff] %vm300, %v4140
      %4177 = vst.msk [vmem:[%s299 + $0x100] sm:$0xff] %vm300, %v4141
      %4178 = vst.msk [vmem:[%s299 + $0x108] sm:$0xff] %vm300, %v4142
      %4179 = vst.msk [vmem:[%s299 + $0x110] sm:$0xff] %vm300, %v4143
      %4180 = vst.msk [vmem:[%s299 + $0x118] sm:$0xff] %vm300, %v4144
      %p4181 = scmp.lt.s32.totalorder %s17, 1
      %s4182 = scalar_select %p4181, %s17, 1
      %s4183 = smul.addr %s4182, 36
      %s4184 = smul.addr %s4183, 8
      %s4185 = scalar_lea.vmem %s6, %s4184
      // Predicated region
      $region45: #{resnet_block_adain.3} parent=43 // pred_check
        %p4186 = pneg %p181
      $region46: #{resnet_block_adain.3} parent=43 // pred_check_branch
        %4188 = sbr.rel (%p4186) target = $region48
      $region47: #{resnet_block_adain.3} parent=43 // pred_region
        _
      $region48: #{resnet_block_adain.3} parent=43 // pred_fallthru
        _
    $region44: #{resnet_block_adain.3} parent=5 // pred_fallthru
      _
    %p4189 = scmp.le.s32.totalorder 2, %s12
    // Predicated region
    $region49: #{resnet_block_adain.3} parent=5 // pred_check
      %p4190 = pneg %p4189
    $region50: #{resnet_block_adain.3} parent=5 // pred_check_branch
      %4192 = sbr.rel (%p4190) target = $region52
    $region51: #{resnet_block_adain.3} parent=5 // pred_region
      %s4193 = ssub.s32 %s12, 2
      // Predicated region
      $region53: #{resnet_block_adain.3} parent=51 // pred_check
        %p4194 = pneg %p187
      $region54: #{resnet_block_adain.3} parent=51 // pred_check_branch
        %4196 = sbr.rel (%p4194) target = $region56
      $region55: #{resnet_block_adain.3} parent=51 // pred_region
        %p4197 = scmp.lt.s32.totalorder %s18, 1
        %s4198 = scalar_select %p4197, %s18, 1
        %s4199 = smul.addr %s4198, 36
        %s4200 = smul.addr %s4199, 8
        %s4201 = scalar_lea.vmem %s6, %s4200
      $region56: #{resnet_block_adain.3} parent=51 // pred_fallthru
        _
    $region52: #{resnet_block_adain.3} parent=5 // pred_fallthru
      _
  $region6: #{resnet_block_adain.3} parent=0 // loop_footer
    %s16 = sadd.s32 1, %s12
  $region7: #{resnet_block_adain.3} parent=0 // loop_footer_branch
    %11 = sbr.rel target = $region3
  $region8: #{resnet_block_adain.3} parent=0 // loop_exit
    _

</llo_original>
